<compile_context>
chip_gen: v6e
topology: v6e:2x2x1
jax: 0.10.0
libtpu: 0.0.40
codegen_flags: <defaults>
</compile_context>

<pallas_src>
import math
import functools

import jax
import jax.numpy as jnp
from jax import lax
from jax.experimental import pallas as pl
from jax.experimental.pallas import tpu as pltpu

# ------------------------- config (small demo shapes) -------------------------
B = 2            # batch
S = 8            # sequence length (stand-in for max_sequence_length=104)
D = 128          # d_model
H = 8            # num_heads
HD = D // H      # head_dim
FFN = 256        # ffn_hidden
NUM_LAYERS = 1   # num_layers_decoder
LN_EPS = 1e-5    # nn.LayerNorm default eps


# ---------------------- helpers traced inside the kernel ----------------------
def _layernorm(x, g, b):
    mu = jnp.mean(x, axis=-1, keepdims=True)
    xc = x - mu
    var = jnp.mean(xc * xc, axis=-1, keepdims=True)
    return xc * lax.rsqrt(var + LN_EPS) * g + b


def _heads_attention(q_all, k_all, v_all, mask, *, batch, seq, num_heads, head_dim):
    """Per-(batch, head) scaled-dot-product attention.

    q_all/k_all/v_all: (batch*seq, num_heads*head_dim); head h lives in the column
    block [h*head_dim, (h+1)*head_dim).  1/sqrt(d_k) is pre-folded into the Q weights.
    Returns a list of (seq, head_dim) outputs ordered (batch-major, head-minor), i.e.
    the row order of the reference's (B, H, S, HD) value tensor flattened over (b, h).
    """
    qb = q_all.astype(jnp.bfloat16)
    kb = k_all.astype(jnp.bfloat16)
    vb = v_all.astype(jnp.bfloat16)
    outs = []
    for b in range(batch):
        r0 = b * seq
        for h in range(num_heads):
            c0 = h * head_dim
            qh = qb[r0:r0 + seq, c0:c0 + head_dim]
            kh = kb[r0:r0 + seq, c0:c0 + head_dim]
            vh = vb[r0:r0 + seq, c0:c0 + head_dim]
            s = lax.dot_general(qh, kh, (((1,), (1,)), ((), ())),
                                preferred_element_type=jnp.float32)        # (S, S)
            if mask is not None:
                s = s + mask
            s = s - jnp.max(s, axis=-1, keepdims=True)                     # stable softmax
            p = jnp.exp(s)
            p = p * pl.reciprocal(jnp.sum(p, axis=-1, keepdims=True), approx=True)
            outs.append(jnp.dot(p.astype(jnp.bfloat16), vh,
                                preferred_element_type=jnp.float32))       # (S, HD)
    return outs


def _reference_merge(outs, tile_mat, colmask, rowred):
    """Reproduce the reference's (B,H,S,HD) -> (B*S, H*HD) reshape (NO head/seq permute)
    without any row gathers:

        co[m, d]            = head-output element, m = b*H*S + h*S + s
        vals[r, a*HD + d]   = co[r*H + a, d]
        vals = ROWRED @ ((co @ TILE) * COLMASK)

    TILE   (HD, D):      TILE[d, j]   = (j % HD == d)        -> lane-tiles co to width D
    COLMASK(BHS, D):     [m, j]       = (m % H == j // HD)   -> keep only the right block
    ROWRED (BS, BHS):    [r, m]       = (m // H == r)        -> sum groups of H rows
    All data movement happens on the MXU/VPU (no slices, concats along lanes, reshapes).
    """
    co = jnp.concatenate(outs, axis=0)                                      # (B*H*S, HD) f32
    t = jnp.dot(co, tile_mat, preferred_element_type=jnp.float32)           # (B*H*S, D)
    return jnp.dot(rowred, t * colmask, preferred_element_type=jnp.float32)  # (B*S, D)


# ------------------------------ fused layer kernel ------------------------------
def _decoder_layer_kernel(x_ref, y_ref, smask_ref, tile_ref, colmask_ref, rowred_ref,
                          w_qkv_ref, w_so_ref, w_kv_ref, w_q_ref, w_co_ref,
                          w1_ref, b1_ref, w2_ref, vec_ref, o_ref,
                          *, batch, seq, num_heads, head_dim):
    bf16 = jnp.bfloat16
    f32 = jnp.float32
    d_model = num_heads * head_dim

    x = x_ref[...]            # (B*S, D) encoder output, f32
    y = y_ref[...]            # (B*S, D) decoder stream, f32
    vecs = vec_ref[...]       # (15, D) packed biases / LayerNorm params, f32
    tile_mat = tile_ref[...]
    colmask = colmask_ref[...]
    rowred = rowred_ref[...]

    # -------- masked multi-head self-attention + add & LayerNorm1 --------
    qkv = jnp.dot(y.astype(bf16), w_qkv_ref[...], preferred_element_type=f32)  # (B*S, 3D)
    q_all = qkv[:, :d_model] + vecs[0:1]           # Q slab (scale pre-folded)
    k_all = qkv[:, d_model:2 * d_model] + vecs[1:2]
    v_all = qkv[:, 2 * d_model:] + vecs[2:3]
    outs = _heads_attention(q_all, k_all, v_all, smask_ref[...],
                            batch=batch, seq=seq, num_heads=num_heads, head_dim=head_dim)
    vals = _reference_merge(outs, tile_mat, colmask, rowred)                   # (B*S, D)
    attn = jnp.dot(vals.astype(bf16), w_so_ref[...], preferred_element_type=f32) + vecs[3:4]
    # TODO(synk): nn.Dropout(p=0.1) layers are treated as identity (inference mode).
    y = _layernorm(attn + y, vecs[4:5], vecs[5:6])

    # -------- multi-head cross-attention + add & LayerNorm2 --------
    # Cross-attention mask is None in the reference invocation -> no mask operand/add.
    kv = jnp.dot(x.astype(bf16), w_kv_ref[...], preferred_element_type=f32)    # (B*S, 2D)
    k_all = kv[:, :d_model] + vecs[6:7]
    v_all = kv[:, d_model:] + vecs[7:8]
    q_all = jnp.dot(y.astype(bf16), w_q_ref[...], preferred_element_type=f32) + vecs[8:9]
    outs = _heads_attention(q_all, k_all, v_all, None,
                            batch=batch, seq=seq, num_heads=num_heads, head_dim=head_dim)
    vals = _reference_merge(outs, tile_mat, colmask, rowred)
    attn = jnp.dot(vals.astype(bf16), w_co_ref[...], preferred_element_type=f32) + vecs[9:10]
    y = _layernorm(attn + y, vecs[10:11], vecs[11:12])

    # -------- position-wise FFN + add & LayerNorm3 --------
    h1 = jnp.dot(y.astype(bf16), w1_ref[...], preferred_element_type=f32) + b1_ref[...]
    h1 = jnp.maximum(h1, 0.0)                     # ReLU
    h2 = jnp.dot(h1.astype(bf16), w2_ref[...], preferred_element_type=f32) + vecs[12:13]
    y = _layernorm(h2 + y, vecs[13:14], vecs[14:15])

    o_ref[...] = y.astype(o_ref.dtype)            # lane-dense (B*S, 128) store


def decoder_layer(x2d, y2d, p, self_mask, relayout):
    tile_mat, colmask, rowred = relayout
    rows = y2d.shape[0]                            # B * S
    kern = functools.partial(_decoder_layer_kernel, batch=B, seq=S,
                             num_heads=H, head_dim=HD)
    operands = [x2d, y2d, self_mask, tile_mat, colmask, rowred,
                p["w_qkv"], p["w_so"], p["w_kv"], p["w_q"], p["w_co"],
                p["w1"], p["b1"], p["w2"], p["vecs"]]
    in_specs = [pl.BlockSpec(op.shape, lambda i: (0, 0)) for op in operands]
    return pl.pallas_call(
        kern,
        out_shape=jax.ShapeDtypeStruct((rows, D), jnp.float32),
        grid=(1,),
        in_specs=in_specs,
        out_specs=pl.BlockSpec((rows, D), lambda i: (0, 0)),
        compiler_params=pltpu.CompilerParams(dimension_semantics=("arbitrary",)),
    )(*operands)


# ----------------------------- glue (plain JAX) -----------------------------
def positional_encoding(seq_len, d_model):
    # Matches the reference PositionalEncoding quirk: both even and odd slots use sin
    # with the even denominator.
    even_i = jnp.arange(0, d_model, 2, dtype=jnp.float32)
    even_denominator = jnp.power(10000.0, even_i / d_model)
    positions = jnp.arange(seq_len, dtype=jnp.float32).reshape(seq_len, 1)
    even_pe = jnp.sin(positions / even_denominator)
    odd_pe = jnp.sin(positions / even_denominator)
    stacked = jnp.stack([even_pe, odd_pe], axis=2)
    return stacked.reshape(seq_len, d_model)


def make_relayout_constants(batch, seq, num_heads, head_dim):
    d = num_heads * head_dim
    j = jnp.arange(d)
    tile_mat = (jnp.arange(head_dim)[:, None] == (j[None, :] % head_dim)).astype(jnp.float32)
    m = jnp.arange(batch * num_heads * seq)
    colmask = ((m[:, None] % num_heads) == (j[None, :] // head_dim)).astype(jnp.float32)
    r = jnp.arange(batch * seq)
    rowred = ((m[None, :] // num_heads) == r[:, None]).astype(jnp.float32)
    return tile_mat, colmask, rowred


def decoder_forward(params, x, y_emb, pe, self_mask, relayout):
    # TODO(synk): SentenceEmbedding's pretrained BERT tokenizer/embedding
    # ('prajjwal1/bert-tiny') has no Pallas equivalent; y_emb stands in for token
    # embeddings and the (precomputed) positional encoding is added as in the reference.
    b, s, d = y_emb.shape
    y = (y_emb + pe[None]).reshape(b * s, d)       # batch flattened into matmul M dim
    x2d = x.reshape(b * s, d)
    for lp in params["layers"]:
        y = decoder_layer(x2d, y, lp, self_mask, relayout)
    return y.reshape(b, s, d)


# ------------------------------ parameter init ------------------------------
def _uniform(key, shape, fan_in):
    bound = 1.0 / math.sqrt(fan_in)
    return jax.random.uniform(key, shape, jnp.float32, -bound, bound)


def init_params(key):
    layers = []
    q_scale = 1.0 / math.sqrt(HD)
    for _ in range(NUM_LAYERS):
        ks = jax.random.split(key, 15)
        key = ks[0]
        # Fused projections with columns ordered as lane-aligned slabs [Q|K|V] / [K|V]
        # (head-major inside each slab). Random init => distributionally identical to the
        # reference's per-head-interleaved column order; the kernel slices slabs to match.
        w_qkv = _uniform(ks[1], (D, 3 * D), D)
        b_qkv = _uniform(ks[2], (1, 3 * D), D)
        col_scale = jnp.concatenate([jnp.full((D,), q_scale, jnp.float32),
                                     jnp.ones((2 * D,), jnp.float32)])
        w_qkv = w_qkv * col_scale[None, :]          # fold 1/sqrt(head_dim) into Q slab
        b_qkv = b_qkv * col_scale[None, :]

        w_so = _uniform(ks[3], (D, D), D)
        b_so = _uniform(ks[4], (1, D), D)
        w_kv = _uniform(ks[5], (D, 2 * D), D)
        b_kv = _uniform(ks[6], (1, 2 * D), D)
        w_q = _uniform(ks[7], (D, D), D) * q_scale  # cross-attn Q, scale folded
        b_q = _uniform(ks[8], (1, D), D) * q_scale
        w_co = _uniform(ks[9], (D, D), D)
        b_co = _uniform(ks[10], (1, D), D)
        w1 = _uniform(ks[11], (D, FFN), D)
        b1 = _uniform(ks[12], (1, FFN), D)
        w2 = _uniform(ks[13], (FFN, D), FFN)
        b2 = _uniform(ks[14], (1, D), FFN)
        ones = jnp.ones((1, D), jnp.float32)
        zeros = jnp.zeros((1, D), jnp.float32)
        # Pack all (1, D) biases / LayerNorm params into one (15, D) input.
        vecs = jnp.concatenate([
            b_qkv[:, :D], b_qkv[:, D:2 * D], b_qkv[:, 2 * D:],  # 0-2: self q/k/v bias
            b_so, ones, zeros,                                   # 3: self out bias, 4-5: LN1
            b_kv[:, :D], b_kv[:, D:],                            # 6-7: cross k/v bias
            b_q, b_co, ones, zeros,                              # 8: cross q, 9: cross out, 10-11: LN2
            b2, ones, zeros,                                     # 12: ffn out bias, 13-14: LN3
        ], axis=0)

        layers.append({
            "w_qkv": w_qkv.astype(jnp.bfloat16), "w_so": w_so.astype(jnp.bfloat16),
            "w_kv": w_kv.astype(jnp.bfloat16), "w_q": w_q.astype(jnp.bfloat16),
            "w_co": w_co.astype(jnp.bfloat16),
            "w1": w1.astype(jnp.bfloat16), "b1": b1, "w2": w2.astype(jnp.bfloat16),
            "vecs": vecs,
        })
    return {"layers": layers}


# ----------------------------------- main -----------------------------------
if __name__ == "__main__":
    key = jax.random.PRNGKey(0)
    kx, ky, kp = jax.random.split(key, 3)

    x = jax.random.normal(kx, (B, S, D), jnp.float32)       # encoder output (Decoder input x)
    y_emb = jax.random.normal(ky, (B, S, D), jnp.float32)   # stand-in decoder token embeddings
    params = init_params(kp)
    pe = positional_encoding(S, D)                           # computed once on host

    # additive causal self-attention mask (S, S); cross mask is None in the reference call
    causal = jnp.triu(jnp.ones((S, S), dtype=bool), k=1)
    self_mask = jnp.where(causal, -1e9, 0.0).astype(jnp.float32)

    relayout = make_relayout_constants(B, S, H, HD)          # constant 0/1 matrices

    fwd = jax.jit(decoder_forward)
    out = fwd(params, x, y_emb, pe, self_mask, relayout)
    out = jax.block_until_ready(out)
    assert out.shape == (B, S, D) and bool(jnp.all(jnp.isfinite(out)))
    print("KERNEL_OK")
</pallas_src>

<mosaic_0001>
module attributes {stable_mosaic.version = 11 : i64} {
  func.func @_decoder_layer_kernel(%arg0: i32, %arg1: memref<16x128xf32, #tpu.memory_space<vmem>>, %arg2: memref<16x128xf32, #tpu.memory_space<vmem>>, %arg3: memref<8x8xf32, #tpu.memory_space<vmem>>, %arg4: memref<16x128xf32, #tpu.memory_space<vmem>>, %arg5: memref<128x128xf32, #tpu.memory_space<vmem>>, %arg6: memref<16x128xf32, #tpu.memory_space<vmem>>, %arg7: memref<128x384xbf16, #tpu.memory_space<vmem>>, %arg8: memref<128x128xbf16, #tpu.memory_space<vmem>>, %arg9: memref<128x256xbf16, #tpu.memory_space<vmem>>, %arg10: memref<128x128xbf16, #tpu.memory_space<vmem>>, %arg11: memref<128x128xbf16, #tpu.memory_space<vmem>>, %arg12: memref<128x256xbf16, #tpu.memory_space<vmem>>, %arg13: memref<1x256xf32, #tpu.memory_space<vmem>>, %arg14: memref<256x128xbf16, #tpu.memory_space<vmem>>, %arg15: memref<15x128xf32, #tpu.memory_space<vmem>>, %arg16: memref<16x128xf32, #tpu.memory_space<vmem>>) attributes {dimension_semantics = [#tpu.dimension_semantics<arbitrary>], iteration_bounds = array<i64: 1>, scalar_prefetch = 0 : i64, scratch_operands = 0 : i64, tpu.core_type = #tpu.core_type<tc>, window_params = [{pipeline_mode = #tpu.pipeline_mode<synchronous>, transform_indices = @transform_0, window_bounds = array<i64: 16, 128>}, {pipeline_mode = #tpu.pipeline_mode<synchronous>, transform_indices = @transform_1, window_bounds = array<i64: 16, 128>}, {pipeline_mode = #tpu.pipeline_mode<synchronous>, transform_indices = @transform_2, window_bounds = array<i64: 8, 8>}, {pipeline_mode = #tpu.pipeline_mode<synchronous>, transform_indices = @transform_3, window_bounds = array<i64: 16, 128>}, {pipeline_mode = #tpu.pipeline_mode<synchronous>, transform_indices = @transform_4, window_bounds = array<i64: 128, 128>}, {pipeline_mode = #tpu.pipeline_mode<synchronous>, transform_indices = @transform_5, window_bounds = array<i64: 16, 128>}, {pipeline_mode = #tpu.pipeline_mode<synchronous>, transform_indices = @transform_6, window_bounds = array<i64: 128, 384>}, {pipeline_mode = #tpu.pipeline_mode<synchronous>, transform_indices = @transform_7, window_bounds = array<i64: 128, 128>}, {pipeline_mode = #tpu.pipeline_mode<synchronous>, transform_indices = @transform_8, window_bounds = array<i64: 128, 256>}, {pipeline_mode = #tpu.pipeline_mode<synchronous>, transform_indices = @transform_9, window_bounds = array<i64: 128, 128>}, {pipeline_mode = #tpu.pipeline_mode<synchronous>, transform_indices = @transform_10, window_bounds = array<i64: 128, 128>}, {pipeline_mode = #tpu.pipeline_mode<synchronous>, transform_indices = @transform_11, window_bounds = array<i64: 128, 256>}, {pipeline_mode = #tpu.pipeline_mode<synchronous>, transform_indices = @transform_12, window_bounds = array<i64: 1, 256>}, {pipeline_mode = #tpu.pipeline_mode<synchronous>, transform_indices = @transform_13, window_bounds = array<i64: 256, 128>}, {pipeline_mode = #tpu.pipeline_mode<synchronous>, transform_indices = @transform_14, window_bounds = array<i64: 15, 128>}, {pipeline_mode = #tpu.pipeline_mode<synchronous>, transform_indices = @transform_15, window_bounds = array<i64: 16, 128>}]} {
    %c0 = arith.constant 0 : index
    %c0_0 = arith.constant 0 : index
    %0 = vector.load %arg1[%c0, %c0_0] : memref<16x128xf32, #tpu.memory_space<vmem>>, vector<16x128xf32>
    %c0_1 = arith.constant 0 : index
    %c0_2 = arith.constant 0 : index
    %1 = vector.load %arg2[%c0_1, %c0_2] : memref<16x128xf32, #tpu.memory_space<vmem>>, vector<16x128xf32>
    %c0_3 = arith.constant 0 : index
    %c0_4 = arith.constant 0 : index
    %2 = vector.load %arg15[%c0_3, %c0_4] : memref<15x128xf32, #tpu.memory_space<vmem>>, vector<15x128xf32>
    %c0_5 = arith.constant 0 : index
    %c0_6 = arith.constant 0 : index
    %3 = vector.load %arg4[%c0_5, %c0_6] : memref<16x128xf32, #tpu.memory_space<vmem>>, vector<16x128xf32>
    %c0_7 = arith.constant 0 : index
    %c0_8 = arith.constant 0 : index
    %4 = vector.load %arg5[%c0_7, %c0_8] : memref<128x128xf32, #tpu.memory_space<vmem>>, vector<128x128xf32>
    %c0_9 = arith.constant 0 : index
    %c0_10 = arith.constant 0 : index
    %5 = vector.load %arg6[%c0_9, %c0_10] : memref<16x128xf32, #tpu.memory_space<vmem>>, vector<16x128xf32>
    %6 = arith.truncf %1 : vector<16x128xf32> to vector<16x128xbf16>
    %c0_11 = arith.constant 0 : index
    %c0_12 = arith.constant 0 : index
    %7 = vector.load %arg7[%c0_11, %c0_12] : memref<128x384xbf16, #tpu.memory_space<vmem>>, vector<128x384xbf16>
    %cst = arith.constant dense<0.000000e+00> : vector<16x384xf32>
    %8 = tpu.matmul %6, %7, %cst {dimension_numbers = #tpu.dot_dimension_numbers<[1], [0], [0], [1], [0, 0, 1, 1], [], []>} : vector<16x128xbf16>, vector<128x384xbf16>, vector<16x384xf32> -> vector<16x384xf32>
    %9 = vector.extract_strided_slice %8 {offsets = [0, 0], sizes = [16, 128], strides = [1, 1]} : vector<16x384xf32> to vector<16x128xf32>
    %10 = vector.extract_strided_slice %2 {offsets = [0, 0], sizes = [1, 128], strides = [1, 1]} : vector<15x128xf32> to vector<1x128xf32>
    %11 = vector.broadcast %10 : vector<1x128xf32> to vector<16x128xf32>
    %12 = arith.addf %9, %11 : vector<16x128xf32>
    %13 = vector.extract_strided_slice %8 {offsets = [0, 128], sizes = [16, 128], strides = [1, 1]} : vector<16x384xf32> to vector<16x128xf32>
    %14 = vector.extract_strided_slice %2 {offsets = [1, 0], sizes = [1, 128], strides = [1, 1]} : vector<15x128xf32> to vector<1x128xf32>
    %15 = vector.broadcast %14 : vector<1x128xf32> to vector<16x128xf32>
    %16 = arith.addf %13, %15 : vector<16x128xf32>
    %17 = vector.extract_strided_slice %8 {offsets = [0, 256], sizes = [16, 128], strides = [1, 1]} : vector<16x384xf32> to vector<16x128xf32>
    %18 = vector.extract_strided_slice %2 {offsets = [2, 0], sizes = [1, 128], strides = [1, 1]} : vector<15x128xf32> to vector<1x128xf32>
    %19 = vector.broadcast %18 : vector<1x128xf32> to vector<16x128xf32>
    %20 = arith.addf %17, %19 : vector<16x128xf32>
    %c0_13 = arith.constant 0 : index
    %c0_14 = arith.constant 0 : index
    %21 = vector.load %arg3[%c0_13, %c0_14] : memref<8x8xf32, #tpu.memory_space<vmem>>, vector<8x8xf32>
    %22 = arith.truncf %12 : vector<16x128xf32> to vector<16x128xbf16>
    %23 = arith.truncf %16 : vector<16x128xf32> to vector<16x128xbf16>
    %24 = arith.truncf %20 : vector<16x128xf32> to vector<16x128xbf16>
    %25 = vector.extract_strided_slice %22 {offsets = [0, 0], sizes = [8, 16], strides = [1, 1]} : vector<16x128xbf16> to vector<8x16xbf16>
    %26 = vector.extract_strided_slice %23 {offsets = [0, 0], sizes = [8, 16], strides = [1, 1]} : vector<16x128xbf16> to vector<8x16xbf16>
    %27 = vector.extract_strided_slice %24 {offsets = [0, 0], sizes = [8, 16], strides = [1, 1]} : vector<16x128xbf16> to vector<8x16xbf16>
    %cst_15 = arith.constant dense<0.000000e+00> : vector<8x8xf32>
    %28 = tpu.matmul %25, %26, %cst_15 {dimension_numbers = #tpu.dot_dimension_numbers<[1], [1], [0], [0], [0, 0, 1, 0], [], []>} : vector<8x16xbf16>, vector<8x16xbf16>, vector<8x8xf32> -> vector<8x8xf32>
    %29 = arith.addf %28, %21 : vector<8x8xf32>
    %cst_16 = arith.constant dense<0xFF800000> : vector<8xf32>
    %30 = vector.multi_reduction <maximumf>, %29, %cst_16 [1] : vector<8x8xf32> to vector<8xf32>
    %31 = vector.shape_cast %30 : vector<8xf32> to vector<8x1xf32>
    %32 = vector.broadcast %31 : vector<8x1xf32> to vector<8x8xf32>
    %33 = arith.subf %29, %32 : vector<8x8xf32>
    %34 = math.exp %33 : vector<8x8xf32>
    %cst_17 = arith.constant dense<0.000000e+00> : vector<8xf32>
    %35 = vector.multi_reduction <add>, %34, %cst_17 [1] : vector<8x8xf32> to vector<8xf32>
    %36 = vector.shape_cast %35 : vector<8xf32> to vector<8x1xf32>
    %37 = tpu.reciprocal %36 {approx = true} : vector<8x1xf32> -> vector<8x1xf32>
    %38 = vector.broadcast %37 : vector<8x1xf32> to vector<8x8xf32>
    %39 = arith.mulf %34, %38 : vector<8x8xf32>
    %40 = arith.truncf %39 : vector<8x8xf32> to vector<8x8xbf16>
    %cst_18 = arith.constant dense<0.000000e+00> : vector<8x16xf32>
    %41 = tpu.matmul %40, %27, %cst_18 {dimension_numbers = #tpu.dot_dimension_numbers<[1], [0], [0], [1], [0, 0, 1, 1], [], []>} : vector<8x8xbf16>, vector<8x16xbf16>, vector<8x16xf32> -> vector<8x16xf32>
    %42 = vector.extract_strided_slice %22 {offsets = [0, 16], sizes = [8, 16], strides = [1, 1]} : vector<16x128xbf16> to vector<8x16xbf16>
    %43 = vector.extract_strided_slice %23 {offsets = [0, 16], sizes = [8, 16], strides = [1, 1]} : vector<16x128xbf16> to vector<8x16xbf16>
    %44 = vector.extract_strided_slice %24 {offsets = [0, 16], sizes = [8, 16], strides = [1, 1]} : vector<16x128xbf16> to vector<8x16xbf16>
    %cst_19 = arith.constant dense<0.000000e+00> : vector<8x8xf32>
    %45 = tpu.matmul %42, %43, %cst_19 {dimension_numbers = #tpu.dot_dimension_numbers<[1], [1], [0], [0], [0, 0, 1, 0], [], []>} : vector<8x16xbf16>, vector<8x16xbf16>, vector<8x8xf32> -> vector<8x8xf32>
    %46 = arith.addf %45, %21 : vector<8x8xf32>
    %cst_20 = arith.constant dense<0xFF800000> : vector<8xf32>
    %47 = vector.multi_reduction <maximumf>, %46, %cst_20 [1] : vector<8x8xf32> to vector<8xf32>
    %48 = vector.shape_cast %47 : vector<8xf32> to vector<8x1xf32>
    %49 = vector.broadcast %48 : vector<8x1xf32> to vector<8x8xf32>
    %50 = arith.subf %46, %49 : vector<8x8xf32>
    %51 = math.exp %50 : vector<8x8xf32>
    %cst_21 = arith.constant dense<0.000000e+00> : vector<8xf32>
    %52 = vector.multi_reduction <add>, %51, %cst_21 [1] : vector<8x8xf32> to vector<8xf32>
    %53 = vector.shape_cast %52 : vector<8xf32> to vector<8x1xf32>
    %54 = tpu.reciprocal %53 {approx = true} : vector<8x1xf32> -> vector<8x1xf32>
    %55 = vector.broadcast %54 : vector<8x1xf32> to vector<8x8xf32>
    %56 = arith.mulf %51, %55 : vector<8x8xf32>
    %57 = arith.truncf %56 : vector<8x8xf32> to vector<8x8xbf16>
    %cst_22 = arith.constant dense<0.000000e+00> : vector<8x16xf32>
    %58 = tpu.matmul %57, %44, %cst_22 {dimension_numbers = #tpu.dot_dimension_numbers<[1], [0], [0], [1], [0, 0, 1, 1], [], []>} : vector<8x8xbf16>, vector<8x16xbf16>, vector<8x16xf32> -> vector<8x16xf32>
    %59 = vector.extract_strided_slice %22 {offsets = [0, 32], sizes = [8, 16], strides = [1, 1]} : vector<16x128xbf16> to vector<8x16xbf16>
    %60 = vector.extract_strided_slice %23 {offsets = [0, 32], sizes = [8, 16], strides = [1, 1]} : vector<16x128xbf16> to vector<8x16xbf16>
    %61 = vector.extract_strided_slice %24 {offsets = [0, 32], sizes = [8, 16], strides = [1, 1]} : vector<16x128xbf16> to vector<8x16xbf16>
    %cst_23 = arith.constant dense<0.000000e+00> : vector<8x8xf32>
    %62 = tpu.matmul %59, %60, %cst_23 {dimension_numbers = #tpu.dot_dimension_numbers<[1], [1], [0], [0], [0, 0, 1, 0], [], []>} : vector<8x16xbf16>, vector<8x16xbf16>, vector<8x8xf32> -> vector<8x8xf32>
    %63 = arith.addf %62, %21 : vector<8x8xf32>
    %cst_24 = arith.constant dense<0xFF800000> : vector<8xf32>
    %64 = vector.multi_reduction <maximumf>, %63, %cst_24 [1] : vector<8x8xf32> to vector<8xf32>
    %65 = vector.shape_cast %64 : vector<8xf32> to vector<8x1xf32>
    %66 = vector.broadcast %65 : vector<8x1xf32> to vector<8x8xf32>
    %67 = arith.subf %63, %66 : vector<8x8xf32>
    %68 = math.exp %67 : vector<8x8xf32>
    %cst_25 = arith.constant dense<0.000000e+00> : vector<8xf32>
    %69 = vector.multi_reduction <add>, %68, %cst_25 [1] : vector<8x8xf32> to vector<8xf32>
    %70 = vector.shape_cast %69 : vector<8xf32> to vector<8x1xf32>
    %71 = tpu.reciprocal %70 {approx = true} : vector<8x1xf32> -> vector<8x1xf32>
    %72 = vector.broadcast %71 : vector<8x1xf32> to vector<8x8xf32>
    %73 = arith.mulf %68, %72 : vector<8x8xf32>
    %74 = arith.truncf %73 : vector<8x8xf32> to vector<8x8xbf16>
    %cst_26 = arith.constant dense<0.000000e+00> : vector<8x16xf32>
    %75 = tpu.matmul %74, %61, %cst_26 {dimension_numbers = #tpu.dot_dimension_numbers<[1], [0], [0], [1], [0, 0, 1, 1], [], []>} : vector<8x8xbf16>, vector<8x16xbf16>, vector<8x16xf32> -> vector<8x16xf32>
    %76 = vector.extract_strided_slice %22 {offsets = [0, 48], sizes = [8, 16], strides = [1, 1]} : vector<16x128xbf16> to vector<8x16xbf16>
    %77 = vector.extract_strided_slice %23 {offsets = [0, 48], sizes = [8, 16], strides = [1, 1]} : vector<16x128xbf16> to vector<8x16xbf16>
    %78 = vector.extract_strided_slice %24 {offsets = [0, 48], sizes = [8, 16], strides = [1, 1]} : vector<16x128xbf16> to vector<8x16xbf16>
    %cst_27 = arith.constant dense<0.000000e+00> : vector<8x8xf32>
    %79 = tpu.matmul %76, %77, %cst_27 {dimension_numbers = #tpu.dot_dimension_numbers<[1], [1], [0], [0], [0, 0, 1, 0], [], []>} : vector<8x16xbf16>, vector<8x16xbf16>, vector<8x8xf32> -> vector<8x8xf32>
    %80 = arith.addf %79, %21 : vector<8x8xf32>
    %cst_28 = arith.constant dense<0xFF800000> : vector<8xf32>
    %81 = vector.multi_reduction <maximumf>, %80, %cst_28 [1] : vector<8x8xf32> to vector<8xf32>
    %82 = vector.shape_cast %81 : vector<8xf32> to vector<8x1xf32>
    %83 = vector.broadcast %82 : vector<8x1xf32> to vector<8x8xf32>
    %84 = arith.subf %80, %83 : vector<8x8xf32>
    %85 = math.exp %84 : vector<8x8xf32>
    %cst_29 = arith.constant dense<0.000000e+00> : vector<8xf32>
    %86 = vector.multi_reduction <add>, %85, %cst_29 [1] : vector<8x8xf32> to vector<8xf32>
    %87 = vector.shape_cast %86 : vector<8xf32> to vector<8x1xf32>
    %88 = tpu.reciprocal %87 {approx = true} : vector<8x1xf32> -> vector<8x1xf32>
    %89 = vector.broadcast %88 : vector<8x1xf32> to vector<8x8xf32>
    %90 = arith.mulf %85, %89 : vector<8x8xf32>
    %91 = arith.truncf %90 : vector<8x8xf32> to vector<8x8xbf16>
    %cst_30 = arith.constant dense<0.000000e+00> : vector<8x16xf32>
    %92 = tpu.matmul %91, %78, %cst_30 {dimension_numbers = #tpu.dot_dimension_numbers<[1], [0], [0], [1], [0, 0, 1, 1], [], []>} : vector<8x8xbf16>, vector<8x16xbf16>, vector<8x16xf32> -> vector<8x16xf32>
    %93 = vector.extract_strided_slice %22 {offsets = [0, 64], sizes = [8, 16], strides = [1, 1]} : vector<16x128xbf16> to vector<8x16xbf16>
    %94 = vector.extract_strided_slice %23 {offsets = [0, 64], sizes = [8, 16], strides = [1, 1]} : vector<16x128xbf16> to vector<8x16xbf16>
    %95 = vector.extract_strided_slice %24 {offsets = [0, 64], sizes = [8, 16], strides = [1, 1]} : vector<16x128xbf16> to vector<8x16xbf16>
    %cst_31 = arith.constant dense<0.000000e+00> : vector<8x8xf32>
    %96 = tpu.matmul %93, %94, %cst_31 {dimension_numbers = #tpu.dot_dimension_numbers<[1], [1], [0], [0], [0, 0, 1, 0], [], []>} : vector<8x16xbf16>, vector<8x16xbf16>, vector<8x8xf32> -> vector<8x8xf32>
    %97 = arith.addf %96, %21 : vector<8x8xf32>
    %cst_32 = arith.constant dense<0xFF800000> : vector<8xf32>
    %98 = vector.multi_reduction <maximumf>, %97, %cst_32 [1] : vector<8x8xf32> to vector<8xf32>
    %99 = vector.shape_cast %98 : vector<8xf32> to vector<8x1xf32>
    %100 = vector.broadcast %99 : vector<8x1xf32> to vector<8x8xf32>
    %101 = arith.subf %97, %100 : vector<8x8xf32>
    %102 = math.exp %101 : vector<8x8xf32>
    %cst_33 = arith.constant dense<0.000000e+00> : vector<8xf32>
    %103 = vector.multi_reduction <add>, %102, %cst_33 [1] : vector<8x8xf32> to vector<8xf32>
    %104 = vector.shape_cast %103 : vector<8xf32> to vector<8x1xf32>
    %105 = tpu.reciprocal %104 {approx = true} : vector<8x1xf32> -> vector<8x1xf32>
    %106 = vector.broadcast %105 : vector<8x1xf32> to vector<8x8xf32>
    %107 = arith.mulf %102, %106 : vector<8x8xf32>
    %108 = arith.truncf %107 : vector<8x8xf32> to vector<8x8xbf16>
    %cst_34 = arith.constant dense<0.000000e+00> : vector<8x16xf32>
    %109 = tpu.matmul %108, %95, %cst_34 {dimension_numbers = #tpu.dot_dimension_numbers<[1], [0], [0], [1], [0, 0, 1, 1], [], []>} : vector<8x8xbf16>, vector<8x16xbf16>, vector<8x16xf32> -> vector<8x16xf32>
    %110 = vector.extract_strided_slice %22 {offsets = [0, 80], sizes = [8, 16], strides = [1, 1]} : vector<16x128xbf16> to vector<8x16xbf16>
    %111 = vector.extract_strided_slice %23 {offsets = [0, 80], sizes = [8, 16], strides = [1, 1]} : vector<16x128xbf16> to vector<8x16xbf16>
    %112 = vector.extract_strided_slice %24 {offsets = [0, 80], sizes = [8, 16], strides = [1, 1]} : vector<16x128xbf16> to vector<8x16xbf16>
    %cst_35 = arith.constant dense<0.000000e+00> : vector<8x8xf32>
    %113 = tpu.matmul %110, %111, %cst_35 {dimension_numbers = #tpu.dot_dimension_numbers<[1], [1], [0], [0], [0, 0, 1, 0], [], []>} : vector<8x16xbf16>, vector<8x16xbf16>, vector<8x8xf32> -> vector<8x8xf32>
    %114 = arith.addf %113, %21 : vector<8x8xf32>
    %cst_36 = arith.constant dense<0xFF800000> : vector<8xf32>
    %115 = vector.multi_reduction <maximumf>, %114, %cst_36 [1] : vector<8x8xf32> to vector<8xf32>
    %116 = vector.shape_cast %115 : vector<8xf32> to vector<8x1xf32>
    %117 = vector.broadcast %116 : vector<8x1xf32> to vector<8x8xf32>
    %118 = arith.subf %114, %117 : vector<8x8xf32>
    %119 = math.exp %118 : vector<8x8xf32>
    %cst_37 = arith.constant dense<0.000000e+00> : vector<8xf32>
    %120 = vector.multi_reduction <add>, %119, %cst_37 [1] : vector<8x8xf32> to vector<8xf32>
    %121 = vector.shape_cast %120 : vector<8xf32> to vector<8x1xf32>
    %122 = tpu.reciprocal %121 {approx = true} : vector<8x1xf32> -> vector<8x1xf32>
    %123 = vector.broadcast %122 : vector<8x1xf32> to vector<8x8xf32>
    %124 = arith.mulf %119, %123 : vector<8x8xf32>
    %125 = arith.truncf %124 : vector<8x8xf32> to vector<8x8xbf16>
    %cst_38 = arith.constant dense<0.000000e+00> : vector<8x16xf32>
    %126 = tpu.matmul %125, %112, %cst_38 {dimension_numbers = #tpu.dot_dimension_numbers<[1], [0], [0], [1], [0, 0, 1, 1], [], []>} : vector<8x8xbf16>, vector<8x16xbf16>, vector<8x16xf32> -> vector<8x16xf32>
    %127 = vector.extract_strided_slice %22 {offsets = [0, 96], sizes = [8, 16], strides = [1, 1]} : vector<16x128xbf16> to vector<8x16xbf16>
    %128 = vector.extract_strided_slice %23 {offsets = [0, 96], sizes = [8, 16], strides = [1, 1]} : vector<16x128xbf16> to vector<8x16xbf16>
    %129 = vector.extract_strided_slice %24 {offsets = [0, 96], sizes = [8, 16], strides = [1, 1]} : vector<16x128xbf16> to vector<8x16xbf16>
    %cst_39 = arith.constant dense<0.000000e+00> : vector<8x8xf32>
    %130 = tpu.matmul %127, %128, %cst_39 {dimension_numbers = #tpu.dot_dimension_numbers<[1], [1], [0], [0], [0, 0, 1, 0], [], []>} : vector<8x16xbf16>, vector<8x16xbf16>, vector<8x8xf32> -> vector<8x8xf32>
    %131 = arith.addf %130, %21 : vector<8x8xf32>
    %cst_40 = arith.constant dense<0xFF800000> : vector<8xf32>
    %132 = vector.multi_reduction <maximumf>, %131, %cst_40 [1] : vector<8x8xf32> to vector<8xf32>
    %133 = vector.shape_cast %132 : vector<8xf32> to vector<8x1xf32>
    %134 = vector.broadcast %133 : vector<8x1xf32> to vector<8x8xf32>
    %135 = arith.subf %131, %134 : vector<8x8xf32>
    %136 = math.exp %135 : vector<8x8xf32>
    %cst_41 = arith.constant dense<0.000000e+00> : vector<8xf32>
    %137 = vector.multi_reduction <add>, %136, %cst_41 [1] : vector<8x8xf32> to vector<8xf32>
    %138 = vector.shape_cast %137 : vector<8xf32> to vector<8x1xf32>
    %139 = tpu.reciprocal %138 {approx = true} : vector<8x1xf32> -> vector<8x1xf32>
    %140 = vector.broadcast %139 : vector<8x1xf32> to vector<8x8xf32>
    %141 = arith.mulf %136, %140 : vector<8x8xf32>
    %142 = arith.truncf %141 : vector<8x8xf32> to vector<8x8xbf16>
    %cst_42 = arith.constant dense<0.000000e+00> : vector<8x16xf32>
    %143 = tpu.matmul %142, %129, %cst_42 {dimension_numbers = #tpu.dot_dimension_numbers<[1], [0], [0], [1], [0, 0, 1, 1], [], []>} : vector<8x8xbf16>, vector<8x16xbf16>, vector<8x16xf32> -> vector<8x16xf32>
    %144 = vector.extract_strided_slice %22 {offsets = [0, 112], sizes = [8, 16], strides = [1, 1]} : vector<16x128xbf16> to vector<8x16xbf16>
    %145 = vector.extract_strided_slice %23 {offsets = [0, 112], sizes = [8, 16], strides = [1, 1]} : vector<16x128xbf16> to vector<8x16xbf16>
    %146 = vector.extract_strided_slice %24 {offsets = [0, 112], sizes = [8, 16], strides = [1, 1]} : vector<16x128xbf16> to vector<8x16xbf16>
    %cst_43 = arith.constant dense<0.000000e+00> : vector<8x8xf32>
    %147 = tpu.matmul %144, %145, %cst_43 {dimension_numbers = #tpu.dot_dimension_numbers<[1], [1], [0], [0], [0, 0, 1, 0], [], []>} : vector<8x16xbf16>, vector<8x16xbf16>, vector<8x8xf32> -> vector<8x8xf32>
    %148 = arith.addf %147, %21 : vector<8x8xf32>
    %cst_44 = arith.constant dense<0xFF800000> : vector<8xf32>
    %149 = vector.multi_reduction <maximumf>, %148, %cst_44 [1] : vector<8x8xf32> to vector<8xf32>
    %150 = vector.shape_cast %149 : vector<8xf32> to vector<8x1xf32>
    %151 = vector.broadcast %150 : vector<8x1xf32> to vector<8x8xf32>
    %152 = arith.subf %148, %151 : vector<8x8xf32>
    %153 = math.exp %152 : vector<8x8xf32>
    %cst_45 = arith.constant dense<0.000000e+00> : vector<8xf32>
    %154 = vector.multi_reduction <add>, %153, %cst_45 [1] : vector<8x8xf32> to vector<8xf32>
    %155 = vector.shape_cast %154 : vector<8xf32> to vector<8x1xf32>
    %156 = tpu.reciprocal %155 {approx = true} : vector<8x1xf32> -> vector<8x1xf32>
    %157 = vector.broadcast %156 : vector<8x1xf32> to vector<8x8xf32>
    %158 = arith.mulf %153, %157 : vector<8x8xf32>
    %159 = arith.truncf %158 : vector<8x8xf32> to vector<8x8xbf16>
    %cst_46 = arith.constant dense<0.000000e+00> : vector<8x16xf32>
    %160 = tpu.matmul %159, %146, %cst_46 {dimension_numbers = #tpu.dot_dimension_numbers<[1], [0], [0], [1], [0, 0, 1, 1], [], []>} : vector<8x8xbf16>, vector<8x16xbf16>, vector<8x16xf32> -> vector<8x16xf32>
    %161 = vector.extract_strided_slice %22 {offsets = [8, 0], sizes = [8, 16], strides = [1, 1]} : vector<16x128xbf16> to vector<8x16xbf16>
    %162 = vector.extract_strided_slice %23 {offsets = [8, 0], sizes = [8, 16], strides = [1, 1]} : vector<16x128xbf16> to vector<8x16xbf16>
    %163 = vector.extract_strided_slice %24 {offsets = [8, 0], sizes = [8, 16], strides = [1, 1]} : vector<16x128xbf16> to vector<8x16xbf16>
    %cst_47 = arith.constant dense<0.000000e+00> : vector<8x8xf32>
    %164 = tpu.matmul %161, %162, %cst_47 {dimension_numbers = #tpu.dot_dimension_numbers<[1], [1], [0], [0], [0, 0, 1, 0], [], []>} : vector<8x16xbf16>, vector<8x16xbf16>, vector<8x8xf32> -> vector<8x8xf32>
    %165 = arith.addf %164, %21 : vector<8x8xf32>
    %cst_48 = arith.constant dense<0xFF800000> : vector<8xf32>
    %166 = vector.multi_reduction <maximumf>, %165, %cst_48 [1] : vector<8x8xf32> to vector<8xf32>
    %167 = vector.shape_cast %166 : vector<8xf32> to vector<8x1xf32>
    %168 = vector.broadcast %167 : vector<8x1xf32> to vector<8x8xf32>
    %169 = arith.subf %165, %168 : vector<8x8xf32>
    %170 = math.exp %169 : vector<8x8xf32>
    %cst_49 = arith.constant dense<0.000000e+00> : vector<8xf32>
    %171 = vector.multi_reduction <add>, %170, %cst_49 [1] : vector<8x8xf32> to vector<8xf32>
    %172 = vector.shape_cast %171 : vector<8xf32> to vector<8x1xf32>
    %173 = tpu.reciprocal %172 {approx = true} : vector<8x1xf32> -> vector<8x1xf32>
    %174 = vector.broadcast %173 : vector<8x1xf32> to vector<8x8xf32>
    %175 = arith.mulf %170, %174 : vector<8x8xf32>
    %176 = arith.truncf %175 : vector<8x8xf32> to vector<8x8xbf16>
    %cst_50 = arith.constant dense<0.000000e+00> : vector<8x16xf32>
    %177 = tpu.matmul %176, %163, %cst_50 {dimension_numbers = #tpu.dot_dimension_numbers<[1], [0], [0], [1], [0, 0, 1, 1], [], []>} : vector<8x8xbf16>, vector<8x16xbf16>, vector<8x16xf32> -> vector<8x16xf32>
    %178 = vector.extract_strided_slice %22 {offsets = [8, 16], sizes = [8, 16], strides = [1, 1]} : vector<16x128xbf16> to vector<8x16xbf16>
    %179 = vector.extract_strided_slice %23 {offsets = [8, 16], sizes = [8, 16], strides = [1, 1]} : vector<16x128xbf16> to vector<8x16xbf16>
    %180 = vector.extract_strided_slice %24 {offsets = [8, 16], sizes = [8, 16], strides = [1, 1]} : vector<16x128xbf16> to vector<8x16xbf16>
    %cst_51 = arith.constant dense<0.000000e+00> : vector<8x8xf32>
    %181 = tpu.matmul %178, %179, %cst_51 {dimension_numbers = #tpu.dot_dimension_numbers<[1], [1], [0], [0], [0, 0, 1, 0], [], []>} : vector<8x16xbf16>, vector<8x16xbf16>, vector<8x8xf32> -> vector<8x8xf32>
    %182 = arith.addf %181, %21 : vector<8x8xf32>
    %cst_52 = arith.constant dense<0xFF800000> : vector<8xf32>
    %183 = vector.multi_reduction <maximumf>, %182, %cst_52 [1] : vector<8x8xf32> to vector<8xf32>
    %184 = vector.shape_cast %183 : vector<8xf32> to vector<8x1xf32>
    %185 = vector.broadcast %184 : vector<8x1xf32> to vector<8x8xf32>
    %186 = arith.subf %182, %185 : vector<8x8xf32>
    %187 = math.exp %186 : vector<8x8xf32>
    %cst_53 = arith.constant dense<0.000000e+00> : vector<8xf32>
    %188 = vector.multi_reduction <add>, %187, %cst_53 [1] : vector<8x8xf32> to vector<8xf32>
    %189 = vector.shape_cast %188 : vector<8xf32> to vector<8x1xf32>
    %190 = tpu.reciprocal %189 {approx = true} : vector<8x1xf32> -> vector<8x1xf32>
    %191 = vector.broadcast %190 : vector<8x1xf32> to vector<8x8xf32>
    %192 = arith.mulf %187, %191 : vector<8x8xf32>
    %193 = arith.truncf %192 : vector<8x8xf32> to vector<8x8xbf16>
    %cst_54 = arith.constant dense<0.000000e+00> : vector<8x16xf32>
    %194 = tpu.matmul %193, %180, %cst_54 {dimension_numbers = #tpu.dot_dimension_numbers<[1], [0], [0], [1], [0, 0, 1, 1], [], []>} : vector<8x8xbf16>, vector<8x16xbf16>, vector<8x16xf32> -> vector<8x16xf32>
    %195 = vector.extract_strided_slice %22 {offsets = [8, 32], sizes = [8, 16], strides = [1, 1]} : vector<16x128xbf16> to vector<8x16xbf16>
    %196 = vector.extract_strided_slice %23 {offsets = [8, 32], sizes = [8, 16], strides = [1, 1]} : vector<16x128xbf16> to vector<8x16xbf16>
    %197 = vector.extract_strided_slice %24 {offsets = [8, 32], sizes = [8, 16], strides = [1, 1]} : vector<16x128xbf16> to vector<8x16xbf16>
    %cst_55 = arith.constant dense<0.000000e+00> : vector<8x8xf32>
    %198 = tpu.matmul %195, %196, %cst_55 {dimension_numbers = #tpu.dot_dimension_numbers<[1], [1], [0], [0], [0, 0, 1, 0], [], []>} : vector<8x16xbf16>, vector<8x16xbf16>, vector<8x8xf32> -> vector<8x8xf32>
    %199 = arith.addf %198, %21 : vector<8x8xf32>
    %cst_56 = arith.constant dense<0xFF800000> : vector<8xf32>
    %200 = vector.multi_reduction <maximumf>, %199, %cst_56 [1] : vector<8x8xf32> to vector<8xf32>
    %201 = vector.shape_cast %200 : vector<8xf32> to vector<8x1xf32>
    %202 = vector.broadcast %201 : vector<8x1xf32> to vector<8x8xf32>
    %203 = arith.subf %199, %202 : vector<8x8xf32>
    %204 = math.exp %203 : vector<8x8xf32>
    %cst_57 = arith.constant dense<0.000000e+00> : vector<8xf32>
    %205 = vector.multi_reduction <add>, %204, %cst_57 [1] : vector<8x8xf32> to vector<8xf32>
    %206 = vector.shape_cast %205 : vector<8xf32> to vector<8x1xf32>
    %207 = tpu.reciprocal %206 {approx = true} : vector<8x1xf32> -> vector<8x1xf32>
    %208 = vector.broadcast %207 : vector<8x1xf32> to vector<8x8xf32>
    %209 = arith.mulf %204, %208 : vector<8x8xf32>
    %210 = arith.truncf %209 : vector<8x8xf32> to vector<8x8xbf16>
    %cst_58 = arith.constant dense<0.000000e+00> : vector<8x16xf32>
    %211 = tpu.matmul %210, %197, %cst_58 {dimension_numbers = #tpu.dot_dimension_numbers<[1], [0], [0], [1], [0, 0, 1, 1], [], []>} : vector<8x8xbf16>, vector<8x16xbf16>, vector<8x16xf32> -> vector<8x16xf32>
    %212 = vector.extract_strided_slice %22 {offsets = [8, 48], sizes = [8, 16], strides = [1, 1]} : vector<16x128xbf16> to vector<8x16xbf16>
    %213 = vector.extract_strided_slice %23 {offsets = [8, 48], sizes = [8, 16], strides = [1, 1]} : vector<16x128xbf16> to vector<8x16xbf16>
    %214 = vector.extract_strided_slice %24 {offsets = [8, 48], sizes = [8, 16], strides = [1, 1]} : vector<16x128xbf16> to vector<8x16xbf16>
    %cst_59 = arith.constant dense<0.000000e+00> : vector<8x8xf32>
    %215 = tpu.matmul %212, %213, %cst_59 {dimension_numbers = #tpu.dot_dimension_numbers<[1], [1], [0], [0], [0, 0, 1, 0], [], []>} : vector<8x16xbf16>, vector<8x16xbf16>, vector<8x8xf32> -> vector<8x8xf32>
    %216 = arith.addf %215, %21 : vector<8x8xf32>
    %cst_60 = arith.constant dense<0xFF800000> : vector<8xf32>
    %217 = vector.multi_reduction <maximumf>, %216, %cst_60 [1] : vector<8x8xf32> to vector<8xf32>
    %218 = vector.shape_cast %217 : vector<8xf32> to vector<8x1xf32>
    %219 = vector.broadcast %218 : vector<8x1xf32> to vector<8x8xf32>
    %220 = arith.subf %216, %219 : vector<8x8xf32>
    %221 = math.exp %220 : vector<8x8xf32>
    %cst_61 = arith.constant dense<0.000000e+00> : vector<8xf32>
    %222 = vector.multi_reduction <add>, %221, %cst_61 [1] : vector<8x8xf32> to vector<8xf32>
    %223 = vector.shape_cast %222 : vector<8xf32> to vector<8x1xf32>
    %224 = tpu.reciprocal %223 {approx = true} : vector<8x1xf32> -> vector<8x1xf32>
    %225 = vector.broadcast %224 : vector<8x1xf32> to vector<8x8xf32>
    %226 = arith.mulf %221, %225 : vector<8x8xf32>
    %227 = arith.truncf %226 : vector<8x8xf32> to vector<8x8xbf16>
    %cst_62 = arith.constant dense<0.000000e+00> : vector<8x16xf32>
    %228 = tpu.matmul %227, %214, %cst_62 {dimension_numbers = #tpu.dot_dimension_numbers<[1], [0], [0], [1], [0, 0, 1, 1], [], []>} : vector<8x8xbf16>, vector<8x16xbf16>, vector<8x16xf32> -> vector<8x16xf32>
    %229 = vector.extract_strided_slice %22 {offsets = [8, 64], sizes = [8, 16], strides = [1, 1]} : vector<16x128xbf16> to vector<8x16xbf16>
    %230 = vector.extract_strided_slice %23 {offsets = [8, 64], sizes = [8, 16], strides = [1, 1]} : vector<16x128xbf16> to vector<8x16xbf16>
    %231 = vector.extract_strided_slice %24 {offsets = [8, 64], sizes = [8, 16], strides = [1, 1]} : vector<16x128xbf16> to vector<8x16xbf16>
    %cst_63 = arith.constant dense<0.000000e+00> : vector<8x8xf32>
    %232 = tpu.matmul %229, %230, %cst_63 {dimension_numbers = #tpu.dot_dimension_numbers<[1], [1], [0], [0], [0, 0, 1, 0], [], []>} : vector<8x16xbf16>, vector<8x16xbf16>, vector<8x8xf32> -> vector<8x8xf32>
    %233 = arith.addf %232, %21 : vector<8x8xf32>
    %cst_64 = arith.constant dense<0xFF800000> : vector<8xf32>
    %234 = vector.multi_reduction <maximumf>, %233, %cst_64 [1] : vector<8x8xf32> to vector<8xf32>
    %235 = vector.shape_cast %234 : vector<8xf32> to vector<8x1xf32>
    %236 = vector.broadcast %235 : vector<8x1xf32> to vector<8x8xf32>
    %237 = arith.subf %233, %236 : vector<8x8xf32>
    %238 = math.exp %237 : vector<8x8xf32>
    %cst_65 = arith.constant dense<0.000000e+00> : vector<8xf32>
    %239 = vector.multi_reduction <add>, %238, %cst_65 [1] : vector<8x8xf32> to vector<8xf32>
    %240 = vector.shape_cast %239 : vector<8xf32> to vector<8x1xf32>
    %241 = tpu.reciprocal %240 {approx = true} : vector<8x1xf32> -> vector<8x1xf32>
    %242 = vector.broadcast %241 : vector<8x1xf32> to vector<8x8xf32>
    %243 = arith.mulf %238, %242 : vector<8x8xf32>
    %244 = arith.truncf %243 : vector<8x8xf32> to vector<8x8xbf16>
    %cst_66 = arith.constant dense<0.000000e+00> : vector<8x16xf32>
    %245 = tpu.matmul %244, %231, %cst_66 {dimension_numbers = #tpu.dot_dimension_numbers<[1], [0], [0], [1], [0, 0, 1, 1], [], []>} : vector<8x8xbf16>, vector<8x16xbf16>, vector<8x16xf32> -> vector<8x16xf32>
    %246 = vector.extract_strided_slice %22 {offsets = [8, 80], sizes = [8, 16], strides = [1, 1]} : vector<16x128xbf16> to vector<8x16xbf16>
    %247 = vector.extract_strided_slice %23 {offsets = [8, 80], sizes = [8, 16], strides = [1, 1]} : vector<16x128xbf16> to vector<8x16xbf16>
    %248 = vector.extract_strided_slice %24 {offsets = [8, 80], sizes = [8, 16], strides = [1, 1]} : vector<16x128xbf16> to vector<8x16xbf16>
    %cst_67 = arith.constant dense<0.000000e+00> : vector<8x8xf32>
    %249 = tpu.matmul %246, %247, %cst_67 {dimension_numbers = #tpu.dot_dimension_numbers<[1], [1], [0], [0], [0, 0, 1, 0], [], []>} : vector<8x16xbf16>, vector<8x16xbf16>, vector<8x8xf32> -> vector<8x8xf32>
    %250 = arith.addf %249, %21 : vector<8x8xf32>
    %cst_68 = arith.constant dense<0xFF800000> : vector<8xf32>
    %251 = vector.multi_reduction <maximumf>, %250, %cst_68 [1] : vector<8x8xf32> to vector<8xf32>
    %252 = vector.shape_cast %251 : vector<8xf32> to vector<8x1xf32>
    %253 = vector.broadcast %252 : vector<8x1xf32> to vector<8x8xf32>
    %254 = arith.subf %250, %253 : vector<8x8xf32>
    %255 = math.exp %254 : vector<8x8xf32>
    %cst_69 = arith.constant dense<0.000000e+00> : vector<8xf32>
    %256 = vector.multi_reduction <add>, %255, %cst_69 [1] : vector<8x8xf32> to vector<8xf32>
    %257 = vector.shape_cast %256 : vector<8xf32> to vector<8x1xf32>
    %258 = tpu.reciprocal %257 {approx = true} : vector<8x1xf32> -> vector<8x1xf32>
    %259 = vector.broadcast %258 : vector<8x1xf32> to vector<8x8xf32>
    %260 = arith.mulf %255, %259 : vector<8x8xf32>
    %261 = arith.truncf %260 : vector<8x8xf32> to vector<8x8xbf16>
    %cst_70 = arith.constant dense<0.000000e+00> : vector<8x16xf32>
    %262 = tpu.matmul %261, %248, %cst_70 {dimension_numbers = #tpu.dot_dimension_numbers<[1], [0], [0], [1], [0, 0, 1, 1], [], []>} : vector<8x8xbf16>, vector<8x16xbf16>, vector<8x16xf32> -> vector<8x16xf32>
    %263 = vector.extract_strided_slice %22 {offsets = [8, 96], sizes = [8, 16], strides = [1, 1]} : vector<16x128xbf16> to vector<8x16xbf16>
    %264 = vector.extract_strided_slice %23 {offsets = [8, 96], sizes = [8, 16], strides = [1, 1]} : vector<16x128xbf16> to vector<8x16xbf16>
    %265 = vector.extract_strided_slice %24 {offsets = [8, 96], sizes = [8, 16], strides = [1, 1]} : vector<16x128xbf16> to vector<8x16xbf16>
    %cst_71 = arith.constant dense<0.000000e+00> : vector<8x8xf32>
    %266 = tpu.matmul %263, %264, %cst_71 {dimension_numbers = #tpu.dot_dimension_numbers<[1], [1], [0], [0], [0, 0, 1, 0], [], []>} : vector<8x16xbf16>, vector<8x16xbf16>, vector<8x8xf32> -> vector<8x8xf32>
    %267 = arith.addf %266, %21 : vector<8x8xf32>
    %cst_72 = arith.constant dense<0xFF800000> : vector<8xf32>
    %268 = vector.multi_reduction <maximumf>, %267, %cst_72 [1] : vector<8x8xf32> to vector<8xf32>
    %269 = vector.shape_cast %268 : vector<8xf32> to vector<8x1xf32>
    %270 = vector.broadcast %269 : vector<8x1xf32> to vector<8x8xf32>
    %271 = arith.subf %267, %270 : vector<8x8xf32>
    %272 = math.exp %271 : vector<8x8xf32>
    %cst_73 = arith.constant dense<0.000000e+00> : vector<8xf32>
    %273 = vector.multi_reduction <add>, %272, %cst_73 [1] : vector<8x8xf32> to vector<8xf32>
    %274 = vector.shape_cast %273 : vector<8xf32> to vector<8x1xf32>
    %275 = tpu.reciprocal %274 {approx = true} : vector<8x1xf32> -> vector<8x1xf32>
    %276 = vector.broadcast %275 : vector<8x1xf32> to vector<8x8xf32>
    %277 = arith.mulf %272, %276 : vector<8x8xf32>
    %278 = arith.truncf %277 : vector<8x8xf32> to vector<8x8xbf16>
    %cst_74 = arith.constant dense<0.000000e+00> : vector<8x16xf32>
    %279 = tpu.matmul %278, %265, %cst_74 {dimension_numbers = #tpu.dot_dimension_numbers<[1], [0], [0], [1], [0, 0, 1, 1], [], []>} : vector<8x8xbf16>, vector<8x16xbf16>, vector<8x16xf32> -> vector<8x16xf32>
    %280 = vector.extract_strided_slice %22 {offsets = [8, 112], sizes = [8, 16], strides = [1, 1]} : vector<16x128xbf16> to vector<8x16xbf16>
    %281 = vector.extract_strided_slice %23 {offsets = [8, 112], sizes = [8, 16], strides = [1, 1]} : vector<16x128xbf16> to vector<8x16xbf16>
    %282 = vector.extract_strided_slice %24 {offsets = [8, 112], sizes = [8, 16], strides = [1, 1]} : vector<16x128xbf16> to vector<8x16xbf16>
    %cst_75 = arith.constant dense<0.000000e+00> : vector<8x8xf32>
    %283 = tpu.matmul %280, %281, %cst_75 {dimension_numbers = #tpu.dot_dimension_numbers<[1], [1], [0], [0], [0, 0, 1, 0], [], []>} : vector<8x16xbf16>, vector<8x16xbf16>, vector<8x8xf32> -> vector<8x8xf32>
    %284 = arith.addf %283, %21 : vector<8x8xf32>
    %cst_76 = arith.constant dense<0xFF800000> : vector<8xf32>
    %285 = vector.multi_reduction <maximumf>, %284, %cst_76 [1] : vector<8x8xf32> to vector<8xf32>
    %286 = vector.shape_cast %285 : vector<8xf32> to vector<8x1xf32>
    %287 = vector.broadcast %286 : vector<8x1xf32> to vector<8x8xf32>
    %288 = arith.subf %284, %287 : vector<8x8xf32>
    %289 = math.exp %288 : vector<8x8xf32>
    %cst_77 = arith.constant dense<0.000000e+00> : vector<8xf32>
    %290 = vector.multi_reduction <add>, %289, %cst_77 [1] : vector<8x8xf32> to vector<8xf32>
    %291 = vector.shape_cast %290 : vector<8xf32> to vector<8x1xf32>
    %292 = tpu.reciprocal %291 {approx = true} : vector<8x1xf32> -> vector<8x1xf32>
    %293 = vector.broadcast %292 : vector<8x1xf32> to vector<8x8xf32>
    %294 = arith.mulf %289, %293 : vector<8x8xf32>
    %295 = arith.truncf %294 : vector<8x8xf32> to vector<8x8xbf16>
    %cst_78 = arith.constant dense<0.000000e+00> : vector<8x16xf32>
    %296 = tpu.matmul %295, %282, %cst_78 {dimension_numbers = #tpu.dot_dimension_numbers<[1], [0], [0], [1], [0, 0, 1, 1], [], []>} : vector<8x8xbf16>, vector<8x16xbf16>, vector<8x16xf32> -> vector<8x16xf32>
    %297 = tpu.concatenate %41, %58, %75, %92, %109, %126, %143, %160, %177, %194, %211, %228, %245, %262, %279, %296 in 0 : vector<8x16xf32>, vector<8x16xf32>, vector<8x16xf32>, vector<8x16xf32>, vector<8x16xf32>, vector<8x16xf32>, vector<8x16xf32>, vector<8x16xf32>, vector<8x16xf32>, vector<8x16xf32>, vector<8x16xf32>, vector<8x16xf32>, vector<8x16xf32>, vector<8x16xf32>, vector<8x16xf32>, vector<8x16xf32> -> vector<128x16xf32>
    %cst_79 = arith.constant dense<0.000000e+00> : vector<128x128xf32>
    %298 = tpu.matmul %297, %3, %cst_79 {dimension_numbers = #tpu.dot_dimension_numbers<[1], [0], [0], [1], [0, 0, 1, 1], [], []>} : vector<128x16xf32>, vector<16x128xf32>, vector<128x128xf32> -> vector<128x128xf32>
    %299 = arith.mulf %298, %4 : vector<128x128xf32>
    %cst_80 = arith.constant dense<0.000000e+00> : vector<16x128xf32>
    %300 = tpu.matmul %5, %299, %cst_80 {dimension_numbers = #tpu.dot_dimension_numbers<[1], [0], [0], [1], [0, 0, 1, 1], [], []>} : vector<16x128xf32>, vector<128x128xf32>, vector<16x128xf32> -> vector<16x128xf32>
    %301 = arith.truncf %300 : vector<16x128xf32> to vector<16x128xbf16>
    %c0_81 = arith.constant 0 : index
    %c0_82 = arith.constant 0 : index
    %302 = vector.load %arg8[%c0_81, %c0_82] : memref<128x128xbf16, #tpu.memory_space<vmem>>, vector<128x128xbf16>
    %cst_83 = arith.constant dense<0.000000e+00> : vector<16x128xf32>
    %303 = tpu.matmul %301, %302, %cst_83 {dimension_numbers = #tpu.dot_dimension_numbers<[1], [0], [0], [1], [0, 0, 1, 1], [], []>} : vector<16x128xbf16>, vector<128x128xbf16>, vector<16x128xf32> -> vector<16x128xf32>
    %304 = vector.extract_strided_slice %2 {offsets = [3, 0], sizes = [1, 128], strides = [1, 1]} : vector<15x128xf32> to vector<1x128xf32>
    %305 = vector.broadcast %304 : vector<1x128xf32> to vector<16x128xf32>
    %306 = arith.addf %303, %305 : vector<16x128xf32>
    %307 = arith.addf %306, %1 : vector<16x128xf32>
    %308 = vector.extract_strided_slice %2 {offsets = [4, 0], sizes = [1, 128], strides = [1, 1]} : vector<15x128xf32> to vector<1x128xf32>
    %309 = vector.extract_strided_slice %2 {offsets = [5, 0], sizes = [1, 128], strides = [1, 1]} : vector<15x128xf32> to vector<1x128xf32>
    %cst_84 = arith.constant dense<0.000000e+00> : vector<16xf32>
    %310 = vector.multi_reduction <add>, %307, %cst_84 [1] : vector<16x128xf32> to vector<16xf32>
    %311 = vector.shape_cast %310 : vector<16xf32> to vector<16x1xf32>
    %cst_85 = arith.constant 1.280000e+02 : f32
    %312 = vector.broadcast %cst_85 : f32 to vector<16x1xf32>
    %313 = arith.divf %311, %312 : vector<16x1xf32>
    %314 = vector.broadcast %313 : vector<16x1xf32> to vector<16x128xf32>
    %315 = arith.subf %307, %314 : vector<16x128xf32>
    %316 = arith.mulf %315, %315 : vector<16x128xf32>
    %cst_86 = arith.constant dense<0.000000e+00> : vector<16xf32>
    %317 = vector.multi_reduction <add>, %316, %cst_86 [1] : vector<16x128xf32> to vector<16xf32>
    %318 = vector.shape_cast %317 : vector<16xf32> to vector<16x1xf32>
    %cst_87 = arith.constant 1.280000e+02 : f32
    %319 = vector.broadcast %cst_87 : f32 to vector<16x1xf32>
    %320 = arith.divf %318, %319 : vector<16x1xf32>
    %cst_88 = arith.constant 9.99999974E-6 : f32
    %321 = vector.broadcast %cst_88 : f32 to vector<16x1xf32>
    %322 = arith.addf %320, %321 : vector<16x1xf32>
    %323 = math.rsqrt %322 : vector<16x1xf32>
    %324 = vector.broadcast %323 : vector<16x1xf32> to vector<16x128xf32>
    %325 = arith.mulf %315, %324 : vector<16x128xf32>
    %326 = vector.broadcast %308 : vector<1x128xf32> to vector<16x128xf32>
    %327 = arith.mulf %325, %326 : vector<16x128xf32>
    %328 = vector.broadcast %309 : vector<1x128xf32> to vector<16x128xf32>
    %329 = arith.addf %327, %328 : vector<16x128xf32>
    %330 = arith.truncf %0 : vector<16x128xf32> to vector<16x128xbf16>
    %c0_89 = arith.constant 0 : index
    %c0_90 = arith.constant 0 : index
    %331 = vector.load %arg9[%c0_89, %c0_90] : memref<128x256xbf16, #tpu.memory_space<vmem>>, vector<128x256xbf16>
    %cst_91 = arith.constant dense<0.000000e+00> : vector<16x256xf32>
    %332 = tpu.matmul %330, %331, %cst_91 {dimension_numbers = #tpu.dot_dimension_numbers<[1], [0], [0], [1], [0, 0, 1, 1], [], []>} : vector<16x128xbf16>, vector<128x256xbf16>, vector<16x256xf32> -> vector<16x256xf32>
    %333 = vector.extract_strided_slice %332 {offsets = [0, 0], sizes = [16, 128], strides = [1, 1]} : vector<16x256xf32> to vector<16x128xf32>
    %334 = vector.extract_strided_slice %2 {offsets = [6, 0], sizes = [1, 128], strides = [1, 1]} : vector<15x128xf32> to vector<1x128xf32>
    %335 = vector.broadcast %334 : vector<1x128xf32> to vector<16x128xf32>
    %336 = arith.addf %333, %335 : vector<16x128xf32>
    %337 = vector.extract_strided_slice %332 {offsets = [0, 128], sizes = [16, 128], strides = [1, 1]} : vector<16x256xf32> to vector<16x128xf32>
    %338 = vector.extract_strided_slice %2 {offsets = [7, 0], sizes = [1, 128], strides = [1, 1]} : vector<15x128xf32> to vector<1x128xf32>
    %339 = vector.broadcast %338 : vector<1x128xf32> to vector<16x128xf32>
    %340 = arith.addf %337, %339 : vector<16x128xf32>
    %341 = arith.truncf %329 : vector<16x128xf32> to vector<16x128xbf16>
    %c0_92 = arith.constant 0 : index
    %c0_93 = arith.constant 0 : index
    %342 = vector.load %arg10[%c0_92, %c0_93] : memref<128x128xbf16, #tpu.memory_space<vmem>>, vector<128x128xbf16>
    %cst_94 = arith.constant dense<0.000000e+00> : vector<16x128xf32>
    %343 = tpu.matmul %341, %342, %cst_94 {dimension_numbers = #tpu.dot_dimension_numbers<[1], [0], [0], [1], [0, 0, 1, 1], [], []>} : vector<16x128xbf16>, vector<128x128xbf16>, vector<16x128xf32> -> vector<16x128xf32>
    %344 = vector.extract_strided_slice %2 {offsets = [8, 0], sizes = [1, 128], strides = [1, 1]} : vector<15x128xf32> to vector<1x128xf32>
    %345 = vector.broadcast %344 : vector<1x128xf32> to vector<16x128xf32>
    %346 = arith.addf %343, %345 : vector<16x128xf32>
    %347 = arith.truncf %346 : vector<16x128xf32> to vector<16x128xbf16>
    %348 = arith.truncf %336 : vector<16x128xf32> to vector<16x128xbf16>
    %349 = arith.truncf %340 : vector<16x128xf32> to vector<16x128xbf16>
    %350 = vector.extract_strided_slice %347 {offsets = [0, 0], sizes = [8, 16], strides = [1, 1]} : vector<16x128xbf16> to vector<8x16xbf16>
    %351 = vector.extract_strided_slice %348 {offsets = [0, 0], sizes = [8, 16], strides = [1, 1]} : vector<16x128xbf16> to vector<8x16xbf16>
    %352 = vector.extract_strided_slice %349 {offsets = [0, 0], sizes = [8, 16], strides = [1, 1]} : vector<16x128xbf16> to vector<8x16xbf16>
    %cst_95 = arith.constant dense<0.000000e+00> : vector<8x8xf32>
    %353 = tpu.matmul %350, %351, %cst_95 {dimension_numbers = #tpu.dot_dimension_numbers<[1], [1], [0], [0], [0, 0, 1, 0], [], []>} : vector<8x16xbf16>, vector<8x16xbf16>, vector<8x8xf32> -> vector<8x8xf32>
    %cst_96 = arith.constant dense<0xFF800000> : vector<8xf32>
    %354 = vector.multi_reduction <maximumf>, %353, %cst_96 [1] : vector<8x8xf32> to vector<8xf32>
    %355 = vector.shape_cast %354 : vector<8xf32> to vector<8x1xf32>
    %356 = vector.broadcast %355 : vector<8x1xf32> to vector<8x8xf32>
    %357 = arith.subf %353, %356 : vector<8x8xf32>
    %358 = math.exp %357 : vector<8x8xf32>
    %cst_97 = arith.constant dense<0.000000e+00> : vector<8xf32>
    %359 = vector.multi_reduction <add>, %358, %cst_97 [1] : vector<8x8xf32> to vector<8xf32>
    %360 = vector.shape_cast %359 : vector<8xf32> to vector<8x1xf32>
    %361 = tpu.reciprocal %360 {approx = true} : vector<8x1xf32> -> vector<8x1xf32>
    %362 = vector.broadcast %361 : vector<8x1xf32> to vector<8x8xf32>
    %363 = arith.mulf %358, %362 : vector<8x8xf32>
    %364 = arith.truncf %363 : vector<8x8xf32> to vector<8x8xbf16>
    %cst_98 = arith.constant dense<0.000000e+00> : vector<8x16xf32>
    %365 = tpu.matmul %364, %352, %cst_98 {dimension_numbers = #tpu.dot_dimension_numbers<[1], [0], [0], [1], [0, 0, 1, 1], [], []>} : vector<8x8xbf16>, vector<8x16xbf16>, vector<8x16xf32> -> vector<8x16xf32>
    %366 = vector.extract_strided_slice %347 {offsets = [0, 16], sizes = [8, 16], strides = [1, 1]} : vector<16x128xbf16> to vector<8x16xbf16>
    %367 = vector.extract_strided_slice %348 {offsets = [0, 16], sizes = [8, 16], strides = [1, 1]} : vector<16x128xbf16> to vector<8x16xbf16>
    %368 = vector.extract_strided_slice %349 {offsets = [0, 16], sizes = [8, 16], strides = [1, 1]} : vector<16x128xbf16> to vector<8x16xbf16>
    %cst_99 = arith.constant dense<0.000000e+00> : vector<8x8xf32>
    %369 = tpu.matmul %366, %367, %cst_99 {dimension_numbers = #tpu.dot_dimension_numbers<[1], [1], [0], [0], [0, 0, 1, 0], [], []>} : vector<8x16xbf16>, vector<8x16xbf16>, vector<8x8xf32> -> vector<8x8xf32>
    %cst_100 = arith.constant dense<0xFF800000> : vector<8xf32>
    %370 = vector.multi_reduction <maximumf>, %369, %cst_100 [1] : vector<8x8xf32> to vector<8xf32>
    %371 = vector.shape_cast %370 : vector<8xf32> to vector<8x1xf32>
    %372 = vector.broadcast %371 : vector<8x1xf32> to vector<8x8xf32>
    %373 = arith.subf %369, %372 : vector<8x8xf32>
    %374 = math.exp %373 : vector<8x8xf32>
    %cst_101 = arith.constant dense<0.000000e+00> : vector<8xf32>
    %375 = vector.multi_reduction <add>, %374, %cst_101 [1] : vector<8x8xf32> to vector<8xf32>
    %376 = vector.shape_cast %375 : vector<8xf32> to vector<8x1xf32>
    %377 = tpu.reciprocal %376 {approx = true} : vector<8x1xf32> -> vector<8x1xf32>
    %378 = vector.broadcast %377 : vector<8x1xf32> to vector<8x8xf32>
    %379 = arith.mulf %374, %378 : vector<8x8xf32>
    %380 = arith.truncf %379 : vector<8x8xf32> to vector<8x8xbf16>
    %cst_102 = arith.constant dense<0.000000e+00> : vector<8x16xf32>
    %381 = tpu.matmul %380, %368, %cst_102 {dimension_numbers = #tpu.dot_dimension_numbers<[1], [0], [0], [1], [0, 0, 1, 1], [], []>} : vector<8x8xbf16>, vector<8x16xbf16>, vector<8x16xf32> -> vector<8x16xf32>
    %382 = vector.extract_strided_slice %347 {offsets = [0, 32], sizes = [8, 16], strides = [1, 1]} : vector<16x128xbf16> to vector<8x16xbf16>
    %383 = vector.extract_strided_slice %348 {offsets = [0, 32], sizes = [8, 16], strides = [1, 1]} : vector<16x128xbf16> to vector<8x16xbf16>
    %384 = vector.extract_strided_slice %349 {offsets = [0, 32], sizes = [8, 16], strides = [1, 1]} : vector<16x128xbf16> to vector<8x16xbf16>
    %cst_103 = arith.constant dense<0.000000e+00> : vector<8x8xf32>
    %385 = tpu.matmul %382, %383, %cst_103 {dimension_numbers = #tpu.dot_dimension_numbers<[1], [1], [0], [0], [0, 0, 1, 0], [], []>} : vector<8x16xbf16>, vector<8x16xbf16>, vector<8x8xf32> -> vector<8x8xf32>
    %cst_104 = arith.constant dense<0xFF800000> : vector<8xf32>
    %386 = vector.multi_reduction <maximumf>, %385, %cst_104 [1] : vector<8x8xf32> to vector<8xf32>
    %387 = vector.shape_cast %386 : vector<8xf32> to vector<8x1xf32>
    %388 = vector.broadcast %387 : vector<8x1xf32> to vector<8x8xf32>
    %389 = arith.subf %385, %388 : vector<8x8xf32>
    %390 = math.exp %389 : vector<8x8xf32>
    %cst_105 = arith.constant dense<0.000000e+00> : vector<8xf32>
    %391 = vector.multi_reduction <add>, %390, %cst_105 [1] : vector<8x8xf32> to vector<8xf32>
    %392 = vector.shape_cast %391 : vector<8xf32> to vector<8x1xf32>
    %393 = tpu.reciprocal %392 {approx = true} : vector<8x1xf32> -> vector<8x1xf32>
    %394 = vector.broadcast %393 : vector<8x1xf32> to vector<8x8xf32>
    %395 = arith.mulf %390, %394 : vector<8x8xf32>
    %396 = arith.truncf %395 : vector<8x8xf32> to vector<8x8xbf16>
    %cst_106 = arith.constant dense<0.000000e+00> : vector<8x16xf32>
    %397 = tpu.matmul %396, %384, %cst_106 {dimension_numbers = #tpu.dot_dimension_numbers<[1], [0], [0], [1], [0, 0, 1, 1], [], []>} : vector<8x8xbf16>, vector<8x16xbf16>, vector<8x16xf32> -> vector<8x16xf32>
    %398 = vector.extract_strided_slice %347 {offsets = [0, 48], sizes = [8, 16], strides = [1, 1]} : vector<16x128xbf16> to vector<8x16xbf16>
    %399 = vector.extract_strided_slice %348 {offsets = [0, 48], sizes = [8, 16], strides = [1, 1]} : vector<16x128xbf16> to vector<8x16xbf16>
    %400 = vector.extract_strided_slice %349 {offsets = [0, 48], sizes = [8, 16], strides = [1, 1]} : vector<16x128xbf16> to vector<8x16xbf16>
    %cst_107 = arith.constant dense<0.000000e+00> : vector<8x8xf32>
    %401 = tpu.matmul %398, %399, %cst_107 {dimension_numbers = #tpu.dot_dimension_numbers<[1], [1], [0], [0], [0, 0, 1, 0], [], []>} : vector<8x16xbf16>, vector<8x16xbf16>, vector<8x8xf32> -> vector<8x8xf32>
    %cst_108 = arith.constant dense<0xFF800000> : vector<8xf32>
    %402 = vector.multi_reduction <maximumf>, %401, %cst_108 [1] : vector<8x8xf32> to vector<8xf32>
    %403 = vector.shape_cast %402 : vector<8xf32> to vector<8x1xf32>
    %404 = vector.broadcast %403 : vector<8x1xf32> to vector<8x8xf32>
    %405 = arith.subf %401, %404 : vector<8x8xf32>
    %406 = math.exp %405 : vector<8x8xf32>
    %cst_109 = arith.constant dense<0.000000e+00> : vector<8xf32>
    %407 = vector.multi_reduction <add>, %406, %cst_109 [1] : vector<8x8xf32> to vector<8xf32>
    %408 = vector.shape_cast %407 : vector<8xf32> to vector<8x1xf32>
    %409 = tpu.reciprocal %408 {approx = true} : vector<8x1xf32> -> vector<8x1xf32>
    %410 = vector.broadcast %409 : vector<8x1xf32> to vector<8x8xf32>
    %411 = arith.mulf %406, %410 : vector<8x8xf32>
    %412 = arith.truncf %411 : vector<8x8xf32> to vector<8x8xbf16>
    %cst_110 = arith.constant dense<0.000000e+00> : vector<8x16xf32>
    %413 = tpu.matmul %412, %400, %cst_110 {dimension_numbers = #tpu.dot_dimension_numbers<[1], [0], [0], [1], [0, 0, 1, 1], [], []>} : vector<8x8xbf16>, vector<8x16xbf16>, vector<8x16xf32> -> vector<8x16xf32>
    %414 = vector.extract_strided_slice %347 {offsets = [0, 64], sizes = [8, 16], strides = [1, 1]} : vector<16x128xbf16> to vector<8x16xbf16>
    %415 = vector.extract_strided_slice %348 {offsets = [0, 64], sizes = [8, 16], strides = [1, 1]} : vector<16x128xbf16> to vector<8x16xbf16>
    %416 = vector.extract_strided_slice %349 {offsets = [0, 64], sizes = [8, 16], strides = [1, 1]} : vector<16x128xbf16> to vector<8x16xbf16>
    %cst_111 = arith.constant dense<0.000000e+00> : vector<8x8xf32>
    %417 = tpu.matmul %414, %415, %cst_111 {dimension_numbers = #tpu.dot_dimension_numbers<[1], [1], [0], [0], [0, 0, 1, 0], [], []>} : vector<8x16xbf16>, vector<8x16xbf16>, vector<8x8xf32> -> vector<8x8xf32>
    %cst_112 = arith.constant dense<0xFF800000> : vector<8xf32>
    %418 = vector.multi_reduction <maximumf>, %417, %cst_112 [1] : vector<8x8xf32> to vector<8xf32>
    %419 = vector.shape_cast %418 : vector<8xf32> to vector<8x1xf32>
    %420 = vector.broadcast %419 : vector<8x1xf32> to vector<8x8xf32>
    %421 = arith.subf %417, %420 : vector<8x8xf32>
    %422 = math.exp %421 : vector<8x8xf32>
    %cst_113 = arith.constant dense<0.000000e+00> : vector<8xf32>
    %423 = vector.multi_reduction <add>, %422, %cst_113 [1] : vector<8x8xf32> to vector<8xf32>
    %424 = vector.shape_cast %423 : vector<8xf32> to vector<8x1xf32>
    %425 = tpu.reciprocal %424 {approx = true} : vector<8x1xf32> -> vector<8x1xf32>
    %426 = vector.broadcast %425 : vector<8x1xf32> to vector<8x8xf32>
    %427 = arith.mulf %422, %426 : vector<8x8xf32>
    %428 = arith.truncf %427 : vector<8x8xf32> to vector<8x8xbf16>
    %cst_114 = arith.constant dense<0.000000e+00> : vector<8x16xf32>
    %429 = tpu.matmul %428, %416, %cst_114 {dimension_numbers = #tpu.dot_dimension_numbers<[1], [0], [0], [1], [0, 0, 1, 1], [], []>} : vector<8x8xbf16>, vector<8x16xbf16>, vector<8x16xf32> -> vector<8x16xf32>
    %430 = vector.extract_strided_slice %347 {offsets = [0, 80], sizes = [8, 16], strides = [1, 1]} : vector<16x128xbf16> to vector<8x16xbf16>
    %431 = vector.extract_strided_slice %348 {offsets = [0, 80], sizes = [8, 16], strides = [1, 1]} : vector<16x128xbf16> to vector<8x16xbf16>
    %432 = vector.extract_strided_slice %349 {offsets = [0, 80], sizes = [8, 16], strides = [1, 1]} : vector<16x128xbf16> to vector<8x16xbf16>
    %cst_115 = arith.constant dense<0.000000e+00> : vector<8x8xf32>
    %433 = tpu.matmul %430, %431, %cst_115 {dimension_numbers = #tpu.dot_dimension_numbers<[1], [1], [0], [0], [0, 0, 1, 0], [], []>} : vector<8x16xbf16>, vector<8x16xbf16>, vector<8x8xf32> -> vector<8x8xf32>
    %cst_116 = arith.constant dense<0xFF800000> : vector<8xf32>
    %434 = vector.multi_reduction <maximumf>, %433, %cst_116 [1] : vector<8x8xf32> to vector<8xf32>
    %435 = vector.shape_cast %434 : vector<8xf32> to vector<8x1xf32>
    %436 = vector.broadcast %435 : vector<8x1xf32> to vector<8x8xf32>
    %437 = arith.subf %433, %436 : vector<8x8xf32>
    %438 = math.exp %437 : vector<8x8xf32>
    %cst_117 = arith.constant dense<0.000000e+00> : vector<8xf32>
    %439 = vector.multi_reduction <add>, %438, %cst_117 [1] : vector<8x8xf32> to vector<8xf32>
    %440 = vector.shape_cast %439 : vector<8xf32> to vector<8x1xf32>
    %441 = tpu.reciprocal %440 {approx = true} : vector<8x1xf32> -> vector<8x1xf32>
    %442 = vector.broadcast %441 : vector<8x1xf32> to vector<8x8xf32>
    %443 = arith.mulf %438, %442 : vector<8x8xf32>
    %444 = arith.truncf %443 : vector<8x8xf32> to vector<8x8xbf16>
    %cst_118 = arith.constant dense<0.000000e+00> : vector<8x16xf32>
    %445 = tpu.matmul %444, %432, %cst_118 {dimension_numbers = #tpu.dot_dimension_numbers<[1], [0], [0], [1], [0, 0, 1, 1], [], []>} : vector<8x8xbf16>, vector<8x16xbf16>, vector<8x16xf32> -> vector<8x16xf32>
    %446 = vector.extract_strided_slice %347 {offsets = [0, 96], sizes = [8, 16], strides = [1, 1]} : vector<16x128xbf16> to vector<8x16xbf16>
    %447 = vector.extract_strided_slice %348 {offsets = [0, 96], sizes = [8, 16], strides = [1, 1]} : vector<16x128xbf16> to vector<8x16xbf16>
    %448 = vector.extract_strided_slice %349 {offsets = [0, 96], sizes = [8, 16], strides = [1, 1]} : vector<16x128xbf16> to vector<8x16xbf16>
    %cst_119 = arith.constant dense<0.000000e+00> : vector<8x8xf32>
    %449 = tpu.matmul %446, %447, %cst_119 {dimension_numbers = #tpu.dot_dimension_numbers<[1], [1], [0], [0], [0, 0, 1, 0], [], []>} : vector<8x16xbf16>, vector<8x16xbf16>, vector<8x8xf32> -> vector<8x8xf32>
    %cst_120 = arith.constant dense<0xFF800000> : vector<8xf32>
    %450 = vector.multi_reduction <maximumf>, %449, %cst_120 [1] : vector<8x8xf32> to vector<8xf32>
    %451 = vector.shape_cast %450 : vector<8xf32> to vector<8x1xf32>
    %452 = vector.broadcast %451 : vector<8x1xf32> to vector<8x8xf32>
    %453 = arith.subf %449, %452 : vector<8x8xf32>
    %454 = math.exp %453 : vector<8x8xf32>
    %cst_121 = arith.constant dense<0.000000e+00> : vector<8xf32>
    %455 = vector.multi_reduction <add>, %454, %cst_121 [1] : vector<8x8xf32> to vector<8xf32>
    %456 = vector.shape_cast %455 : vector<8xf32> to vector<8x1xf32>
    %457 = tpu.reciprocal %456 {approx = true} : vector<8x1xf32> -> vector<8x1xf32>
    %458 = vector.broadcast %457 : vector<8x1xf32> to vector<8x8xf32>
    %459 = arith.mulf %454, %458 : vector<8x8xf32>
    %460 = arith.truncf %459 : vector<8x8xf32> to vector<8x8xbf16>
    %cst_122 = arith.constant dense<0.000000e+00> : vector<8x16xf32>
    %461 = tpu.matmul %460, %448, %cst_122 {dimension_numbers = #tpu.dot_dimension_numbers<[1], [0], [0], [1], [0, 0, 1, 1], [], []>} : vector<8x8xbf16>, vector<8x16xbf16>, vector<8x16xf32> -> vector<8x16xf32>
    %462 = vector.extract_strided_slice %347 {offsets = [0, 112], sizes = [8, 16], strides = [1, 1]} : vector<16x128xbf16> to vector<8x16xbf16>
    %463 = vector.extract_strided_slice %348 {offsets = [0, 112], sizes = [8, 16], strides = [1, 1]} : vector<16x128xbf16> to vector<8x16xbf16>
    %464 = vector.extract_strided_slice %349 {offsets = [0, 112], sizes = [8, 16], strides = [1, 1]} : vector<16x128xbf16> to vector<8x16xbf16>
    %cst_123 = arith.constant dense<0.000000e+00> : vector<8x8xf32>
    %465 = tpu.matmul %462, %463, %cst_123 {dimension_numbers = #tpu.dot_dimension_numbers<[1], [1], [0], [0], [0, 0, 1, 0], [], []>} : vector<8x16xbf16>, vector<8x16xbf16>, vector<8x8xf32> -> vector<8x8xf32>
    %cst_124 = arith.constant dense<0xFF800000> : vector<8xf32>
    %466 = vector.multi_reduction <maximumf>, %465, %cst_124 [1] : vector<8x8xf32> to vector<8xf32>
    %467 = vector.shape_cast %466 : vector<8xf32> to vector<8x1xf32>
    %468 = vector.broadcast %467 : vector<8x1xf32> to vector<8x8xf32>
    %469 = arith.subf %465, %468 : vector<8x8xf32>
    %470 = math.exp %469 : vector<8x8xf32>
    %cst_125 = arith.constant dense<0.000000e+00> : vector<8xf32>
    %471 = vector.multi_reduction <add>, %470, %cst_125 [1] : vector<8x8xf32> to vector<8xf32>
    %472 = vector.shape_cast %471 : vector<8xf32> to vector<8x1xf32>
    %473 = tpu.reciprocal %472 {approx = true} : vector<8x1xf32> -> vector<8x1xf32>
    %474 = vector.broadcast %473 : vector<8x1xf32> to vector<8x8xf32>
    %475 = arith.mulf %470, %474 : vector<8x8xf32>
    %476 = arith.truncf %475 : vector<8x8xf32> to vector<8x8xbf16>
    %cst_126 = arith.constant dense<0.000000e+00> : vector<8x16xf32>
    %477 = tpu.matmul %476, %464, %cst_126 {dimension_numbers = #tpu.dot_dimension_numbers<[1], [0], [0], [1], [0, 0, 1, 1], [], []>} : vector<8x8xbf16>, vector<8x16xbf16>, vector<8x16xf32> -> vector<8x16xf32>
    %478 = vector.extract_strided_slice %347 {offsets = [8, 0], sizes = [8, 16], strides = [1, 1]} : vector<16x128xbf16> to vector<8x16xbf16>
    %479 = vector.extract_strided_slice %348 {offsets = [8, 0], sizes = [8, 16], strides = [1, 1]} : vector<16x128xbf16> to vector<8x16xbf16>
    %480 = vector.extract_strided_slice %349 {offsets = [8, 0], sizes = [8, 16], strides = [1, 1]} : vector<16x128xbf16> to vector<8x16xbf16>
    %cst_127 = arith.constant dense<0.000000e+00> : vector<8x8xf32>
    %481 = tpu.matmul %478, %479, %cst_127 {dimension_numbers = #tpu.dot_dimension_numbers<[1], [1], [0], [0], [0, 0, 1, 0], [], []>} : vector<8x16xbf16>, vector<8x16xbf16>, vector<8x8xf32> -> vector<8x8xf32>
    %cst_128 = arith.constant dense<0xFF800000> : vector<8xf32>
    %482 = vector.multi_reduction <maximumf>, %481, %cst_128 [1] : vector<8x8xf32> to vector<8xf32>
    %483 = vector.shape_cast %482 : vector<8xf32> to vector<8x1xf32>
    %484 = vector.broadcast %483 : vector<8x1xf32> to vector<8x8xf32>
    %485 = arith.subf %481, %484 : vector<8x8xf32>
    %486 = math.exp %485 : vector<8x8xf32>
    %cst_129 = arith.constant dense<0.000000e+00> : vector<8xf32>
    %487 = vector.multi_reduction <add>, %486, %cst_129 [1] : vector<8x8xf32> to vector<8xf32>
    %488 = vector.shape_cast %487 : vector<8xf32> to vector<8x1xf32>
    %489 = tpu.reciprocal %488 {approx = true} : vector<8x1xf32> -> vector<8x1xf32>
    %490 = vector.broadcast %489 : vector<8x1xf32> to vector<8x8xf32>
    %491 = arith.mulf %486, %490 : vector<8x8xf32>
    %492 = arith.truncf %491 : vector<8x8xf32> to vector<8x8xbf16>
    %cst_130 = arith.constant dense<0.000000e+00> : vector<8x16xf32>
    %493 = tpu.matmul %492, %480, %cst_130 {dimension_numbers = #tpu.dot_dimension_numbers<[1], [0], [0], [1], [0, 0, 1, 1], [], []>} : vector<8x8xbf16>, vector<8x16xbf16>, vector<8x16xf32> -> vector<8x16xf32>
    %494 = vector.extract_strided_slice %347 {offsets = [8, 16], sizes = [8, 16], strides = [1, 1]} : vector<16x128xbf16> to vector<8x16xbf16>
    %495 = vector.extract_strided_slice %348 {offsets = [8, 16], sizes = [8, 16], strides = [1, 1]} : vector<16x128xbf16> to vector<8x16xbf16>
    %496 = vector.extract_strided_slice %349 {offsets = [8, 16], sizes = [8, 16], strides = [1, 1]} : vector<16x128xbf16> to vector<8x16xbf16>
    %cst_131 = arith.constant dense<0.000000e+00> : vector<8x8xf32>
    %497 = tpu.matmul %494, %495, %cst_131 {dimension_numbers = #tpu.dot_dimension_numbers<[1], [1], [0], [0], [0, 0, 1, 0], [], []>} : vector<8x16xbf16>, vector<8x16xbf16>, vector<8x8xf32> -> vector<8x8xf32>
    %cst_132 = arith.constant dense<0xFF800000> : vector<8xf32>
    %498 = vector.multi_reduction <maximumf>, %497, %cst_132 [1] : vector<8x8xf32> to vector<8xf32>
    %499 = vector.shape_cast %498 : vector<8xf32> to vector<8x1xf32>
    %500 = vector.broadcast %499 : vector<8x1xf32> to vector<8x8xf32>
    %501 = arith.subf %497, %500 : vector<8x8xf32>
    %502 = math.exp %501 : vector<8x8xf32>
    %cst_133 = arith.constant dense<0.000000e+00> : vector<8xf32>
    %503 = vector.multi_reduction <add>, %502, %cst_133 [1] : vector<8x8xf32> to vector<8xf32>
    %504 = vector.shape_cast %503 : vector<8xf32> to vector<8x1xf32>
    %505 = tpu.reciprocal %504 {approx = true} : vector<8x1xf32> -> vector<8x1xf32>
    %506 = vector.broadcast %505 : vector<8x1xf32> to vector<8x8xf32>
    %507 = arith.mulf %502, %506 : vector<8x8xf32>
    %508 = arith.truncf %507 : vector<8x8xf32> to vector<8x8xbf16>
    %cst_134 = arith.constant dense<0.000000e+00> : vector<8x16xf32>
    %509 = tpu.matmul %508, %496, %cst_134 {dimension_numbers = #tpu.dot_dimension_numbers<[1], [0], [0], [1], [0, 0, 1, 1], [], []>} : vector<8x8xbf16>, vector<8x16xbf16>, vector<8x16xf32> -> vector<8x16xf32>
    %510 = vector.extract_strided_slice %347 {offsets = [8, 32], sizes = [8, 16], strides = [1, 1]} : vector<16x128xbf16> to vector<8x16xbf16>
    %511 = vector.extract_strided_slice %348 {offsets = [8, 32], sizes = [8, 16], strides = [1, 1]} : vector<16x128xbf16> to vector<8x16xbf16>
    %512 = vector.extract_strided_slice %349 {offsets = [8, 32], sizes = [8, 16], strides = [1, 1]} : vector<16x128xbf16> to vector<8x16xbf16>
    %cst_135 = arith.constant dense<0.000000e+00> : vector<8x8xf32>
    %513 = tpu.matmul %510, %511, %cst_135 {dimension_numbers = #tpu.dot_dimension_numbers<[1], [1], [0], [0], [0, 0, 1, 0], [], []>} : vector<8x16xbf16>, vector<8x16xbf16>, vector<8x8xf32> -> vector<8x8xf32>
    %cst_136 = arith.constant dense<0xFF800000> : vector<8xf32>
    %514 = vector.multi_reduction <maximumf>, %513, %cst_136 [1] : vector<8x8xf32> to vector<8xf32>
    %515 = vector.shape_cast %514 : vector<8xf32> to vector<8x1xf32>
    %516 = vector.broadcast %515 : vector<8x1xf32> to vector<8x8xf32>
    %517 = arith.subf %513, %516 : vector<8x8xf32>
    %518 = math.exp %517 : vector<8x8xf32>
    %cst_137 = arith.constant dense<0.000000e+00> : vector<8xf32>
    %519 = vector.multi_reduction <add>, %518, %cst_137 [1] : vector<8x8xf32> to vector<8xf32>
    %520 = vector.shape_cast %519 : vector<8xf32> to vector<8x1xf32>
    %521 = tpu.reciprocal %520 {approx = true} : vector<8x1xf32> -> vector<8x1xf32>
    %522 = vector.broadcast %521 : vector<8x1xf32> to vector<8x8xf32>
    %523 = arith.mulf %518, %522 : vector<8x8xf32>
    %524 = arith.truncf %523 : vector<8x8xf32> to vector<8x8xbf16>
    %cst_138 = arith.constant dense<0.000000e+00> : vector<8x16xf32>
    %525 = tpu.matmul %524, %512, %cst_138 {dimension_numbers = #tpu.dot_dimension_numbers<[1], [0], [0], [1], [0, 0, 1, 1], [], []>} : vector<8x8xbf16>, vector<8x16xbf16>, vector<8x16xf32> -> vector<8x16xf32>
    %526 = vector.extract_strided_slice %347 {offsets = [8, 48], sizes = [8, 16], strides = [1, 1]} : vector<16x128xbf16> to vector<8x16xbf16>
    %527 = vector.extract_strided_slice %348 {offsets = [8, 48], sizes = [8, 16], strides = [1, 1]} : vector<16x128xbf16> to vector<8x16xbf16>
    %528 = vector.extract_strided_slice %349 {offsets = [8, 48], sizes = [8, 16], strides = [1, 1]} : vector<16x128xbf16> to vector<8x16xbf16>
    %cst_139 = arith.constant dense<0.000000e+00> : vector<8x8xf32>
    %529 = tpu.matmul %526, %527, %cst_139 {dimension_numbers = #tpu.dot_dimension_numbers<[1], [1], [0], [0], [0, 0, 1, 0], [], []>} : vector<8x16xbf16>, vector<8x16xbf16>, vector<8x8xf32> -> vector<8x8xf32>
    %cst_140 = arith.constant dense<0xFF800000> : vector<8xf32>
    %530 = vector.multi_reduction <maximumf>, %529, %cst_140 [1] : vector<8x8xf32> to vector<8xf32>
    %531 = vector.shape_cast %530 : vector<8xf32> to vector<8x1xf32>
    %532 = vector.broadcast %531 : vector<8x1xf32> to vector<8x8xf32>
    %533 = arith.subf %529, %532 : vector<8x8xf32>
    %534 = math.exp %533 : vector<8x8xf32>
    %cst_141 = arith.constant dense<0.000000e+00> : vector<8xf32>
    %535 = vector.multi_reduction <add>, %534, %cst_141 [1] : vector<8x8xf32> to vector<8xf32>
    %536 = vector.shape_cast %535 : vector<8xf32> to vector<8x1xf32>
    %537 = tpu.reciprocal %536 {approx = true} : vector<8x1xf32> -> vector<8x1xf32>
    %538 = vector.broadcast %537 : vector<8x1xf32> to vector<8x8xf32>
    %539 = arith.mulf %534, %538 : vector<8x8xf32>
    %540 = arith.truncf %539 : vector<8x8xf32> to vector<8x8xbf16>
    %cst_142 = arith.constant dense<0.000000e+00> : vector<8x16xf32>
    %541 = tpu.matmul %540, %528, %cst_142 {dimension_numbers = #tpu.dot_dimension_numbers<[1], [0], [0], [1], [0, 0, 1, 1], [], []>} : vector<8x8xbf16>, vector<8x16xbf16>, vector<8x16xf32> -> vector<8x16xf32>
    %542 = vector.extract_strided_slice %347 {offsets = [8, 64], sizes = [8, 16], strides = [1, 1]} : vector<16x128xbf16> to vector<8x16xbf16>
    %543 = vector.extract_strided_slice %348 {offsets = [8, 64], sizes = [8, 16], strides = [1, 1]} : vector<16x128xbf16> to vector<8x16xbf16>
    %544 = vector.extract_strided_slice %349 {offsets = [8, 64], sizes = [8, 16], strides = [1, 1]} : vector<16x128xbf16> to vector<8x16xbf16>
    %cst_143 = arith.constant dense<0.000000e+00> : vector<8x8xf32>
    %545 = tpu.matmul %542, %543, %cst_143 {dimension_numbers = #tpu.dot_dimension_numbers<[1], [1], [0], [0], [0, 0, 1, 0], [], []>} : vector<8x16xbf16>, vector<8x16xbf16>, vector<8x8xf32> -> vector<8x8xf32>
    %cst_144 = arith.constant dense<0xFF800000> : vector<8xf32>
    %546 = vector.multi_reduction <maximumf>, %545, %cst_144 [1] : vector<8x8xf32> to vector<8xf32>
    %547 = vector.shape_cast %546 : vector<8xf32> to vector<8x1xf32>
    %548 = vector.broadcast %547 : vector<8x1xf32> to vector<8x8xf32>
    %549 = arith.subf %545, %548 : vector<8x8xf32>
    %550 = math.exp %549 : vector<8x8xf32>
    %cst_145 = arith.constant dense<0.000000e+00> : vector<8xf32>
    %551 = vector.multi_reduction <add>, %550, %cst_145 [1] : vector<8x8xf32> to vector<8xf32>
    %552 = vector.shape_cast %551 : vector<8xf32> to vector<8x1xf32>
    %553 = tpu.reciprocal %552 {approx = true} : vector<8x1xf32> -> vector<8x1xf32>
    %554 = vector.broadcast %553 : vector<8x1xf32> to vector<8x8xf32>
    %555 = arith.mulf %550, %554 : vector<8x8xf32>
    %556 = arith.truncf %555 : vector<8x8xf32> to vector<8x8xbf16>
    %cst_146 = arith.constant dense<0.000000e+00> : vector<8x16xf32>
    %557 = tpu.matmul %556, %544, %cst_146 {dimension_numbers = #tpu.dot_dimension_numbers<[1], [0], [0], [1], [0, 0, 1, 1], [], []>} : vector<8x8xbf16>, vector<8x16xbf16>, vector<8x16xf32> -> vector<8x16xf32>
    %558 = vector.extract_strided_slice %347 {offsets = [8, 80], sizes = [8, 16], strides = [1, 1]} : vector<16x128xbf16> to vector<8x16xbf16>
    %559 = vector.extract_strided_slice %348 {offsets = [8, 80], sizes = [8, 16], strides = [1, 1]} : vector<16x128xbf16> to vector<8x16xbf16>
    %560 = vector.extract_strided_slice %349 {offsets = [8, 80], sizes = [8, 16], strides = [1, 1]} : vector<16x128xbf16> to vector<8x16xbf16>
    %cst_147 = arith.constant dense<0.000000e+00> : vector<8x8xf32>
    %561 = tpu.matmul %558, %559, %cst_147 {dimension_numbers = #tpu.dot_dimension_numbers<[1], [1], [0], [0], [0, 0, 1, 0], [], []>} : vector<8x16xbf16>, vector<8x16xbf16>, vector<8x8xf32> -> vector<8x8xf32>
    %cst_148 = arith.constant dense<0xFF800000> : vector<8xf32>
    %562 = vector.multi_reduction <maximumf>, %561, %cst_148 [1] : vector<8x8xf32> to vector<8xf32>
    %563 = vector.shape_cast %562 : vector<8xf32> to vector<8x1xf32>
    %564 = vector.broadcast %563 : vector<8x1xf32> to vector<8x8xf32>
    %565 = arith.subf %561, %564 : vector<8x8xf32>
    %566 = math.exp %565 : vector<8x8xf32>
    %cst_149 = arith.constant dense<0.000000e+00> : vector<8xf32>
    %567 = vector.multi_reduction <add>, %566, %cst_149 [1] : vector<8x8xf32> to vector<8xf32>
    %568 = vector.shape_cast %567 : vector<8xf32> to vector<8x1xf32>
    %569 = tpu.reciprocal %568 {approx = true} : vector<8x1xf32> -> vector<8x1xf32>
    %570 = vector.broadcast %569 : vector<8x1xf32> to vector<8x8xf32>
    %571 = arith.mulf %566, %570 : vector<8x8xf32>
    %572 = arith.truncf %571 : vector<8x8xf32> to vector<8x8xbf16>
    %cst_150 = arith.constant dense<0.000000e+00> : vector<8x16xf32>
    %573 = tpu.matmul %572, %560, %cst_150 {dimension_numbers = #tpu.dot_dimension_numbers<[1], [0], [0], [1], [0, 0, 1, 1], [], []>} : vector<8x8xbf16>, vector<8x16xbf16>, vector<8x16xf32> -> vector<8x16xf32>
    %574 = vector.extract_strided_slice %347 {offsets = [8, 96], sizes = [8, 16], strides = [1, 1]} : vector<16x128xbf16> to vector<8x16xbf16>
    %575 = vector.extract_strided_slice %348 {offsets = [8, 96], sizes = [8, 16], strides = [1, 1]} : vector<16x128xbf16> to vector<8x16xbf16>
    %576 = vector.extract_strided_slice %349 {offsets = [8, 96], sizes = [8, 16], strides = [1, 1]} : vector<16x128xbf16> to vector<8x16xbf16>
    %cst_151 = arith.constant dense<0.000000e+00> : vector<8x8xf32>
    %577 = tpu.matmul %574, %575, %cst_151 {dimension_numbers = #tpu.dot_dimension_numbers<[1], [1], [0], [0], [0, 0, 1, 0], [], []>} : vector<8x16xbf16>, vector<8x16xbf16>, vector<8x8xf32> -> vector<8x8xf32>
    %cst_152 = arith.constant dense<0xFF800000> : vector<8xf32>
    %578 = vector.multi_reduction <maximumf>, %577, %cst_152 [1] : vector<8x8xf32> to vector<8xf32>
    %579 = vector.shape_cast %578 : vector<8xf32> to vector<8x1xf32>
    %580 = vector.broadcast %579 : vector<8x1xf32> to vector<8x8xf32>
    %581 = arith.subf %577, %580 : vector<8x8xf32>
    %582 = math.exp %581 : vector<8x8xf32>
    %cst_153 = arith.constant dense<0.000000e+00> : vector<8xf32>
    %583 = vector.multi_reduction <add>, %582, %cst_153 [1] : vector<8x8xf32> to vector<8xf32>
    %584 = vector.shape_cast %583 : vector<8xf32> to vector<8x1xf32>
    %585 = tpu.reciprocal %584 {approx = true} : vector<8x1xf32> -> vector<8x1xf32>
    %586 = vector.broadcast %585 : vector<8x1xf32> to vector<8x8xf32>
    %587 = arith.mulf %582, %586 : vector<8x8xf32>
    %588 = arith.truncf %587 : vector<8x8xf32> to vector<8x8xbf16>
    %cst_154 = arith.constant dense<0.000000e+00> : vector<8x16xf32>
    %589 = tpu.matmul %588, %576, %cst_154 {dimension_numbers = #tpu.dot_dimension_numbers<[1], [0], [0], [1], [0, 0, 1, 1], [], []>} : vector<8x8xbf16>, vector<8x16xbf16>, vector<8x16xf32> -> vector<8x16xf32>
    %590 = vector.extract_strided_slice %347 {offsets = [8, 112], sizes = [8, 16], strides = [1, 1]} : vector<16x128xbf16> to vector<8x16xbf16>
    %591 = vector.extract_strided_slice %348 {offsets = [8, 112], sizes = [8, 16], strides = [1, 1]} : vector<16x128xbf16> to vector<8x16xbf16>
    %592 = vector.extract_strided_slice %349 {offsets = [8, 112], sizes = [8, 16], strides = [1, 1]} : vector<16x128xbf16> to vector<8x16xbf16>
    %cst_155 = arith.constant dense<0.000000e+00> : vector<8x8xf32>
    %593 = tpu.matmul %590, %591, %cst_155 {dimension_numbers = #tpu.dot_dimension_numbers<[1], [1], [0], [0], [0, 0, 1, 0], [], []>} : vector<8x16xbf16>, vector<8x16xbf16>, vector<8x8xf32> -> vector<8x8xf32>
    %cst_156 = arith.constant dense<0xFF800000> : vector<8xf32>
    %594 = vector.multi_reduction <maximumf>, %593, %cst_156 [1] : vector<8x8xf32> to vector<8xf32>
    %595 = vector.shape_cast %594 : vector<8xf32> to vector<8x1xf32>
    %596 = vector.broadcast %595 : vector<8x1xf32> to vector<8x8xf32>
    %597 = arith.subf %593, %596 : vector<8x8xf32>
    %598 = math.exp %597 : vector<8x8xf32>
    %cst_157 = arith.constant dense<0.000000e+00> : vector<8xf32>
    %599 = vector.multi_reduction <add>, %598, %cst_157 [1] : vector<8x8xf32> to vector<8xf32>
    %600 = vector.shape_cast %599 : vector<8xf32> to vector<8x1xf32>
    %601 = tpu.reciprocal %600 {approx = true} : vector<8x1xf32> -> vector<8x1xf32>
    %602 = vector.broadcast %601 : vector<8x1xf32> to vector<8x8xf32>
    %603 = arith.mulf %598, %602 : vector<8x8xf32>
    %604 = arith.truncf %603 : vector<8x8xf32> to vector<8x8xbf16>
    %cst_158 = arith.constant dense<0.000000e+00> : vector<8x16xf32>
    %605 = tpu.matmul %604, %592, %cst_158 {dimension_numbers = #tpu.dot_dimension_numbers<[1], [0], [0], [1], [0, 0, 1, 1], [], []>} : vector<8x8xbf16>, vector<8x16xbf16>, vector<8x16xf32> -> vector<8x16xf32>
    %606 = tpu.concatenate %365, %381, %397, %413, %429, %445, %461, %477, %493, %509, %525, %541, %557, %573, %589, %605 in 0 : vector<8x16xf32>, vector<8x16xf32>, vector<8x16xf32>, vector<8x16xf32>, vector<8x16xf32>, vector<8x16xf32>, vector<8x16xf32>, vector<8x16xf32>, vector<8x16xf32>, vector<8x16xf32>, vector<8x16xf32>, vector<8x16xf32>, vector<8x16xf32>, vector<8x16xf32>, vector<8x16xf32>, vector<8x16xf32> -> vector<128x16xf32>
    %cst_159 = arith.constant dense<0.000000e+00> : vector<128x128xf32>
    %607 = tpu.matmul %606, %3, %cst_159 {dimension_numbers = #tpu.dot_dimension_numbers<[1], [0], [0], [1], [0, 0, 1, 1], [], []>} : vector<128x16xf32>, vector<16x128xf32>, vector<128x128xf32> -> vector<128x128xf32>
    %608 = arith.mulf %607, %4 : vector<128x128xf32>
    %cst_160 = arith.constant dense<0.000000e+00> : vector<16x128xf32>
    %609 = tpu.matmul %5, %608, %cst_160 {dimension_numbers = #tpu.dot_dimension_numbers<[1], [0], [0], [1], [0, 0, 1, 1], [], []>} : vector<16x128xf32>, vector<128x128xf32>, vector<16x128xf32> -> vector<16x128xf32>
    %610 = arith.truncf %609 : vector<16x128xf32> to vector<16x128xbf16>
    %c0_161 = arith.constant 0 : index
    %c0_162 = arith.constant 0 : index
    %611 = vector.load %arg11[%c0_161, %c0_162] : memref<128x128xbf16, #tpu.memory_space<vmem>>, vector<128x128xbf16>
    %cst_163 = arith.constant dense<0.000000e+00> : vector<16x128xf32>
    %612 = tpu.matmul %610, %611, %cst_163 {dimension_numbers = #tpu.dot_dimension_numbers<[1], [0], [0], [1], [0, 0, 1, 1], [], []>} : vector<16x128xbf16>, vector<128x128xbf16>, vector<16x128xf32> -> vector<16x128xf32>
    %613 = vector.extract_strided_slice %2 {offsets = [9, 0], sizes = [1, 128], strides = [1, 1]} : vector<15x128xf32> to vector<1x128xf32>
    %614 = vector.broadcast %613 : vector<1x128xf32> to vector<16x128xf32>
    %615 = arith.addf %612, %614 : vector<16x128xf32>
    %616 = arith.addf %615, %329 : vector<16x128xf32>
    %617 = vector.extract_strided_slice %2 {offsets = [10, 0], sizes = [1, 128], strides = [1, 1]} : vector<15x128xf32> to vector<1x128xf32>
    %618 = vector.extract_strided_slice %2 {offsets = [11, 0], sizes = [1, 128], strides = [1, 1]} : vector<15x128xf32> to vector<1x128xf32>
    %cst_164 = arith.constant dense<0.000000e+00> : vector<16xf32>
    %619 = vector.multi_reduction <add>, %616, %cst_164 [1] : vector<16x128xf32> to vector<16xf32>
    %620 = vector.shape_cast %619 : vector<16xf32> to vector<16x1xf32>
    %cst_165 = arith.constant 1.280000e+02 : f32
    %621 = vector.broadcast %cst_165 : f32 to vector<16x1xf32>
    %622 = arith.divf %620, %621 : vector<16x1xf32>
    %623 = vector.broadcast %622 : vector<16x1xf32> to vector<16x128xf32>
    %624 = arith.subf %616, %623 : vector<16x128xf32>
    %625 = arith.mulf %624, %624 : vector<16x128xf32>
    %cst_166 = arith.constant dense<0.000000e+00> : vector<16xf32>
    %626 = vector.multi_reduction <add>, %625, %cst_166 [1] : vector<16x128xf32> to vector<16xf32>
    %627 = vector.shape_cast %626 : vector<16xf32> to vector<16x1xf32>
    %cst_167 = arith.constant 1.280000e+02 : f32
    %628 = vector.broadcast %cst_167 : f32 to vector<16x1xf32>
    %629 = arith.divf %627, %628 : vector<16x1xf32>
    %cst_168 = arith.constant 9.99999974E-6 : f32
    %630 = vector.broadcast %cst_168 : f32 to vector<16x1xf32>
    %631 = arith.addf %629, %630 : vector<16x1xf32>
    %632 = math.rsqrt %631 : vector<16x1xf32>
    %633 = vector.broadcast %632 : vector<16x1xf32> to vector<16x128xf32>
    %634 = arith.mulf %624, %633 : vector<16x128xf32>
    %635 = vector.broadcast %617 : vector<1x128xf32> to vector<16x128xf32>
    %636 = arith.mulf %634, %635 : vector<16x128xf32>
    %637 = vector.broadcast %618 : vector<1x128xf32> to vector<16x128xf32>
    %638 = arith.addf %636, %637 : vector<16x128xf32>
    %639 = arith.truncf %638 : vector<16x128xf32> to vector<16x128xbf16>
    %c0_169 = arith.constant 0 : index
    %c0_170 = arith.constant 0 : index
    %640 = vector.load %arg12[%c0_169, %c0_170] : memref<128x256xbf16, #tpu.memory_space<vmem>>, vector<128x256xbf16>
    %cst_171 = arith.constant dense<0.000000e+00> : vector<16x256xf32>
    %641 = tpu.matmul %639, %640, %cst_171 {dimension_numbers = #tpu.dot_dimension_numbers<[1], [0], [0], [1], [0, 0, 1, 1], [], []>} : vector<16x128xbf16>, vector<128x256xbf16>, vector<16x256xf32> -> vector<16x256xf32>
    %c0_172 = arith.constant 0 : index
    %c0_173 = arith.constant 0 : index
    %642 = vector.load %arg13[%c0_172, %c0_173] : memref<1x256xf32, #tpu.memory_space<vmem>>, vector<1x256xf32>
    %643 = vector.broadcast %642 : vector<1x256xf32> to vector<16x256xf32>
    %644 = arith.addf %641, %643 : vector<16x256xf32>
    %cst_174 = arith.constant 0.000000e+00 : f32
    %645 = vector.broadcast %cst_174 : f32 to vector<16x256xf32>
    %646 = arith.maximumf %644, %645 : vector<16x256xf32>
    %647 = arith.truncf %646 : vector<16x256xf32> to vector<16x256xbf16>
    %c0_175 = arith.constant 0 : index
    %c0_176 = arith.constant 0 : index
    %648 = vector.load %arg14[%c0_175, %c0_176] : memref<256x128xbf16, #tpu.memory_space<vmem>>, vector<256x128xbf16>
    %cst_177 = arith.constant dense<0.000000e+00> : vector<16x128xf32>
    %649 = tpu.matmul %647, %648, %cst_177 {dimension_numbers = #tpu.dot_dimension_numbers<[1], [0], [0], [1], [0, 0, 1, 1], [], []>} : vector<16x256xbf16>, vector<256x128xbf16>, vector<16x128xf32> -> vector<16x128xf32>
    %650 = vector.extract_strided_slice %2 {offsets = [12, 0], sizes = [1, 128], strides = [1, 1]} : vector<15x128xf32> to vector<1x128xf32>
    %651 = vector.broadcast %650 : vector<1x128xf32> to vector<16x128xf32>
    %652 = arith.addf %649, %651 : vector<16x128xf32>
    %653 = arith.addf %652, %638 : vector<16x128xf32>
    %654 = vector.extract_strided_slice %2 {offsets = [13, 0], sizes = [1, 128], strides = [1, 1]} : vector<15x128xf32> to vector<1x128xf32>
    %655 = vector.extract_strided_slice %2 {offsets = [14, 0], sizes = [1, 128], strides = [1, 1]} : vector<15x128xf32> to vector<1x128xf32>
    %cst_178 = arith.constant dense<0.000000e+00> : vector<16xf32>
    %656 = vector.multi_reduction <add>, %653, %cst_178 [1] : vector<16x128xf32> to vector<16xf32>
    %657 = vector.shape_cast %656 : vector<16xf32> to vector<16x1xf32>
    %cst_179 = arith.constant 1.280000e+02 : f32
    %658 = vector.broadcast %cst_179 : f32 to vector<16x1xf32>
    %659 = arith.divf %657, %658 : vector<16x1xf32>
    %660 = vector.broadcast %659 : vector<16x1xf32> to vector<16x128xf32>
    %661 = arith.subf %653, %660 : vector<16x128xf32>
    %662 = arith.mulf %661, %661 : vector<16x128xf32>
    %cst_180 = arith.constant dense<0.000000e+00> : vector<16xf32>
    %663 = vector.multi_reduction <add>, %662, %cst_180 [1] : vector<16x128xf32> to vector<16xf32>
    %664 = vector.shape_cast %663 : vector<16xf32> to vector<16x1xf32>
    %cst_181 = arith.constant 1.280000e+02 : f32
    %665 = vector.broadcast %cst_181 : f32 to vector<16x1xf32>
    %666 = arith.divf %664, %665 : vector<16x1xf32>
    %cst_182 = arith.constant 9.99999974E-6 : f32
    %667 = vector.broadcast %cst_182 : f32 to vector<16x1xf32>
    %668 = arith.addf %666, %667 : vector<16x1xf32>
    %669 = math.rsqrt %668 : vector<16x1xf32>
    %670 = vector.broadcast %669 : vector<16x1xf32> to vector<16x128xf32>
    %671 = arith.mulf %661, %670 : vector<16x128xf32>
    %672 = vector.broadcast %654 : vector<1x128xf32> to vector<16x128xf32>
    %673 = arith.mulf %671, %672 : vector<16x128xf32>
    %674 = vector.broadcast %655 : vector<1x128xf32> to vector<16x128xf32>
    %675 = arith.addf %673, %674 : vector<16x128xf32>
    %c0_183 = arith.constant 0 : index
    %c0_184 = arith.constant 0 : index
    %676 = vector.load %arg16[%c0_183, %c0_184] : memref<16x128xf32, #tpu.memory_space<vmem>>, vector<16x128xf32>
    tpu.vector_store %arg16[%c0_183, %c0_184], %675 {strides = array<i32>} : memref<16x128xf32, #tpu.memory_space<vmem>>, vector<16x128xf32>,
    return
  }
  func.func @transform_0(%arg0: i32) -> (i32, i32) {
    %c0_i32 = arith.constant 0 : i32
    %c0_i32_0 = arith.constant 0 : i32
    %c0_i32_1 = arith.constant 0 : i32
    return %c0_i32, %c0_i32_0 : i32, i32
  }
  func.func @transform_1(%arg0: i32) -> (i32, i32) {
    %c0_i32 = arith.constant 0 : i32
    %c0_i32_0 = arith.constant 0 : i32
    %c0_i32_1 = arith.constant 0 : i32
    return %c0_i32, %c0_i32_0 : i32, i32
  }
  func.func @transform_2(%arg0: i32) -> (i32, i32) {
    %c0_i32 = arith.constant 0 : i32
    %c0_i32_0 = arith.constant 0 : i32
    %c0_i32_1 = arith.constant 0 : i32
    return %c0_i32, %c0_i32_0 : i32, i32
  }
  func.func @transform_3(%arg0: i32) -> (i32, i32) {
    %c0_i32 = arith.constant 0 : i32
    %c0_i32_0 = arith.constant 0 : i32
    %c0_i32_1 = arith.constant 0 : i32
    return %c0_i32, %c0_i32_0 : i32, i32
  }
  func.func @transform_4(%arg0: i32) -> (i32, i32) {
    %c0_i32 = arith.constant 0 : i32
    %c0_i32_0 = arith.constant 0 : i32
    %c0_i32_1 = arith.constant 0 : i32
    return %c0_i32, %c0_i32_0 : i32, i32
  }
  func.func @transform_5(%arg0: i32) -> (i32, i32) {
    %c0_i32 = arith.constant 0 : i32
    %c0_i32_0 = arith.constant 0 : i32
    %c0_i32_1 = arith.constant 0 : i32
    return %c0_i32, %c0_i32_0 : i32, i32
  }
  func.func @transform_6(%arg0: i32) -> (i32, i32) {
    %c0_i32 = arith.constant 0 : i32
    %c0_i32_0 = arith.constant 0 : i32
    %c0_i32_1 = arith.constant 0 : i32
    return %c0_i32, %c0_i32_0 : i32, i32
  }
  func.func @transform_7(%arg0: i32) -> (i32, i32) {
    %c0_i32 = arith.constant 0 : i32
    %c0_i32_0 = arith.constant 0 : i32
    %c0_i32_1 = arith.constant 0 : i32
    return %c0_i32, %c0_i32_0 : i32, i32
  }
  func.func @transform_8(%arg0: i32) -> (i32, i32) {
    %c0_i32 = arith.constant 0 : i32
    %c0_i32_0 = arith.constant 0 : i32
    %c0_i32_1 = arith.constant 0 : i32
    return %c0_i32, %c0_i32_0 : i32, i32
  }
  func.func @transform_9(%arg0: i32) -> (i32, i32) {
    %c0_i32 = arith.constant 0 : i32
    %c0_i32_0 = arith.constant 0 : i32
    %c0_i32_1 = arith.constant 0 : i32
    return %c0_i32, %c0_i32_0 : i32, i32
  }
  func.func @transform_10(%arg0: i32) -> (i32, i32) {
    %c0_i32 = arith.constant 0 : i32
    %c0_i32_0 = arith.constant 0 : i32
    %c0_i32_1 = arith.constant 0 : i32
    return %c0_i32, %c0_i32_0 : i32, i32
  }
  func.func @transform_11(%arg0: i32) -> (i32, i32) {
    %c0_i32 = arith.constant 0 : i32
    %c0_i32_0 = arith.constant 0 : i32
    %c0_i32_1 = arith.constant 0 : i32
    return %c0_i32, %c0_i32_0 : i32, i32
  }
  func.func @transform_12(%arg0: i32) -> (i32, i32) {
    %c0_i32 = arith.constant 0 : i32
    %c0_i32_0 = arith.constant 0 : i32
    %c0_i32_1 = arith.constant 0 : i32
    return %c0_i32, %c0_i32_0 : i32, i32
  }
  func.func @transform_13(%arg0: i32) -> (i32, i32) {
    %c0_i32 = arith.constant 0 : i32
    %c0_i32_0 = arith.constant 0 : i32
    %c0_i32_1 = arith.constant 0 : i32
    return %c0_i32, %c0_i32_0 : i32, i32
  }
  func.func @transform_14(%arg0: i32) -> (i32, i32) {
    %c0_i32 = arith.constant 0 : i32
    %c0_i32_0 = arith.constant 0 : i32
    %c0_i32_1 = arith.constant 0 : i32
    return %c0_i32, %c0_i32_0 : i32, i32
  }
  func.func @transform_15(%arg0: i32) -> (i32, i32) {
    %c0_i32 = arith.constant 0 : i32
    %c0_i32_0 = arith.constant 0 : i32
    %c0_i32_1 = arith.constant 0 : i32
    return %c0_i32, %c0_i32_0 : i32, i32
  }
}

</mosaic_0001>

<llo_original>
// kernel: decoder_forward.1
$region0: #{decoder_forward.1}
  #allocation0 [shape = 'u32[]', space=smem, size = 0x4, offset = 0x4, fixed_abs, tag = 'smem constant byte address 0x4 - core index']
  #allocation1 [shape = 'u32[144,128]{1,0:T(1,128)}', space=vmem, size = 0x12000, scoped, tag = 'internal scratch']
  %s0 = inlined_call_operand.vmem [shape: f32[16,128], index: 0, kind: input, shape index: {}]
  %s1 = inlined_call_operand.vmem [shape: f32[16,128], index: 1, kind: input, shape index: {}]
  %s2 = inlined_call_operand.vmem [shape: f32[8,8], index: 2, kind: input, shape index: {}]
  %s3 = inlined_call_operand.vmem [shape: f32[16,128], index: 3, kind: input, shape index: {}]
  %s4 = inlined_call_operand.hbm [shape: f32[128,128], index: 4, kind: input, shape index: {}]
  %s5 = inlined_call_operand.hbm [shape: f32[16,128], index: 5, kind: input, shape index: {}]
  %s6 = inlined_call_operand.hbm [shape: bf16[128,384], index: 6, kind: input, shape index: {}]
  %s7 = inlined_call_operand.hbm [shape: bf16[128,128], index: 7, kind: input, shape index: {}]
  %s8 = inlined_call_operand.hbm [shape: bf16[128,256], index: 8, kind: input, shape index: {}]
  %s9 = inlined_call_operand.hbm [shape: bf16[128,128], index: 9, kind: input, shape index: {}]
  %s10 = inlined_call_operand.hbm [shape: bf16[128,128], index: 10, kind: input, shape index: {}]
  %s11 = inlined_call_operand.hbm [shape: bf16[128,256], index: 11, kind: input, shape index: {}]
  %s12 = inlined_call_operand.hbm [shape: f32[1,256], index: 12, kind: input, shape index: {}]
  %s13 = inlined_call_operand.hbm [shape: bf16[256,128], index: 13, kind: input, shape index: {}]
  %s14 = inlined_call_operand.hbm [shape: f32[15,128], index: 14, kind: input, shape index: {}]
  %s15 = inlined_call_operand.hbm [shape: f32[16,128], index: 15, kind: output, shape index: {}]
  %s16 = sld [smem:[#allocation0]]
  $region114: #{decoder_forward.1} parent=0
    _
  %s18 = ssub.s32 1, %s16
  %s19 = scalar_select 0, %s18, %s16
  $region1: #{decoder_forward.1} parent=0
    #allocation2 [shape = 'u8[65536]{0}', space=vmem, size = 0x10000, scoped, tag = 'input window, operand 4, single buffered']
    #allocation3 [shape = 's32[1]{0}', space=sflag, size = 0x4, scoped, tag = 'scoped memory for decoder_forward.1']
    #allocation4 [shape = 's32[1]{0}', space=sflag, size = 0x4, scoped, tag = 'scoped memory for decoder_forward.1']
    #allocation5 [shape = 'u8[8192]{0}', space=vmem, size = 0x2000, scoped, tag = 'input window, operand 5, single buffered']
    #allocation6 [shape = 's32[1]{0}', space=sflag, size = 0x4, scoped, tag = 'scoped memory for decoder_forward.1']
    #allocation7 [shape = 'u8[98304]{0}', space=vmem, size = 0x18000, scoped, tag = 'input window, operand 6, single buffered']
    #allocation8 [shape = 'u8[32768]{0}', space=vmem, size = 0x8000, scoped, tag = 'input window, operand 7, single buffered']
    #allocation9 [shape = 's32[1]{0}', space=sflag, size = 0x4, scoped, tag = 'scoped memory for decoder_forward.1']
    #allocation10 [shape = 'u8[65536]{0}', space=vmem, size = 0x10000, scoped, tag = 'input window, operand 8, single buffered']
    #allocation11 [shape = 'u8[32768]{0}', space=vmem, size = 0x8000, scoped, tag = 'input window, operand 9, single buffered']
    #allocation12 [shape = 's32[1]{0}', space=sflag, size = 0x4, scoped, tag = 'scoped memory for decoder_forward.1']
    #allocation13 [shape = 'u8[32768]{0}', space=vmem, size = 0x8000, scoped, tag = 'input window, operand 10, single buffered']
    #allocation14 [shape = 'u8[65536]{0}', space=vmem, size = 0x10000, scoped, tag = 'input window, operand 11, single buffered']
    #allocation15 [shape = 's32[1]{0}', space=sflag, size = 0x4, scoped, tag = 'scoped memory for decoder_forward.1']
    #allocation16 [shape = 'u8[1024]{0}', space=vmem, size = 0x400, scoped, tag = 'input window, operand 12, single buffered']
    #allocation17 [shape = 'u8[65536]{0}', space=vmem, size = 0x10000, scoped, tag = 'input window, operand 13, single buffered']
    #allocation18 [shape = 's32[1]{0}', space=sflag, size = 0x4, scoped, tag = 'scoped memory for decoder_forward.1']
    #allocation19 [shape = 'u8[8192]{0}', space=vmem, size = 0x2000, scoped, tag = 'input window, operand 14, single buffered']
    #allocation20 [shape = 'u8[8192]{0}', space=vmem, size = 0x2000, scoped, tag = 'output window, operand 0, single buffered']
    %20 = vsyncpa [#allocation3], 0
    %21 = vsyncpa [#allocation6], 0
    %22 = vsyncpa [#allocation9], 0
    %23 = vsyncpa [#allocation12], 0
    %24 = vsyncpa [#allocation15], 0
    %25 = vsyncpa [#allocation18], 0
    %26 = vsyncpa [#allocation4], 0
    // Predicated region
    $region2: #{decoder_forward.1} parent=1 // pred_check
      _
    $region3: #{decoder_forward.1} parent=1 // pred_check_branch
      %28 = sbr.rel (0) target = $region5
    $region4: #{decoder_forward.1} parent=1 // pred_region
      _
    $region5: #{decoder_forward.1} parent=1 // pred_fallthru
      _
    // Predicated region
    $region6: #{decoder_forward.1} parent=1 // pred_check
      _
    $region7: #{decoder_forward.1} parent=1 // pred_check_branch
      %30 = sbr.rel (0) target = $region9
    $region8: #{decoder_forward.1} parent=1 // pred_region
      _
    $region9: #{decoder_forward.1} parent=1 // pred_fallthru
      _
    // Predicated region
    $region10: #{decoder_forward.1} parent=1 // pred_check
      _
    $region11: #{decoder_forward.1} parent=1 // pred_check_branch
      %32 = sbr.rel (0) target = $region13
    $region12: #{decoder_forward.1} parent=1 // pred_region
      _
    $region13: #{decoder_forward.1} parent=1 // pred_fallthru
      _
    // Predicated region
    $region14: #{decoder_forward.1} parent=1 // pred_check
      _
    $region15: #{decoder_forward.1} parent=1 // pred_check_branch
      %34 = sbr.rel (0) target = $region17
    $region16: #{decoder_forward.1} parent=1 // pred_region
      _
    $region17: #{decoder_forward.1} parent=1 // pred_fallthru
      _
    // Predicated region
    $region18: #{decoder_forward.1} parent=1 // pred_check
      _
    $region19: #{decoder_forward.1} parent=1 // pred_check_branch
      %36 = sbr.rel (0) target = $region21
    $region20: #{decoder_forward.1} parent=1 // pred_region
      %s38 = ssub.s32 2048, 2048
      %39 = vsyncadd [#allocation3], %s38
      %s40 = sshll.u32 [#allocation2], 4
      %s41 = int_to_ptr.vmem [resolvable:$true] %s40
      %46 = dma.hbm_to_vmem [thread:$0]  %s4, 2048, %s41, [#allocation3], 128, 128, 8
    $region21: #{decoder_forward.1} parent=1 // pred_fallthru
      _
    // Predicated region
    $region22: #{decoder_forward.1} parent=1 // pred_check
      _
    $region23: #{decoder_forward.1} parent=1 // pred_check_branch
      %48 = sbr.rel (0) target = $region25
    $region24: #{decoder_forward.1} parent=1 // pred_region
      %s50 = ssub.s32 256, 256
      %51 = vsyncadd [#allocation6], %s50
      %s52 = sshll.u32 [#allocation5], 4
      %s53 = int_to_ptr.vmem [resolvable:$true] %s52
      %58 = dma.hbm_to_vmem [thread:$0]  %s5, 256, %s53, [#allocation6], 128, 128, 8
    $region25: #{decoder_forward.1} parent=1 // pred_fallthru
      _
    // Predicated region
    $region26: #{decoder_forward.1} parent=1 // pred_check
      _
    $region27: #{decoder_forward.1} parent=1 // pred_check_branch
      %60 = sbr.rel (0) target = $region29
    $region28: #{decoder_forward.1} parent=1 // pred_region
      %s62 = ssub.s32 3072, 3072
      %63 = vsyncadd [#allocation6], %s62
      %s64 = sshll.u32 [#allocation7], 4
      %s65 = int_to_ptr.vmem [resolvable:$true] %s64
      %70 = dma.hbm_to_vmem [thread:$0]  %s6, 3072, %s65, [#allocation6], 192, 192, 12
    $region29: #{decoder_forward.1} parent=1 // pred_fallthru
      _
    // Predicated region
    $region30: #{decoder_forward.1} parent=1 // pred_check
      _
    $region31: #{decoder_forward.1} parent=1 // pred_check_branch
      %72 = sbr.rel (0) target = $region33
    $region32: #{decoder_forward.1} parent=1 // pred_region
      %s74 = ssub.s32 1024, 1024
      %75 = vsyncadd [#allocation9], %s74
      %s76 = sshll.u32 [#allocation8], 4
      %s77 = int_to_ptr.vmem [resolvable:$true] %s76
      %82 = dma.hbm_to_vmem [thread:$0]  %s7, 1024, %s77, [#allocation9], 64, 64, 4
    $region33: #{decoder_forward.1} parent=1 // pred_fallthru
      _
    // Predicated region
    $region34: #{decoder_forward.1} parent=1 // pred_check
      _
    $region35: #{decoder_forward.1} parent=1 // pred_check_branch
      %84 = sbr.rel (0) target = $region37
    $region36: #{decoder_forward.1} parent=1 // pred_region
      %s86 = ssub.s32 2048, 2048
      %87 = vsyncadd [#allocation9], %s86
      %s88 = sshll.u32 [#allocation10], 4
      %s89 = int_to_ptr.vmem [resolvable:$true] %s88
      %94 = dma.hbm_to_vmem [thread:$0]  %s8, 2048, %s89, [#allocation9], 128, 128, 8
    $region37: #{decoder_forward.1} parent=1 // pred_fallthru
      _
    // Predicated region
    $region38: #{decoder_forward.1} parent=1 // pred_check
      _
    $region39: #{decoder_forward.1} parent=1 // pred_check_branch
      %96 = sbr.rel (0) target = $region41
    $region40: #{decoder_forward.1} parent=1 // pred_region
      %s98 = ssub.s32 1024, 1024
      %99 = vsyncadd [#allocation12], %s98
      %s100 = sshll.u32 [#allocation11], 4
      %s101 = int_to_ptr.vmem [resolvable:$true] %s100
      %106 = dma.hbm_to_vmem [thread:$0]  %s9, 1024, %s101, [#allocation12], 64, 64, 4
    $region41: #{decoder_forward.1} parent=1 // pred_fallthru
      _
    // Predicated region
    $region42: #{decoder_forward.1} parent=1 // pred_check
      _
    $region43: #{decoder_forward.1} parent=1 // pred_check_branch
      %108 = sbr.rel (0) target = $region45
    $region44: #{decoder_forward.1} parent=1 // pred_region
      %s110 = ssub.s32 1024, 1024
      %111 = vsyncadd [#allocation12], %s110
      %s112 = sshll.u32 [#allocation13], 4
      %s113 = int_to_ptr.vmem [resolvable:$true] %s112
      %118 = dma.hbm_to_vmem [thread:$0]  %s10, 1024, %s113, [#allocation12], 64, 64, 4
    $region45: #{decoder_forward.1} parent=1 // pred_fallthru
      _
    // Predicated region
    $region46: #{decoder_forward.1} parent=1 // pred_check
      _
    $region47: #{decoder_forward.1} parent=1 // pred_check_branch
      %120 = sbr.rel (0) target = $region49
    $region48: #{decoder_forward.1} parent=1 // pred_region
      %s122 = ssub.s32 2048, 2048
      %123 = vsyncadd [#allocation15], %s122
      %s124 = sshll.u32 [#allocation14], 4
      %s125 = int_to_ptr.vmem [resolvable:$true] %s124
      %130 = dma.hbm_to_vmem [thread:$0]  %s11, 2048, %s125, [#allocation15], 128, 128, 8
    $region49: #{decoder_forward.1} parent=1 // pred_fallthru
      _
    // Predicated region
    $region50: #{decoder_forward.1} parent=1 // pred_check
      _
    $region51: #{decoder_forward.1} parent=1 // pred_check_branch
      %132 = sbr.rel (0) target = $region53
    $region52: #{decoder_forward.1} parent=1 // pred_region
      %s134 = ssub.s32 32, 32
      %135 = vsyncadd [#allocation15], %s134
      %s137 = sshll.u32 [#allocation16], 4
      %s138 = int_to_ptr.vmem [resolvable:$true] %s137
      %140 = dma.hbm_to_vmem [thread:$0]  %s12, 32, %s138, [#allocation15]
    $region53: #{decoder_forward.1} parent=1 // pred_fallthru
      _
    // Predicated region
    $region54: #{decoder_forward.1} parent=1 // pred_check
      _
    $region55: #{decoder_forward.1} parent=1 // pred_check_branch
      %142 = sbr.rel (0) target = $region57
    $region56: #{decoder_forward.1} parent=1 // pred_region
      %s144 = ssub.s32 2048, 2048
      %145 = vsyncadd [#allocation18], %s144
      %s146 = sshll.u32 [#allocation17], 4
      %s147 = int_to_ptr.vmem [resolvable:$true] %s146
      %152 = dma.hbm_to_vmem [thread:$0]  %s13, 2048, %s147, [#allocation18], 64, 64, 4
    $region57: #{decoder_forward.1} parent=1 // pred_fallthru
      _
    // Predicated region
    $region58: #{decoder_forward.1} parent=1 // pred_check
      _
    $region59: #{decoder_forward.1} parent=1 // pred_check_branch
      %154 = sbr.rel (0) target = $region61
    $region60: #{decoder_forward.1} parent=1 // pred_region
      %s156 = ssub.s32 256, 256
      %157 = vsyncadd [#allocation18], %s156
      %s158 = sshll.u32 [#allocation19], 4
      %s159 = int_to_ptr.vmem [resolvable:$true] %s158
      %164 = dma.hbm_to_vmem [thread:$0]  %s14, 256, %s159, [#allocation18], 128, 128, 8
    $region61: #{decoder_forward.1} parent=1 // pred_fallthru
      _
    // Predicated region
    $region62: #{decoder_forward.1} parent=1 // pred_check
      _
    $region63: #{decoder_forward.1} parent=1 // pred_check_branch
      %166 = sbr.rel (0) target = $region65
    $region64: #{decoder_forward.1} parent=1 // pred_region
      %167 = dma.done [#allocation3], 2048
    $region65: #{decoder_forward.1} parent=1 // pred_fallthru
      _
    // Predicated region
    $region66: #{decoder_forward.1} parent=1 // pred_check
      _
    $region67: #{decoder_forward.1} parent=1 // pred_check_branch
      %169 = sbr.rel (0) target = $region69
    $region68: #{decoder_forward.1} parent=1 // pred_region
      %170 = dma.done [#allocation6], 256
    $region69: #{decoder_forward.1} parent=1 // pred_fallthru
      _
    // Predicated region
    $region70: #{decoder_forward.1} parent=1 // pred_check
      _
    $region71: #{decoder_forward.1} parent=1 // pred_check_branch
      %172 = sbr.rel (0) target = $region73
    $region72: #{decoder_forward.1} parent=1 // pred_region
      %173 = dma.done [#allocation6], 3072
    $region73: #{decoder_forward.1} parent=1 // pred_fallthru
      _
    // Predicated region
    $region74: #{decoder_forward.1} parent=1 // pred_check
      _
    $region75: #{decoder_forward.1} parent=1 // pred_check_branch
      %175 = sbr.rel (0) target = $region77
    $region76: #{decoder_forward.1} parent=1 // pred_region
      %176 = dma.done [#allocation9], 1024
    $region77: #{decoder_forward.1} parent=1 // pred_fallthru
      _
    // Predicated region
    $region78: #{decoder_forward.1} parent=1 // pred_check
      _
    $region79: #{decoder_forward.1} parent=1 // pred_check_branch
      %178 = sbr.rel (0) target = $region81
    $region80: #{decoder_forward.1} parent=1 // pred_region
      %179 = dma.done [#allocation9], 2048
    $region81: #{decoder_forward.1} parent=1 // pred_fallthru
      _
    // Predicated region
    $region82: #{decoder_forward.1} parent=1 // pred_check
      _
    $region83: #{decoder_forward.1} parent=1 // pred_check_branch
      %181 = sbr.rel (0) target = $region85
    $region84: #{decoder_forward.1} parent=1 // pred_region
      %182 = dma.done [#allocation12], 1024
    $region85: #{decoder_forward.1} parent=1 // pred_fallthru
      _
    // Predicated region
    $region86: #{decoder_forward.1} parent=1 // pred_check
      _
    $region87: #{decoder_forward.1} parent=1 // pred_check_branch
      %184 = sbr.rel (0) target = $region89
    $region88: #{decoder_forward.1} parent=1 // pred_region
      %185 = dma.done [#allocation12], 1024
    $region89: #{decoder_forward.1} parent=1 // pred_fallthru
      _
    // Predicated region
    $region90: #{decoder_forward.1} parent=1 // pred_check
      _
    $region91: #{decoder_forward.1} parent=1 // pred_check_branch
      %187 = sbr.rel (0) target = $region93
    $region92: #{decoder_forward.1} parent=1 // pred_region
      %188 = dma.done [#allocation15], 2048
    $region93: #{decoder_forward.1} parent=1 // pred_fallthru
      _
    // Predicated region
    $region94: #{decoder_forward.1} parent=1 // pred_check
      _
    $region95: #{decoder_forward.1} parent=1 // pred_check_branch
      %190 = sbr.rel (0) target = $region97
    $region96: #{decoder_forward.1} parent=1 // pred_region
      %191 = dma.done [#allocation15], 32
    $region97: #{decoder_forward.1} parent=1 // pred_fallthru
      _
    // Predicated region
    $region98: #{decoder_forward.1} parent=1 // pred_check
      _
    $region99: #{decoder_forward.1} parent=1 // pred_check_branch
      %193 = sbr.rel (0) target = $region101
    $region100: #{decoder_forward.1} parent=1 // pred_region
      %194 = dma.done [#allocation18], 2048
    $region101: #{decoder_forward.1} parent=1 // pred_fallthru
      _
    // Predicated region
    $region102: #{decoder_forward.1} parent=1 // pred_check
      _
    $region103: #{decoder_forward.1} parent=1 // pred_check_branch
      %196 = sbr.rel (0) target = $region105
    $region104: #{decoder_forward.1} parent=1 // pred_region
      %197 = dma.done [#allocation18], 256
    $region105: #{decoder_forward.1} parent=1 // pred_fallthru
      _
    %v199 = vld [vmem:[%s0] sm:$0xff]
    %v200 = vld [vmem:[%s0 + $0x8] sm:$0xff]
    %v201 = vld [vmem:[%s1] sm:$0xff]
    %v202 = vld [vmem:[%s1 + $0x8] sm:$0xff]
    %v203 = vld [vmem:[#allocation19] sm:$0xff]
    %v204 = vld [vmem:[#allocation19 + $0x8] sm:$0x7f]
    %v205 = vld [vmem:[%s3] sm:$0xff]
    %v206 = vld [vmem:[%s3 + $0x8] sm:$0xff]
    %v207 = vld [vmem:[#allocation2] sm:$0xff]
    %v208 = vld [vmem:[#allocation2 + $0x8] sm:$0xff]
    %v209 = vld [vmem:[#allocation2 + $0x10] sm:$0xff]
    %v210 = vld [vmem:[#allocation2 + $0x18] sm:$0xff]
    %v211 = vld [vmem:[#allocation2 + $0x20] sm:$0xff]
    %v212 = vld [vmem:[#allocation2 + $0x28] sm:$0xff]
    %v213 = vld [vmem:[#allocation2 + $0x30] sm:$0xff]
    %v214 = vld [vmem:[#allocation2 + $0x38] sm:$0xff]
    %v215 = vld [vmem:[#allocation2 + $0x40] sm:$0xff]
    %v216 = vld [vmem:[#allocation2 + $0x48] sm:$0xff]
    %v217 = vld [vmem:[#allocation2 + $0x50] sm:$0xff]
    %v218 = vld [vmem:[#allocation2 + $0x58] sm:$0xff]
    %v219 = vld [vmem:[#allocation2 + $0x60] sm:$0xff]
    %v220 = vld [vmem:[#allocation2 + $0x68] sm:$0xff]
    %v221 = vld [vmem:[#allocation2 + $0x70] sm:$0xff]
    %v222 = vld [vmem:[#allocation2 + $0x78] sm:$0xff]
    %v223 = vld [vmem:[#allocation5] sm:$0xff]
    %v224 = vld [vmem:[#allocation5 + $0x8] sm:$0xff]
    %v225 = vpack.c.bf16 %v202, %v201
    %v226 = vld [vmem:[#allocation7] sm:$0xff]
    %v227 = vld [vmem:[#allocation7 + $0x8] sm:$0xf]
    %v228 = vld [vmem:[#allocation7 + $0xc] sm:$0xff]
    %v229 = vld [vmem:[#allocation7 + $0x14] sm:$0xf]
    %v230 = vld [vmem:[#allocation7 + $0x18] sm:$0xff]
    %v231 = vld [vmem:[#allocation7 + $0x20] sm:$0xf]
    %v232 = vld [vmem:[#allocation7 + $0x24] sm:$0xff]
    %v233 = vld [vmem:[#allocation7 + $0x2c] sm:$0xf]
    %v234 = vld [vmem:[#allocation7 + $0x30] sm:$0xff]
    %v235 = vld [vmem:[#allocation7 + $0x38] sm:$0xf]
    %v236 = vld [vmem:[#allocation7 + $0x3c] sm:$0xff]
    %v237 = vld [vmem:[#allocation7 + $0x44] sm:$0xf]
    %v238 = vld [vmem:[#allocation7 + $0x48] sm:$0xff]
    %v239 = vld [vmem:[#allocation7 + $0x50] sm:$0xf]
    %v240 = vld [vmem:[#allocation7 + $0x54] sm:$0xff]
    %v241 = vld [vmem:[#allocation7 + $0x5c] sm:$0xf]
    %v242 = vld [vmem:[#allocation7 + $0x60] sm:$0xff]
    %v243 = vld [vmem:[#allocation7 + $0x68] sm:$0xf]
    %v244 = vld [vmem:[#allocation7 + $0x6c] sm:$0xff]
    %v245 = vld [vmem:[#allocation7 + $0x74] sm:$0xf]
    %v246 = vld [vmem:[#allocation7 + $0x78] sm:$0xff]
    %v247 = vld [vmem:[#allocation7 + $0x80] sm:$0xf]
    %v248 = vld [vmem:[#allocation7 + $0x84] sm:$0xff]
    %v249 = vld [vmem:[#allocation7 + $0x8c] sm:$0xf]
    %v250 = vld [vmem:[#allocation7 + $0x90] sm:$0xff]
    %v251 = vld [vmem:[#allocation7 + $0x98] sm:$0xf]
    %v252 = vld [vmem:[#allocation7 + $0x9c] sm:$0xff]
    %v253 = vld [vmem:[#allocation7 + $0xa4] sm:$0xf]
    %v254 = vld [vmem:[#allocation7 + $0xa8] sm:$0xff]
    %v255 = vld [vmem:[#allocation7 + $0xb0] sm:$0xf]
    %v256 = vld [vmem:[#allocation7 + $0xb4] sm:$0xff]
    %v257 = vld [vmem:[#allocation7 + $0xbc] sm:$0xf]
    %v290 = vunpack.c.l.b16 %v226
    %v291 = vunpack.c.h.b16 %v226
    %v292 = vunpack.c.l.b16 %v227
    %v293 = vunpack.c.l.b16 %v228
    %v294 = vunpack.c.h.b16 %v228
    %v295 = vunpack.c.l.b16 %v229
    %v296 = vunpack.c.l.b16 %v230
    %v297 = vunpack.c.h.b16 %v230
    %v298 = vunpack.c.l.b16 %v231
    %v299 = vunpack.c.l.b16 %v232
    %v300 = vunpack.c.h.b16 %v232
    %v301 = vunpack.c.l.b16 %v233
    %v302 = vunpack.c.l.b16 %v234
    %v303 = vunpack.c.h.b16 %v234
    %v304 = vunpack.c.l.b16 %v235
    %v305 = vunpack.c.l.b16 %v236
    %v306 = vunpack.c.h.b16 %v236
    %v307 = vunpack.c.l.b16 %v237
    %v308 = vunpack.c.l.b16 %v238
    %v309 = vunpack.c.h.b16 %v238
    %v310 = vunpack.c.l.b16 %v239
    %v311 = vunpack.c.l.b16 %v240
    %v312 = vunpack.c.h.b16 %v240
    %v313 = vunpack.c.l.b16 %v241
    %v314 = vunpack.c.l.b16 %v242
    %v315 = vunpack.c.h.b16 %v242
    %v316 = vunpack.c.l.b16 %v243
    %v317 = vunpack.c.l.b16 %v244
    %v318 = vunpack.c.h.b16 %v244
    %v319 = vunpack.c.l.b16 %v245
    %v320 = vunpack.c.l.b16 %v246
    %v321 = vunpack.c.h.b16 %v246
    %v322 = vunpack.c.l.b16 %v247
    %v323 = vunpack.c.l.b16 %v248
    %v324 = vunpack.c.h.b16 %v248
    %v325 = vunpack.c.l.b16 %v249
    %v326 = vunpack.c.l.b16 %v250
    %v327 = vunpack.c.h.b16 %v250
    %v328 = vunpack.c.l.b16 %v251
    %v329 = vunpack.c.l.b16 %v252
    %v330 = vunpack.c.h.b16 %v252
    %v331 = vunpack.c.l.b16 %v253
    %v332 = vunpack.c.l.b16 %v254
    %v333 = vunpack.c.h.b16 %v254
    %v334 = vunpack.c.l.b16 %v255
    %v335 = vunpack.c.l.b16 %v256
    %v336 = vunpack.c.h.b16 %v256
    %v337 = vunpack.c.l.b16 %v257
    %v338 = vpack.c.b16 %v293, %v290
    %v339 = vpack.c.b16 %v294, %v291
    %v340 = vpack.c.b16 %v295, %v292
    %v341 = vpack.c.b16 %v299, %v296
    %v342 = vpack.c.b16 %v300, %v297
    %v343 = vpack.c.b16 %v301, %v298
    %v344 = vpack.c.b16 %v305, %v302
    %v345 = vpack.c.b16 %v306, %v303
    %v346 = vpack.c.b16 %v307, %v304
    %v347 = vpack.c.b16 %v311, %v308
    %v348 = vpack.c.b16 %v312, %v309
    %v349 = vpack.c.b16 %v313, %v310
    %v350 = vpack.c.b16 %v317, %v314
    %v351 = vpack.c.b16 %v318, %v315
    %v352 = vpack.c.b16 %v319, %v316
    %v353 = vpack.c.b16 %v323, %v320
    %v354 = vpack.c.b16 %v324, %v321
    %v355 = vpack.c.b16 %v325, %v322
    %v356 = vpack.c.b16 %v329, %v326
    %v357 = vpack.c.b16 %v330, %v327
    %v358 = vpack.c.b16 %v331, %v328
    %v359 = vpack.c.b16 %v335, %v332
    %v360 = vpack.c.b16 %v336, %v333
    %v361 = vpack.c.b16 %v337, %v334
    %386 = vmatprep.subr.bf16.mxu0 %v360
    %387 = vmatpush1.bf16.msra.mxu0 %v359
    %388 = vmatprep.subr.bf16.mxu0 %v357
    %389 = vmatpush1.bf16.msra.mxu0 %v356
    %390 = vmatprep.subr.bf16.mxu0 %v354
    %391 = vmatpush1.bf16.msra.mxu0 %v353
    %392 = vmatprep.subr.bf16.mxu0 %v351
    %393 = vmatpush1.bf16.msra.mxu0 %v350
    %394 = vmatprep.subr.bf16.mxu0 %v348
    %395 = vmatpush1.bf16.msra.mxu0 %v347
    %396 = vmatprep.subr.bf16.mxu0 %v345
    %397 = vmatpush1.bf16.msra.mxu0 %v344
    %398 = vmatprep.subr.bf16.mxu0 %v342
    %399 = vmatpush1.bf16.msra.mxu0 %v341
    %400 = vmatprep.subr.bf16.mxu0 %v339
    %401 = vmatpush1.bf16.msra.mxu0 %v338
    %402 = vmatprep.subr.bf16.mxu0 0
    %403 = vmatpush2.bf16.msra.mxu0 0
    %404 = vmatprep.subr.bf16.mxu0 0
    %405 = vmatpush2.bf16.msra.mxu0 0
    %406 = vmatprep.subr.bf16.mxu0 0
    %407 = vmatpush2.bf16.msra.mxu0 0
    %408 = vmatprep.subr.bf16.mxu0 0
    %409 = vmatpush2.bf16.msra.mxu0 0
    %410 = vmatprep.subr.bf16.mxu0 0
    %411 = vmatpush2.bf16.msra.mxu0 0
    %412 = vmatprep.subr.bf16.mxu0 0
    %413 = vmatpush2.bf16.msra.mxu0 0
    %414 = vmatprep.subr.bf16.mxu0 0
    %415 = vmatpush2.bf16.msra.mxu0 0
    %416 = vmatprep.subr.bf16.mxu0 0
    %417 = vmatpush2.bf16.msra.mxu0 0
    %418 = vmatprep.mubr.bf16.mxu0 0
    %419 = vmatmul.mubr.bf16.gmra.mxu0 %v225
    %v420 = vpop.f32.mrf.mxu0
    %v421 = vadd.f32 0.0, %v420
    %v422 = vpop.f32.mrf.mxu0
    %v423 = vadd.f32 0.0, %v422
    %v424 = vpop.f32.mrf.mxu0
    %v425 = vadd.f32 0.0, %v424
    %v426 = vpop.f32.mrf.mxu0
    %v427 = vadd.f32 0.0, %v426
    %428 = vdwg.mxu0
    %429 = vmatprep.subr.bf16.mxu0 0
    %430 = vmatpush1.bf16.msra.mxu0 %v361
    %431 = vmatprep.subr.bf16.mxu0 0
    %432 = vmatpush1.bf16.msra.mxu0 %v358
    %433 = vmatprep.subr.bf16.mxu0 0
    %434 = vmatpush1.bf16.msra.mxu0 %v355
    %435 = vmatprep.subr.bf16.mxu0 0
    %436 = vmatpush1.bf16.msra.mxu0 %v352
    %437 = vmatprep.subr.bf16.mxu0 0
    %438 = vmatpush1.bf16.msra.mxu0 %v349
    %439 = vmatprep.subr.bf16.mxu0 0
    %440 = vmatpush1.bf16.msra.mxu0 %v346
    %441 = vmatprep.subr.bf16.mxu0 0
    %442 = vmatpush1.bf16.msra.mxu0 %v343
    %443 = vmatprep.subr.bf16.mxu0 0
    %444 = vmatpush1.bf16.msra.mxu0 %v340
    %445 = vmatprep.subr.bf16.mxu0 0
    %446 = vmatpush2.bf16.msra.mxu0 0
    %447 = vmatprep.subr.bf16.mxu0 0
    %448 = vmatpush2.bf16.msra.mxu0 0
    %449 = vmatprep.subr.bf16.mxu0 0
    %450 = vmatpush2.bf16.msra.mxu0 0
    %451 = vmatprep.subr.bf16.mxu0 0
    %452 = vmatpush2.bf16.msra.mxu0 0
    %453 = vmatprep.subr.bf16.mxu0 0
    %454 = vmatpush2.bf16.msra.mxu0 0
    %455 = vmatprep.subr.bf16.mxu0 0
    %456 = vmatpush2.bf16.msra.mxu0 0
    %457 = vmatprep.subr.bf16.mxu0 0
    %458 = vmatpush2.bf16.msra.mxu0 0
    %459 = vmatprep.subr.bf16.mxu0 0
    %460 = vmatpush2.bf16.msra.mxu0 0
    %461 = vmatprep.mubr.bf16.mxu0 0
    %462 = vmatmul.mubr.bf16.gmra.mxu0 %v225
    %v463 = vpop.f32.mrf.mxu0
    %v464 = vadd.f32 0.0, %v463
    %v465 = vpop.f32.mrf.mxu0
    %v466 = vpop.f32.mrf.mxu0
    %v467 = vadd.f32 0.0, %v466
    %v468 = vpop.f32.mrf.mxu0
    %469 = vdwg.mxu0
    %v470 = vlaneseq
    %v471 = vshrl.u32 %v470, 7
    %v472 = vsub.s32 0, %v471
    %v473 = vrot.slane %v203, %v472
    %v474 = vadd.f32 %v421, %v473
    %v475 = vadd.f32 %v425, %v473
    %v476 = vlaneseq
    %v477 = vshrl.u32 %v476, 7
    %v478 = vsub.s32 1, %v477
    %v479 = vrot.slane %v203, %v478
    %v480 = vadd.f32 %v423, %v479
    %v481 = vadd.f32 %v427, %v479
    %v482 = vlaneseq
    %v483 = vshrl.u32 %v482, 7
    %v484 = vsub.s32 2, %v483
    %v485 = vrot.slane %v203, %v484
    %v486 = vadd.f32 %v464, %v485
    %v487 = vadd.f32 %v467, %v485
    %v488 = vld [vmem:[%s2] sm:$0xff]
    %v489 = vpack.c.bf16 %v475, %v474
    %v490 = vpack.c.bf16 %v481, %v480
    %v491 = vpack.c.bf16 %v487, %v486
    %vm492 = vcmask 130048
    %v494 = vsel %vm492, %v489, 0
    %v497 = vsel %vm492, %v490, 0
    %499 = vmatprep.subr.bf16.mxu0 0
    %500 = vmatpush1.bf16.xpose.msra.mxu0 0
    %501 = vmatprep.subr.bf16.mxu0 0
    %502 = vmatpush1.bf16.xpose.msra.mxu0 0
    %503 = vmatprep.subr.bf16.mxu0 0
    %504 = vmatpush1.bf16.xpose.msra.mxu0 0
    %505 = vmatprep.subr.bf16.mxu0 0
    %506 = vmatpush1.bf16.xpose.msra.mxu0 0
    %507 = vmatprep.subr.bf16.mxu0 0
    %508 = vmatpush1.bf16.xpose.msra.mxu0 0
    %509 = vmatprep.subr.bf16.mxu0 0
    %510 = vmatpush1.bf16.xpose.msra.mxu0 0
    %511 = vmatprep.subr.bf16.mxu0 0
    %512 = vmatpush1.bf16.xpose.msra.mxu0 0
    %513 = vmatprep.subr.bf16.mxu0 0
    %514 = vmatpush1.bf16.xpose.msra.mxu0 %v497
    %515 = vmatprep.subr.bf16.mxu0 0
    %516 = vmatpush2.bf16.xpose.msra.mxu0 0
    %517 = vmatprep.subr.bf16.mxu0 0
    %518 = vmatpush2.bf16.xpose.msra.mxu0 0
    %519 = vmatprep.subr.bf16.mxu0 0
    %520 = vmatpush2.bf16.xpose.msra.mxu0 0
    %521 = vmatprep.subr.bf16.mxu0 0
    %522 = vmatpush2.bf16.xpose.msra.mxu0 0
    %523 = vmatprep.subr.bf16.mxu0 0
    %524 = vmatpush2.bf16.xpose.msra.mxu0 0
    %525 = vmatprep.subr.bf16.mxu0 0
    %526 = vmatpush2.bf16.xpose.msra.mxu0 0
    %527 = vmatprep.subr.bf16.mxu0 0
    %528 = vmatpush2.bf16.xpose.msra.mxu0 0
    %529 = vmatprep.subr.bf16.mxu0 0
    %530 = vmatpush2.bf16.xpose.msra.mxu0 0
    %531 = vmatprep.mubr.bf16.mxu0 0
    %532 = vmatmul.mubr.bf16.gmra.mxu0 %v494
    %v533 = vpop.f32.mrf.mxu0
    %v534 = vadd.f32 %v488, %v533
    %v535 = vpop.f32.mrf.mxu0
    %v536 = vpop.f32.mrf.mxu0
    %v537 = vpop.f32.mrf.mxu0
    %538 = vdwg.mxu0
    %vm539 = vcmask 64512
    %v540 = vsel %vm539, %v534, -inf
    %541 = vmax.xlane.f32.xlu0 %v540
    %v542 = vpop.xlane.xlu0 %541
    %v543 = vsub.f32 %v534, %v542
    %v544 = vmul.f32 %v543, 1.442695
    %v545 = vpow.pop %v544
    %v546 = vsel %vm539, %v545, 0.0
    %547 = vadd.xlane.f32.xlu0 %v546
    %v548 = vpop.xlane.xlu0 %547
    %v549 = vrcp.pop %v548
    %v550 = vmul.f32 %v545, %v549
    %v551 = vpack.c.bf16 %v550, %v550
    %v553 = vsel %vm539, %v551, 0
    %vm555 = vcmask 1043456
    %v557 = vsel %vm555, %v491, 0
    %559 = vmatprep.subr.bf16.mxu0 0
    %560 = vmatpush1.bf16.msra.mxu0 0
    %561 = vmatprep.subr.bf16.mxu0 0
    %562 = vmatpush1.bf16.msra.mxu0 0
    %563 = vmatprep.subr.bf16.mxu0 0
    %564 = vmatpush1.bf16.msra.mxu0 0
    %565 = vmatprep.subr.bf16.mxu0 0
    %566 = vmatpush1.bf16.msra.mxu0 0
    %567 = vmatprep.subr.bf16.mxu0 0
    %568 = vmatpush1.bf16.msra.mxu0 0
    %569 = vmatprep.subr.bf16.mxu0 0
    %570 = vmatpush1.bf16.msra.mxu0 0
    %571 = vmatprep.subr.bf16.mxu0 0
    %572 = vmatpush1.bf16.msra.mxu0 0
    %573 = vmatprep.subr.bf16.mxu0 0
    %574 = vmatpush1.bf16.msra.mxu0 %v557
    %575 = vmatprep.subr.bf16.mxu0 0
    %576 = vmatpush2.bf16.msra.mxu0 0
    %577 = vmatprep.subr.bf16.mxu0 0
    %578 = vmatpush2.bf16.msra.mxu0 0
    %579 = vmatprep.subr.bf16.mxu0 0
    %580 = vmatpush2.bf16.msra.mxu0 0
    %581 = vmatprep.subr.bf16.mxu0 0
    %582 = vmatpush2.bf16.msra.mxu0 0
    %583 = vmatprep.subr.bf16.mxu0 0
    %584 = vmatpush2.bf16.msra.mxu0 0
    %585 = vmatprep.subr.bf16.mxu0 0
    %586 = vmatpush2.bf16.msra.mxu0 0
    %587 = vmatprep.subr.bf16.mxu0 0
    %588 = vmatpush2.bf16.msra.mxu0 0
    %589 = vmatprep.subr.bf16.mxu0 0
    %590 = vmatpush2.bf16.msra.mxu0 0
    %591 = vmatprep.mubr.bf16.mxu0 0
    %592 = vmatmul.mubr.bf16.gmra.mxu0 %v553
    %v593 = vpop.f32.mrf.mxu0
    %v594 = vadd.f32 0.0, %v593
    %v595 = vpop.f32.mrf.mxu0
    %v596 = vpop.f32.mrf.mxu0
    %v597 = vpop.f32.mrf.mxu0
    %598 = vdwg.mxu0
    %600 = vrot.lane.b32.xlu0 %v489, 112
    %v601 = vpop.permute.xlu0 %600
    %603 = vrot.lane.b32.xlu0 %v490, 112
    %v604 = vpop.permute.xlu0 %603
    %v606 = vsel %vm492, %v601, 0
    %v609 = vsel %vm492, %v604, 0
    %611 = vmatprep.subr.bf16.mxu0 0
    %612 = vmatpush1.bf16.xpose.msra.mxu0 0
    %613 = vmatprep.subr.bf16.mxu0 0
    %614 = vmatpush1.bf16.xpose.msra.mxu0 0
    %615 = vmatprep.subr.bf16.mxu0 0
    %616 = vmatpush1.bf16.xpose.msra.mxu0 0
    %617 = vmatprep.subr.bf16.mxu0 0
    %618 = vmatpush1.bf16.xpose.msra.mxu0 0
    %619 = vmatprep.subr.bf16.mxu0 0
    %620 = vmatpush1.bf16.xpose.msra.mxu0 0
    %621 = vmatprep.subr.bf16.mxu0 0
    %622 = vmatpush1.bf16.xpose.msra.mxu0 0
    %623 = vmatprep.subr.bf16.mxu0 0
    %624 = vmatpush1.bf16.xpose.msra.mxu0 0
    %625 = vmatprep.subr.bf16.mxu0 0
    %626 = vmatpush1.bf16.xpose.msra.mxu0 %v609
    %627 = vmatprep.subr.bf16.mxu0 0
    %628 = vmatpush2.bf16.xpose.msra.mxu0 0
    %629 = vmatprep.subr.bf16.mxu0 0
    %630 = vmatpush2.bf16.xpose.msra.mxu0 0
    %631 = vmatprep.subr.bf16.mxu0 0
    %632 = vmatpush2.bf16.xpose.msra.mxu0 0
    %633 = vmatprep.subr.bf16.mxu0 0
    %634 = vmatpush2.bf16.xpose.msra.mxu0 0
    %635 = vmatprep.subr.bf16.mxu0 0
    %636 = vmatpush2.bf16.xpose.msra.mxu0 0
    %637 = vmatprep.subr.bf16.mxu0 0
    %638 = vmatpush2.bf16.xpose.msra.mxu0 0
    %639 = vmatprep.subr.bf16.mxu0 0
    %640 = vmatpush2.bf16.xpose.msra.mxu0 0
    %641 = vmatprep.subr.bf16.mxu0 0
    %642 = vmatpush2.bf16.xpose.msra.mxu0 0
    %643 = vmatprep.mubr.bf16.mxu0 0
    %644 = vmatmul.mubr.bf16.gmra.mxu0 %v606
    %v645 = vpop.f32.mrf.mxu0
    %v646 = vadd.f32 %v488, %v645
    %v647 = vpop.f32.mrf.mxu0
    %v648 = vpop.f32.mrf.mxu0
    %v649 = vpop.f32.mrf.mxu0
    %650 = vdwg.mxu0
    %v651 = vsel %vm539, %v646, -inf
    %652 = vmax.xlane.f32.xlu0 %v651
    %v653 = vpop.xlane.xlu0 %652
    %v654 = vsub.f32 %v646, %v653
    %v655 = vmul.f32 %v654, 1.442695
    %v656 = vpow.pop %v655
    %v657 = vsel %vm539, %v656, 0.0
    %658 = vadd.xlane.f32.xlu0 %v657
    %v659 = vpop.xlane.xlu0 %658
    %v660 = vrcp.pop %v659
    %v661 = vmul.f32 %v656, %v660
    %v662 = vpack.c.bf16 %v661, %v661
    %664 = vrot.lane.b32.xlu0 %v491, 112
    %v665 = vpop.permute.xlu0 %664
    %v667 = vsel %vm539, %v662, 0
    %v670 = vsel %vm555, %v665, 0
    %672 = vmatprep.subr.bf16.mxu0 0
    %673 = vmatpush1.bf16.msra.mxu0 0
    %674 = vmatprep.subr.bf16.mxu0 0
    %675 = vmatpush1.bf16.msra.mxu0 0
    %676 = vmatprep.subr.bf16.mxu0 0
    %677 = vmatpush1.bf16.msra.mxu0 0
    %678 = vmatprep.subr.bf16.mxu0 0
    %679 = vmatpush1.bf16.msra.mxu0 0
    %680 = vmatprep.subr.bf16.mxu0 0
    %681 = vmatpush1.bf16.msra.mxu0 0
    %682 = vmatprep.subr.bf16.mxu0 0
    %683 = vmatpush1.bf16.msra.mxu0 0
    %684 = vmatprep.subr.bf16.mxu0 0
    %685 = vmatpush1.bf16.msra.mxu0 0
    %686 = vmatprep.subr.bf16.mxu0 0
    %687 = vmatpush1.bf16.msra.mxu0 %v670
    %688 = vmatprep.subr.bf16.mxu0 0
    %689 = vmatpush2.bf16.msra.mxu0 0
    %690 = vmatprep.subr.bf16.mxu0 0
    %691 = vmatpush2.bf16.msra.mxu0 0
    %692 = vmatprep.subr.bf16.mxu0 0
    %693 = vmatpush2.bf16.msra.mxu0 0
    %694 = vmatprep.subr.bf16.mxu0 0
    %695 = vmatpush2.bf16.msra.mxu0 0
    %696 = vmatprep.subr.bf16.mxu0 0
    %697 = vmatpush2.bf16.msra.mxu0 0
    %698 = vmatprep.subr.bf16.mxu0 0
    %699 = vmatpush2.bf16.msra.mxu0 0
    %700 = vmatprep.subr.bf16.mxu0 0
    %701 = vmatpush2.bf16.msra.mxu0 0
    %702 = vmatprep.subr.bf16.mxu0 0
    %703 = vmatpush2.bf16.msra.mxu0 0
    %704 = vmatprep.mubr.bf16.mxu0 0
    %705 = vmatmul.mubr.bf16.gmra.mxu0 %v667
    %v706 = vpop.f32.mrf.mxu0
    %v707 = vadd.f32 0.0, %v706
    %v708 = vpop.f32.mrf.mxu0
    %v709 = vpop.f32.mrf.mxu0
    %v710 = vpop.f32.mrf.mxu0
    %711 = vdwg.mxu0
    %712 = vrot.lane.b32.xlu0 %v489, 96
    %v713 = vpop.permute.xlu0 %712
    %714 = vrot.lane.b32.xlu0 %v490, 96
    %v715 = vpop.permute.xlu0 %714
    %v717 = vsel %vm492, %v713, 0
    %v720 = vsel %vm492, %v715, 0
    %722 = vmatprep.subr.bf16.mxu0 0
    %723 = vmatpush1.bf16.xpose.msra.mxu0 0
    %724 = vmatprep.subr.bf16.mxu0 0
    %725 = vmatpush1.bf16.xpose.msra.mxu0 0
    %726 = vmatprep.subr.bf16.mxu0 0
    %727 = vmatpush1.bf16.xpose.msra.mxu0 0
    %728 = vmatprep.subr.bf16.mxu0 0
    %729 = vmatpush1.bf16.xpose.msra.mxu0 0
    %730 = vmatprep.subr.bf16.mxu0 0
    %731 = vmatpush1.bf16.xpose.msra.mxu0 0
    %732 = vmatprep.subr.bf16.mxu0 0
    %733 = vmatpush1.bf16.xpose.msra.mxu0 0
    %734 = vmatprep.subr.bf16.mxu0 0
    %735 = vmatpush1.bf16.xpose.msra.mxu0 0
    %736 = vmatprep.subr.bf16.mxu0 0
    %737 = vmatpush1.bf16.xpose.msra.mxu0 %v720
    %738 = vmatprep.subr.bf16.mxu0 0
    %739 = vmatpush2.bf16.xpose.msra.mxu0 0
    %740 = vmatprep.subr.bf16.mxu0 0
    %741 = vmatpush2.bf16.xpose.msra.mxu0 0
    %742 = vmatprep.subr.bf16.mxu0 0
    %743 = vmatpush2.bf16.xpose.msra.mxu0 0
    %744 = vmatprep.subr.bf16.mxu0 0
    %745 = vmatpush2.bf16.xpose.msra.mxu0 0
    %746 = vmatprep.subr.bf16.mxu0 0
    %747 = vmatpush2.bf16.xpose.msra.mxu0 0
    %748 = vmatprep.subr.bf16.mxu0 0
    %749 = vmatpush2.bf16.xpose.msra.mxu0 0
    %750 = vmatprep.subr.bf16.mxu0 0
    %751 = vmatpush2.bf16.xpose.msra.mxu0 0
    %752 = vmatprep.subr.bf16.mxu0 0
    %753 = vmatpush2.bf16.xpose.msra.mxu0 0
    %754 = vmatprep.mubr.bf16.mxu0 0
    %755 = vmatmul.mubr.bf16.gmra.mxu0 %v717
    %v756 = vpop.f32.mrf.mxu0
    %v757 = vadd.f32 %v488, %v756
    %v758 = vpop.f32.mrf.mxu0
    %v759 = vpop.f32.mrf.mxu0
    %v760 = vpop.f32.mrf.mxu0
    %761 = vdwg.mxu0
    %v762 = vsel %vm539, %v757, -inf
    %763 = vmax.xlane.f32.xlu0 %v762
    %v764 = vpop.xlane.xlu0 %763
    %v765 = vsub.f32 %v757, %v764
    %v766 = vmul.f32 %v765, 1.442695
    %v767 = vpow.pop %v766
    %v768 = vsel %vm539, %v767, 0.0
    %769 = vadd.xlane.f32.xlu0 %v768
    %v770 = vpop.xlane.xlu0 %769
    %v771 = vrcp.pop %v770
    %v772 = vmul.f32 %v767, %v771
    %v773 = vpack.c.bf16 %v772, %v772
    %774 = vrot.lane.b32.xlu0 %v491, 96
    %v775 = vpop.permute.xlu0 %774
    %v777 = vsel %vm539, %v773, 0
    %v780 = vsel %vm555, %v775, 0
    %782 = vmatprep.subr.bf16.mxu0 0
    %783 = vmatpush1.bf16.msra.mxu0 0
    %784 = vmatprep.subr.bf16.mxu0 0
    %785 = vmatpush1.bf16.msra.mxu0 0
    %786 = vmatprep.subr.bf16.mxu0 0
    %787 = vmatpush1.bf16.msra.mxu0 0
    %788 = vmatprep.subr.bf16.mxu0 0
    %789 = vmatpush1.bf16.msra.mxu0 0
    %790 = vmatprep.subr.bf16.mxu0 0
    %791 = vmatpush1.bf16.msra.mxu0 0
    %792 = vmatprep.subr.bf16.mxu0 0
    %793 = vmatpush1.bf16.msra.mxu0 0
    %794 = vmatprep.subr.bf16.mxu0 0
    %795 = vmatpush1.bf16.msra.mxu0 0
    %796 = vmatprep.subr.bf16.mxu0 0
    %797 = vmatpush1.bf16.msra.mxu0 %v780
    %798 = vmatprep.subr.bf16.mxu0 0
    %799 = vmatpush2.bf16.msra.mxu0 0
    %800 = vmatprep.subr.bf16.mxu0 0
    %801 = vmatpush2.bf16.msra.mxu0 0
    %802 = vmatprep.subr.bf16.mxu0 0
    %803 = vmatpush2.bf16.msra.mxu0 0
    %804 = vmatprep.subr.bf16.mxu0 0
    %805 = vmatpush2.bf16.msra.mxu0 0
    %806 = vmatprep.subr.bf16.mxu0 0
    %807 = vmatpush2.bf16.msra.mxu0 0
    %808 = vmatprep.subr.bf16.mxu0 0
    %809 = vmatpush2.bf16.msra.mxu0 0
    %810 = vmatprep.subr.bf16.mxu0 0
    %811 = vmatpush2.bf16.msra.mxu0 0
    %812 = vmatprep.subr.bf16.mxu0 0
    %813 = vmatpush2.bf16.msra.mxu0 0
    %814 = vmatprep.mubr.bf16.mxu0 0
    %815 = vmatmul.mubr.bf16.gmra.mxu0 %v777
    %v816 = vpop.f32.mrf.mxu0
    %v817 = vadd.f32 0.0, %v816
    %v818 = vpop.f32.mrf.mxu0
    %v819 = vpop.f32.mrf.mxu0
    %v820 = vpop.f32.mrf.mxu0
    %821 = vdwg.mxu0
    %822 = vrot.lane.b32.xlu0 %v489, 80
    %v823 = vpop.permute.xlu0 %822
    %824 = vrot.lane.b32.xlu0 %v490, 80
    %v825 = vpop.permute.xlu0 %824
    %v827 = vsel %vm492, %v823, 0
    %v830 = vsel %vm492, %v825, 0
    %832 = vmatprep.subr.bf16.mxu0 0
    %833 = vmatpush1.bf16.xpose.msra.mxu0 0
    %834 = vmatprep.subr.bf16.mxu0 0
    %835 = vmatpush1.bf16.xpose.msra.mxu0 0
    %836 = vmatprep.subr.bf16.mxu0 0
    %837 = vmatpush1.bf16.xpose.msra.mxu0 0
    %838 = vmatprep.subr.bf16.mxu0 0
    %839 = vmatpush1.bf16.xpose.msra.mxu0 0
    %840 = vmatprep.subr.bf16.mxu0 0
    %841 = vmatpush1.bf16.xpose.msra.mxu0 0
    %842 = vmatprep.subr.bf16.mxu0 0
    %843 = vmatpush1.bf16.xpose.msra.mxu0 0
    %844 = vmatprep.subr.bf16.mxu0 0
    %845 = vmatpush1.bf16.xpose.msra.mxu0 0
    %846 = vmatprep.subr.bf16.mxu0 0
    %847 = vmatpush1.bf16.xpose.msra.mxu0 %v830
    %848 = vmatprep.subr.bf16.mxu0 0
    %849 = vmatpush2.bf16.xpose.msra.mxu0 0
    %850 = vmatprep.subr.bf16.mxu0 0
    %851 = vmatpush2.bf16.xpose.msra.mxu0 0
    %852 = vmatprep.subr.bf16.mxu0 0
    %853 = vmatpush2.bf16.xpose.msra.mxu0 0
    %854 = vmatprep.subr.bf16.mxu0 0
    %855 = vmatpush2.bf16.xpose.msra.mxu0 0
    %856 = vmatprep.subr.bf16.mxu0 0
    %857 = vmatpush2.bf16.xpose.msra.mxu0 0
    %858 = vmatprep.subr.bf16.mxu0 0
    %859 = vmatpush2.bf16.xpose.msra.mxu0 0
    %860 = vmatprep.subr.bf16.mxu0 0
    %861 = vmatpush2.bf16.xpose.msra.mxu0 0
    %862 = vmatprep.subr.bf16.mxu0 0
    %863 = vmatpush2.bf16.xpose.msra.mxu0 0
    %864 = vmatprep.mubr.bf16.mxu0 0
    %865 = vmatmul.mubr.bf16.gmra.mxu0 %v827
    %v866 = vpop.f32.mrf.mxu0
    %v867 = vadd.f32 %v488, %v866
    %v868 = vpop.f32.mrf.mxu0
    %v869 = vpop.f32.mrf.mxu0
    %v870 = vpop.f32.mrf.mxu0
    %871 = vdwg.mxu0
    %v872 = vsel %vm539, %v867, -inf
    %873 = vmax.xlane.f32.xlu0 %v872
    %v874 = vpop.xlane.xlu0 %873
    %v875 = vsub.f32 %v867, %v874
    %v876 = vmul.f32 %v875, 1.442695
    %v877 = vpow.pop %v876
    %v878 = vsel %vm539, %v877, 0.0
    %879 = vadd.xlane.f32.xlu0 %v878
    %v880 = vpop.xlane.xlu0 %879
    %v881 = vrcp.pop %v880
    %v882 = vmul.f32 %v877, %v881
    %v883 = vpack.c.bf16 %v882, %v882
    %884 = vrot.lane.b32.xlu0 %v491, 80
    %v885 = vpop.permute.xlu0 %884
    %v887 = vsel %vm539, %v883, 0
    %v890 = vsel %vm555, %v885, 0
    %892 = vmatprep.subr.bf16.mxu0 0
    %893 = vmatpush1.bf16.msra.mxu0 0
    %894 = vmatprep.subr.bf16.mxu0 0
    %895 = vmatpush1.bf16.msra.mxu0 0
    %896 = vmatprep.subr.bf16.mxu0 0
    %897 = vmatpush1.bf16.msra.mxu0 0
    %898 = vmatprep.subr.bf16.mxu0 0
    %899 = vmatpush1.bf16.msra.mxu0 0
    %900 = vmatprep.subr.bf16.mxu0 0
    %901 = vmatpush1.bf16.msra.mxu0 0
    %902 = vmatprep.subr.bf16.mxu0 0
    %903 = vmatpush1.bf16.msra.mxu0 0
    %904 = vmatprep.subr.bf16.mxu0 0
    %905 = vmatpush1.bf16.msra.mxu0 0
    %906 = vmatprep.subr.bf16.mxu0 0
    %907 = vmatpush1.bf16.msra.mxu0 %v890
    %908 = vmatprep.subr.bf16.mxu0 0
    %909 = vmatpush2.bf16.msra.mxu0 0
    %910 = vmatprep.subr.bf16.mxu0 0
    %911 = vmatpush2.bf16.msra.mxu0 0
    %912 = vmatprep.subr.bf16.mxu0 0
    %913 = vmatpush2.bf16.msra.mxu0 0
    %914 = vmatprep.subr.bf16.mxu0 0
    %915 = vmatpush2.bf16.msra.mxu0 0
    %916 = vmatprep.subr.bf16.mxu0 0
    %917 = vmatpush2.bf16.msra.mxu0 0
    %918 = vmatprep.subr.bf16.mxu0 0
    %919 = vmatpush2.bf16.msra.mxu0 0
    %920 = vmatprep.subr.bf16.mxu0 0
    %921 = vmatpush2.bf16.msra.mxu0 0
    %922 = vmatprep.subr.bf16.mxu0 0
    %923 = vmatpush2.bf16.msra.mxu0 0
    %924 = vmatprep.mubr.bf16.mxu0 0
    %925 = vmatmul.mubr.bf16.gmra.mxu0 %v887
    %v926 = vpop.f32.mrf.mxu0
    %v927 = vadd.f32 0.0, %v926
    %v928 = vpop.f32.mrf.mxu0
    %v929 = vpop.f32.mrf.mxu0
    %v930 = vpop.f32.mrf.mxu0
    %931 = vdwg.mxu0
    %932 = vrot.lane.b32.xlu0 %v489, 64
    %v933 = vpop.permute.xlu0 %932
    %934 = vrot.lane.b32.xlu0 %v490, 64
    %v935 = vpop.permute.xlu0 %934
    %v937 = vsel %vm492, %v933, 0
    %v940 = vsel %vm492, %v935, 0
    %942 = vmatprep.subr.bf16.mxu0 0
    %943 = vmatpush1.bf16.xpose.msra.mxu0 0
    %944 = vmatprep.subr.bf16.mxu0 0
    %945 = vmatpush1.bf16.xpose.msra.mxu0 0
    %946 = vmatprep.subr.bf16.mxu0 0
    %947 = vmatpush1.bf16.xpose.msra.mxu0 0
    %948 = vmatprep.subr.bf16.mxu0 0
    %949 = vmatpush1.bf16.xpose.msra.mxu0 0
    %950 = vmatprep.subr.bf16.mxu0 0
    %951 = vmatpush1.bf16.xpose.msra.mxu0 0
    %952 = vmatprep.subr.bf16.mxu0 0
    %953 = vmatpush1.bf16.xpose.msra.mxu0 0
    %954 = vmatprep.subr.bf16.mxu0 0
    %955 = vmatpush1.bf16.xpose.msra.mxu0 0
    %956 = vmatprep.subr.bf16.mxu0 0
    %957 = vmatpush1.bf16.xpose.msra.mxu0 %v940
    %958 = vmatprep.subr.bf16.mxu0 0
    %959 = vmatpush2.bf16.xpose.msra.mxu0 0
    %960 = vmatprep.subr.bf16.mxu0 0
    %961 = vmatpush2.bf16.xpose.msra.mxu0 0
    %962 = vmatprep.subr.bf16.mxu0 0
    %963 = vmatpush2.bf16.xpose.msra.mxu0 0
    %964 = vmatprep.subr.bf16.mxu0 0
    %965 = vmatpush2.bf16.xpose.msra.mxu0 0
    %966 = vmatprep.subr.bf16.mxu0 0
    %967 = vmatpush2.bf16.xpose.msra.mxu0 0
    %968 = vmatprep.subr.bf16.mxu0 0
    %969 = vmatpush2.bf16.xpose.msra.mxu0 0
    %970 = vmatprep.subr.bf16.mxu0 0
    %971 = vmatpush2.bf16.xpose.msra.mxu0 0
    %972 = vmatprep.subr.bf16.mxu0 0
    %973 = vmatpush2.bf16.xpose.msra.mxu0 0
    %974 = vmatprep.mubr.bf16.mxu0 0
    %975 = vmatmul.mubr.bf16.gmra.mxu0 %v937
    %v976 = vpop.f32.mrf.mxu0
    %v977 = vadd.f32 %v488, %v976
    %v978 = vpop.f32.mrf.mxu0
    %v979 = vpop.f32.mrf.mxu0
    %v980 = vpop.f32.mrf.mxu0
    %981 = vdwg.mxu0
    %v982 = vsel %vm539, %v977, -inf
    %983 = vmax.xlane.f32.xlu0 %v982
    %v984 = vpop.xlane.xlu0 %983
    %v985 = vsub.f32 %v977, %v984
    %v986 = vmul.f32 %v985, 1.442695
    %v987 = vpow.pop %v986
    %v988 = vsel %vm539, %v987, 0.0
    %989 = vadd.xlane.f32.xlu0 %v988
    %v990 = vpop.xlane.xlu0 %989
    %v991 = vrcp.pop %v990
    %v992 = vmul.f32 %v987, %v991
    %v993 = vpack.c.bf16 %v992, %v992
    %994 = vrot.lane.b32.xlu0 %v491, 64
    %v995 = vpop.permute.xlu0 %994
    %v997 = vsel %vm539, %v993, 0
    %v1000 = vsel %vm555, %v995, 0
    %1002 = vmatprep.subr.bf16.mxu0 0
    %1003 = vmatpush1.bf16.msra.mxu0 0
    %1004 = vmatprep.subr.bf16.mxu0 0
    %1005 = vmatpush1.bf16.msra.mxu0 0
    %1006 = vmatprep.subr.bf16.mxu0 0
    %1007 = vmatpush1.bf16.msra.mxu0 0
    %1008 = vmatprep.subr.bf16.mxu0 0
    %1009 = vmatpush1.bf16.msra.mxu0 0
    %1010 = vmatprep.subr.bf16.mxu0 0
    %1011 = vmatpush1.bf16.msra.mxu0 0
    %1012 = vmatprep.subr.bf16.mxu0 0
    %1013 = vmatpush1.bf16.msra.mxu0 0
    %1014 = vmatprep.subr.bf16.mxu0 0
    %1015 = vmatpush1.bf16.msra.mxu0 0
    %1016 = vmatprep.subr.bf16.mxu0 0
    %1017 = vmatpush1.bf16.msra.mxu0 %v1000
    %1018 = vmatprep.subr.bf16.mxu0 0
    %1019 = vmatpush2.bf16.msra.mxu0 0
    %1020 = vmatprep.subr.bf16.mxu0 0
    %1021 = vmatpush2.bf16.msra.mxu0 0
    %1022 = vmatprep.subr.bf16.mxu0 0
    %1023 = vmatpush2.bf16.msra.mxu0 0
    %1024 = vmatprep.subr.bf16.mxu0 0
    %1025 = vmatpush2.bf16.msra.mxu0 0
    %1026 = vmatprep.subr.bf16.mxu0 0
    %1027 = vmatpush2.bf16.msra.mxu0 0
    %1028 = vmatprep.subr.bf16.mxu0 0
    %1029 = vmatpush2.bf16.msra.mxu0 0
    %1030 = vmatprep.subr.bf16.mxu0 0
    %1031 = vmatpush2.bf16.msra.mxu0 0
    %1032 = vmatprep.subr.bf16.mxu0 0
    %1033 = vmatpush2.bf16.msra.mxu0 0
    %1034 = vmatprep.mubr.bf16.mxu0 0
    %1035 = vmatmul.mubr.bf16.gmra.mxu0 %v997
    %v1036 = vpop.f32.mrf.mxu0
    %v1037 = vadd.f32 0.0, %v1036
    %v1038 = vpop.f32.mrf.mxu0
    %v1039 = vpop.f32.mrf.mxu0
    %v1040 = vpop.f32.mrf.mxu0
    %1041 = vdwg.mxu0
    %1042 = vrot.lane.b32.xlu0 %v489, 48
    %v1043 = vpop.permute.xlu0 %1042
    %1044 = vrot.lane.b32.xlu0 %v490, 48
    %v1045 = vpop.permute.xlu0 %1044
    %v1047 = vsel %vm492, %v1043, 0
    %v1050 = vsel %vm492, %v1045, 0
    %1052 = vmatprep.subr.bf16.mxu0 0
    %1053 = vmatpush1.bf16.xpose.msra.mxu0 0
    %1054 = vmatprep.subr.bf16.mxu0 0
    %1055 = vmatpush1.bf16.xpose.msra.mxu0 0
    %1056 = vmatprep.subr.bf16.mxu0 0
    %1057 = vmatpush1.bf16.xpose.msra.mxu0 0
    %1058 = vmatprep.subr.bf16.mxu0 0
    %1059 = vmatpush1.bf16.xpose.msra.mxu0 0
    %1060 = vmatprep.subr.bf16.mxu0 0
    %1061 = vmatpush1.bf16.xpose.msra.mxu0 0
    %1062 = vmatprep.subr.bf16.mxu0 0
    %1063 = vmatpush1.bf16.xpose.msra.mxu0 0
    %1064 = vmatprep.subr.bf16.mxu0 0
    %1065 = vmatpush1.bf16.xpose.msra.mxu0 0
    %1066 = vmatprep.subr.bf16.mxu0 0
    %1067 = vmatpush1.bf16.xpose.msra.mxu0 %v1050
    %1068 = vmatprep.subr.bf16.mxu0 0
    %1069 = vmatpush2.bf16.xpose.msra.mxu0 0
    %1070 = vmatprep.subr.bf16.mxu0 0
    %1071 = vmatpush2.bf16.xpose.msra.mxu0 0
    %1072 = vmatprep.subr.bf16.mxu0 0
    %1073 = vmatpush2.bf16.xpose.msra.mxu0 0
    %1074 = vmatprep.subr.bf16.mxu0 0
    %1075 = vmatpush2.bf16.xpose.msra.mxu0 0
    %1076 = vmatprep.subr.bf16.mxu0 0
    %1077 = vmatpush2.bf16.xpose.msra.mxu0 0
    %1078 = vmatprep.subr.bf16.mxu0 0
    %1079 = vmatpush2.bf16.xpose.msra.mxu0 0
    %1080 = vmatprep.subr.bf16.mxu0 0
    %1081 = vmatpush2.bf16.xpose.msra.mxu0 0
    %1082 = vmatprep.subr.bf16.mxu0 0
    %1083 = vmatpush2.bf16.xpose.msra.mxu0 0
    %1084 = vmatprep.mubr.bf16.mxu0 0
    %1085 = vmatmul.mubr.bf16.gmra.mxu0 %v1047
    %v1086 = vpop.f32.mrf.mxu0
    %v1087 = vadd.f32 %v488, %v1086
    %v1088 = vpop.f32.mrf.mxu0
    %v1089 = vpop.f32.mrf.mxu0
    %v1090 = vpop.f32.mrf.mxu0
    %1091 = vdwg.mxu0
    %v1092 = vsel %vm539, %v1087, -inf
    %1093 = vmax.xlane.f32.xlu0 %v1092
    %v1094 = vpop.xlane.xlu0 %1093
    %v1095 = vsub.f32 %v1087, %v1094
    %v1096 = vmul.f32 %v1095, 1.442695
    %v1097 = vpow.pop %v1096
    %v1098 = vsel %vm539, %v1097, 0.0
    %1099 = vadd.xlane.f32.xlu0 %v1098
    %v1100 = vpop.xlane.xlu0 %1099
    %v1101 = vrcp.pop %v1100
    %v1102 = vmul.f32 %v1097, %v1101
    %v1103 = vpack.c.bf16 %v1102, %v1102
    %1104 = vrot.lane.b32.xlu0 %v491, 48
    %v1105 = vpop.permute.xlu0 %1104
    %v1107 = vsel %vm539, %v1103, 0
    %v1110 = vsel %vm555, %v1105, 0
    %1112 = vmatprep.subr.bf16.mxu0 0
    %1113 = vmatpush1.bf16.msra.mxu0 0
    %1114 = vmatprep.subr.bf16.mxu0 0
    %1115 = vmatpush1.bf16.msra.mxu0 0
    %1116 = vmatprep.subr.bf16.mxu0 0
    %1117 = vmatpush1.bf16.msra.mxu0 0
    %1118 = vmatprep.subr.bf16.mxu0 0
    %1119 = vmatpush1.bf16.msra.mxu0 0
    %1120 = vmatprep.subr.bf16.mxu0 0
    %1121 = vmatpush1.bf16.msra.mxu0 0
    %1122 = vmatprep.subr.bf16.mxu0 0
    %1123 = vmatpush1.bf16.msra.mxu0 0
    %1124 = vmatprep.subr.bf16.mxu0 0
    %1125 = vmatpush1.bf16.msra.mxu0 0
    %1126 = vmatprep.subr.bf16.mxu0 0
    %1127 = vmatpush1.bf16.msra.mxu0 %v1110
    %1128 = vmatprep.subr.bf16.mxu0 0
    %1129 = vmatpush2.bf16.msra.mxu0 0
    %1130 = vmatprep.subr.bf16.mxu0 0
    %1131 = vmatpush2.bf16.msra.mxu0 0
    %1132 = vmatprep.subr.bf16.mxu0 0
    %1133 = vmatpush2.bf16.msra.mxu0 0
    %1134 = vmatprep.subr.bf16.mxu0 0
    %1135 = vmatpush2.bf16.msra.mxu0 0
    %1136 = vmatprep.subr.bf16.mxu0 0
    %1137 = vmatpush2.bf16.msra.mxu0 0
    %1138 = vmatprep.subr.bf16.mxu0 0
    %1139 = vmatpush2.bf16.msra.mxu0 0
    %1140 = vmatprep.subr.bf16.mxu0 0
    %1141 = vmatpush2.bf16.msra.mxu0 0
    %1142 = vmatprep.subr.bf16.mxu0 0
    %1143 = vmatpush2.bf16.msra.mxu0 0
    %1144 = vmatprep.mubr.bf16.mxu0 0
    %1145 = vmatmul.mubr.bf16.gmra.mxu0 %v1107
    %v1146 = vpop.f32.mrf.mxu0
    %v1147 = vadd.f32 0.0, %v1146
    %v1148 = vpop.f32.mrf.mxu0
    %v1149 = vpop.f32.mrf.mxu0
    %v1150 = vpop.f32.mrf.mxu0
    %1151 = vdwg.mxu0
    %1152 = vrot.lane.b32.xlu0 %v489, 32
    %v1153 = vpop.permute.xlu0 %1152
    %1154 = vrot.lane.b32.xlu0 %v490, 32
    %v1155 = vpop.permute.xlu0 %1154
    %v1157 = vsel %vm492, %v1153, 0
    %v1160 = vsel %vm492, %v1155, 0
    %1162 = vmatprep.subr.bf16.mxu0 0
    %1163 = vmatpush1.bf16.xpose.msra.mxu0 0
    %1164 = vmatprep.subr.bf16.mxu0 0
    %1165 = vmatpush1.bf16.xpose.msra.mxu0 0
    %1166 = vmatprep.subr.bf16.mxu0 0
    %1167 = vmatpush1.bf16.xpose.msra.mxu0 0
    %1168 = vmatprep.subr.bf16.mxu0 0
    %1169 = vmatpush1.bf16.xpose.msra.mxu0 0
    %1170 = vmatprep.subr.bf16.mxu0 0
    %1171 = vmatpush1.bf16.xpose.msra.mxu0 0
    %1172 = vmatprep.subr.bf16.mxu0 0
    %1173 = vmatpush1.bf16.xpose.msra.mxu0 0
    %1174 = vmatprep.subr.bf16.mxu0 0
    %1175 = vmatpush1.bf16.xpose.msra.mxu0 0
    %1176 = vmatprep.subr.bf16.mxu0 0
    %1177 = vmatpush1.bf16.xpose.msra.mxu0 %v1160
    %1178 = vmatprep.subr.bf16.mxu0 0
    %1179 = vmatpush2.bf16.xpose.msra.mxu0 0
    %1180 = vmatprep.subr.bf16.mxu0 0
    %1181 = vmatpush2.bf16.xpose.msra.mxu0 0
    %1182 = vmatprep.subr.bf16.mxu0 0
    %1183 = vmatpush2.bf16.xpose.msra.mxu0 0
    %1184 = vmatprep.subr.bf16.mxu0 0
    %1185 = vmatpush2.bf16.xpose.msra.mxu0 0
    %1186 = vmatprep.subr.bf16.mxu0 0
    %1187 = vmatpush2.bf16.xpose.msra.mxu0 0
    %1188 = vmatprep.subr.bf16.mxu0 0
    %1189 = vmatpush2.bf16.xpose.msra.mxu0 0
    %1190 = vmatprep.subr.bf16.mxu0 0
    %1191 = vmatpush2.bf16.xpose.msra.mxu0 0
    %1192 = vmatprep.subr.bf16.mxu0 0
    %1193 = vmatpush2.bf16.xpose.msra.mxu0 0
    %1194 = vmatprep.mubr.bf16.mxu0 0
    %1195 = vmatmul.mubr.bf16.gmra.mxu0 %v1157
    %v1196 = vpop.f32.mrf.mxu0
    %v1197 = vadd.f32 %v488, %v1196
    %v1198 = vpop.f32.mrf.mxu0
    %v1199 = vpop.f32.mrf.mxu0
    %v1200 = vpop.f32.mrf.mxu0
    %1201 = vdwg.mxu0
    %v1202 = vsel %vm539, %v1197, -inf
    %1203 = vmax.xlane.f32.xlu0 %v1202
    %v1204 = vpop.xlane.xlu0 %1203
    %v1205 = vsub.f32 %v1197, %v1204
    %v1206 = vmul.f32 %v1205, 1.442695
    %v1207 = vpow.pop %v1206
    %v1208 = vsel %vm539, %v1207, 0.0
    %1209 = vadd.xlane.f32.xlu0 %v1208
    %v1210 = vpop.xlane.xlu0 %1209
    %v1211 = vrcp.pop %v1210
    %v1212 = vmul.f32 %v1207, %v1211
    %v1213 = vpack.c.bf16 %v1212, %v1212
    %1214 = vrot.lane.b32.xlu0 %v491, 32
    %v1215 = vpop.permute.xlu0 %1214
    %v1217 = vsel %vm539, %v1213, 0
    %v1220 = vsel %vm555, %v1215, 0
    %1222 = vmatprep.subr.bf16.mxu0 0
    %1223 = vmatpush1.bf16.msra.mxu0 0
    %1224 = vmatprep.subr.bf16.mxu0 0
    %1225 = vmatpush1.bf16.msra.mxu0 0
    %1226 = vmatprep.subr.bf16.mxu0 0
    %1227 = vmatpush1.bf16.msra.mxu0 0
    %1228 = vmatprep.subr.bf16.mxu0 0
    %1229 = vmatpush1.bf16.msra.mxu0 0
    %1230 = vmatprep.subr.bf16.mxu0 0
    %1231 = vmatpush1.bf16.msra.mxu0 0
    %1232 = vmatprep.subr.bf16.mxu0 0
    %1233 = vmatpush1.bf16.msra.mxu0 0
    %1234 = vmatprep.subr.bf16.mxu0 0
    %1235 = vmatpush1.bf16.msra.mxu0 0
    %1236 = vmatprep.subr.bf16.mxu0 0
    %1237 = vmatpush1.bf16.msra.mxu0 %v1220
    %1238 = vmatprep.subr.bf16.mxu0 0
    %1239 = vmatpush2.bf16.msra.mxu0 0
    %1240 = vmatprep.subr.bf16.mxu0 0
    %1241 = vmatpush2.bf16.msra.mxu0 0
    %1242 = vmatprep.subr.bf16.mxu0 0
    %1243 = vmatpush2.bf16.msra.mxu0 0
    %1244 = vmatprep.subr.bf16.mxu0 0
    %1245 = vmatpush2.bf16.msra.mxu0 0
    %1246 = vmatprep.subr.bf16.mxu0 0
    %1247 = vmatpush2.bf16.msra.mxu0 0
    %1248 = vmatprep.subr.bf16.mxu0 0
    %1249 = vmatpush2.bf16.msra.mxu0 0
    %1250 = vmatprep.subr.bf16.mxu0 0
    %1251 = vmatpush2.bf16.msra.mxu0 0
    %1252 = vmatprep.subr.bf16.mxu0 0
    %1253 = vmatpush2.bf16.msra.mxu0 0
    %1254 = vmatprep.mubr.bf16.mxu0 0
    %1255 = vmatmul.mubr.bf16.gmra.mxu0 %v1217
    %v1256 = vpop.f32.mrf.mxu0
    %v1257 = vadd.f32 0.0, %v1256
    %v1258 = vpop.f32.mrf.mxu0
    %v1259 = vpop.f32.mrf.mxu0
    %v1260 = vpop.f32.mrf.mxu0
    %1261 = vdwg.mxu0
    %1262 = vrot.lane.b32.xlu0 %v489, 16
    %v1263 = vpop.permute.xlu0 %1262
    %1264 = vrot.lane.b32.xlu0 %v490, 16
    %v1265 = vpop.permute.xlu0 %1264
    %v1267 = vsel %vm492, %v1263, 0
    %v1270 = vsel %vm492, %v1265, 0
    %1272 = vmatprep.subr.bf16.mxu0 0
    %1273 = vmatpush1.bf16.xpose.msra.mxu0 0
    %1274 = vmatprep.subr.bf16.mxu0 0
    %1275 = vmatpush1.bf16.xpose.msra.mxu0 0
    %1276 = vmatprep.subr.bf16.mxu0 0
    %1277 = vmatpush1.bf16.xpose.msra.mxu0 0
    %1278 = vmatprep.subr.bf16.mxu0 0
    %1279 = vmatpush1.bf16.xpose.msra.mxu0 0
    %1280 = vmatprep.subr.bf16.mxu0 0
    %1281 = vmatpush1.bf16.xpose.msra.mxu0 0
    %1282 = vmatprep.subr.bf16.mxu0 0
    %1283 = vmatpush1.bf16.xpose.msra.mxu0 0
    %1284 = vmatprep.subr.bf16.mxu0 0
    %1285 = vmatpush1.bf16.xpose.msra.mxu0 0
    %1286 = vmatprep.subr.bf16.mxu0 0
    %1287 = vmatpush1.bf16.xpose.msra.mxu0 %v1270
    %1288 = vmatprep.subr.bf16.mxu0 0
    %1289 = vmatpush2.bf16.xpose.msra.mxu0 0
    %1290 = vmatprep.subr.bf16.mxu0 0
    %1291 = vmatpush2.bf16.xpose.msra.mxu0 0
    %1292 = vmatprep.subr.bf16.mxu0 0
    %1293 = vmatpush2.bf16.xpose.msra.mxu0 0
    %1294 = vmatprep.subr.bf16.mxu0 0
    %1295 = vmatpush2.bf16.xpose.msra.mxu0 0
    %1296 = vmatprep.subr.bf16.mxu0 0
    %1297 = vmatpush2.bf16.xpose.msra.mxu0 0
    %1298 = vmatprep.subr.bf16.mxu0 0
    %1299 = vmatpush2.bf16.xpose.msra.mxu0 0
    %1300 = vmatprep.subr.bf16.mxu0 0
    %1301 = vmatpush2.bf16.xpose.msra.mxu0 0
    %1302 = vmatprep.subr.bf16.mxu0 0
    %1303 = vmatpush2.bf16.xpose.msra.mxu0 0
    %1304 = vmatprep.mubr.bf16.mxu0 0
    %1305 = vmatmul.mubr.bf16.gmra.mxu0 %v1267
    %v1306 = vpop.f32.mrf.mxu0
    %v1307 = vadd.f32 %v488, %v1306
    %v1308 = vpop.f32.mrf.mxu0
    %v1309 = vpop.f32.mrf.mxu0
    %v1310 = vpop.f32.mrf.mxu0
    %1311 = vdwg.mxu0
    %v1312 = vsel %vm539, %v1307, -inf
    %1313 = vmax.xlane.f32.xlu0 %v1312
    %v1314 = vpop.xlane.xlu0 %1313
    %v1315 = vsub.f32 %v1307, %v1314
    %v1316 = vmul.f32 %v1315, 1.442695
    %v1317 = vpow.pop %v1316
    %v1318 = vsel %vm539, %v1317, 0.0
    %1319 = vadd.xlane.f32.xlu0 %v1318
    %v1320 = vpop.xlane.xlu0 %1319
    %v1321 = vrcp.pop %v1320
    %v1322 = vmul.f32 %v1317, %v1321
    %v1323 = vpack.c.bf16 %v1322, %v1322
    %1324 = vrot.lane.b32.xlu0 %v491, 16
    %v1325 = vpop.permute.xlu0 %1324
    %v1327 = vsel %vm539, %v1323, 0
    %v1330 = vsel %vm555, %v1325, 0
    %1332 = vmatprep.subr.bf16.mxu0 0
    %1333 = vmatpush1.bf16.msra.mxu0 0
    %1334 = vmatprep.subr.bf16.mxu0 0
    %1335 = vmatpush1.bf16.msra.mxu0 0
    %1336 = vmatprep.subr.bf16.mxu0 0
    %1337 = vmatpush1.bf16.msra.mxu0 0
    %1338 = vmatprep.subr.bf16.mxu0 0
    %1339 = vmatpush1.bf16.msra.mxu0 0
    %1340 = vmatprep.subr.bf16.mxu0 0
    %1341 = vmatpush1.bf16.msra.mxu0 0
    %1342 = vmatprep.subr.bf16.mxu0 0
    %1343 = vmatpush1.bf16.msra.mxu0 0
    %1344 = vmatprep.subr.bf16.mxu0 0
    %1345 = vmatpush1.bf16.msra.mxu0 0
    %1346 = vmatprep.subr.bf16.mxu0 0
    %1347 = vmatpush1.bf16.msra.mxu0 %v1330
    %1348 = vmatprep.subr.bf16.mxu0 0
    %1349 = vmatpush2.bf16.msra.mxu0 0
    %1350 = vmatprep.subr.bf16.mxu0 0
    %1351 = vmatpush2.bf16.msra.mxu0 0
    %1352 = vmatprep.subr.bf16.mxu0 0
    %1353 = vmatpush2.bf16.msra.mxu0 0
    %1354 = vmatprep.subr.bf16.mxu0 0
    %1355 = vmatpush2.bf16.msra.mxu0 0
    %1356 = vmatprep.subr.bf16.mxu0 0
    %1357 = vmatpush2.bf16.msra.mxu0 0
    %1358 = vmatprep.subr.bf16.mxu0 0
    %1359 = vmatpush2.bf16.msra.mxu0 0
    %1360 = vmatprep.subr.bf16.mxu0 0
    %1361 = vmatpush2.bf16.msra.mxu0 0
    %1362 = vmatprep.subr.bf16.mxu0 0
    %1363 = vmatpush2.bf16.msra.mxu0 0
    %1364 = vmatprep.mubr.bf16.mxu0 0
    %1365 = vmatmul.mubr.bf16.gmra.mxu0 %v1327
    %v1366 = vpop.f32.mrf.mxu0
    %v1367 = vadd.f32 0.0, %v1366
    %v1368 = vpop.f32.mrf.mxu0
    %v1369 = vpop.f32.mrf.mxu0
    %v1370 = vpop.f32.mrf.mxu0
    %1371 = vdwg.mxu0
    %v1372 = vrot.slane %v489, 4
    %v1373 = vrot.slane %v490, 4
    %v1375 = vsel %vm492, %v1372, 0
    %v1378 = vsel %vm492, %v1373, 0
    %1380 = vmatprep.subr.bf16.mxu0 0
    %1381 = vmatpush1.bf16.xpose.msra.mxu0 0
    %1382 = vmatprep.subr.bf16.mxu0 0
    %1383 = vmatpush1.bf16.xpose.msra.mxu0 0
    %1384 = vmatprep.subr.bf16.mxu0 0
    %1385 = vmatpush1.bf16.xpose.msra.mxu0 0
    %1386 = vmatprep.subr.bf16.mxu0 0
    %1387 = vmatpush1.bf16.xpose.msra.mxu0 0
    %1388 = vmatprep.subr.bf16.mxu0 0
    %1389 = vmatpush1.bf16.xpose.msra.mxu0 0
    %1390 = vmatprep.subr.bf16.mxu0 0
    %1391 = vmatpush1.bf16.xpose.msra.mxu0 0
    %1392 = vmatprep.subr.bf16.mxu0 0
    %1393 = vmatpush1.bf16.xpose.msra.mxu0 0
    %1394 = vmatprep.subr.bf16.mxu0 0
    %1395 = vmatpush1.bf16.xpose.msra.mxu0 %v1378
    %1396 = vmatprep.subr.bf16.mxu0 0
    %1397 = vmatpush2.bf16.xpose.msra.mxu0 0
    %1398 = vmatprep.subr.bf16.mxu0 0
    %1399 = vmatpush2.bf16.xpose.msra.mxu0 0
    %1400 = vmatprep.subr.bf16.mxu0 0
    %1401 = vmatpush2.bf16.xpose.msra.mxu0 0
    %1402 = vmatprep.subr.bf16.mxu0 0
    %1403 = vmatpush2.bf16.xpose.msra.mxu0 0
    %1404 = vmatprep.subr.bf16.mxu0 0
    %1405 = vmatpush2.bf16.xpose.msra.mxu0 0
    %1406 = vmatprep.subr.bf16.mxu0 0
    %1407 = vmatpush2.bf16.xpose.msra.mxu0 0
    %1408 = vmatprep.subr.bf16.mxu0 0
    %1409 = vmatpush2.bf16.xpose.msra.mxu0 0
    %1410 = vmatprep.subr.bf16.mxu0 0
    %1411 = vmatpush2.bf16.xpose.msra.mxu0 0
    %1412 = vmatprep.mubr.bf16.mxu0 0
    %1413 = vmatmul.mubr.bf16.gmra.mxu0 %v1375
    %v1414 = vpop.f32.mrf.mxu0
    %v1415 = vadd.f32 %v488, %v1414
    %v1416 = vpop.f32.mrf.mxu0
    %v1417 = vpop.f32.mrf.mxu0
    %v1418 = vpop.f32.mrf.mxu0
    %1419 = vdwg.mxu0
    %v1420 = vsel %vm539, %v1415, -inf
    %1421 = vmax.xlane.f32.xlu0 %v1420
    %v1422 = vpop.xlane.xlu0 %1421
    %v1423 = vsub.f32 %v1415, %v1422
    %v1424 = vmul.f32 %v1423, 1.442695
    %v1425 = vpow.pop %v1424
    %v1426 = vsel %vm539, %v1425, 0.0
    %1427 = vadd.xlane.f32.xlu0 %v1426
    %v1428 = vpop.xlane.xlu0 %1427
    %v1429 = vrcp.pop %v1428
    %v1430 = vmul.f32 %v1425, %v1429
    %v1431 = vpack.c.bf16 %v1430, %v1430
    %v1432 = vrot.slane %v491, 4
    %v1434 = vsel %vm539, %v1431, 0
    %v1437 = vsel %vm555, %v1432, 0
    %1439 = vmatprep.subr.bf16.mxu0 0
    %1440 = vmatpush1.bf16.msra.mxu0 0
    %1441 = vmatprep.subr.bf16.mxu0 0
    %1442 = vmatpush1.bf16.msra.mxu0 0
    %1443 = vmatprep.subr.bf16.mxu0 0
    %1444 = vmatpush1.bf16.msra.mxu0 0
    %1445 = vmatprep.subr.bf16.mxu0 0
    %1446 = vmatpush1.bf16.msra.mxu0 0
    %1447 = vmatprep.subr.bf16.mxu0 0
    %1448 = vmatpush1.bf16.msra.mxu0 0
    %1449 = vmatprep.subr.bf16.mxu0 0
    %1450 = vmatpush1.bf16.msra.mxu0 0
    %1451 = vmatprep.subr.bf16.mxu0 0
    %1452 = vmatpush1.bf16.msra.mxu0 0
    %1453 = vmatprep.subr.bf16.mxu0 0
    %1454 = vmatpush1.bf16.msra.mxu0 %v1437
    %1455 = vmatprep.subr.bf16.mxu0 0
    %1456 = vmatpush2.bf16.msra.mxu0 0
    %1457 = vmatprep.subr.bf16.mxu0 0
    %1458 = vmatpush2.bf16.msra.mxu0 0
    %1459 = vmatprep.subr.bf16.mxu0 0
    %1460 = vmatpush2.bf16.msra.mxu0 0
    %1461 = vmatprep.subr.bf16.mxu0 0
    %1462 = vmatpush2.bf16.msra.mxu0 0
    %1463 = vmatprep.subr.bf16.mxu0 0
    %1464 = vmatpush2.bf16.msra.mxu0 0
    %1465 = vmatprep.subr.bf16.mxu0 0
    %1466 = vmatpush2.bf16.msra.mxu0 0
    %1467 = vmatprep.subr.bf16.mxu0 0
    %1468 = vmatpush2.bf16.msra.mxu0 0
    %1469 = vmatprep.subr.bf16.mxu0 0
    %1470 = vmatpush2.bf16.msra.mxu0 0
    %1471 = vmatprep.mubr.bf16.mxu0 0
    %1472 = vmatmul.mubr.bf16.gmra.mxu0 %v1434
    %v1473 = vpop.f32.mrf.mxu0
    %v1474 = vadd.f32 0.0, %v1473
    %v1475 = vpop.f32.mrf.mxu0
    %v1476 = vpop.f32.mrf.mxu0
    %v1477 = vpop.f32.mrf.mxu0
    %1478 = vdwg.mxu0
    %1479 = vrot.lane.b32.xlu0 %v1372, 112
    %v1480 = vpop.permute.xlu0 %1479
    %1481 = vrot.lane.b32.xlu0 %v1373, 112
    %v1482 = vpop.permute.xlu0 %1481
    %v1484 = vsel %vm492, %v1480, 0
    %v1487 = vsel %vm492, %v1482, 0
    %1489 = vmatprep.subr.bf16.mxu0 0
    %1490 = vmatpush1.bf16.xpose.msra.mxu0 0
    %1491 = vmatprep.subr.bf16.mxu0 0
    %1492 = vmatpush1.bf16.xpose.msra.mxu0 0
    %1493 = vmatprep.subr.bf16.mxu0 0
    %1494 = vmatpush1.bf16.xpose.msra.mxu0 0
    %1495 = vmatprep.subr.bf16.mxu0 0
    %1496 = vmatpush1.bf16.xpose.msra.mxu0 0
    %1497 = vmatprep.subr.bf16.mxu0 0
    %1498 = vmatpush1.bf16.xpose.msra.mxu0 0
    %1499 = vmatprep.subr.bf16.mxu0 0
    %1500 = vmatpush1.bf16.xpose.msra.mxu0 0
    %1501 = vmatprep.subr.bf16.mxu0 0
    %1502 = vmatpush1.bf16.xpose.msra.mxu0 0
    %1503 = vmatprep.subr.bf16.mxu0 0
    %1504 = vmatpush1.bf16.xpose.msra.mxu0 %v1487
    %1505 = vmatprep.subr.bf16.mxu0 0
    %1506 = vmatpush2.bf16.xpose.msra.mxu0 0
    %1507 = vmatprep.subr.bf16.mxu0 0
    %1508 = vmatpush2.bf16.xpose.msra.mxu0 0
    %1509 = vmatprep.subr.bf16.mxu0 0
    %1510 = vmatpush2.bf16.xpose.msra.mxu0 0
    %1511 = vmatprep.subr.bf16.mxu0 0
    %1512 = vmatpush2.bf16.xpose.msra.mxu0 0
    %1513 = vmatprep.subr.bf16.mxu0 0
    %1514 = vmatpush2.bf16.xpose.msra.mxu0 0
    %1515 = vmatprep.subr.bf16.mxu0 0
    %1516 = vmatpush2.bf16.xpose.msra.mxu0 0
    %1517 = vmatprep.subr.bf16.mxu0 0
    %1518 = vmatpush2.bf16.xpose.msra.mxu0 0
    %1519 = vmatprep.subr.bf16.mxu0 0
    %1520 = vmatpush2.bf16.xpose.msra.mxu0 0
    %1521 = vmatprep.mubr.bf16.mxu0 0
    %1522 = vmatmul.mubr.bf16.gmra.mxu0 %v1484
    %v1523 = vpop.f32.mrf.mxu0
    %v1524 = vadd.f32 %v488, %v1523
    %v1525 = vpop.f32.mrf.mxu0
    %v1526 = vpop.f32.mrf.mxu0
    %v1527 = vpop.f32.mrf.mxu0
    %1528 = vdwg.mxu0
    %v1529 = vsel %vm539, %v1524, -inf
    %1530 = vmax.xlane.f32.xlu0 %v1529
    %v1531 = vpop.xlane.xlu0 %1530
    %v1532 = vsub.f32 %v1524, %v1531
    %v1533 = vmul.f32 %v1532, 1.442695
    %v1534 = vpow.pop %v1533
    %v1535 = vsel %vm539, %v1534, 0.0
    %1536 = vadd.xlane.f32.xlu0 %v1535
    %v1537 = vpop.xlane.xlu0 %1536
    %v1538 = vrcp.pop %v1537
    %v1539 = vmul.f32 %v1534, %v1538
    %v1540 = vpack.c.bf16 %v1539, %v1539
    %1541 = vrot.lane.b32.xlu0 %v1432, 112
    %v1542 = vpop.permute.xlu0 %1541
    %v1544 = vsel %vm539, %v1540, 0
    %v1547 = vsel %vm555, %v1542, 0
    %1549 = vmatprep.subr.bf16.mxu0 0
    %1550 = vmatpush1.bf16.msra.mxu0 0
    %1551 = vmatprep.subr.bf16.mxu0 0
    %1552 = vmatpush1.bf16.msra.mxu0 0
    %1553 = vmatprep.subr.bf16.mxu0 0
    %1554 = vmatpush1.bf16.msra.mxu0 0
    %1555 = vmatprep.subr.bf16.mxu0 0
    %1556 = vmatpush1.bf16.msra.mxu0 0
    %1557 = vmatprep.subr.bf16.mxu0 0
    %1558 = vmatpush1.bf16.msra.mxu0 0
    %1559 = vmatprep.subr.bf16.mxu0 0
    %1560 = vmatpush1.bf16.msra.mxu0 0
    %1561 = vmatprep.subr.bf16.mxu0 0
    %1562 = vmatpush1.bf16.msra.mxu0 0
    %1563 = vmatprep.subr.bf16.mxu0 0
    %1564 = vmatpush1.bf16.msra.mxu0 %v1547
    %1565 = vmatprep.subr.bf16.mxu0 0
    %1566 = vmatpush2.bf16.msra.mxu0 0
    %1567 = vmatprep.subr.bf16.mxu0 0
    %1568 = vmatpush2.bf16.msra.mxu0 0
    %1569 = vmatprep.subr.bf16.mxu0 0
    %1570 = vmatpush2.bf16.msra.mxu0 0
    %1571 = vmatprep.subr.bf16.mxu0 0
    %1572 = vmatpush2.bf16.msra.mxu0 0
    %1573 = vmatprep.subr.bf16.mxu0 0
    %1574 = vmatpush2.bf16.msra.mxu0 0
    %1575 = vmatprep.subr.bf16.mxu0 0
    %1576 = vmatpush2.bf16.msra.mxu0 0
    %1577 = vmatprep.subr.bf16.mxu0 0
    %1578 = vmatpush2.bf16.msra.mxu0 0
    %1579 = vmatprep.subr.bf16.mxu0 0
    %1580 = vmatpush2.bf16.msra.mxu0 0
    %1581 = vmatprep.mubr.bf16.mxu0 0
    %1582 = vmatmul.mubr.bf16.gmra.mxu0 %v1544
    %v1583 = vpop.f32.mrf.mxu0
    %v1584 = vadd.f32 0.0, %v1583
    %v1585 = vpop.f32.mrf.mxu0
    %v1586 = vpop.f32.mrf.mxu0
    %v1587 = vpop.f32.mrf.mxu0
    %1588 = vdwg.mxu0
    %1589 = vrot.lane.b32.xlu0 %v1372, 96
    %v1590 = vpop.permute.xlu0 %1589
    %1591 = vrot.lane.b32.xlu0 %v1373, 96
    %v1592 = vpop.permute.xlu0 %1591
    %v1594 = vsel %vm492, %v1590, 0
    %v1597 = vsel %vm492, %v1592, 0
    %1599 = vmatprep.subr.bf16.mxu0 0
    %1600 = vmatpush1.bf16.xpose.msra.mxu0 0
    %1601 = vmatprep.subr.bf16.mxu0 0
    %1602 = vmatpush1.bf16.xpose.msra.mxu0 0
    %1603 = vmatprep.subr.bf16.mxu0 0
    %1604 = vmatpush1.bf16.xpose.msra.mxu0 0
    %1605 = vmatprep.subr.bf16.mxu0 0
    %1606 = vmatpush1.bf16.xpose.msra.mxu0 0
    %1607 = vmatprep.subr.bf16.mxu0 0
    %1608 = vmatpush1.bf16.xpose.msra.mxu0 0
    %1609 = vmatprep.subr.bf16.mxu0 0
    %1610 = vmatpush1.bf16.xpose.msra.mxu0 0
    %1611 = vmatprep.subr.bf16.mxu0 0
    %1612 = vmatpush1.bf16.xpose.msra.mxu0 0
    %1613 = vmatprep.subr.bf16.mxu0 0
    %1614 = vmatpush1.bf16.xpose.msra.mxu0 %v1597
    %1615 = vmatprep.subr.bf16.mxu0 0
    %1616 = vmatpush2.bf16.xpose.msra.mxu0 0
    %1617 = vmatprep.subr.bf16.mxu0 0
    %1618 = vmatpush2.bf16.xpose.msra.mxu0 0
    %1619 = vmatprep.subr.bf16.mxu0 0
    %1620 = vmatpush2.bf16.xpose.msra.mxu0 0
    %1621 = vmatprep.subr.bf16.mxu0 0
    %1622 = vmatpush2.bf16.xpose.msra.mxu0 0
    %1623 = vmatprep.subr.bf16.mxu0 0
    %1624 = vmatpush2.bf16.xpose.msra.mxu0 0
    %1625 = vmatprep.subr.bf16.mxu0 0
    %1626 = vmatpush2.bf16.xpose.msra.mxu0 0
    %1627 = vmatprep.subr.bf16.mxu0 0
    %1628 = vmatpush2.bf16.xpose.msra.mxu0 0
    %1629 = vmatprep.subr.bf16.mxu0 0
    %1630 = vmatpush2.bf16.xpose.msra.mxu0 0
    %1631 = vmatprep.mubr.bf16.mxu0 0
    %1632 = vmatmul.mubr.bf16.gmra.mxu0 %v1594
    %v1633 = vpop.f32.mrf.mxu0
    %v1634 = vadd.f32 %v488, %v1633
    %v1635 = vpop.f32.mrf.mxu0
    %v1636 = vpop.f32.mrf.mxu0
    %v1637 = vpop.f32.mrf.mxu0
    %1638 = vdwg.mxu0
    %v1639 = vsel %vm539, %v1634, -inf
    %1640 = vmax.xlane.f32.xlu0 %v1639
    %v1641 = vpop.xlane.xlu0 %1640
    %v1642 = vsub.f32 %v1634, %v1641
    %v1643 = vmul.f32 %v1642, 1.442695
    %v1644 = vpow.pop %v1643
    %v1645 = vsel %vm539, %v1644, 0.0
    %1646 = vadd.xlane.f32.xlu0 %v1645
    %v1647 = vpop.xlane.xlu0 %1646
    %v1648 = vrcp.pop %v1647
    %v1649 = vmul.f32 %v1644, %v1648
    %v1650 = vpack.c.bf16 %v1649, %v1649
    %1651 = vrot.lane.b32.xlu0 %v1432, 96
    %v1652 = vpop.permute.xlu0 %1651
    %v1654 = vsel %vm539, %v1650, 0
    %v1657 = vsel %vm555, %v1652, 0
    %1659 = vmatprep.subr.bf16.mxu0 0
    %1660 = vmatpush1.bf16.msra.mxu0 0
    %1661 = vmatprep.subr.bf16.mxu0 0
    %1662 = vmatpush1.bf16.msra.mxu0 0
    %1663 = vmatprep.subr.bf16.mxu0 0
    %1664 = vmatpush1.bf16.msra.mxu0 0
    %1665 = vmatprep.subr.bf16.mxu0 0
    %1666 = vmatpush1.bf16.msra.mxu0 0
    %1667 = vmatprep.subr.bf16.mxu0 0
    %1668 = vmatpush1.bf16.msra.mxu0 0
    %1669 = vmatprep.subr.bf16.mxu0 0
    %1670 = vmatpush1.bf16.msra.mxu0 0
    %1671 = vmatprep.subr.bf16.mxu0 0
    %1672 = vmatpush1.bf16.msra.mxu0 0
    %1673 = vmatprep.subr.bf16.mxu0 0
    %1674 = vmatpush1.bf16.msra.mxu0 %v1657
    %1675 = vmatprep.subr.bf16.mxu0 0
    %1676 = vmatpush2.bf16.msra.mxu0 0
    %1677 = vmatprep.subr.bf16.mxu0 0
    %1678 = vmatpush2.bf16.msra.mxu0 0
    %1679 = vmatprep.subr.bf16.mxu0 0
    %1680 = vmatpush2.bf16.msra.mxu0 0
    %1681 = vmatprep.subr.bf16.mxu0 0
    %1682 = vmatpush2.bf16.msra.mxu0 0
    %1683 = vmatprep.subr.bf16.mxu0 0
    %1684 = vmatpush2.bf16.msra.mxu0 0
    %1685 = vmatprep.subr.bf16.mxu0 0
    %1686 = vmatpush2.bf16.msra.mxu0 0
    %1687 = vmatprep.subr.bf16.mxu0 0
    %1688 = vmatpush2.bf16.msra.mxu0 0
    %1689 = vmatprep.subr.bf16.mxu0 0
    %1690 = vmatpush2.bf16.msra.mxu0 0
    %1691 = vmatprep.mubr.bf16.mxu0 0
    %1692 = vmatmul.mubr.bf16.gmra.mxu0 %v1654
    %v1693 = vpop.f32.mrf.mxu0
    %v1694 = vadd.f32 0.0, %v1693
    %v1695 = vpop.f32.mrf.mxu0
    %v1696 = vpop.f32.mrf.mxu0
    %v1697 = vpop.f32.mrf.mxu0
    %1698 = vdwg.mxu0
    %1699 = vrot.lane.b32.xlu0 %v1372, 80
    %v1700 = vpop.permute.xlu0 %1699
    %1701 = vrot.lane.b32.xlu0 %v1373, 80
    %v1702 = vpop.permute.xlu0 %1701
    %v1704 = vsel %vm492, %v1700, 0
    %v1707 = vsel %vm492, %v1702, 0
    %1709 = vmatprep.subr.bf16.mxu0 0
    %1710 = vmatpush1.bf16.xpose.msra.mxu0 0
    %1711 = vmatprep.subr.bf16.mxu0 0
    %1712 = vmatpush1.bf16.xpose.msra.mxu0 0
    %1713 = vmatprep.subr.bf16.mxu0 0
    %1714 = vmatpush1.bf16.xpose.msra.mxu0 0
    %1715 = vmatprep.subr.bf16.mxu0 0
    %1716 = vmatpush1.bf16.xpose.msra.mxu0 0
    %1717 = vmatprep.subr.bf16.mxu0 0
    %1718 = vmatpush1.bf16.xpose.msra.mxu0 0
    %1719 = vmatprep.subr.bf16.mxu0 0
    %1720 = vmatpush1.bf16.xpose.msra.mxu0 0
    %1721 = vmatprep.subr.bf16.mxu0 0
    %1722 = vmatpush1.bf16.xpose.msra.mxu0 0
    %1723 = vmatprep.subr.bf16.mxu0 0
    %1724 = vmatpush1.bf16.xpose.msra.mxu0 %v1707
    %1725 = vmatprep.subr.bf16.mxu0 0
    %1726 = vmatpush2.bf16.xpose.msra.mxu0 0
    %1727 = vmatprep.subr.bf16.mxu0 0
    %1728 = vmatpush2.bf16.xpose.msra.mxu0 0
    %1729 = vmatprep.subr.bf16.mxu0 0
    %1730 = vmatpush2.bf16.xpose.msra.mxu0 0
    %1731 = vmatprep.subr.bf16.mxu0 0
    %1732 = vmatpush2.bf16.xpose.msra.mxu0 0
    %1733 = vmatprep.subr.bf16.mxu0 0
    %1734 = vmatpush2.bf16.xpose.msra.mxu0 0
    %1735 = vmatprep.subr.bf16.mxu0 0
    %1736 = vmatpush2.bf16.xpose.msra.mxu0 0
    %1737 = vmatprep.subr.bf16.mxu0 0
    %1738 = vmatpush2.bf16.xpose.msra.mxu0 0
    %1739 = vmatprep.subr.bf16.mxu0 0
    %1740 = vmatpush2.bf16.xpose.msra.mxu0 0
    %1741 = vmatprep.mubr.bf16.mxu0 0
    %1742 = vmatmul.mubr.bf16.gmra.mxu0 %v1704
    %v1743 = vpop.f32.mrf.mxu0
    %v1744 = vadd.f32 %v488, %v1743
    %v1745 = vpop.f32.mrf.mxu0
    %v1746 = vpop.f32.mrf.mxu0
    %v1747 = vpop.f32.mrf.mxu0
    %1748 = vdwg.mxu0
    %v1749 = vsel %vm539, %v1744, -inf
    %1750 = vmax.xlane.f32.xlu0 %v1749
    %v1751 = vpop.xlane.xlu0 %1750
    %v1752 = vsub.f32 %v1744, %v1751
    %v1753 = vmul.f32 %v1752, 1.442695
    %v1754 = vpow.pop %v1753
    %v1755 = vsel %vm539, %v1754, 0.0
    %1756 = vadd.xlane.f32.xlu0 %v1755
    %v1757 = vpop.xlane.xlu0 %1756
    %v1758 = vrcp.pop %v1757
    %v1759 = vmul.f32 %v1754, %v1758
    %v1760 = vpack.c.bf16 %v1759, %v1759
    %1761 = vrot.lane.b32.xlu0 %v1432, 80
    %v1762 = vpop.permute.xlu0 %1761
    %v1764 = vsel %vm539, %v1760, 0
    %v1767 = vsel %vm555, %v1762, 0
    %1769 = vmatprep.subr.bf16.mxu0 0
    %1770 = vmatpush1.bf16.msra.mxu0 0
    %1771 = vmatprep.subr.bf16.mxu0 0
    %1772 = vmatpush1.bf16.msra.mxu0 0
    %1773 = vmatprep.subr.bf16.mxu0 0
    %1774 = vmatpush1.bf16.msra.mxu0 0
    %1775 = vmatprep.subr.bf16.mxu0 0
    %1776 = vmatpush1.bf16.msra.mxu0 0
    %1777 = vmatprep.subr.bf16.mxu0 0
    %1778 = vmatpush1.bf16.msra.mxu0 0
    %1779 = vmatprep.subr.bf16.mxu0 0
    %1780 = vmatpush1.bf16.msra.mxu0 0
    %1781 = vmatprep.subr.bf16.mxu0 0
    %1782 = vmatpush1.bf16.msra.mxu0 0
    %1783 = vmatprep.subr.bf16.mxu0 0
    %1784 = vmatpush1.bf16.msra.mxu0 %v1767
    %1785 = vmatprep.subr.bf16.mxu0 0
    %1786 = vmatpush2.bf16.msra.mxu0 0
    %1787 = vmatprep.subr.bf16.mxu0 0
    %1788 = vmatpush2.bf16.msra.mxu0 0
    %1789 = vmatprep.subr.bf16.mxu0 0
    %1790 = vmatpush2.bf16.msra.mxu0 0
    %1791 = vmatprep.subr.bf16.mxu0 0
    %1792 = vmatpush2.bf16.msra.mxu0 0
    %1793 = vmatprep.subr.bf16.mxu0 0
    %1794 = vmatpush2.bf16.msra.mxu0 0
    %1795 = vmatprep.subr.bf16.mxu0 0
    %1796 = vmatpush2.bf16.msra.mxu0 0
    %1797 = vmatprep.subr.bf16.mxu0 0
    %1798 = vmatpush2.bf16.msra.mxu0 0
    %1799 = vmatprep.subr.bf16.mxu0 0
    %1800 = vmatpush2.bf16.msra.mxu0 0
    %1801 = vmatprep.mubr.bf16.mxu0 0
    %1802 = vmatmul.mubr.bf16.gmra.mxu0 %v1764
    %v1803 = vpop.f32.mrf.mxu0
    %v1804 = vadd.f32 0.0, %v1803
    %v1805 = vpop.f32.mrf.mxu0
    %v1806 = vpop.f32.mrf.mxu0
    %v1807 = vpop.f32.mrf.mxu0
    %1808 = vdwg.mxu0
    %1809 = vrot.lane.b32.xlu0 %v1372, 64
    %v1810 = vpop.permute.xlu0 %1809
    %1811 = vrot.lane.b32.xlu0 %v1373, 64
    %v1812 = vpop.permute.xlu0 %1811
    %v1814 = vsel %vm492, %v1810, 0
    %v1817 = vsel %vm492, %v1812, 0
    %1819 = vmatprep.subr.bf16.mxu0 0
    %1820 = vmatpush1.bf16.xpose.msra.mxu0 0
    %1821 = vmatprep.subr.bf16.mxu0 0
    %1822 = vmatpush1.bf16.xpose.msra.mxu0 0
    %1823 = vmatprep.subr.bf16.mxu0 0
    %1824 = vmatpush1.bf16.xpose.msra.mxu0 0
    %1825 = vmatprep.subr.bf16.mxu0 0
    %1826 = vmatpush1.bf16.xpose.msra.mxu0 0
    %1827 = vmatprep.subr.bf16.mxu0 0
    %1828 = vmatpush1.bf16.xpose.msra.mxu0 0
    %1829 = vmatprep.subr.bf16.mxu0 0
    %1830 = vmatpush1.bf16.xpose.msra.mxu0 0
    %1831 = vmatprep.subr.bf16.mxu0 0
    %1832 = vmatpush1.bf16.xpose.msra.mxu0 0
    %1833 = vmatprep.subr.bf16.mxu0 0
    %1834 = vmatpush1.bf16.xpose.msra.mxu0 %v1817
    %1835 = vmatprep.subr.bf16.mxu0 0
    %1836 = vmatpush2.bf16.xpose.msra.mxu0 0
    %1837 = vmatprep.subr.bf16.mxu0 0
    %1838 = vmatpush2.bf16.xpose.msra.mxu0 0
    %1839 = vmatprep.subr.bf16.mxu0 0
    %1840 = vmatpush2.bf16.xpose.msra.mxu0 0
    %1841 = vmatprep.subr.bf16.mxu0 0
    %1842 = vmatpush2.bf16.xpose.msra.mxu0 0
    %1843 = vmatprep.subr.bf16.mxu0 0
    %1844 = vmatpush2.bf16.xpose.msra.mxu0 0
    %1845 = vmatprep.subr.bf16.mxu0 0
    %1846 = vmatpush2.bf16.xpose.msra.mxu0 0
    %1847 = vmatprep.subr.bf16.mxu0 0
    %1848 = vmatpush2.bf16.xpose.msra.mxu0 0
    %1849 = vmatprep.subr.bf16.mxu0 0
    %1850 = vmatpush2.bf16.xpose.msra.mxu0 0
    %1851 = vmatprep.mubr.bf16.mxu0 0
    %1852 = vmatmul.mubr.bf16.gmra.mxu0 %v1814
    %v1853 = vpop.f32.mrf.mxu0
    %v1854 = vadd.f32 %v488, %v1853
    %v1855 = vpop.f32.mrf.mxu0
    %v1856 = vpop.f32.mrf.mxu0
    %v1857 = vpop.f32.mrf.mxu0
    %1858 = vdwg.mxu0
    %v1859 = vsel %vm539, %v1854, -inf
    %1860 = vmax.xlane.f32.xlu0 %v1859
    %v1861 = vpop.xlane.xlu0 %1860
    %v1862 = vsub.f32 %v1854, %v1861
    %v1863 = vmul.f32 %v1862, 1.442695
    %v1864 = vpow.pop %v1863
    %v1865 = vsel %vm539, %v1864, 0.0
    %1866 = vadd.xlane.f32.xlu0 %v1865
    %v1867 = vpop.xlane.xlu0 %1866
    %v1868 = vrcp.pop %v1867
    %v1869 = vmul.f32 %v1864, %v1868
    %v1870 = vpack.c.bf16 %v1869, %v1869
    %1871 = vrot.lane.b32.xlu0 %v1432, 64
    %v1872 = vpop.permute.xlu0 %1871
    %v1874 = vsel %vm539, %v1870, 0
    %v1877 = vsel %vm555, %v1872, 0
    %1879 = vmatprep.subr.bf16.mxu0 0
    %1880 = vmatpush1.bf16.msra.mxu0 0
    %1881 = vmatprep.subr.bf16.mxu0 0
    %1882 = vmatpush1.bf16.msra.mxu0 0
    %1883 = vmatprep.subr.bf16.mxu0 0
    %1884 = vmatpush1.bf16.msra.mxu0 0
    %1885 = vmatprep.subr.bf16.mxu0 0
    %1886 = vmatpush1.bf16.msra.mxu0 0
    %1887 = vmatprep.subr.bf16.mxu0 0
    %1888 = vmatpush1.bf16.msra.mxu0 0
    %1889 = vmatprep.subr.bf16.mxu0 0
    %1890 = vmatpush1.bf16.msra.mxu0 0
    %1891 = vmatprep.subr.bf16.mxu0 0
    %1892 = vmatpush1.bf16.msra.mxu0 0
    %1893 = vmatprep.subr.bf16.mxu0 0
    %1894 = vmatpush1.bf16.msra.mxu0 %v1877
    %1895 = vmatprep.subr.bf16.mxu0 0
    %1896 = vmatpush2.bf16.msra.mxu0 0
    %1897 = vmatprep.subr.bf16.mxu0 0
    %1898 = vmatpush2.bf16.msra.mxu0 0
    %1899 = vmatprep.subr.bf16.mxu0 0
    %1900 = vmatpush2.bf16.msra.mxu0 0
    %1901 = vmatprep.subr.bf16.mxu0 0
    %1902 = vmatpush2.bf16.msra.mxu0 0
    %1903 = vmatprep.subr.bf16.mxu0 0
    %1904 = vmatpush2.bf16.msra.mxu0 0
    %1905 = vmatprep.subr.bf16.mxu0 0
    %1906 = vmatpush2.bf16.msra.mxu0 0
    %1907 = vmatprep.subr.bf16.mxu0 0
    %1908 = vmatpush2.bf16.msra.mxu0 0
    %1909 = vmatprep.subr.bf16.mxu0 0
    %1910 = vmatpush2.bf16.msra.mxu0 0
    %1911 = vmatprep.mubr.bf16.mxu0 0
    %1912 = vmatmul.mubr.bf16.gmra.mxu0 %v1874
    %v1913 = vpop.f32.mrf.mxu0
    %v1914 = vadd.f32 0.0, %v1913
    %v1915 = vpop.f32.mrf.mxu0
    %v1916 = vpop.f32.mrf.mxu0
    %v1917 = vpop.f32.mrf.mxu0
    %1918 = vdwg.mxu0
    %1919 = vrot.lane.b32.xlu0 %v1372, 48
    %v1920 = vpop.permute.xlu0 %1919
    %1921 = vrot.lane.b32.xlu0 %v1373, 48
    %v1922 = vpop.permute.xlu0 %1921
    %v1924 = vsel %vm492, %v1920, 0
    %v1927 = vsel %vm492, %v1922, 0
    %1929 = vmatprep.subr.bf16.mxu0 0
    %1930 = vmatpush1.bf16.xpose.msra.mxu0 0
    %1931 = vmatprep.subr.bf16.mxu0 0
    %1932 = vmatpush1.bf16.xpose.msra.mxu0 0
    %1933 = vmatprep.subr.bf16.mxu0 0
    %1934 = vmatpush1.bf16.xpose.msra.mxu0 0
    %1935 = vmatprep.subr.bf16.mxu0 0
    %1936 = vmatpush1.bf16.xpose.msra.mxu0 0
    %1937 = vmatprep.subr.bf16.mxu0 0
    %1938 = vmatpush1.bf16.xpose.msra.mxu0 0
    %1939 = vmatprep.subr.bf16.mxu0 0
    %1940 = vmatpush1.bf16.xpose.msra.mxu0 0
    %1941 = vmatprep.subr.bf16.mxu0 0
    %1942 = vmatpush1.bf16.xpose.msra.mxu0 0
    %1943 = vmatprep.subr.bf16.mxu0 0
    %1944 = vmatpush1.bf16.xpose.msra.mxu0 %v1927
    %1945 = vmatprep.subr.bf16.mxu0 0
    %1946 = vmatpush2.bf16.xpose.msra.mxu0 0
    %1947 = vmatprep.subr.bf16.mxu0 0
    %1948 = vmatpush2.bf16.xpose.msra.mxu0 0
    %1949 = vmatprep.subr.bf16.mxu0 0
    %1950 = vmatpush2.bf16.xpose.msra.mxu0 0
    %1951 = vmatprep.subr.bf16.mxu0 0
    %1952 = vmatpush2.bf16.xpose.msra.mxu0 0
    %1953 = vmatprep.subr.bf16.mxu0 0
    %1954 = vmatpush2.bf16.xpose.msra.mxu0 0
    %1955 = vmatprep.subr.bf16.mxu0 0
    %1956 = vmatpush2.bf16.xpose.msra.mxu0 0
    %1957 = vmatprep.subr.bf16.mxu0 0
    %1958 = vmatpush2.bf16.xpose.msra.mxu0 0
    %1959 = vmatprep.subr.bf16.mxu0 0
    %1960 = vmatpush2.bf16.xpose.msra.mxu0 0
    %1961 = vmatprep.mubr.bf16.mxu0 0
    %1962 = vmatmul.mubr.bf16.gmra.mxu0 %v1924
    %v1963 = vpop.f32.mrf.mxu0
    %v1964 = vadd.f32 %v488, %v1963
    %v1965 = vpop.f32.mrf.mxu0
    %v1966 = vpop.f32.mrf.mxu0
    %v1967 = vpop.f32.mrf.mxu0
    %1968 = vdwg.mxu0
    %v1969 = vsel %vm539, %v1964, -inf
    %1970 = vmax.xlane.f32.xlu0 %v1969
    %v1971 = vpop.xlane.xlu0 %1970
    %v1972 = vsub.f32 %v1964, %v1971
    %v1973 = vmul.f32 %v1972, 1.442695
    %v1974 = vpow.pop %v1973
    %v1975 = vsel %vm539, %v1974, 0.0
    %1976 = vadd.xlane.f32.xlu0 %v1975
    %v1977 = vpop.xlane.xlu0 %1976
    %v1978 = vrcp.pop %v1977
    %v1979 = vmul.f32 %v1974, %v1978
    %v1980 = vpack.c.bf16 %v1979, %v1979
    %1981 = vrot.lane.b32.xlu0 %v1432, 48
    %v1982 = vpop.permute.xlu0 %1981
    %v1984 = vsel %vm539, %v1980, 0
    %v1987 = vsel %vm555, %v1982, 0
    %1989 = vmatprep.subr.bf16.mxu0 0
    %1990 = vmatpush1.bf16.msra.mxu0 0
    %1991 = vmatprep.subr.bf16.mxu0 0
    %1992 = vmatpush1.bf16.msra.mxu0 0
    %1993 = vmatprep.subr.bf16.mxu0 0
    %1994 = vmatpush1.bf16.msra.mxu0 0
    %1995 = vmatprep.subr.bf16.mxu0 0
    %1996 = vmatpush1.bf16.msra.mxu0 0
    %1997 = vmatprep.subr.bf16.mxu0 0
    %1998 = vmatpush1.bf16.msra.mxu0 0
    %1999 = vmatprep.subr.bf16.mxu0 0
    %2000 = vmatpush1.bf16.msra.mxu0 0
    %2001 = vmatprep.subr.bf16.mxu0 0
    %2002 = vmatpush1.bf16.msra.mxu0 0
    %2003 = vmatprep.subr.bf16.mxu0 0
    %2004 = vmatpush1.bf16.msra.mxu0 %v1987
    %2005 = vmatprep.subr.bf16.mxu0 0
    %2006 = vmatpush2.bf16.msra.mxu0 0
    %2007 = vmatprep.subr.bf16.mxu0 0
    %2008 = vmatpush2.bf16.msra.mxu0 0
    %2009 = vmatprep.subr.bf16.mxu0 0
    %2010 = vmatpush2.bf16.msra.mxu0 0
    %2011 = vmatprep.subr.bf16.mxu0 0
    %2012 = vmatpush2.bf16.msra.mxu0 0
    %2013 = vmatprep.subr.bf16.mxu0 0
    %2014 = vmatpush2.bf16.msra.mxu0 0
    %2015 = vmatprep.subr.bf16.mxu0 0
    %2016 = vmatpush2.bf16.msra.mxu0 0
    %2017 = vmatprep.subr.bf16.mxu0 0
    %2018 = vmatpush2.bf16.msra.mxu0 0
    %2019 = vmatprep.subr.bf16.mxu0 0
    %2020 = vmatpush2.bf16.msra.mxu0 0
    %2021 = vmatprep.mubr.bf16.mxu0 0
    %2022 = vmatmul.mubr.bf16.gmra.mxu0 %v1984
    %v2023 = vpop.f32.mrf.mxu0
    %v2024 = vadd.f32 0.0, %v2023
    %v2025 = vpop.f32.mrf.mxu0
    %v2026 = vpop.f32.mrf.mxu0
    %v2027 = vpop.f32.mrf.mxu0
    %2028 = vdwg.mxu0
    %2029 = vrot.lane.b32.xlu0 %v1372, 32
    %v2030 = vpop.permute.xlu0 %2029
    %2031 = vrot.lane.b32.xlu0 %v1373, 32
    %v2032 = vpop.permute.xlu0 %2031
    %v2034 = vsel %vm492, %v2030, 0
    %v2037 = vsel %vm492, %v2032, 0
    %2039 = vmatprep.subr.bf16.mxu0 0
    %2040 = vmatpush1.bf16.xpose.msra.mxu0 0
    %2041 = vmatprep.subr.bf16.mxu0 0
    %2042 = vmatpush1.bf16.xpose.msra.mxu0 0
    %2043 = vmatprep.subr.bf16.mxu0 0
    %2044 = vmatpush1.bf16.xpose.msra.mxu0 0
    %2045 = vmatprep.subr.bf16.mxu0 0
    %2046 = vmatpush1.bf16.xpose.msra.mxu0 0
    %2047 = vmatprep.subr.bf16.mxu0 0
    %2048 = vmatpush1.bf16.xpose.msra.mxu0 0
    %2049 = vmatprep.subr.bf16.mxu0 0
    %2050 = vmatpush1.bf16.xpose.msra.mxu0 0
    %2051 = vmatprep.subr.bf16.mxu0 0
    %2052 = vmatpush1.bf16.xpose.msra.mxu0 0
    %2053 = vmatprep.subr.bf16.mxu0 0
    %2054 = vmatpush1.bf16.xpose.msra.mxu0 %v2037
    %2055 = vmatprep.subr.bf16.mxu0 0
    %2056 = vmatpush2.bf16.xpose.msra.mxu0 0
    %2057 = vmatprep.subr.bf16.mxu0 0
    %2058 = vmatpush2.bf16.xpose.msra.mxu0 0
    %2059 = vmatprep.subr.bf16.mxu0 0
    %2060 = vmatpush2.bf16.xpose.msra.mxu0 0
    %2061 = vmatprep.subr.bf16.mxu0 0
    %2062 = vmatpush2.bf16.xpose.msra.mxu0 0
    %2063 = vmatprep.subr.bf16.mxu0 0
    %2064 = vmatpush2.bf16.xpose.msra.mxu0 0
    %2065 = vmatprep.subr.bf16.mxu0 0
    %2066 = vmatpush2.bf16.xpose.msra.mxu0 0
    %2067 = vmatprep.subr.bf16.mxu0 0
    %2068 = vmatpush2.bf16.xpose.msra.mxu0 0
    %2069 = vmatprep.subr.bf16.mxu0 0
    %2070 = vmatpush2.bf16.xpose.msra.mxu0 0
    %2071 = vmatprep.mubr.bf16.mxu0 0
    %2072 = vmatmul.mubr.bf16.gmra.mxu0 %v2034
    %v2073 = vpop.f32.mrf.mxu0
    %v2074 = vadd.f32 %v488, %v2073
    %v2075 = vpop.f32.mrf.mxu0
    %v2076 = vpop.f32.mrf.mxu0
    %v2077 = vpop.f32.mrf.mxu0
    %2078 = vdwg.mxu0
    %v2079 = vsel %vm539, %v2074, -inf
    %2080 = vmax.xlane.f32.xlu0 %v2079
    %v2081 = vpop.xlane.xlu0 %2080
    %v2082 = vsub.f32 %v2074, %v2081
    %v2083 = vmul.f32 %v2082, 1.442695
    %v2084 = vpow.pop %v2083
    %v2085 = vsel %vm539, %v2084, 0.0
    %2086 = vadd.xlane.f32.xlu0 %v2085
    %v2087 = vpop.xlane.xlu0 %2086
    %v2088 = vrcp.pop %v2087
    %v2089 = vmul.f32 %v2084, %v2088
    %v2090 = vpack.c.bf16 %v2089, %v2089
    %2091 = vrot.lane.b32.xlu0 %v1432, 32
    %v2092 = vpop.permute.xlu0 %2091
    %v2094 = vsel %vm539, %v2090, 0
    %v2097 = vsel %vm555, %v2092, 0
    %2099 = vmatprep.subr.bf16.mxu0 0
    %2100 = vmatpush1.bf16.msra.mxu0 0
    %2101 = vmatprep.subr.bf16.mxu0 0
    %2102 = vmatpush1.bf16.msra.mxu0 0
    %2103 = vmatprep.subr.bf16.mxu0 0
    %2104 = vmatpush1.bf16.msra.mxu0 0
    %2105 = vmatprep.subr.bf16.mxu0 0
    %2106 = vmatpush1.bf16.msra.mxu0 0
    %2107 = vmatprep.subr.bf16.mxu0 0
    %2108 = vmatpush1.bf16.msra.mxu0 0
    %2109 = vmatprep.subr.bf16.mxu0 0
    %2110 = vmatpush1.bf16.msra.mxu0 0
    %2111 = vmatprep.subr.bf16.mxu0 0
    %2112 = vmatpush1.bf16.msra.mxu0 0
    %2113 = vmatprep.subr.bf16.mxu0 0
    %2114 = vmatpush1.bf16.msra.mxu0 %v2097
    %2115 = vmatprep.subr.bf16.mxu0 0
    %2116 = vmatpush2.bf16.msra.mxu0 0
    %2117 = vmatprep.subr.bf16.mxu0 0
    %2118 = vmatpush2.bf16.msra.mxu0 0
    %2119 = vmatprep.subr.bf16.mxu0 0
    %2120 = vmatpush2.bf16.msra.mxu0 0
    %2121 = vmatprep.subr.bf16.mxu0 0
    %2122 = vmatpush2.bf16.msra.mxu0 0
    %2123 = vmatprep.subr.bf16.mxu0 0
    %2124 = vmatpush2.bf16.msra.mxu0 0
    %2125 = vmatprep.subr.bf16.mxu0 0
    %2126 = vmatpush2.bf16.msra.mxu0 0
    %2127 = vmatprep.subr.bf16.mxu0 0
    %2128 = vmatpush2.bf16.msra.mxu0 0
    %2129 = vmatprep.subr.bf16.mxu0 0
    %2130 = vmatpush2.bf16.msra.mxu0 0
    %2131 = vmatprep.mubr.bf16.mxu0 0
    %2132 = vmatmul.mubr.bf16.gmra.mxu0 %v2094
    %v2133 = vpop.f32.mrf.mxu0
    %v2134 = vadd.f32 0.0, %v2133
    %v2135 = vpop.f32.mrf.mxu0
    %v2136 = vpop.f32.mrf.mxu0
    %v2137 = vpop.f32.mrf.mxu0
    %2138 = vdwg.mxu0
    %2139 = vrot.lane.b32.xlu0 %v1372, 16
    %v2140 = vpop.permute.xlu0 %2139
    %2141 = vrot.lane.b32.xlu0 %v1373, 16
    %v2142 = vpop.permute.xlu0 %2141
    %v2144 = vsel %vm492, %v2140, 0
    %v2147 = vsel %vm492, %v2142, 0
    %2149 = vmatprep.subr.bf16.mxu0 0
    %2150 = vmatpush1.bf16.xpose.msra.mxu0 0
    %2151 = vmatprep.subr.bf16.mxu0 0
    %2152 = vmatpush1.bf16.xpose.msra.mxu0 0
    %2153 = vmatprep.subr.bf16.mxu0 0
    %2154 = vmatpush1.bf16.xpose.msra.mxu0 0
    %2155 = vmatprep.subr.bf16.mxu0 0
    %2156 = vmatpush1.bf16.xpose.msra.mxu0 0
    %2157 = vmatprep.subr.bf16.mxu0 0
    %2158 = vmatpush1.bf16.xpose.msra.mxu0 0
    %2159 = vmatprep.subr.bf16.mxu0 0
    %2160 = vmatpush1.bf16.xpose.msra.mxu0 0
    %2161 = vmatprep.subr.bf16.mxu0 0
    %2162 = vmatpush1.bf16.xpose.msra.mxu0 0
    %2163 = vmatprep.subr.bf16.mxu0 0
    %2164 = vmatpush1.bf16.xpose.msra.mxu0 %v2147
    %2165 = vmatprep.subr.bf16.mxu0 0
    %2166 = vmatpush2.bf16.xpose.msra.mxu0 0
    %2167 = vmatprep.subr.bf16.mxu0 0
    %2168 = vmatpush2.bf16.xpose.msra.mxu0 0
    %2169 = vmatprep.subr.bf16.mxu0 0
    %2170 = vmatpush2.bf16.xpose.msra.mxu0 0
    %2171 = vmatprep.subr.bf16.mxu0 0
    %2172 = vmatpush2.bf16.xpose.msra.mxu0 0
    %2173 = vmatprep.subr.bf16.mxu0 0
    %2174 = vmatpush2.bf16.xpose.msra.mxu0 0
    %2175 = vmatprep.subr.bf16.mxu0 0
    %2176 = vmatpush2.bf16.xpose.msra.mxu0 0
    %2177 = vmatprep.subr.bf16.mxu0 0
    %2178 = vmatpush2.bf16.xpose.msra.mxu0 0
    %2179 = vmatprep.subr.bf16.mxu0 0
    %2180 = vmatpush2.bf16.xpose.msra.mxu0 0
    %2181 = vmatprep.mubr.bf16.mxu0 0
    %2182 = vmatmul.mubr.bf16.gmra.mxu0 %v2144
    %v2183 = vpop.f32.mrf.mxu0
    %v2184 = vadd.f32 %v488, %v2183
    %v2185 = vpop.f32.mrf.mxu0
    %v2186 = vpop.f32.mrf.mxu0
    %v2187 = vpop.f32.mrf.mxu0
    %2188 = vdwg.mxu0
    %v2189 = vsel %vm539, %v2184, -inf
    %2190 = vmax.xlane.f32.xlu0 %v2189
    %v2191 = vpop.xlane.xlu0 %2190
    %v2192 = vsub.f32 %v2184, %v2191
    %v2193 = vmul.f32 %v2192, 1.442695
    %v2194 = vpow.pop %v2193
    %v2195 = vsel %vm539, %v2194, 0.0
    %2196 = vadd.xlane.f32.xlu0 %v2195
    %v2197 = vpop.xlane.xlu0 %2196
    %v2198 = vrcp.pop %v2197
    %v2199 = vmul.f32 %v2194, %v2198
    %v2200 = vpack.c.bf16 %v2199, %v2199
    %2201 = vrot.lane.b32.xlu0 %v1432, 16
    %v2202 = vpop.permute.xlu0 %2201
    %v2204 = vsel %vm539, %v2200, 0
    %v2207 = vsel %vm555, %v2202, 0
    %2209 = vmatprep.subr.bf16.mxu0 0
    %2210 = vmatpush1.bf16.msra.mxu0 0
    %2211 = vmatprep.subr.bf16.mxu0 0
    %2212 = vmatpush1.bf16.msra.mxu0 0
    %2213 = vmatprep.subr.bf16.mxu0 0
    %2214 = vmatpush1.bf16.msra.mxu0 0
    %2215 = vmatprep.subr.bf16.mxu0 0
    %2216 = vmatpush1.bf16.msra.mxu0 0
    %2217 = vmatprep.subr.bf16.mxu0 0
    %2218 = vmatpush1.bf16.msra.mxu0 0
    %2219 = vmatprep.subr.bf16.mxu0 0
    %2220 = vmatpush1.bf16.msra.mxu0 0
    %2221 = vmatprep.subr.bf16.mxu0 0
    %2222 = vmatpush1.bf16.msra.mxu0 0
    %2223 = vmatprep.subr.bf16.mxu0 0
    %2224 = vmatpush1.bf16.msra.mxu0 %v2207
    %2225 = vmatprep.subr.bf16.mxu0 0
    %2226 = vmatpush2.bf16.msra.mxu0 0
    %2227 = vmatprep.subr.bf16.mxu0 0
    %2228 = vmatpush2.bf16.msra.mxu0 0
    %2229 = vmatprep.subr.bf16.mxu0 0
    %2230 = vmatpush2.bf16.msra.mxu0 0
    %2231 = vmatprep.subr.bf16.mxu0 0
    %2232 = vmatpush2.bf16.msra.mxu0 0
    %2233 = vmatprep.subr.bf16.mxu0 0
    %2234 = vmatpush2.bf16.msra.mxu0 0
    %2235 = vmatprep.subr.bf16.mxu0 0
    %2236 = vmatpush2.bf16.msra.mxu0 0
    %2237 = vmatprep.subr.bf16.mxu0 0
    %2238 = vmatpush2.bf16.msra.mxu0 0
    %2239 = vmatprep.subr.bf16.mxu0 0
    %2240 = vmatpush2.bf16.msra.mxu0 0
    %2241 = vmatprep.mubr.bf16.mxu0 0
    %2242 = vmatmul.mubr.bf16.gmra.mxu0 %v2204
    %v2243 = vpop.f32.mrf.mxu0
    %v2244 = vadd.f32 0.0, %v2243
    %v2245 = vpop.f32.mrf.mxu0
    %v2246 = vpop.f32.mrf.mxu0
    %v2247 = vpop.f32.mrf.mxu0
    %2248 = vdwg.mxu0
    %v2250 = vsel %vm492, %v594, 0
    %v2253 = vsel %vm492, %v707, 0
    %v2256 = vsel %vm492, %v817, 0
    %v2259 = vsel %vm492, %v927, 0
    %v2262 = vsel %vm492, %v1037, 0
    %v2265 = vsel %vm492, %v1147, 0
    %v2268 = vsel %vm492, %v1257, 0
    %v2271 = vsel %vm492, %v1367, 0
    %v2274 = vsel %vm492, %v1474, 0
    %v2277 = vsel %vm492, %v1584, 0
    %v2280 = vsel %vm492, %v1694, 0
    %v2283 = vsel %vm492, %v1804, 0
    %v2286 = vsel %vm492, %v1914, 0
    %v2289 = vsel %vm492, %v2024, 0
    %v2292 = vsel %vm492, %v2134, 0
    %v2295 = vsel %vm492, %v2244, 0
    %2297 = vmatprep.subr.mxu0 0.0
    %2298 = vmatpush1.msra.mxu0 0.0
    %2299 = vmatprep.subr.mxu0 0.0
    %2300 = vmatpush1.msra.mxu0 0.0
    %2301 = vmatprep.subr.mxu0 0.0
    %2302 = vmatpush1.msra.mxu0 0.0
    %2303 = vmatprep.subr.mxu0 0.0
    %2304 = vmatpush1.msra.mxu0 0.0
    %2305 = vmatprep.subr.mxu0 0.0
    %2306 = vmatpush1.msra.mxu0 0.0
    %2307 = vmatprep.subr.mxu0 0.0
    %2308 = vmatpush1.msra.mxu0 0.0
    %2309 = vmatprep.subr.mxu0 0.0
    %2310 = vmatpush1.msra.mxu0 0.0
    %2311 = vmatprep.subr.mxu0 0.0
    %2312 = vmatpush1.msra.mxu0 0.0
    %2313 = vmatprep.subr.mxu0 0.0
    %2314 = vmatpush1.msra.mxu0 0.0
    %2315 = vmatprep.subr.mxu0 0.0
    %2316 = vmatpush1.msra.mxu0 0.0
    %2317 = vmatprep.subr.mxu0 0.0
    %2318 = vmatpush1.msra.mxu0 0.0
    %2319 = vmatprep.subr.mxu0 0.0
    %2320 = vmatpush1.msra.mxu0 0.0
    %2321 = vmatprep.subr.mxu0 0.0
    %2322 = vmatpush1.msra.mxu0 0.0
    %2323 = vmatprep.subr.mxu0 0.0
    %2324 = vmatpush1.msra.mxu0 0.0
    %2325 = vmatprep.subr.mxu0 0.0
    %2326 = vmatpush1.msra.mxu0 %v206
    %2327 = vmatprep.subr.mxu0 0.0
    %2328 = vmatpush1.msra.mxu0 %v205
    %2329 = vmatprep.subr.mxu0 0.0
    %2330 = vmatpush2.msra.mxu0 0.0
    %2331 = vmatprep.subr.mxu0 0.0
    %2332 = vmatpush2.msra.mxu0 0.0
    %2333 = vmatprep.subr.mxu0 0.0
    %2334 = vmatpush2.msra.mxu0 0.0
    %2335 = vmatprep.subr.mxu0 0.0
    %2336 = vmatpush2.msra.mxu0 0.0
    %2337 = vmatprep.subr.mxu0 0.0
    %2338 = vmatpush2.msra.mxu0 0.0
    %2339 = vmatprep.subr.mxu0 0.0
    %2340 = vmatpush2.msra.mxu0 0.0
    %2341 = vmatprep.subr.mxu0 0.0
    %2342 = vmatpush2.msra.mxu0 0.0
    %2343 = vmatprep.subr.mxu0 0.0
    %2344 = vmatpush2.msra.mxu0 0.0
    %2345 = vmatprep.subr.mxu0 0.0
    %2346 = vmatpush2.msra.mxu0 0.0
    %2347 = vmatprep.subr.mxu0 0.0
    %2348 = vmatpush2.msra.mxu0 0.0
    %2349 = vmatprep.subr.mxu0 0.0
    %2350 = vmatpush2.msra.mxu0 0.0
    %2351 = vmatprep.subr.mxu0 0.0
    %2352 = vmatpush2.msra.mxu0 0.0
    %2353 = vmatprep.subr.mxu0 0.0
    %2354 = vmatpush2.msra.mxu0 0.0
    %2355 = vmatprep.subr.mxu0 0.0
    %2356 = vmatpush2.msra.mxu0 0.0
    %2357 = vmatprep.subr.mxu0 0.0
    %2358 = vmatpush2.msra.mxu0 0.0
    %2359 = vmatprep.subr.mxu0 0.0
    %2360 = vmatpush2.msra.mxu0 0.0
    %2361 = vmatprep.mubr.f32.mxu0 0.0
    %2362 = vmatmul.mubr.f32.gmra.mxu0 %v2250
    %v2363 = vpop.f32.mrf.mxu0
    %v2364 = vadd.f32 0.0, %v2363
    %v2365 = vpop.f32.mrf.mxu0
    %2366 = vmatprep.mubr.f32.mxu0 0.0
    %2367 = vmatmul.mubr.f32.gmra.mxu0 %v2253
    %v2368 = vpop.f32.mrf.mxu0
    %v2369 = vadd.f32 0.0, %v2368
    %v2370 = vpop.f32.mrf.mxu0
    %2371 = vmatprep.mubr.f32.mxu0 0.0
    %2372 = vmatmul.mubr.f32.gmra.mxu0 %v2256
    %v2373 = vpop.f32.mrf.mxu0
    %v2374 = vadd.f32 0.0, %v2373
    %v2375 = vpop.f32.mrf.mxu0
    %2376 = vmatprep.mubr.f32.mxu0 0.0
    %2377 = vmatmul.mubr.f32.gmra.mxu0 %v2259
    %v2378 = vpop.f32.mrf.mxu0
    %v2379 = vadd.f32 0.0, %v2378
    %v2380 = vpop.f32.mrf.mxu0
    %2381 = vmatprep.mubr.f32.mxu0 0.0
    %2382 = vmatmul.mubr.f32.gmra.mxu0 %v2262
    %v2383 = vpop.f32.mrf.mxu0
    %v2384 = vadd.f32 0.0, %v2383
    %v2385 = vpop.f32.mrf.mxu0
    %2386 = vmatprep.mubr.f32.mxu0 0.0
    %2387 = vmatmul.mubr.f32.gmra.mxu0 %v2265
    %v2388 = vpop.f32.mrf.mxu0
    %v2389 = vadd.f32 0.0, %v2388
    %v2390 = vpop.f32.mrf.mxu0
    %2391 = vmatprep.mubr.f32.mxu0 0.0
    %2392 = vmatmul.mubr.f32.gmra.mxu0 %v2268
    %v2393 = vpop.f32.mrf.mxu0
    %v2394 = vadd.f32 0.0, %v2393
    %v2395 = vpop.f32.mrf.mxu0
    %2396 = vmatprep.mubr.f32.mxu0 0.0
    %2397 = vmatmul.mubr.f32.gmra.mxu0 %v2271
    %v2398 = vpop.f32.mrf.mxu0
    %v2399 = vadd.f32 0.0, %v2398
    %v2400 = vpop.f32.mrf.mxu0
    %2401 = vmatprep.mubr.f32.mxu0 0.0
    %2402 = vmatmul.mubr.f32.gmra.mxu0 %v2274
    %v2403 = vpop.f32.mrf.mxu0
    %v2404 = vadd.f32 0.0, %v2403
    %v2405 = vpop.f32.mrf.mxu0
    %2406 = vmatprep.mubr.f32.mxu0 0.0
    %2407 = vmatmul.mubr.f32.gmra.mxu0 %v2277
    %v2408 = vpop.f32.mrf.mxu0
    %v2409 = vadd.f32 0.0, %v2408
    %v2410 = vpop.f32.mrf.mxu0
    %2411 = vmatprep.mubr.f32.mxu0 0.0
    %2412 = vmatmul.mubr.f32.gmra.mxu0 %v2280
    %v2413 = vpop.f32.mrf.mxu0
    %v2414 = vadd.f32 0.0, %v2413
    %v2415 = vpop.f32.mrf.mxu0
    %2416 = vmatprep.mubr.f32.mxu0 0.0
    %2417 = vmatmul.mubr.f32.gmra.mxu0 %v2283
    %v2418 = vpop.f32.mrf.mxu0
    %v2419 = vadd.f32 0.0, %v2418
    %v2420 = vpop.f32.mrf.mxu0
    %2421 = vmatprep.mubr.f32.mxu0 0.0
    %2422 = vmatmul.mubr.f32.gmra.mxu0 %v2286
    %v2423 = vpop.f32.mrf.mxu0
    %v2424 = vadd.f32 0.0, %v2423
    %v2425 = vpop.f32.mrf.mxu0
    %2426 = vmatprep.mubr.f32.mxu0 0.0
    %2427 = vmatmul.mubr.f32.gmra.mxu0 %v2289
    %v2428 = vpop.f32.mrf.mxu0
    %v2429 = vadd.f32 0.0, %v2428
    %v2430 = vpop.f32.mrf.mxu0
    %2431 = vmatprep.mubr.f32.mxu0 0.0
    %2432 = vmatmul.mubr.f32.gmra.mxu0 %v2292
    %v2433 = vpop.f32.mrf.mxu0
    %v2434 = vadd.f32 0.0, %v2433
    %v2435 = vpop.f32.mrf.mxu0
    %2436 = vmatprep.mubr.f32.mxu0 0.0
    %2437 = vmatmul.mubr.f32.gmra.mxu0 %v2295
    %v2438 = vpop.f32.mrf.mxu0
    %v2439 = vadd.f32 0.0, %v2438
    %v2440 = vpop.f32.mrf.mxu0
    %2441 = vdwg.mxu0
    %v2442 = vmul.f32 %v2364, %v207
    %v2443 = vmul.f32 %v2369, %v208
    %v2444 = vmul.f32 %v2374, %v209
    %v2445 = vmul.f32 %v2379, %v210
    %v2446 = vmul.f32 %v2384, %v211
    %v2447 = vmul.f32 %v2389, %v212
    %v2448 = vmul.f32 %v2394, %v213
    %v2449 = vmul.f32 %v2399, %v214
    %v2450 = vmul.f32 %v2404, %v215
    %v2451 = vmul.f32 %v2409, %v216
    %v2452 = vmul.f32 %v2414, %v217
    %v2453 = vmul.f32 %v2419, %v218
    %v2454 = vmul.f32 %v2424, %v219
    %v2455 = vmul.f32 %v2429, %v220
    %v2456 = vmul.f32 %v2434, %v221
    %v2457 = vmul.f32 %v2439, %v222
    %2458 = vmatprep.subr.mxu0 0.0
    %2459 = vmatpush1.msra.mxu0 %v2457
    %2460 = vmatprep.subr.mxu0 0.0
    %2461 = vmatpush1.msra.mxu0 %v2456
    %2462 = vmatprep.subr.mxu0 0.0
    %2463 = vmatpush1.msra.mxu0 %v2455
    %2464 = vmatprep.subr.mxu0 0.0
    %2465 = vmatpush1.msra.mxu0 %v2454
    %2466 = vmatprep.subr.mxu0 0.0
    %2467 = vmatpush1.msra.mxu0 %v2453
    %2468 = vmatprep.subr.mxu0 0.0
    %2469 = vmatpush1.msra.mxu0 %v2452
    %2470 = vmatprep.subr.mxu0 0.0
    %2471 = vmatpush1.msra.mxu0 %v2451
    %2472 = vmatprep.subr.mxu0 0.0
    %2473 = vmatpush1.msra.mxu0 %v2450
    %2474 = vmatprep.subr.mxu0 0.0
    %2475 = vmatpush1.msra.mxu0 %v2449
    %2476 = vmatprep.subr.mxu0 0.0
    %2477 = vmatpush1.msra.mxu0 %v2448
    %2478 = vmatprep.subr.mxu0 0.0
    %2479 = vmatpush1.msra.mxu0 %v2447
    %2480 = vmatprep.subr.mxu0 0.0
    %2481 = vmatpush1.msra.mxu0 %v2446
    %2482 = vmatprep.subr.mxu0 0.0
    %2483 = vmatpush1.msra.mxu0 %v2445
    %2484 = vmatprep.subr.mxu0 0.0
    %2485 = vmatpush1.msra.mxu0 %v2444
    %2486 = vmatprep.subr.mxu0 0.0
    %2487 = vmatpush1.msra.mxu0 %v2443
    %2488 = vmatprep.subr.mxu0 0.0
    %2489 = vmatpush1.msra.mxu0 %v2442
    %2490 = vmatprep.subr.mxu0 0.0
    %2491 = vmatpush2.msra.mxu0 0.0
    %2492 = vmatprep.subr.mxu0 0.0
    %2493 = vmatpush2.msra.mxu0 0.0
    %2494 = vmatprep.subr.mxu0 0.0
    %2495 = vmatpush2.msra.mxu0 0.0
    %2496 = vmatprep.subr.mxu0 0.0
    %2497 = vmatpush2.msra.mxu0 0.0
    %2498 = vmatprep.subr.mxu0 0.0
    %2499 = vmatpush2.msra.mxu0 0.0
    %2500 = vmatprep.subr.mxu0 0.0
    %2501 = vmatpush2.msra.mxu0 0.0
    %2502 = vmatprep.subr.mxu0 0.0
    %2503 = vmatpush2.msra.mxu0 0.0
    %2504 = vmatprep.subr.mxu0 0.0
    %2505 = vmatpush2.msra.mxu0 0.0
    %2506 = vmatprep.subr.mxu0 0.0
    %2507 = vmatpush2.msra.mxu0 0.0
    %2508 = vmatprep.subr.mxu0 0.0
    %2509 = vmatpush2.msra.mxu0 0.0
    %2510 = vmatprep.subr.mxu0 0.0
    %2511 = vmatpush2.msra.mxu0 0.0
    %2512 = vmatprep.subr.mxu0 0.0
    %2513 = vmatpush2.msra.mxu0 0.0
    %2514 = vmatprep.subr.mxu0 0.0
    %2515 = vmatpush2.msra.mxu0 0.0
    %2516 = vmatprep.subr.mxu0 0.0
    %2517 = vmatpush2.msra.mxu0 0.0
    %2518 = vmatprep.subr.mxu0 0.0
    %2519 = vmatpush2.msra.mxu0 0.0
    %2520 = vmatprep.subr.mxu0 0.0
    %2521 = vmatpush2.msra.mxu0 0.0
    %2522 = vmatprep.mubr.f32.mxu0 0.0
    %2523 = vmatmul.mubr.f32.gmra.mxu0 %v223
    %v2524 = vpop.f32.mrf.mxu0
    %v2525 = vadd.f32 0.0, %v2524
    %v2526 = vpop.f32.mrf.mxu0
    %2527 = vmatprep.mubr.f32.mxu0 0.0
    %2528 = vmatmul.mubr.f32.gmra.mxu0 %v224
    %v2529 = vpop.f32.mrf.mxu0
    %v2530 = vadd.f32 0.0, %v2529
    %v2531 = vpop.f32.mrf.mxu0
    %2532 = vdwg.mxu0
    %v2533 = vpack.c.bf16 %v2530, %v2525
    %v2534 = vld [vmem:[#allocation8] sm:$0xf]
    %v2535 = vld [vmem:[#allocation8 + $0x4] sm:$0xf]
    %v2536 = vld [vmem:[#allocation8 + $0x8] sm:$0xf]
    %v2537 = vld [vmem:[#allocation8 + $0xc] sm:$0xf]
    %v2538 = vld [vmem:[#allocation8 + $0x10] sm:$0xf]
    %v2539 = vld [vmem:[#allocation8 + $0x14] sm:$0xf]
    %v2540 = vld [vmem:[#allocation8 + $0x18] sm:$0xf]
    %v2541 = vld [vmem:[#allocation8 + $0x1c] sm:$0xf]
    %v2542 = vld [vmem:[#allocation8 + $0x20] sm:$0xf]
    %v2543 = vld [vmem:[#allocation8 + $0x24] sm:$0xf]
    %v2544 = vld [vmem:[#allocation8 + $0x28] sm:$0xf]
    %v2545 = vld [vmem:[#allocation8 + $0x2c] sm:$0xf]
    %v2546 = vld [vmem:[#allocation8 + $0x30] sm:$0xf]
    %v2547 = vld [vmem:[#allocation8 + $0x34] sm:$0xf]
    %v2548 = vld [vmem:[#allocation8 + $0x38] sm:$0xf]
    %v2549 = vld [vmem:[#allocation8 + $0x3c] sm:$0xf]
    %v2550 = vlaneseq
    %v2551 = vshrl.u32 %v2550, 7
    %v2552 = vsub.s32 3, %v2551
    %v2553 = vrot.slane %v203, %v2552
    %v2570 = vunpack.c.l.b16 %v2534
    %v2571 = vunpack.c.l.b16 %v2535
    %v2572 = vunpack.c.l.b16 %v2536
    %v2573 = vunpack.c.l.b16 %v2537
    %v2574 = vunpack.c.l.b16 %v2538
    %v2575 = vunpack.c.l.b16 %v2539
    %v2576 = vunpack.c.l.b16 %v2540
    %v2577 = vunpack.c.l.b16 %v2541
    %v2578 = vunpack.c.l.b16 %v2542
    %v2579 = vunpack.c.l.b16 %v2543
    %v2580 = vunpack.c.l.b16 %v2544
    %v2581 = vunpack.c.l.b16 %v2545
    %v2582 = vunpack.c.l.b16 %v2546
    %v2583 = vunpack.c.l.b16 %v2547
    %v2584 = vunpack.c.l.b16 %v2548
    %v2585 = vunpack.c.l.b16 %v2549
    %v2586 = vpack.c.b16 %v2571, %v2570
    %v2587 = vpack.c.b16 %v2573, %v2572
    %v2588 = vpack.c.b16 %v2575, %v2574
    %v2589 = vpack.c.b16 %v2577, %v2576
    %v2590 = vpack.c.b16 %v2579, %v2578
    %v2591 = vpack.c.b16 %v2581, %v2580
    %v2592 = vpack.c.b16 %v2583, %v2582
    %v2593 = vpack.c.b16 %v2585, %v2584
    %2602 = vmatprep.subr.bf16.mxu0 0
    %2603 = vmatpush1.bf16.msra.mxu0 %v2593
    %2604 = vmatprep.subr.bf16.mxu0 0
    %2605 = vmatpush1.bf16.msra.mxu0 %v2592
    %2606 = vmatprep.subr.bf16.mxu0 0
    %2607 = vmatpush1.bf16.msra.mxu0 %v2591
    %2608 = vmatprep.subr.bf16.mxu0 0
    %2609 = vmatpush1.bf16.msra.mxu0 %v2590
    %2610 = vmatprep.subr.bf16.mxu0 0
    %2611 = vmatpush1.bf16.msra.mxu0 %v2589
    %2612 = vmatprep.subr.bf16.mxu0 0
    %2613 = vmatpush1.bf16.msra.mxu0 %v2588
    %2614 = vmatprep.subr.bf16.mxu0 0
    %2615 = vmatpush1.bf16.msra.mxu0 %v2587
    %2616 = vmatprep.subr.bf16.mxu0 0
    %2617 = vmatpush1.bf16.msra.mxu0 %v2586
    %2618 = vmatprep.subr.bf16.mxu0 0
    %2619 = vmatpush2.bf16.msra.mxu0 0
    %2620 = vmatprep.subr.bf16.mxu0 0
    %2621 = vmatpush2.bf16.msra.mxu0 0
    %2622 = vmatprep.subr.bf16.mxu0 0
    %2623 = vmatpush2.bf16.msra.mxu0 0
    %2624 = vmatprep.subr.bf16.mxu0 0
    %2625 = vmatpush2.bf16.msra.mxu0 0
    %2626 = vmatprep.subr.bf16.mxu0 0
    %2627 = vmatpush2.bf16.msra.mxu0 0
    %2628 = vmatprep.subr.bf16.mxu0 0
    %2629 = vmatpush2.bf16.msra.mxu0 0
    %2630 = vmatprep.subr.bf16.mxu0 0
    %2631 = vmatpush2.bf16.msra.mxu0 0
    %2632 = vmatprep.subr.bf16.mxu0 0
    %2633 = vmatpush2.bf16.msra.mxu0 0
    %2634 = vmatprep.mubr.bf16.mxu0 0
    %2635 = vmatmul.mubr.bf16.gmra.mxu0 %v2533
    %v2636 = vpop.f32.mrf.mxu0
    %v2637 = vadd.f32 %v2553, %v2636
    %v2638 = vpop.f32.mrf.mxu0
    %v2639 = vpop.f32.mrf.mxu0
    %v2640 = vadd.f32 %v2553, %v2639
    %v2641 = vpop.f32.mrf.mxu0
    %2642 = vdwg.mxu0
    %v2643 = vadd.f32 %v2637, %v201
    %v2644 = vadd.f32 %v2640, %v202
    %2645 = vadd.xlane.f32.xlu0 %v2643
    %v2646 = vpop.xlane.xlu0 %2645
    %2647 = vadd.xlane.f32.xlu0 %v2644
    %v2648 = vpop.xlane.xlu0 %2647
    %v2649 = vrcp.pop 128.0
    %v2650 = vmul.f32 %v2646, %v2649
    %v2651 = vmul.f32 %v2648, %v2649
    %v2652 = vsub.f32 %v2643, %v2650
    %v2653 = vsub.f32 %v2644, %v2651
    %v2654 = vmul.f32 %v2652, %v2652
    %v2655 = vmul.f32 %v2653, %v2653
    %2656 = vadd.xlane.f32.xlu0 %v2654
    %v2657 = vpop.xlane.xlu0 %2656
    %2658 = vadd.xlane.f32.xlu0 %v2655
    %v2659 = vpop.xlane.xlu0 %2658
    %v2660 = vmul.f32 %v2657, %v2649
    %v2661 = vmul.f32 %v2659, %v2649
    %v2662 = vadd.f32 %v2660, 1e-05
    %v2663 = vadd.f32 %v2661, 1e-05
    %v2664 = vrsqrt.pop %v2662
    %v2665 = vrsqrt.pop %v2663
    %v2666 = vmul.f32 %v2652, %v2664
    %v2667 = vmul.f32 %v2653, %v2665
    %v2668 = vlaneseq
    %v2669 = vshrl.u32 %v2668, 7
    %v2670 = vsub.s32 4, %v2669
    %v2671 = vrot.slane %v203, %v2670
    %v2672 = vmul.f32 %v2666, %v2671
    %v2673 = vmul.f32 %v2667, %v2671
    %v2674 = vlaneseq
    %v2675 = vshrl.u32 %v2674, 7
    %v2676 = vsub.s32 5, %v2675
    %v2677 = vrot.slane %v203, %v2676
    %v2678 = vadd.f32 %v2672, %v2677
    %v2679 = vadd.f32 %v2673, %v2677
    %v2680 = vpack.c.bf16 %v200, %v199
    %v2681 = vld [vmem:[#allocation10] sm:$0xff]
    %v2682 = vld [vmem:[#allocation10 + $0x8] sm:$0xff]
    %v2683 = vld [vmem:[#allocation10 + $0x10] sm:$0xff]
    %v2684 = vld [vmem:[#allocation10 + $0x18] sm:$0xff]
    %v2685 = vld [vmem:[#allocation10 + $0x20] sm:$0xff]
    %v2686 = vld [vmem:[#allocation10 + $0x28] sm:$0xff]
    %v2687 = vld [vmem:[#allocation10 + $0x30] sm:$0xff]
    %v2688 = vld [vmem:[#allocation10 + $0x38] sm:$0xff]
    %v2689 = vld [vmem:[#allocation10 + $0x40] sm:$0xff]
    %v2690 = vld [vmem:[#allocation10 + $0x48] sm:$0xff]
    %v2691 = vld [vmem:[#allocation10 + $0x50] sm:$0xff]
    %v2692 = vld [vmem:[#allocation10 + $0x58] sm:$0xff]
    %v2693 = vld [vmem:[#allocation10 + $0x60] sm:$0xff]
    %v2694 = vld [vmem:[#allocation10 + $0x68] sm:$0xff]
    %v2695 = vld [vmem:[#allocation10 + $0x70] sm:$0xff]
    %v2696 = vld [vmem:[#allocation10 + $0x78] sm:$0xff]
    %v2713 = vunpack.c.l.b16 %v2681
    %v2714 = vunpack.c.h.b16 %v2681
    %v2715 = vunpack.c.l.b16 %v2682
    %v2716 = vunpack.c.h.b16 %v2682
    %v2717 = vunpack.c.l.b16 %v2683
    %v2718 = vunpack.c.h.b16 %v2683
    %v2719 = vunpack.c.l.b16 %v2684
    %v2720 = vunpack.c.h.b16 %v2684
    %v2721 = vunpack.c.l.b16 %v2685
    %v2722 = vunpack.c.h.b16 %v2685
    %v2723 = vunpack.c.l.b16 %v2686
    %v2724 = vunpack.c.h.b16 %v2686
    %v2725 = vunpack.c.l.b16 %v2687
    %v2726 = vunpack.c.h.b16 %v2687
    %v2727 = vunpack.c.l.b16 %v2688
    %v2728 = vunpack.c.h.b16 %v2688
    %v2729 = vunpack.c.l.b16 %v2689
    %v2730 = vunpack.c.h.b16 %v2689
    %v2731 = vunpack.c.l.b16 %v2690
    %v2732 = vunpack.c.h.b16 %v2690
    %v2733 = vunpack.c.l.b16 %v2691
    %v2734 = vunpack.c.h.b16 %v2691
    %v2735 = vunpack.c.l.b16 %v2692
    %v2736 = vunpack.c.h.b16 %v2692
    %v2737 = vunpack.c.l.b16 %v2693
    %v2738 = vunpack.c.h.b16 %v2693
    %v2739 = vunpack.c.l.b16 %v2694
    %v2740 = vunpack.c.h.b16 %v2694
    %v2741 = vunpack.c.l.b16 %v2695
    %v2742 = vunpack.c.h.b16 %v2695
    %v2743 = vunpack.c.l.b16 %v2696
    %v2744 = vunpack.c.h.b16 %v2696
    %v2745 = vpack.c.b16 %v2715, %v2713
    %v2746 = vpack.c.b16 %v2716, %v2714
    %v2747 = vpack.c.b16 %v2719, %v2717
    %v2748 = vpack.c.b16 %v2720, %v2718
    %v2749 = vpack.c.b16 %v2723, %v2721
    %v2750 = vpack.c.b16 %v2724, %v2722
    %v2751 = vpack.c.b16 %v2727, %v2725
    %v2752 = vpack.c.b16 %v2728, %v2726
    %v2753 = vpack.c.b16 %v2731, %v2729
    %v2754 = vpack.c.b16 %v2732, %v2730
    %v2755 = vpack.c.b16 %v2735, %v2733
    %v2756 = vpack.c.b16 %v2736, %v2734
    %v2757 = vpack.c.b16 %v2739, %v2737
    %v2758 = vpack.c.b16 %v2740, %v2738
    %v2759 = vpack.c.b16 %v2743, %v2741
    %v2760 = vpack.c.b16 %v2744, %v2742
    %2777 = vmatprep.subr.bf16.mxu0 %v2760
    %2778 = vmatpush1.bf16.msra.mxu0 %v2759
    %2779 = vmatprep.subr.bf16.mxu0 %v2758
    %2780 = vmatpush1.bf16.msra.mxu0 %v2757
    %2781 = vmatprep.subr.bf16.mxu0 %v2756
    %2782 = vmatpush1.bf16.msra.mxu0 %v2755
    %2783 = vmatprep.subr.bf16.mxu0 %v2754
    %2784 = vmatpush1.bf16.msra.mxu0 %v2753
    %2785 = vmatprep.subr.bf16.mxu0 %v2752
    %2786 = vmatpush1.bf16.msra.mxu0 %v2751
    %2787 = vmatprep.subr.bf16.mxu0 %v2750
    %2788 = vmatpush1.bf16.msra.mxu0 %v2749
    %2789 = vmatprep.subr.bf16.mxu0 %v2748
    %2790 = vmatpush1.bf16.msra.mxu0 %v2747
    %2791 = vmatprep.subr.bf16.mxu0 %v2746
    %2792 = vmatpush1.bf16.msra.mxu0 %v2745
    %2793 = vmatprep.subr.bf16.mxu0 0
    %2794 = vmatpush2.bf16.msra.mxu0 0
    %2795 = vmatprep.subr.bf16.mxu0 0
    %2796 = vmatpush2.bf16.msra.mxu0 0
    %2797 = vmatprep.subr.bf16.mxu0 0
    %2798 = vmatpush2.bf16.msra.mxu0 0
    %2799 = vmatprep.subr.bf16.mxu0 0
    %2800 = vmatpush2.bf16.msra.mxu0 0
    %2801 = vmatprep.subr.bf16.mxu0 0
    %2802 = vmatpush2.bf16.msra.mxu0 0
    %2803 = vmatprep.subr.bf16.mxu0 0
    %2804 = vmatpush2.bf16.msra.mxu0 0
    %2805 = vmatprep.subr.bf16.mxu0 0
    %2806 = vmatpush2.bf16.msra.mxu0 0
    %2807 = vmatprep.subr.bf16.mxu0 0
    %2808 = vmatpush2.bf16.msra.mxu0 0
    %2809 = vmatprep.mubr.bf16.mxu0 0
    %2810 = vmatmul.mubr.bf16.gmra.mxu0 %v2680
    %v2811 = vpop.f32.mrf.mxu0
    %v2812 = vadd.f32 0.0, %v2811
    %v2813 = vpop.f32.mrf.mxu0
    %v2814 = vadd.f32 0.0, %v2813
    %v2815 = vpop.f32.mrf.mxu0
    %v2816 = vadd.f32 0.0, %v2815
    %v2817 = vpop.f32.mrf.mxu0
    %v2818 = vadd.f32 0.0, %v2817
    %2819 = vdwg.mxu0
    %v2820 = vlaneseq
    %v2821 = vshrl.u32 %v2820, 7
    %v2822 = vsub.s32 6, %v2821
    %v2823 = vrot.slane %v203, %v2822
    %v2824 = vadd.f32 %v2812, %v2823
    %v2825 = vadd.f32 %v2816, %v2823
    %v2826 = vlaneseq
    %v2827 = vshrl.u32 %v2826, 7
    %v2828 = vsub.s32 7, %v2827
    %v2829 = vrot.slane %v203, %v2828
    %v2830 = vadd.f32 %v2814, %v2829
    %v2831 = vadd.f32 %v2818, %v2829
    %v2832 = vpack.c.bf16 %v2679, %v2678
    %v2833 = vld [vmem:[#allocation11] sm:$0xf]
    %v2834 = vld [vmem:[#allocation11 + $0x4] sm:$0xf]
    %v2835 = vld [vmem:[#allocation11 + $0x8] sm:$0xf]
    %v2836 = vld [vmem:[#allocation11 + $0xc] sm:$0xf]
    %v2837 = vld [vmem:[#allocation11 + $0x10] sm:$0xf]
    %v2838 = vld [vmem:[#allocation11 + $0x14] sm:$0xf]
    %v2839 = vld [vmem:[#allocation11 + $0x18] sm:$0xf]
    %v2840 = vld [vmem:[#allocation11 + $0x1c] sm:$0xf]
    %v2841 = vld [vmem:[#allocation11 + $0x20] sm:$0xf]
    %v2842 = vld [vmem:[#allocation11 + $0x24] sm:$0xf]
    %v2843 = vld [vmem:[#allocation11 + $0x28] sm:$0xf]
    %v2844 = vld [vmem:[#allocation11 + $0x2c] sm:$0xf]
    %v2845 = vld [vmem:[#allocation11 + $0x30] sm:$0xf]
    %v2846 = vld [vmem:[#allocation11 + $0x34] sm:$0xf]
    %v2847 = vld [vmem:[#allocation11 + $0x38] sm:$0xf]
    %v2848 = vld [vmem:[#allocation11 + $0x3c] sm:$0xf]
    %v2849 = vlaneseq
    %v2850 = vshrl.u32 %v2849, 7
    %v2851 = vsub.s32 0, %v2850
    %v2852 = vrot.slane %v204, %v2851
    %v2869 = vunpack.c.l.b16 %v2833
    %v2870 = vunpack.c.l.b16 %v2834
    %v2871 = vunpack.c.l.b16 %v2835
    %v2872 = vunpack.c.l.b16 %v2836
    %v2873 = vunpack.c.l.b16 %v2837
    %v2874 = vunpack.c.l.b16 %v2838
    %v2875 = vunpack.c.l.b16 %v2839
    %v2876 = vunpack.c.l.b16 %v2840
    %v2877 = vunpack.c.l.b16 %v2841
    %v2878 = vunpack.c.l.b16 %v2842
    %v2879 = vunpack.c.l.b16 %v2843
    %v2880 = vunpack.c.l.b16 %v2844
    %v2881 = vunpack.c.l.b16 %v2845
    %v2882 = vunpack.c.l.b16 %v2846
    %v2883 = vunpack.c.l.b16 %v2847
    %v2884 = vunpack.c.l.b16 %v2848
    %v2885 = vpack.c.b16 %v2870, %v2869
    %v2886 = vpack.c.b16 %v2872, %v2871
    %v2887 = vpack.c.b16 %v2874, %v2873
    %v2888 = vpack.c.b16 %v2876, %v2875
    %v2889 = vpack.c.b16 %v2878, %v2877
    %v2890 = vpack.c.b16 %v2880, %v2879
    %v2891 = vpack.c.b16 %v2882, %v2881
    %v2892 = vpack.c.b16 %v2884, %v2883
    %2901 = vmatprep.subr.bf16.mxu0 0
    %2902 = vmatpush1.bf16.msra.mxu0 %v2892
    %2903 = vmatprep.subr.bf16.mxu0 0
    %2904 = vmatpush1.bf16.msra.mxu0 %v2891
    %2905 = vmatprep.subr.bf16.mxu0 0
    %2906 = vmatpush1.bf16.msra.mxu0 %v2890
    %2907 = vmatprep.subr.bf16.mxu0 0
    %2908 = vmatpush1.bf16.msra.mxu0 %v2889
    %2909 = vmatprep.subr.bf16.mxu0 0
    %2910 = vmatpush1.bf16.msra.mxu0 %v2888
    %2911 = vmatprep.subr.bf16.mxu0 0
    %2912 = vmatpush1.bf16.msra.mxu0 %v2887
    %2913 = vmatprep.subr.bf16.mxu0 0
    %2914 = vmatpush1.bf16.msra.mxu0 %v2886
    %2915 = vmatprep.subr.bf16.mxu0 0
    %2916 = vmatpush1.bf16.msra.mxu0 %v2885
    %2917 = vmatprep.subr.bf16.mxu0 0
    %2918 = vmatpush2.bf16.msra.mxu0 0
    %2919 = vmatprep.subr.bf16.mxu0 0
    %2920 = vmatpush2.bf16.msra.mxu0 0
    %2921 = vmatprep.subr.bf16.mxu0 0
    %2922 = vmatpush2.bf16.msra.mxu0 0
    %2923 = vmatprep.subr.bf16.mxu0 0
    %2924 = vmatpush2.bf16.msra.mxu0 0
    %2925 = vmatprep.subr.bf16.mxu0 0
    %2926 = vmatpush2.bf16.msra.mxu0 0
    %2927 = vmatprep.subr.bf16.mxu0 0
    %2928 = vmatpush2.bf16.msra.mxu0 0
    %2929 = vmatprep.subr.bf16.mxu0 0
    %2930 = vmatpush2.bf16.msra.mxu0 0
    %2931 = vmatprep.subr.bf16.mxu0 0
    %2932 = vmatpush2.bf16.msra.mxu0 0
    %2933 = vmatprep.mubr.bf16.mxu0 0
    %2934 = vmatmul.mubr.bf16.gmra.mxu0 %v2832
    %v2935 = vpop.f32.mrf.mxu0
    %v2936 = vadd.f32 %v2852, %v2935
    %v2937 = vpop.f32.mrf.mxu0
    %v2938 = vpop.f32.mrf.mxu0
    %v2939 = vadd.f32 %v2852, %v2938
    %v2940 = vpop.f32.mrf.mxu0
    %2941 = vdwg.mxu0
    %v2942 = vpack.c.bf16 %v2939, %v2936
    %v2943 = vpack.c.bf16 %v2825, %v2824
    %v2944 = vpack.c.bf16 %v2831, %v2830
    %v2946 = vsel %vm492, %v2942, 0
    %v2949 = vsel %vm492, %v2943, 0
    %2951 = vmatprep.subr.bf16.mxu0 0
    %2952 = vmatpush1.bf16.xpose.msra.mxu0 0
    %2953 = vmatprep.subr.bf16.mxu0 0
    %2954 = vmatpush1.bf16.xpose.msra.mxu0 0
    %2955 = vmatprep.subr.bf16.mxu0 0
    %2956 = vmatpush1.bf16.xpose.msra.mxu0 0
    %2957 = vmatprep.subr.bf16.mxu0 0
    %2958 = vmatpush1.bf16.xpose.msra.mxu0 0
    %2959 = vmatprep.subr.bf16.mxu0 0
    %2960 = vmatpush1.bf16.xpose.msra.mxu0 0
    %2961 = vmatprep.subr.bf16.mxu0 0
    %2962 = vmatpush1.bf16.xpose.msra.mxu0 0
    %2963 = vmatprep.subr.bf16.mxu0 0
    %2964 = vmatpush1.bf16.xpose.msra.mxu0 0
    %2965 = vmatprep.subr.bf16.mxu0 0
    %2966 = vmatpush1.bf16.xpose.msra.mxu0 %v2949
    %2967 = vmatprep.subr.bf16.mxu0 0
    %2968 = vmatpush2.bf16.xpose.msra.mxu0 0
    %2969 = vmatprep.subr.bf16.mxu0 0
    %2970 = vmatpush2.bf16.xpose.msra.mxu0 0
    %2971 = vmatprep.subr.bf16.mxu0 0
    %2972 = vmatpush2.bf16.xpose.msra.mxu0 0
    %2973 = vmatprep.subr.bf16.mxu0 0
    %2974 = vmatpush2.bf16.xpose.msra.mxu0 0
    %2975 = vmatprep.subr.bf16.mxu0 0
    %2976 = vmatpush2.bf16.xpose.msra.mxu0 0
    %2977 = vmatprep.subr.bf16.mxu0 0
    %2978 = vmatpush2.bf16.xpose.msra.mxu0 0
    %2979 = vmatprep.subr.bf16.mxu0 0
    %2980 = vmatpush2.bf16.xpose.msra.mxu0 0
    %2981 = vmatprep.subr.bf16.mxu0 0
    %2982 = vmatpush2.bf16.xpose.msra.mxu0 0
    %2983 = vmatprep.mubr.bf16.mxu0 0
    %2984 = vmatmul.mubr.bf16.gmra.mxu0 %v2946
    %v2985 = vpop.f32.mrf.mxu0
    %v2986 = vadd.f32 0.0, %v2985
    %v2987 = vpop.f32.mrf.mxu0
    %v2988 = vpop.f32.mrf.mxu0
    %v2989 = vpop.f32.mrf.mxu0
    %2990 = vdwg.mxu0
    %v2991 = vsel %vm539, %v2986, -inf
    %2992 = vmax.xlane.f32.xlu0 %v2991
    %v2993 = vpop.xlane.xlu0 %2992
    %v2994 = vsub.f32 %v2986, %v2993
    %v2995 = vmul.f32 %v2994, 1.442695
    %v2996 = vpow.pop %v2995
    %v2997 = vsel %vm539, %v2996, 0.0
    %2998 = vadd.xlane.f32.xlu0 %v2997
    %v2999 = vpop.xlane.xlu0 %2998
    %v3000 = vrcp.pop %v2999
    %v3001 = vmul.f32 %v2996, %v3000
    %v3002 = vpack.c.bf16 %v3001, %v3001
    %v3004 = vsel %vm539, %v3002, 0
    %v3007 = vsel %vm555, %v2944, 0
    %3009 = vmatprep.subr.bf16.mxu0 0
    %3010 = vmatpush1.bf16.msra.mxu0 0
    %3011 = vmatprep.subr.bf16.mxu0 0
    %3012 = vmatpush1.bf16.msra.mxu0 0
    %3013 = vmatprep.subr.bf16.mxu0 0
    %3014 = vmatpush1.bf16.msra.mxu0 0
    %3015 = vmatprep.subr.bf16.mxu0 0
    %3016 = vmatpush1.bf16.msra.mxu0 0
    %3017 = vmatprep.subr.bf16.mxu0 0
    %3018 = vmatpush1.bf16.msra.mxu0 0
    %3019 = vmatprep.subr.bf16.mxu0 0
    %3020 = vmatpush1.bf16.msra.mxu0 0
    %3021 = vmatprep.subr.bf16.mxu0 0
    %3022 = vmatpush1.bf16.msra.mxu0 0
    %3023 = vmatprep.subr.bf16.mxu0 0
    %3024 = vmatpush1.bf16.msra.mxu0 %v3007
    %3025 = vmatprep.subr.bf16.mxu0 0
    %3026 = vmatpush2.bf16.msra.mxu0 0
    %3027 = vmatprep.subr.bf16.mxu0 0
    %3028 = vmatpush2.bf16.msra.mxu0 0
    %3029 = vmatprep.subr.bf16.mxu0 0
    %3030 = vmatpush2.bf16.msra.mxu0 0
    %3031 = vmatprep.subr.bf16.mxu0 0
    %3032 = vmatpush2.bf16.msra.mxu0 0
    %3033 = vmatprep.subr.bf16.mxu0 0
    %3034 = vmatpush2.bf16.msra.mxu0 0
    %3035 = vmatprep.subr.bf16.mxu0 0
    %3036 = vmatpush2.bf16.msra.mxu0 0
    %3037 = vmatprep.subr.bf16.mxu0 0
    %3038 = vmatpush2.bf16.msra.mxu0 0
    %3039 = vmatprep.subr.bf16.mxu0 0
    %3040 = vmatpush2.bf16.msra.mxu0 0
    %3041 = vmatprep.mubr.bf16.mxu0 0
    %3042 = vmatmul.mubr.bf16.gmra.mxu0 %v3004
    %v3043 = vpop.f32.mrf.mxu0
    %v3044 = vadd.f32 0.0, %v3043
    %v3045 = vpop.f32.mrf.mxu0
    %v3046 = vpop.f32.mrf.mxu0
    %v3047 = vpop.f32.mrf.mxu0
    %3048 = vdwg.mxu0
    %3050 = vrot.lane.b32.xlu0 %v2942, 112
    %v3051 = vpop.permute.xlu0 %3050
    %3053 = vrot.lane.b32.xlu0 %v2943, 112
    %v3054 = vpop.permute.xlu0 %3053
    %v3056 = vsel %vm492, %v3051, 0
    %v3059 = vsel %vm492, %v3054, 0
    %3061 = vmatprep.subr.bf16.mxu0 0
    %3062 = vmatpush1.bf16.xpose.msra.mxu0 0
    %3063 = vmatprep.subr.bf16.mxu0 0
    %3064 = vmatpush1.bf16.xpose.msra.mxu0 0
    %3065 = vmatprep.subr.bf16.mxu0 0
    %3066 = vmatpush1.bf16.xpose.msra.mxu0 0
    %3067 = vmatprep.subr.bf16.mxu0 0
    %3068 = vmatpush1.bf16.xpose.msra.mxu0 0
    %3069 = vmatprep.subr.bf16.mxu0 0
    %3070 = vmatpush1.bf16.xpose.msra.mxu0 0
    %3071 = vmatprep.subr.bf16.mxu0 0
    %3072 = vmatpush1.bf16.xpose.msra.mxu0 0
    %3073 = vmatprep.subr.bf16.mxu0 0
    %3074 = vmatpush1.bf16.xpose.msra.mxu0 0
    %3075 = vmatprep.subr.bf16.mxu0 0
    %3076 = vmatpush1.bf16.xpose.msra.mxu0 %v3059
    %3077 = vmatprep.subr.bf16.mxu0 0
    %3078 = vmatpush2.bf16.xpose.msra.mxu0 0
    %3079 = vmatprep.subr.bf16.mxu0 0
    %3080 = vmatpush2.bf16.xpose.msra.mxu0 0
    %3081 = vmatprep.subr.bf16.mxu0 0
    %3082 = vmatpush2.bf16.xpose.msra.mxu0 0
    %3083 = vmatprep.subr.bf16.mxu0 0
    %3084 = vmatpush2.bf16.xpose.msra.mxu0 0
    %3085 = vmatprep.subr.bf16.mxu0 0
    %3086 = vmatpush2.bf16.xpose.msra.mxu0 0
    %3087 = vmatprep.subr.bf16.mxu0 0
    %3088 = vmatpush2.bf16.xpose.msra.mxu0 0
    %3089 = vmatprep.subr.bf16.mxu0 0
    %3090 = vmatpush2.bf16.xpose.msra.mxu0 0
    %3091 = vmatprep.subr.bf16.mxu0 0
    %3092 = vmatpush2.bf16.xpose.msra.mxu0 0
    %3093 = vmatprep.mubr.bf16.mxu0 0
    %3094 = vmatmul.mubr.bf16.gmra.mxu0 %v3056
    %v3095 = vpop.f32.mrf.mxu0
    %v3096 = vadd.f32 0.0, %v3095
    %v3097 = vpop.f32.mrf.mxu0
    %v3098 = vpop.f32.mrf.mxu0
    %v3099 = vpop.f32.mrf.mxu0
    %3100 = vdwg.mxu0
    %v3101 = vsel %vm539, %v3096, -inf
    %3102 = vmax.xlane.f32.xlu0 %v3101
    %v3103 = vpop.xlane.xlu0 %3102
    %v3104 = vsub.f32 %v3096, %v3103
    %v3105 = vmul.f32 %v3104, 1.442695
    %v3106 = vpow.pop %v3105
    %v3107 = vsel %vm539, %v3106, 0.0
    %3108 = vadd.xlane.f32.xlu0 %v3107
    %v3109 = vpop.xlane.xlu0 %3108
    %v3110 = vrcp.pop %v3109
    %v3111 = vmul.f32 %v3106, %v3110
    %v3112 = vpack.c.bf16 %v3111, %v3111
    %3114 = vrot.lane.b32.xlu0 %v2944, 112
    %v3115 = vpop.permute.xlu0 %3114
    %v3117 = vsel %vm539, %v3112, 0
    %v3120 = vsel %vm555, %v3115, 0
    %3122 = vmatprep.subr.bf16.mxu0 0
    %3123 = vmatpush1.bf16.msra.mxu0 0
    %3124 = vmatprep.subr.bf16.mxu0 0
    %3125 = vmatpush1.bf16.msra.mxu0 0
    %3126 = vmatprep.subr.bf16.mxu0 0
    %3127 = vmatpush1.bf16.msra.mxu0 0
    %3128 = vmatprep.subr.bf16.mxu0 0
    %3129 = vmatpush1.bf16.msra.mxu0 0
    %3130 = vmatprep.subr.bf16.mxu0 0
    %3131 = vmatpush1.bf16.msra.mxu0 0
    %3132 = vmatprep.subr.bf16.mxu0 0
    %3133 = vmatpush1.bf16.msra.mxu0 0
    %3134 = vmatprep.subr.bf16.mxu0 0
    %3135 = vmatpush1.bf16.msra.mxu0 0
    %3136 = vmatprep.subr.bf16.mxu0 0
    %3137 = vmatpush1.bf16.msra.mxu0 %v3120
    %3138 = vmatprep.subr.bf16.mxu0 0
    %3139 = vmatpush2.bf16.msra.mxu0 0
    %3140 = vmatprep.subr.bf16.mxu0 0
    %3141 = vmatpush2.bf16.msra.mxu0 0
    %3142 = vmatprep.subr.bf16.mxu0 0
    %3143 = vmatpush2.bf16.msra.mxu0 0
    %3144 = vmatprep.subr.bf16.mxu0 0
    %3145 = vmatpush2.bf16.msra.mxu0 0
    %3146 = vmatprep.subr.bf16.mxu0 0
    %3147 = vmatpush2.bf16.msra.mxu0 0
    %3148 = vmatprep.subr.bf16.mxu0 0
    %3149 = vmatpush2.bf16.msra.mxu0 0
    %3150 = vmatprep.subr.bf16.mxu0 0
    %3151 = vmatpush2.bf16.msra.mxu0 0
    %3152 = vmatprep.subr.bf16.mxu0 0
    %3153 = vmatpush2.bf16.msra.mxu0 0
    %3154 = vmatprep.mubr.bf16.mxu0 0
    %3155 = vmatmul.mubr.bf16.gmra.mxu0 %v3117
    %v3156 = vpop.f32.mrf.mxu0
    %v3157 = vadd.f32 0.0, %v3156
    %v3158 = vpop.f32.mrf.mxu0
    %v3159 = vpop.f32.mrf.mxu0
    %v3160 = vpop.f32.mrf.mxu0
    %3161 = vdwg.mxu0
    %3162 = vrot.lane.b32.xlu0 %v2942, 96
    %v3163 = vpop.permute.xlu0 %3162
    %3164 = vrot.lane.b32.xlu0 %v2943, 96
    %v3165 = vpop.permute.xlu0 %3164
    %v3167 = vsel %vm492, %v3163, 0
    %v3170 = vsel %vm492, %v3165, 0
    %3172 = vmatprep.subr.bf16.mxu0 0
    %3173 = vmatpush1.bf16.xpose.msra.mxu0 0
    %3174 = vmatprep.subr.bf16.mxu0 0
    %3175 = vmatpush1.bf16.xpose.msra.mxu0 0
    %3176 = vmatprep.subr.bf16.mxu0 0
    %3177 = vmatpush1.bf16.xpose.msra.mxu0 0
    %3178 = vmatprep.subr.bf16.mxu0 0
    %3179 = vmatpush1.bf16.xpose.msra.mxu0 0
    %3180 = vmatprep.subr.bf16.mxu0 0
    %3181 = vmatpush1.bf16.xpose.msra.mxu0 0
    %3182 = vmatprep.subr.bf16.mxu0 0
    %3183 = vmatpush1.bf16.xpose.msra.mxu0 0
    %3184 = vmatprep.subr.bf16.mxu0 0
    %3185 = vmatpush1.bf16.xpose.msra.mxu0 0
    %3186 = vmatprep.subr.bf16.mxu0 0
    %3187 = vmatpush1.bf16.xpose.msra.mxu0 %v3170
    %3188 = vmatprep.subr.bf16.mxu0 0
    %3189 = vmatpush2.bf16.xpose.msra.mxu0 0
    %3190 = vmatprep.subr.bf16.mxu0 0
    %3191 = vmatpush2.bf16.xpose.msra.mxu0 0
    %3192 = vmatprep.subr.bf16.mxu0 0
    %3193 = vmatpush2.bf16.xpose.msra.mxu0 0
    %3194 = vmatprep.subr.bf16.mxu0 0
    %3195 = vmatpush2.bf16.xpose.msra.mxu0 0
    %3196 = vmatprep.subr.bf16.mxu0 0
    %3197 = vmatpush2.bf16.xpose.msra.mxu0 0
    %3198 = vmatprep.subr.bf16.mxu0 0
    %3199 = vmatpush2.bf16.xpose.msra.mxu0 0
    %3200 = vmatprep.subr.bf16.mxu0 0
    %3201 = vmatpush2.bf16.xpose.msra.mxu0 0
    %3202 = vmatprep.subr.bf16.mxu0 0
    %3203 = vmatpush2.bf16.xpose.msra.mxu0 0
    %3204 = vmatprep.mubr.bf16.mxu0 0
    %3205 = vmatmul.mubr.bf16.gmra.mxu0 %v3167
    %v3206 = vpop.f32.mrf.mxu0
    %v3207 = vadd.f32 0.0, %v3206
    %v3208 = vpop.f32.mrf.mxu0
    %v3209 = vpop.f32.mrf.mxu0
    %v3210 = vpop.f32.mrf.mxu0
    %3211 = vdwg.mxu0
    %v3212 = vsel %vm539, %v3207, -inf
    %3213 = vmax.xlane.f32.xlu0 %v3212
    %v3214 = vpop.xlane.xlu0 %3213
    %v3215 = vsub.f32 %v3207, %v3214
    %v3216 = vmul.f32 %v3215, 1.442695
    %v3217 = vpow.pop %v3216
    %v3218 = vsel %vm539, %v3217, 0.0
    %3219 = vadd.xlane.f32.xlu0 %v3218
    %v3220 = vpop.xlane.xlu0 %3219
    %v3221 = vrcp.pop %v3220
    %v3222 = vmul.f32 %v3217, %v3221
    %v3223 = vpack.c.bf16 %v3222, %v3222
    %3224 = vrot.lane.b32.xlu0 %v2944, 96
    %v3225 = vpop.permute.xlu0 %3224
    %v3227 = vsel %vm539, %v3223, 0
    %v3230 = vsel %vm555, %v3225, 0
    %3232 = vmatprep.subr.bf16.mxu0 0
    %3233 = vmatpush1.bf16.msra.mxu0 0
    %3234 = vmatprep.subr.bf16.mxu0 0
    %3235 = vmatpush1.bf16.msra.mxu0 0
    %3236 = vmatprep.subr.bf16.mxu0 0
    %3237 = vmatpush1.bf16.msra.mxu0 0
    %3238 = vmatprep.subr.bf16.mxu0 0
    %3239 = vmatpush1.bf16.msra.mxu0 0
    %3240 = vmatprep.subr.bf16.mxu0 0
    %3241 = vmatpush1.bf16.msra.mxu0 0
    %3242 = vmatprep.subr.bf16.mxu0 0
    %3243 = vmatpush1.bf16.msra.mxu0 0
    %3244 = vmatprep.subr.bf16.mxu0 0
    %3245 = vmatpush1.bf16.msra.mxu0 0
    %3246 = vmatprep.subr.bf16.mxu0 0
    %3247 = vmatpush1.bf16.msra.mxu0 %v3230
    %3248 = vmatprep.subr.bf16.mxu0 0
    %3249 = vmatpush2.bf16.msra.mxu0 0
    %3250 = vmatprep.subr.bf16.mxu0 0
    %3251 = vmatpush2.bf16.msra.mxu0 0
    %3252 = vmatprep.subr.bf16.mxu0 0
    %3253 = vmatpush2.bf16.msra.mxu0 0
    %3254 = vmatprep.subr.bf16.mxu0 0
    %3255 = vmatpush2.bf16.msra.mxu0 0
    %3256 = vmatprep.subr.bf16.mxu0 0
    %3257 = vmatpush2.bf16.msra.mxu0 0
    %3258 = vmatprep.subr.bf16.mxu0 0
    %3259 = vmatpush2.bf16.msra.mxu0 0
    %3260 = vmatprep.subr.bf16.mxu0 0
    %3261 = vmatpush2.bf16.msra.mxu0 0
    %3262 = vmatprep.subr.bf16.mxu0 0
    %3263 = vmatpush2.bf16.msra.mxu0 0
    %3264 = vmatprep.mubr.bf16.mxu0 0
    %3265 = vmatmul.mubr.bf16.gmra.mxu0 %v3227
    %v3266 = vpop.f32.mrf.mxu0
    %v3267 = vadd.f32 0.0, %v3266
    %v3268 = vpop.f32.mrf.mxu0
    %v3269 = vpop.f32.mrf.mxu0
    %v3270 = vpop.f32.mrf.mxu0
    %3271 = vdwg.mxu0
    %3272 = vrot.lane.b32.xlu0 %v2942, 80
    %v3273 = vpop.permute.xlu0 %3272
    %3274 = vrot.lane.b32.xlu0 %v2943, 80
    %v3275 = vpop.permute.xlu0 %3274
    %v3277 = vsel %vm492, %v3273, 0
    %v3280 = vsel %vm492, %v3275, 0
    %3282 = vmatprep.subr.bf16.mxu0 0
    %3283 = vmatpush1.bf16.xpose.msra.mxu0 0
    %3284 = vmatprep.subr.bf16.mxu0 0
    %3285 = vmatpush1.bf16.xpose.msra.mxu0 0
    %3286 = vmatprep.subr.bf16.mxu0 0
    %3287 = vmatpush1.bf16.xpose.msra.mxu0 0
    %3288 = vmatprep.subr.bf16.mxu0 0
    %3289 = vmatpush1.bf16.xpose.msra.mxu0 0
    %3290 = vmatprep.subr.bf16.mxu0 0
    %3291 = vmatpush1.bf16.xpose.msra.mxu0 0
    %3292 = vmatprep.subr.bf16.mxu0 0
    %3293 = vmatpush1.bf16.xpose.msra.mxu0 0
    %3294 = vmatprep.subr.bf16.mxu0 0
    %3295 = vmatpush1.bf16.xpose.msra.mxu0 0
    %3296 = vmatprep.subr.bf16.mxu0 0
    %3297 = vmatpush1.bf16.xpose.msra.mxu0 %v3280
    %3298 = vmatprep.subr.bf16.mxu0 0
    %3299 = vmatpush2.bf16.xpose.msra.mxu0 0
    %3300 = vmatprep.subr.bf16.mxu0 0
    %3301 = vmatpush2.bf16.xpose.msra.mxu0 0
    %3302 = vmatprep.subr.bf16.mxu0 0
    %3303 = vmatpush2.bf16.xpose.msra.mxu0 0
    %3304 = vmatprep.subr.bf16.mxu0 0
    %3305 = vmatpush2.bf16.xpose.msra.mxu0 0
    %3306 = vmatprep.subr.bf16.mxu0 0
    %3307 = vmatpush2.bf16.xpose.msra.mxu0 0
    %3308 = vmatprep.subr.bf16.mxu0 0
    %3309 = vmatpush2.bf16.xpose.msra.mxu0 0
    %3310 = vmatprep.subr.bf16.mxu0 0
    %3311 = vmatpush2.bf16.xpose.msra.mxu0 0
    %3312 = vmatprep.subr.bf16.mxu0 0
    %3313 = vmatpush2.bf16.xpose.msra.mxu0 0
    %3314 = vmatprep.mubr.bf16.mxu0 0
    %3315 = vmatmul.mubr.bf16.gmra.mxu0 %v3277
    %v3316 = vpop.f32.mrf.mxu0
    %v3317 = vadd.f32 0.0, %v3316
    %v3318 = vpop.f32.mrf.mxu0
    %v3319 = vpop.f32.mrf.mxu0
    %v3320 = vpop.f32.mrf.mxu0
    %3321 = vdwg.mxu0
    %v3322 = vsel %vm539, %v3317, -inf
    %3323 = vmax.xlane.f32.xlu0 %v3322
    %v3324 = vpop.xlane.xlu0 %3323
    %v3325 = vsub.f32 %v3317, %v3324
    %v3326 = vmul.f32 %v3325, 1.442695
    %v3327 = vpow.pop %v3326
    %v3328 = vsel %vm539, %v3327, 0.0
    %3329 = vadd.xlane.f32.xlu0 %v3328
    %v3330 = vpop.xlane.xlu0 %3329
    %v3331 = vrcp.pop %v3330
    %v3332 = vmul.f32 %v3327, %v3331
    %v3333 = vpack.c.bf16 %v3332, %v3332
    %3334 = vrot.lane.b32.xlu0 %v2944, 80
    %v3335 = vpop.permute.xlu0 %3334
    %v3337 = vsel %vm539, %v3333, 0
    %v3340 = vsel %vm555, %v3335, 0
    %3342 = vmatprep.subr.bf16.mxu0 0
    %3343 = vmatpush1.bf16.msra.mxu0 0
    %3344 = vmatprep.subr.bf16.mxu0 0
    %3345 = vmatpush1.bf16.msra.mxu0 0
    %3346 = vmatprep.subr.bf16.mxu0 0
    %3347 = vmatpush1.bf16.msra.mxu0 0
    %3348 = vmatprep.subr.bf16.mxu0 0
    %3349 = vmatpush1.bf16.msra.mxu0 0
    %3350 = vmatprep.subr.bf16.mxu0 0
    %3351 = vmatpush1.bf16.msra.mxu0 0
    %3352 = vmatprep.subr.bf16.mxu0 0
    %3353 = vmatpush1.bf16.msra.mxu0 0
    %3354 = vmatprep.subr.bf16.mxu0 0
    %3355 = vmatpush1.bf16.msra.mxu0 0
    %3356 = vmatprep.subr.bf16.mxu0 0
    %3357 = vmatpush1.bf16.msra.mxu0 %v3340
    %3358 = vmatprep.subr.bf16.mxu0 0
    %3359 = vmatpush2.bf16.msra.mxu0 0
    %3360 = vmatprep.subr.bf16.mxu0 0
    %3361 = vmatpush2.bf16.msra.mxu0 0
    %3362 = vmatprep.subr.bf16.mxu0 0
    %3363 = vmatpush2.bf16.msra.mxu0 0
    %3364 = vmatprep.subr.bf16.mxu0 0
    %3365 = vmatpush2.bf16.msra.mxu0 0
    %3366 = vmatprep.subr.bf16.mxu0 0
    %3367 = vmatpush2.bf16.msra.mxu0 0
    %3368 = vmatprep.subr.bf16.mxu0 0
    %3369 = vmatpush2.bf16.msra.mxu0 0
    %3370 = vmatprep.subr.bf16.mxu0 0
    %3371 = vmatpush2.bf16.msra.mxu0 0
    %3372 = vmatprep.subr.bf16.mxu0 0
    %3373 = vmatpush2.bf16.msra.mxu0 0
    %3374 = vmatprep.mubr.bf16.mxu0 0
    %3375 = vmatmul.mubr.bf16.gmra.mxu0 %v3337
    %v3376 = vpop.f32.mrf.mxu0
    %v3377 = vadd.f32 0.0, %v3376
    %v3378 = vpop.f32.mrf.mxu0
    %v3379 = vpop.f32.mrf.mxu0
    %v3380 = vpop.f32.mrf.mxu0
    %3381 = vdwg.mxu0
    %3382 = vrot.lane.b32.xlu0 %v2942, 64
    %v3383 = vpop.permute.xlu0 %3382
    %3384 = vrot.lane.b32.xlu0 %v2943, 64
    %v3385 = vpop.permute.xlu0 %3384
    %v3387 = vsel %vm492, %v3383, 0
    %v3390 = vsel %vm492, %v3385, 0
    %3392 = vmatprep.subr.bf16.mxu0 0
    %3393 = vmatpush1.bf16.xpose.msra.mxu0 0
    %3394 = vmatprep.subr.bf16.mxu0 0
    %3395 = vmatpush1.bf16.xpose.msra.mxu0 0
    %3396 = vmatprep.subr.bf16.mxu0 0
    %3397 = vmatpush1.bf16.xpose.msra.mxu0 0
    %3398 = vmatprep.subr.bf16.mxu0 0
    %3399 = vmatpush1.bf16.xpose.msra.mxu0 0
    %3400 = vmatprep.subr.bf16.mxu0 0
    %3401 = vmatpush1.bf16.xpose.msra.mxu0 0
    %3402 = vmatprep.subr.bf16.mxu0 0
    %3403 = vmatpush1.bf16.xpose.msra.mxu0 0
    %3404 = vmatprep.subr.bf16.mxu0 0
    %3405 = vmatpush1.bf16.xpose.msra.mxu0 0
    %3406 = vmatprep.subr.bf16.mxu0 0
    %3407 = vmatpush1.bf16.xpose.msra.mxu0 %v3390
    %3408 = vmatprep.subr.bf16.mxu0 0
    %3409 = vmatpush2.bf16.xpose.msra.mxu0 0
    %3410 = vmatprep.subr.bf16.mxu0 0
    %3411 = vmatpush2.bf16.xpose.msra.mxu0 0
    %3412 = vmatprep.subr.bf16.mxu0 0
    %3413 = vmatpush2.bf16.xpose.msra.mxu0 0
    %3414 = vmatprep.subr.bf16.mxu0 0
    %3415 = vmatpush2.bf16.xpose.msra.mxu0 0
    %3416 = vmatprep.subr.bf16.mxu0 0
    %3417 = vmatpush2.bf16.xpose.msra.mxu0 0
    %3418 = vmatprep.subr.bf16.mxu0 0
    %3419 = vmatpush2.bf16.xpose.msra.mxu0 0
    %3420 = vmatprep.subr.bf16.mxu0 0
    %3421 = vmatpush2.bf16.xpose.msra.mxu0 0
    %3422 = vmatprep.subr.bf16.mxu0 0
    %3423 = vmatpush2.bf16.xpose.msra.mxu0 0
    %3424 = vmatprep.mubr.bf16.mxu0 0
    %3425 = vmatmul.mubr.bf16.gmra.mxu0 %v3387
    %v3426 = vpop.f32.mrf.mxu0
    %v3427 = vadd.f32 0.0, %v3426
    %v3428 = vpop.f32.mrf.mxu0
    %v3429 = vpop.f32.mrf.mxu0
    %v3430 = vpop.f32.mrf.mxu0
    %3431 = vdwg.mxu0
    %v3432 = vsel %vm539, %v3427, -inf
    %3433 = vmax.xlane.f32.xlu0 %v3432
    %v3434 = vpop.xlane.xlu0 %3433
    %v3435 = vsub.f32 %v3427, %v3434
    %v3436 = vmul.f32 %v3435, 1.442695
    %v3437 = vpow.pop %v3436
    %v3438 = vsel %vm539, %v3437, 0.0
    %3439 = vadd.xlane.f32.xlu0 %v3438
    %v3440 = vpop.xlane.xlu0 %3439
    %v3441 = vrcp.pop %v3440
    %v3442 = vmul.f32 %v3437, %v3441
    %v3443 = vpack.c.bf16 %v3442, %v3442
    %3444 = vrot.lane.b32.xlu0 %v2944, 64
    %v3445 = vpop.permute.xlu0 %3444
    %v3447 = vsel %vm539, %v3443, 0
    %v3450 = vsel %vm555, %v3445, 0
    %3452 = vmatprep.subr.bf16.mxu0 0
    %3453 = vmatpush1.bf16.msra.mxu0 0
    %3454 = vmatprep.subr.bf16.mxu0 0
    %3455 = vmatpush1.bf16.msra.mxu0 0
    %3456 = vmatprep.subr.bf16.mxu0 0
    %3457 = vmatpush1.bf16.msra.mxu0 0
    %3458 = vmatprep.subr.bf16.mxu0 0
    %3459 = vmatpush1.bf16.msra.mxu0 0
    %3460 = vmatprep.subr.bf16.mxu0 0
    %3461 = vmatpush1.bf16.msra.mxu0 0
    %3462 = vmatprep.subr.bf16.mxu0 0
    %3463 = vmatpush1.bf16.msra.mxu0 0
    %3464 = vmatprep.subr.bf16.mxu0 0
    %3465 = vmatpush1.bf16.msra.mxu0 0
    %3466 = vmatprep.subr.bf16.mxu0 0
    %3467 = vmatpush1.bf16.msra.mxu0 %v3450
    %3468 = vmatprep.subr.bf16.mxu0 0
    %3469 = vmatpush2.bf16.msra.mxu0 0
    %3470 = vmatprep.subr.bf16.mxu0 0
    %3471 = vmatpush2.bf16.msra.mxu0 0
    %3472 = vmatprep.subr.bf16.mxu0 0
    %3473 = vmatpush2.bf16.msra.mxu0 0
    %3474 = vmatprep.subr.bf16.mxu0 0
    %3475 = vmatpush2.bf16.msra.mxu0 0
    %3476 = vmatprep.subr.bf16.mxu0 0
    %3477 = vmatpush2.bf16.msra.mxu0 0
    %3478 = vmatprep.subr.bf16.mxu0 0
    %3479 = vmatpush2.bf16.msra.mxu0 0
    %3480 = vmatprep.subr.bf16.mxu0 0
    %3481 = vmatpush2.bf16.msra.mxu0 0
    %3482 = vmatprep.subr.bf16.mxu0 0
    %3483 = vmatpush2.bf16.msra.mxu0 0
    %3484 = vmatprep.mubr.bf16.mxu0 0
    %3485 = vmatmul.mubr.bf16.gmra.mxu0 %v3447
    %v3486 = vpop.f32.mrf.mxu0
    %v3487 = vadd.f32 0.0, %v3486
    %v3488 = vpop.f32.mrf.mxu0
    %v3489 = vpop.f32.mrf.mxu0
    %v3490 = vpop.f32.mrf.mxu0
    %3491 = vdwg.mxu0
    %3492 = vrot.lane.b32.xlu0 %v2942, 48
    %v3493 = vpop.permute.xlu0 %3492
    %3494 = vrot.lane.b32.xlu0 %v2943, 48
    %v3495 = vpop.permute.xlu0 %3494
    %v3497 = vsel %vm492, %v3493, 0
    %v3500 = vsel %vm492, %v3495, 0
    %3502 = vmatprep.subr.bf16.mxu0 0
    %3503 = vmatpush1.bf16.xpose.msra.mxu0 0
    %3504 = vmatprep.subr.bf16.mxu0 0
    %3505 = vmatpush1.bf16.xpose.msra.mxu0 0
    %3506 = vmatprep.subr.bf16.mxu0 0
    %3507 = vmatpush1.bf16.xpose.msra.mxu0 0
    %3508 = vmatprep.subr.bf16.mxu0 0
    %3509 = vmatpush1.bf16.xpose.msra.mxu0 0
    %3510 = vmatprep.subr.bf16.mxu0 0
    %3511 = vmatpush1.bf16.xpose.msra.mxu0 0
    %3512 = vmatprep.subr.bf16.mxu0 0
    %3513 = vmatpush1.bf16.xpose.msra.mxu0 0
    %3514 = vmatprep.subr.bf16.mxu0 0
    %3515 = vmatpush1.bf16.xpose.msra.mxu0 0
    %3516 = vmatprep.subr.bf16.mxu0 0
    %3517 = vmatpush1.bf16.xpose.msra.mxu0 %v3500
    %3518 = vmatprep.subr.bf16.mxu0 0
    %3519 = vmatpush2.bf16.xpose.msra.mxu0 0
    %3520 = vmatprep.subr.bf16.mxu0 0
    %3521 = vmatpush2.bf16.xpose.msra.mxu0 0
    %3522 = vmatprep.subr.bf16.mxu0 0
    %3523 = vmatpush2.bf16.xpose.msra.mxu0 0
    %3524 = vmatprep.subr.bf16.mxu0 0
    %3525 = vmatpush2.bf16.xpose.msra.mxu0 0
    %3526 = vmatprep.subr.bf16.mxu0 0
    %3527 = vmatpush2.bf16.xpose.msra.mxu0 0
    %3528 = vmatprep.subr.bf16.mxu0 0
    %3529 = vmatpush2.bf16.xpose.msra.mxu0 0
    %3530 = vmatprep.subr.bf16.mxu0 0
    %3531 = vmatpush2.bf16.xpose.msra.mxu0 0
    %3532 = vmatprep.subr.bf16.mxu0 0
    %3533 = vmatpush2.bf16.xpose.msra.mxu0 0
    %3534 = vmatprep.mubr.bf16.mxu0 0
    %3535 = vmatmul.mubr.bf16.gmra.mxu0 %v3497
    %v3536 = vpop.f32.mrf.mxu0
    %v3537 = vadd.f32 0.0, %v3536
    %v3538 = vpop.f32.mrf.mxu0
    %v3539 = vpop.f32.mrf.mxu0
    %v3540 = vpop.f32.mrf.mxu0
    %3541 = vdwg.mxu0
    %v3542 = vsel %vm539, %v3537, -inf
    %3543 = vmax.xlane.f32.xlu0 %v3542
    %v3544 = vpop.xlane.xlu0 %3543
    %v3545 = vsub.f32 %v3537, %v3544
    %v3546 = vmul.f32 %v3545, 1.442695
    %v3547 = vpow.pop %v3546
    %v3548 = vsel %vm539, %v3547, 0.0
    %3549 = vadd.xlane.f32.xlu0 %v3548
    %v3550 = vpop.xlane.xlu0 %3549
    %v3551 = vrcp.pop %v3550
    %v3552 = vmul.f32 %v3547, %v3551
    %v3553 = vpack.c.bf16 %v3552, %v3552
    %3554 = vrot.lane.b32.xlu0 %v2944, 48
    %v3555 = vpop.permute.xlu0 %3554
    %v3557 = vsel %vm539, %v3553, 0
    %v3560 = vsel %vm555, %v3555, 0
    %3562 = vmatprep.subr.bf16.mxu0 0
    %3563 = vmatpush1.bf16.msra.mxu0 0
    %3564 = vmatprep.subr.bf16.mxu0 0
    %3565 = vmatpush1.bf16.msra.mxu0 0
    %3566 = vmatprep.subr.bf16.mxu0 0
    %3567 = vmatpush1.bf16.msra.mxu0 0
    %3568 = vmatprep.subr.bf16.mxu0 0
    %3569 = vmatpush1.bf16.msra.mxu0 0
    %3570 = vmatprep.subr.bf16.mxu0 0
    %3571 = vmatpush1.bf16.msra.mxu0 0
    %3572 = vmatprep.subr.bf16.mxu0 0
    %3573 = vmatpush1.bf16.msra.mxu0 0
    %3574 = vmatprep.subr.bf16.mxu0 0
    %3575 = vmatpush1.bf16.msra.mxu0 0
    %3576 = vmatprep.subr.bf16.mxu0 0
    %3577 = vmatpush1.bf16.msra.mxu0 %v3560
    %3578 = vmatprep.subr.bf16.mxu0 0
    %3579 = vmatpush2.bf16.msra.mxu0 0
    %3580 = vmatprep.subr.bf16.mxu0 0
    %3581 = vmatpush2.bf16.msra.mxu0 0
    %3582 = vmatprep.subr.bf16.mxu0 0
    %3583 = vmatpush2.bf16.msra.mxu0 0
    %3584 = vmatprep.subr.bf16.mxu0 0
    %3585 = vmatpush2.bf16.msra.mxu0 0
    %3586 = vmatprep.subr.bf16.mxu0 0
    %3587 = vmatpush2.bf16.msra.mxu0 0
    %3588 = vmatprep.subr.bf16.mxu0 0
    %3589 = vmatpush2.bf16.msra.mxu0 0
    %3590 = vmatprep.subr.bf16.mxu0 0
    %3591 = vmatpush2.bf16.msra.mxu0 0
    %3592 = vmatprep.subr.bf16.mxu0 0
    %3593 = vmatpush2.bf16.msra.mxu0 0
    %3594 = vmatprep.mubr.bf16.mxu0 0
    %3595 = vmatmul.mubr.bf16.gmra.mxu0 %v3557
    %v3596 = vpop.f32.mrf.mxu0
    %v3597 = vadd.f32 0.0, %v3596
    %v3598 = vpop.f32.mrf.mxu0
    %v3599 = vpop.f32.mrf.mxu0
    %v3600 = vpop.f32.mrf.mxu0
    %3601 = vdwg.mxu0
    %3602 = vrot.lane.b32.xlu0 %v2942, 32
    %v3603 = vpop.permute.xlu0 %3602
    %3604 = vrot.lane.b32.xlu0 %v2943, 32
    %v3605 = vpop.permute.xlu0 %3604
    %v3607 = vsel %vm492, %v3603, 0
    %v3610 = vsel %vm492, %v3605, 0
    %3612 = vmatprep.subr.bf16.mxu0 0
    %3613 = vmatpush1.bf16.xpose.msra.mxu0 0
    %3614 = vmatprep.subr.bf16.mxu0 0
    %3615 = vmatpush1.bf16.xpose.msra.mxu0 0
    %3616 = vmatprep.subr.bf16.mxu0 0
    %3617 = vmatpush1.bf16.xpose.msra.mxu0 0
    %3618 = vmatprep.subr.bf16.mxu0 0
    %3619 = vmatpush1.bf16.xpose.msra.mxu0 0
    %3620 = vmatprep.subr.bf16.mxu0 0
    %3621 = vmatpush1.bf16.xpose.msra.mxu0 0
    %3622 = vmatprep.subr.bf16.mxu0 0
    %3623 = vmatpush1.bf16.xpose.msra.mxu0 0
    %3624 = vmatprep.subr.bf16.mxu0 0
    %3625 = vmatpush1.bf16.xpose.msra.mxu0 0
    %3626 = vmatprep.subr.bf16.mxu0 0
    %3627 = vmatpush1.bf16.xpose.msra.mxu0 %v3610
    %3628 = vmatprep.subr.bf16.mxu0 0
    %3629 = vmatpush2.bf16.xpose.msra.mxu0 0
    %3630 = vmatprep.subr.bf16.mxu0 0
    %3631 = vmatpush2.bf16.xpose.msra.mxu0 0
    %3632 = vmatprep.subr.bf16.mxu0 0
    %3633 = vmatpush2.bf16.xpose.msra.mxu0 0
    %3634 = vmatprep.subr.bf16.mxu0 0
    %3635 = vmatpush2.bf16.xpose.msra.mxu0 0
    %3636 = vmatprep.subr.bf16.mxu0 0
    %3637 = vmatpush2.bf16.xpose.msra.mxu0 0
    %3638 = vmatprep.subr.bf16.mxu0 0
    %3639 = vmatpush2.bf16.xpose.msra.mxu0 0
    %3640 = vmatprep.subr.bf16.mxu0 0
    %3641 = vmatpush2.bf16.xpose.msra.mxu0 0
    %3642 = vmatprep.subr.bf16.mxu0 0
    %3643 = vmatpush2.bf16.xpose.msra.mxu0 0
    %3644 = vmatprep.mubr.bf16.mxu0 0
    %3645 = vmatmul.mubr.bf16.gmra.mxu0 %v3607
    %v3646 = vpop.f32.mrf.mxu0
    %v3647 = vadd.f32 0.0, %v3646
    %v3648 = vpop.f32.mrf.mxu0
    %v3649 = vpop.f32.mrf.mxu0
    %v3650 = vpop.f32.mrf.mxu0
    %3651 = vdwg.mxu0
    %v3652 = vsel %vm539, %v3647, -inf
    %3653 = vmax.xlane.f32.xlu0 %v3652
    %v3654 = vpop.xlane.xlu0 %3653
    %v3655 = vsub.f32 %v3647, %v3654
    %v3656 = vmul.f32 %v3655, 1.442695
    %v3657 = vpow.pop %v3656
    %v3658 = vsel %vm539, %v3657, 0.0
    %3659 = vadd.xlane.f32.xlu0 %v3658
    %v3660 = vpop.xlane.xlu0 %3659
    %v3661 = vrcp.pop %v3660
    %v3662 = vmul.f32 %v3657, %v3661
    %v3663 = vpack.c.bf16 %v3662, %v3662
    %3664 = vrot.lane.b32.xlu0 %v2944, 32
    %v3665 = vpop.permute.xlu0 %3664
    %v3667 = vsel %vm539, %v3663, 0
    %v3670 = vsel %vm555, %v3665, 0
    %3672 = vmatprep.subr.bf16.mxu0 0
    %3673 = vmatpush1.bf16.msra.mxu0 0
    %3674 = vmatprep.subr.bf16.mxu0 0
    %3675 = vmatpush1.bf16.msra.mxu0 0
    %3676 = vmatprep.subr.bf16.mxu0 0
    %3677 = vmatpush1.bf16.msra.mxu0 0
    %3678 = vmatprep.subr.bf16.mxu0 0
    %3679 = vmatpush1.bf16.msra.mxu0 0
    %3680 = vmatprep.subr.bf16.mxu0 0
    %3681 = vmatpush1.bf16.msra.mxu0 0
    %3682 = vmatprep.subr.bf16.mxu0 0
    %3683 = vmatpush1.bf16.msra.mxu0 0
    %3684 = vmatprep.subr.bf16.mxu0 0
    %3685 = vmatpush1.bf16.msra.mxu0 0
    %3686 = vmatprep.subr.bf16.mxu0 0
    %3687 = vmatpush1.bf16.msra.mxu0 %v3670
    %3688 = vmatprep.subr.bf16.mxu0 0
    %3689 = vmatpush2.bf16.msra.mxu0 0
    %3690 = vmatprep.subr.bf16.mxu0 0
    %3691 = vmatpush2.bf16.msra.mxu0 0
    %3692 = vmatprep.subr.bf16.mxu0 0
    %3693 = vmatpush2.bf16.msra.mxu0 0
    %3694 = vmatprep.subr.bf16.mxu0 0
    %3695 = vmatpush2.bf16.msra.mxu0 0
    %3696 = vmatprep.subr.bf16.mxu0 0
    %3697 = vmatpush2.bf16.msra.mxu0 0
    %3698 = vmatprep.subr.bf16.mxu0 0
    %3699 = vmatpush2.bf16.msra.mxu0 0
    %3700 = vmatprep.subr.bf16.mxu0 0
    %3701 = vmatpush2.bf16.msra.mxu0 0
    %3702 = vmatprep.subr.bf16.mxu0 0
    %3703 = vmatpush2.bf16.msra.mxu0 0
    %3704 = vmatprep.mubr.bf16.mxu0 0
    %3705 = vmatmul.mubr.bf16.gmra.mxu0 %v3667
    %v3706 = vpop.f32.mrf.mxu0
    %v3707 = vadd.f32 0.0, %v3706
    %v3708 = vpop.f32.mrf.mxu0
    %v3709 = vpop.f32.mrf.mxu0
    %v3710 = vpop.f32.mrf.mxu0
    %3711 = vdwg.mxu0
    %3712 = vrot.lane.b32.xlu0 %v2942, 16
    %v3713 = vpop.permute.xlu0 %3712
    %3714 = vrot.lane.b32.xlu0 %v2943, 16
    %v3715 = vpop.permute.xlu0 %3714
    %v3717 = vsel %vm492, %v3713, 0
    %v3720 = vsel %vm492, %v3715, 0
    %3722 = vmatprep.subr.bf16.mxu0 0
    %3723 = vmatpush1.bf16.xpose.msra.mxu0 0
    %3724 = vmatprep.subr.bf16.mxu0 0
    %3725 = vmatpush1.bf16.xpose.msra.mxu0 0
    %3726 = vmatprep.subr.bf16.mxu0 0
    %3727 = vmatpush1.bf16.xpose.msra.mxu0 0
    %3728 = vmatprep.subr.bf16.mxu0 0
    %3729 = vmatpush1.bf16.xpose.msra.mxu0 0
    %3730 = vmatprep.subr.bf16.mxu0 0
    %3731 = vmatpush1.bf16.xpose.msra.mxu0 0
    %3732 = vmatprep.subr.bf16.mxu0 0
    %3733 = vmatpush1.bf16.xpose.msra.mxu0 0
    %3734 = vmatprep.subr.bf16.mxu0 0
    %3735 = vmatpush1.bf16.xpose.msra.mxu0 0
    %3736 = vmatprep.subr.bf16.mxu0 0
    %3737 = vmatpush1.bf16.xpose.msra.mxu0 %v3720
    %3738 = vmatprep.subr.bf16.mxu0 0
    %3739 = vmatpush2.bf16.xpose.msra.mxu0 0
    %3740 = vmatprep.subr.bf16.mxu0 0
    %3741 = vmatpush2.bf16.xpose.msra.mxu0 0
    %3742 = vmatprep.subr.bf16.mxu0 0
    %3743 = vmatpush2.bf16.xpose.msra.mxu0 0
    %3744 = vmatprep.subr.bf16.mxu0 0
    %3745 = vmatpush2.bf16.xpose.msra.mxu0 0
    %3746 = vmatprep.subr.bf16.mxu0 0
    %3747 = vmatpush2.bf16.xpose.msra.mxu0 0
    %3748 = vmatprep.subr.bf16.mxu0 0
    %3749 = vmatpush2.bf16.xpose.msra.mxu0 0
    %3750 = vmatprep.subr.bf16.mxu0 0
    %3751 = vmatpush2.bf16.xpose.msra.mxu0 0
    %3752 = vmatprep.subr.bf16.mxu0 0
    %3753 = vmatpush2.bf16.xpose.msra.mxu0 0
    %3754 = vmatprep.mubr.bf16.mxu0 0
    %3755 = vmatmul.mubr.bf16.gmra.mxu0 %v3717
    %v3756 = vpop.f32.mrf.mxu0
    %v3757 = vadd.f32 0.0, %v3756
    %v3758 = vpop.f32.mrf.mxu0
    %v3759 = vpop.f32.mrf.mxu0
    %v3760 = vpop.f32.mrf.mxu0
    %3761 = vdwg.mxu0
    %v3762 = vsel %vm539, %v3757, -inf
    %3763 = vmax.xlane.f32.xlu0 %v3762
    %v3764 = vpop.xlane.xlu0 %3763
    %v3765 = vsub.f32 %v3757, %v3764
    %v3766 = vmul.f32 %v3765, 1.442695
    %v3767 = vpow.pop %v3766
    %v3768 = vsel %vm539, %v3767, 0.0
    %3769 = vadd.xlane.f32.xlu0 %v3768
    %v3770 = vpop.xlane.xlu0 %3769
    %v3771 = vrcp.pop %v3770
    %v3772 = vmul.f32 %v3767, %v3771
    %v3773 = vpack.c.bf16 %v3772, %v3772
    %3774 = vrot.lane.b32.xlu0 %v2944, 16
    %v3775 = vpop.permute.xlu0 %3774
    %v3777 = vsel %vm539, %v3773, 0
    %v3780 = vsel %vm555, %v3775, 0
    %3782 = vmatprep.subr.bf16.mxu0 0
    %3783 = vmatpush1.bf16.msra.mxu0 0
    %3784 = vmatprep.subr.bf16.mxu0 0
    %3785 = vmatpush1.bf16.msra.mxu0 0
    %3786 = vmatprep.subr.bf16.mxu0 0
    %3787 = vmatpush1.bf16.msra.mxu0 0
    %3788 = vmatprep.subr.bf16.mxu0 0
    %3789 = vmatpush1.bf16.msra.mxu0 0
    %3790 = vmatprep.subr.bf16.mxu0 0
    %3791 = vmatpush1.bf16.msra.mxu0 0
    %3792 = vmatprep.subr.bf16.mxu0 0
    %3793 = vmatpush1.bf16.msra.mxu0 0
    %3794 = vmatprep.subr.bf16.mxu0 0
    %3795 = vmatpush1.bf16.msra.mxu0 0
    %3796 = vmatprep.subr.bf16.mxu0 0
    %3797 = vmatpush1.bf16.msra.mxu0 %v3780
    %3798 = vmatprep.subr.bf16.mxu0 0
    %3799 = vmatpush2.bf16.msra.mxu0 0
    %3800 = vmatprep.subr.bf16.mxu0 0
    %3801 = vmatpush2.bf16.msra.mxu0 0
    %3802 = vmatprep.subr.bf16.mxu0 0
    %3803 = vmatpush2.bf16.msra.mxu0 0
    %3804 = vmatprep.subr.bf16.mxu0 0
    %3805 = vmatpush2.bf16.msra.mxu0 0
    %3806 = vmatprep.subr.bf16.mxu0 0
    %3807 = vmatpush2.bf16.msra.mxu0 0
    %3808 = vmatprep.subr.bf16.mxu0 0
    %3809 = vmatpush2.bf16.msra.mxu0 0
    %3810 = vmatprep.subr.bf16.mxu0 0
    %3811 = vmatpush2.bf16.msra.mxu0 0
    %3812 = vmatprep.subr.bf16.mxu0 0
    %3813 = vmatpush2.bf16.msra.mxu0 0
    %3814 = vmatprep.mubr.bf16.mxu0 0
    %3815 = vmatmul.mubr.bf16.gmra.mxu0 %v3777
    %v3816 = vpop.f32.mrf.mxu0
    %v3817 = vadd.f32 0.0, %v3816
    %v3818 = vpop.f32.mrf.mxu0
    %v3819 = vpop.f32.mrf.mxu0
    %v3820 = vpop.f32.mrf.mxu0
    %3821 = vdwg.mxu0
    %v3822 = vrot.slane %v2942, 4
    %v3823 = vrot.slane %v2943, 4
    %v3825 = vsel %vm492, %v3822, 0
    %v3828 = vsel %vm492, %v3823, 0
    %3830 = vmatprep.subr.bf16.mxu0 0
    %3831 = vmatpush1.bf16.xpose.msra.mxu0 0
    %3832 = vmatprep.subr.bf16.mxu0 0
    %3833 = vmatpush1.bf16.xpose.msra.mxu0 0
    %3834 = vmatprep.subr.bf16.mxu0 0
    %3835 = vmatpush1.bf16.xpose.msra.mxu0 0
    %3836 = vmatprep.subr.bf16.mxu0 0
    %3837 = vmatpush1.bf16.xpose.msra.mxu0 0
    %3838 = vmatprep.subr.bf16.mxu0 0
    %3839 = vmatpush1.bf16.xpose.msra.mxu0 0
    %3840 = vmatprep.subr.bf16.mxu0 0
    %3841 = vmatpush1.bf16.xpose.msra.mxu0 0
    %3842 = vmatprep.subr.bf16.mxu0 0
    %3843 = vmatpush1.bf16.xpose.msra.mxu0 0
    %3844 = vmatprep.subr.bf16.mxu0 0
    %3845 = vmatpush1.bf16.xpose.msra.mxu0 %v3828
    %3846 = vmatprep.subr.bf16.mxu0 0
    %3847 = vmatpush2.bf16.xpose.msra.mxu0 0
    %3848 = vmatprep.subr.bf16.mxu0 0
    %3849 = vmatpush2.bf16.xpose.msra.mxu0 0
    %3850 = vmatprep.subr.bf16.mxu0 0
    %3851 = vmatpush2.bf16.xpose.msra.mxu0 0
    %3852 = vmatprep.subr.bf16.mxu0 0
    %3853 = vmatpush2.bf16.xpose.msra.mxu0 0
    %3854 = vmatprep.subr.bf16.mxu0 0
    %3855 = vmatpush2.bf16.xpose.msra.mxu0 0
    %3856 = vmatprep.subr.bf16.mxu0 0
    %3857 = vmatpush2.bf16.xpose.msra.mxu0 0
    %3858 = vmatprep.subr.bf16.mxu0 0
    %3859 = vmatpush2.bf16.xpose.msra.mxu0 0
    %3860 = vmatprep.subr.bf16.mxu0 0
    %3861 = vmatpush2.bf16.xpose.msra.mxu0 0
    %3862 = vmatprep.mubr.bf16.mxu0 0
    %3863 = vmatmul.mubr.bf16.gmra.mxu0 %v3825
    %v3864 = vpop.f32.mrf.mxu0
    %v3865 = vadd.f32 0.0, %v3864
    %v3866 = vpop.f32.mrf.mxu0
    %v3867 = vpop.f32.mrf.mxu0
    %v3868 = vpop.f32.mrf.mxu0
    %3869 = vdwg.mxu0
    %v3870 = vsel %vm539, %v3865, -inf
    %3871 = vmax.xlane.f32.xlu0 %v3870
    %v3872 = vpop.xlane.xlu0 %3871
    %v3873 = vsub.f32 %v3865, %v3872
    %v3874 = vmul.f32 %v3873, 1.442695
    %v3875 = vpow.pop %v3874
    %v3876 = vsel %vm539, %v3875, 0.0
    %3877 = vadd.xlane.f32.xlu0 %v3876
    %v3878 = vpop.xlane.xlu0 %3877
    %v3879 = vrcp.pop %v3878
    %v3880 = vmul.f32 %v3875, %v3879
    %v3881 = vpack.c.bf16 %v3880, %v3880
    %v3882 = vrot.slane %v2944, 4
    %v3884 = vsel %vm539, %v3881, 0
    %v3887 = vsel %vm555, %v3882, 0
    %3889 = vmatprep.subr.bf16.mxu0 0
    %3890 = vmatpush1.bf16.msra.mxu0 0
    %3891 = vmatprep.subr.bf16.mxu0 0
    %3892 = vmatpush1.bf16.msra.mxu0 0
    %3893 = vmatprep.subr.bf16.mxu0 0
    %3894 = vmatpush1.bf16.msra.mxu0 0
    %3895 = vmatprep.subr.bf16.mxu0 0
    %3896 = vmatpush1.bf16.msra.mxu0 0
    %3897 = vmatprep.subr.bf16.mxu0 0
    %3898 = vmatpush1.bf16.msra.mxu0 0
    %3899 = vmatprep.subr.bf16.mxu0 0
    %3900 = vmatpush1.bf16.msra.mxu0 0
    %3901 = vmatprep.subr.bf16.mxu0 0
    %3902 = vmatpush1.bf16.msra.mxu0 0
    %3903 = vmatprep.subr.bf16.mxu0 0
    %3904 = vmatpush1.bf16.msra.mxu0 %v3887
    %3905 = vmatprep.subr.bf16.mxu0 0
    %3906 = vmatpush2.bf16.msra.mxu0 0
    %3907 = vmatprep.subr.bf16.mxu0 0
    %3908 = vmatpush2.bf16.msra.mxu0 0
    %3909 = vmatprep.subr.bf16.mxu0 0
    %3910 = vmatpush2.bf16.msra.mxu0 0
    %3911 = vmatprep.subr.bf16.mxu0 0
    %3912 = vmatpush2.bf16.msra.mxu0 0
    %3913 = vmatprep.subr.bf16.mxu0 0
    %3914 = vmatpush2.bf16.msra.mxu0 0
    %3915 = vmatprep.subr.bf16.mxu0 0
    %3916 = vmatpush2.bf16.msra.mxu0 0
    %3917 = vmatprep.subr.bf16.mxu0 0
    %3918 = vmatpush2.bf16.msra.mxu0 0
    %3919 = vmatprep.subr.bf16.mxu0 0
    %3920 = vmatpush2.bf16.msra.mxu0 0
    %3921 = vmatprep.mubr.bf16.mxu0 0
    %3922 = vmatmul.mubr.bf16.gmra.mxu0 %v3884
    %v3923 = vpop.f32.mrf.mxu0
    %v3924 = vadd.f32 0.0, %v3923
    %v3925 = vpop.f32.mrf.mxu0
    %v3926 = vpop.f32.mrf.mxu0
    %v3927 = vpop.f32.mrf.mxu0
    %3928 = vdwg.mxu0
    %3929 = vrot.lane.b32.xlu0 %v3822, 112
    %v3930 = vpop.permute.xlu0 %3929
    %3931 = vrot.lane.b32.xlu0 %v3823, 112
    %v3932 = vpop.permute.xlu0 %3931
    %v3934 = vsel %vm492, %v3930, 0
    %v3937 = vsel %vm492, %v3932, 0
    %3939 = vmatprep.subr.bf16.mxu0 0
    %3940 = vmatpush1.bf16.xpose.msra.mxu0 0
    %3941 = vmatprep.subr.bf16.mxu0 0
    %3942 = vmatpush1.bf16.xpose.msra.mxu0 0
    %3943 = vmatprep.subr.bf16.mxu0 0
    %3944 = vmatpush1.bf16.xpose.msra.mxu0 0
    %3945 = vmatprep.subr.bf16.mxu0 0
    %3946 = vmatpush1.bf16.xpose.msra.mxu0 0
    %3947 = vmatprep.subr.bf16.mxu0 0
    %3948 = vmatpush1.bf16.xpose.msra.mxu0 0
    %3949 = vmatprep.subr.bf16.mxu0 0
    %3950 = vmatpush1.bf16.xpose.msra.mxu0 0
    %3951 = vmatprep.subr.bf16.mxu0 0
    %3952 = vmatpush1.bf16.xpose.msra.mxu0 0
    %3953 = vmatprep.subr.bf16.mxu0 0
    %3954 = vmatpush1.bf16.xpose.msra.mxu0 %v3937
    %3955 = vmatprep.subr.bf16.mxu0 0
    %3956 = vmatpush2.bf16.xpose.msra.mxu0 0
    %3957 = vmatprep.subr.bf16.mxu0 0
    %3958 = vmatpush2.bf16.xpose.msra.mxu0 0
    %3959 = vmatprep.subr.bf16.mxu0 0
    %3960 = vmatpush2.bf16.xpose.msra.mxu0 0
    %3961 = vmatprep.subr.bf16.mxu0 0
    %3962 = vmatpush2.bf16.xpose.msra.mxu0 0
    %3963 = vmatprep.subr.bf16.mxu0 0
    %3964 = vmatpush2.bf16.xpose.msra.mxu0 0
    %3965 = vmatprep.subr.bf16.mxu0 0
    %3966 = vmatpush2.bf16.xpose.msra.mxu0 0
    %3967 = vmatprep.subr.bf16.mxu0 0
    %3968 = vmatpush2.bf16.xpose.msra.mxu0 0
    %3969 = vmatprep.subr.bf16.mxu0 0
    %3970 = vmatpush2.bf16.xpose.msra.mxu0 0
    %3971 = vmatprep.mubr.bf16.mxu0 0
    %3972 = vmatmul.mubr.bf16.gmra.mxu0 %v3934
    %v3973 = vpop.f32.mrf.mxu0
    %v3974 = vadd.f32 0.0, %v3973
    %v3975 = vpop.f32.mrf.mxu0
    %v3976 = vpop.f32.mrf.mxu0
    %v3977 = vpop.f32.mrf.mxu0
    %3978 = vdwg.mxu0
    %v3979 = vsel %vm539, %v3974, -inf
    %3980 = vmax.xlane.f32.xlu0 %v3979
    %v3981 = vpop.xlane.xlu0 %3980
    %v3982 = vsub.f32 %v3974, %v3981
    %v3983 = vmul.f32 %v3982, 1.442695
    %v3984 = vpow.pop %v3983
    %v3985 = vsel %vm539, %v3984, 0.0
    %3986 = vadd.xlane.f32.xlu0 %v3985
    %v3987 = vpop.xlane.xlu0 %3986
    %v3988 = vrcp.pop %v3987
    %v3989 = vmul.f32 %v3984, %v3988
    %v3990 = vpack.c.bf16 %v3989, %v3989
    %3991 = vrot.lane.b32.xlu0 %v3882, 112
    %v3992 = vpop.permute.xlu0 %3991
    %v3994 = vsel %vm539, %v3990, 0
    %v3997 = vsel %vm555, %v3992, 0
    %3999 = vmatprep.subr.bf16.mxu0 0
    %4000 = vmatpush1.bf16.msra.mxu0 0
    %4001 = vmatprep.subr.bf16.mxu0 0
    %4002 = vmatpush1.bf16.msra.mxu0 0
    %4003 = vmatprep.subr.bf16.mxu0 0
    %4004 = vmatpush1.bf16.msra.mxu0 0
    %4005 = vmatprep.subr.bf16.mxu0 0
    %4006 = vmatpush1.bf16.msra.mxu0 0
    %4007 = vmatprep.subr.bf16.mxu0 0
    %4008 = vmatpush1.bf16.msra.mxu0 0
    %4009 = vmatprep.subr.bf16.mxu0 0
    %4010 = vmatpush1.bf16.msra.mxu0 0
    %4011 = vmatprep.subr.bf16.mxu0 0
    %4012 = vmatpush1.bf16.msra.mxu0 0
    %4013 = vmatprep.subr.bf16.mxu0 0
    %4014 = vmatpush1.bf16.msra.mxu0 %v3997
    %4015 = vmatprep.subr.bf16.mxu0 0
    %4016 = vmatpush2.bf16.msra.mxu0 0
    %4017 = vmatprep.subr.bf16.mxu0 0
    %4018 = vmatpush2.bf16.msra.mxu0 0
    %4019 = vmatprep.subr.bf16.mxu0 0
    %4020 = vmatpush2.bf16.msra.mxu0 0
    %4021 = vmatprep.subr.bf16.mxu0 0
    %4022 = vmatpush2.bf16.msra.mxu0 0
    %4023 = vmatprep.subr.bf16.mxu0 0
    %4024 = vmatpush2.bf16.msra.mxu0 0
    %4025 = vmatprep.subr.bf16.mxu0 0
    %4026 = vmatpush2.bf16.msra.mxu0 0
    %4027 = vmatprep.subr.bf16.mxu0 0
    %4028 = vmatpush2.bf16.msra.mxu0 0
    %4029 = vmatprep.subr.bf16.mxu0 0
    %4030 = vmatpush2.bf16.msra.mxu0 0
    %4031 = vmatprep.mubr.bf16.mxu0 0
    %4032 = vmatmul.mubr.bf16.gmra.mxu0 %v3994
    %v4033 = vpop.f32.mrf.mxu0
    %v4034 = vadd.f32 0.0, %v4033
    %v4035 = vpop.f32.mrf.mxu0
    %v4036 = vpop.f32.mrf.mxu0
    %v4037 = vpop.f32.mrf.mxu0
    %4038 = vdwg.mxu0
    %4039 = vrot.lane.b32.xlu0 %v3822, 96
    %v4040 = vpop.permute.xlu0 %4039
    %4041 = vrot.lane.b32.xlu0 %v3823, 96
    %v4042 = vpop.permute.xlu0 %4041
    %v4044 = vsel %vm492, %v4040, 0
    %v4047 = vsel %vm492, %v4042, 0
    %4049 = vmatprep.subr.bf16.mxu0 0
    %4050 = vmatpush1.bf16.xpose.msra.mxu0 0
    %4051 = vmatprep.subr.bf16.mxu0 0
    %4052 = vmatpush1.bf16.xpose.msra.mxu0 0
    %4053 = vmatprep.subr.bf16.mxu0 0
    %4054 = vmatpush1.bf16.xpose.msra.mxu0 0
    %4055 = vmatprep.subr.bf16.mxu0 0
    %4056 = vmatpush1.bf16.xpose.msra.mxu0 0
    %4057 = vmatprep.subr.bf16.mxu0 0
    %4058 = vmatpush1.bf16.xpose.msra.mxu0 0
    %4059 = vmatprep.subr.bf16.mxu0 0
    %4060 = vmatpush1.bf16.xpose.msra.mxu0 0
    %4061 = vmatprep.subr.bf16.mxu0 0
    %4062 = vmatpush1.bf16.xpose.msra.mxu0 0
    %4063 = vmatprep.subr.bf16.mxu0 0
    %4064 = vmatpush1.bf16.xpose.msra.mxu0 %v4047
    %4065 = vmatprep.subr.bf16.mxu0 0
    %4066 = vmatpush2.bf16.xpose.msra.mxu0 0
    %4067 = vmatprep.subr.bf16.mxu0 0
    %4068 = vmatpush2.bf16.xpose.msra.mxu0 0
    %4069 = vmatprep.subr.bf16.mxu0 0
    %4070 = vmatpush2.bf16.xpose.msra.mxu0 0
    %4071 = vmatprep.subr.bf16.mxu0 0
    %4072 = vmatpush2.bf16.xpose.msra.mxu0 0
    %4073 = vmatprep.subr.bf16.mxu0 0
    %4074 = vmatpush2.bf16.xpose.msra.mxu0 0
    %4075 = vmatprep.subr.bf16.mxu0 0
    %4076 = vmatpush2.bf16.xpose.msra.mxu0 0
    %4077 = vmatprep.subr.bf16.mxu0 0
    %4078 = vmatpush2.bf16.xpose.msra.mxu0 0
    %4079 = vmatprep.subr.bf16.mxu0 0
    %4080 = vmatpush2.bf16.xpose.msra.mxu0 0
    %4081 = vmatprep.mubr.bf16.mxu0 0
    %4082 = vmatmul.mubr.bf16.gmra.mxu0 %v4044
    %v4083 = vpop.f32.mrf.mxu0
    %v4084 = vadd.f32 0.0, %v4083
    %v4085 = vpop.f32.mrf.mxu0
    %v4086 = vpop.f32.mrf.mxu0
    %v4087 = vpop.f32.mrf.mxu0
    %4088 = vdwg.mxu0
    %v4089 = vsel %vm539, %v4084, -inf
    %4090 = vmax.xlane.f32.xlu0 %v4089
    %v4091 = vpop.xlane.xlu0 %4090
    %v4092 = vsub.f32 %v4084, %v4091
    %v4093 = vmul.f32 %v4092, 1.442695
    %v4094 = vpow.pop %v4093
    %v4095 = vsel %vm539, %v4094, 0.0
    %4096 = vadd.xlane.f32.xlu0 %v4095
    %v4097 = vpop.xlane.xlu0 %4096
    %v4098 = vrcp.pop %v4097
    %v4099 = vmul.f32 %v4094, %v4098
    %v4100 = vpack.c.bf16 %v4099, %v4099
    %4101 = vrot.lane.b32.xlu0 %v3882, 96
    %v4102 = vpop.permute.xlu0 %4101
    %v4104 = vsel %vm539, %v4100, 0
    %v4107 = vsel %vm555, %v4102, 0
    %4109 = vmatprep.subr.bf16.mxu0 0
    %4110 = vmatpush1.bf16.msra.mxu0 0
    %4111 = vmatprep.subr.bf16.mxu0 0
    %4112 = vmatpush1.bf16.msra.mxu0 0
    %4113 = vmatprep.subr.bf16.mxu0 0
    %4114 = vmatpush1.bf16.msra.mxu0 0
    %4115 = vmatprep.subr.bf16.mxu0 0
    %4116 = vmatpush1.bf16.msra.mxu0 0
    %4117 = vmatprep.subr.bf16.mxu0 0
    %4118 = vmatpush1.bf16.msra.mxu0 0
    %4119 = vmatprep.subr.bf16.mxu0 0
    %4120 = vmatpush1.bf16.msra.mxu0 0
    %4121 = vmatprep.subr.bf16.mxu0 0
    %4122 = vmatpush1.bf16.msra.mxu0 0
    %4123 = vmatprep.subr.bf16.mxu0 0
    %4124 = vmatpush1.bf16.msra.mxu0 %v4107
    %4125 = vmatprep.subr.bf16.mxu0 0
    %4126 = vmatpush2.bf16.msra.mxu0 0
    %4127 = vmatprep.subr.bf16.mxu0 0
    %4128 = vmatpush2.bf16.msra.mxu0 0
    %4129 = vmatprep.subr.bf16.mxu0 0
    %4130 = vmatpush2.bf16.msra.mxu0 0
    %4131 = vmatprep.subr.bf16.mxu0 0
    %4132 = vmatpush2.bf16.msra.mxu0 0
    %4133 = vmatprep.subr.bf16.mxu0 0
    %4134 = vmatpush2.bf16.msra.mxu0 0
    %4135 = vmatprep.subr.bf16.mxu0 0
    %4136 = vmatpush2.bf16.msra.mxu0 0
    %4137 = vmatprep.subr.bf16.mxu0 0
    %4138 = vmatpush2.bf16.msra.mxu0 0
    %4139 = vmatprep.subr.bf16.mxu0 0
    %4140 = vmatpush2.bf16.msra.mxu0 0
    %4141 = vmatprep.mubr.bf16.mxu0 0
    %4142 = vmatmul.mubr.bf16.gmra.mxu0 %v4104
    %v4143 = vpop.f32.mrf.mxu0
    %v4144 = vadd.f32 0.0, %v4143
    %v4145 = vpop.f32.mrf.mxu0
    %v4146 = vpop.f32.mrf.mxu0
    %v4147 = vpop.f32.mrf.mxu0
    %4148 = vdwg.mxu0
    %4149 = vrot.lane.b32.xlu0 %v3822, 80
    %v4150 = vpop.permute.xlu0 %4149
    %4151 = vrot.lane.b32.xlu0 %v3823, 80
    %v4152 = vpop.permute.xlu0 %4151
    %v4154 = vsel %vm492, %v4150, 0
    %v4157 = vsel %vm492, %v4152, 0
    %4159 = vmatprep.subr.bf16.mxu0 0
    %4160 = vmatpush1.bf16.xpose.msra.mxu0 0
    %4161 = vmatprep.subr.bf16.mxu0 0
    %4162 = vmatpush1.bf16.xpose.msra.mxu0 0
    %4163 = vmatprep.subr.bf16.mxu0 0
    %4164 = vmatpush1.bf16.xpose.msra.mxu0 0
    %4165 = vmatprep.subr.bf16.mxu0 0
    %4166 = vmatpush1.bf16.xpose.msra.mxu0 0
    %4167 = vmatprep.subr.bf16.mxu0 0
    %4168 = vmatpush1.bf16.xpose.msra.mxu0 0
    %4169 = vmatprep.subr.bf16.mxu0 0
    %4170 = vmatpush1.bf16.xpose.msra.mxu0 0
    %4171 = vmatprep.subr.bf16.mxu0 0
    %4172 = vmatpush1.bf16.xpose.msra.mxu0 0
    %4173 = vmatprep.subr.bf16.mxu0 0
    %4174 = vmatpush1.bf16.xpose.msra.mxu0 %v4157
    %4175 = vmatprep.subr.bf16.mxu0 0
    %4176 = vmatpush2.bf16.xpose.msra.mxu0 0
    %4177 = vmatprep.subr.bf16.mxu0 0
    %4178 = vmatpush2.bf16.xpose.msra.mxu0 0
    %4179 = vmatprep.subr.bf16.mxu0 0
    %4180 = vmatpush2.bf16.xpose.msra.mxu0 0
    %4181 = vmatprep.subr.bf16.mxu0 0
    %4182 = vmatpush2.bf16.xpose.msra.mxu0 0
    %4183 = vmatprep.subr.bf16.mxu0 0
    %4184 = vmatpush2.bf16.xpose.msra.mxu0 0
    %4185 = vmatprep.subr.bf16.mxu0 0
    %4186 = vmatpush2.bf16.xpose.msra.mxu0 0
    %4187 = vmatprep.subr.bf16.mxu0 0
    %4188 = vmatpush2.bf16.xpose.msra.mxu0 0
    %4189 = vmatprep.subr.bf16.mxu0 0
    %4190 = vmatpush2.bf16.xpose.msra.mxu0 0
    %4191 = vmatprep.mubr.bf16.mxu0 0
    %4192 = vmatmul.mubr.bf16.gmra.mxu0 %v4154
    %v4193 = vpop.f32.mrf.mxu0
    %v4194 = vadd.f32 0.0, %v4193
    %v4195 = vpop.f32.mrf.mxu0
    %v4196 = vpop.f32.mrf.mxu0
    %v4197 = vpop.f32.mrf.mxu0
    %4198 = vdwg.mxu0
    %v4199 = vsel %vm539, %v4194, -inf
    %4200 = vmax.xlane.f32.xlu0 %v4199
    %v4201 = vpop.xlane.xlu0 %4200
    %v4202 = vsub.f32 %v4194, %v4201
    %v4203 = vmul.f32 %v4202, 1.442695
    %v4204 = vpow.pop %v4203
    %v4205 = vsel %vm539, %v4204, 0.0
    %4206 = vadd.xlane.f32.xlu0 %v4205
    %v4207 = vpop.xlane.xlu0 %4206
    %v4208 = vrcp.pop %v4207
    %v4209 = vmul.f32 %v4204, %v4208
    %v4210 = vpack.c.bf16 %v4209, %v4209
    %4211 = vrot.lane.b32.xlu0 %v3882, 80
    %v4212 = vpop.permute.xlu0 %4211
    %v4214 = vsel %vm539, %v4210, 0
    %v4217 = vsel %vm555, %v4212, 0
    %4219 = vmatprep.subr.bf16.mxu0 0
    %4220 = vmatpush1.bf16.msra.mxu0 0
    %4221 = vmatprep.subr.bf16.mxu0 0
    %4222 = vmatpush1.bf16.msra.mxu0 0
    %4223 = vmatprep.subr.bf16.mxu0 0
    %4224 = vmatpush1.bf16.msra.mxu0 0
    %4225 = vmatprep.subr.bf16.mxu0 0
    %4226 = vmatpush1.bf16.msra.mxu0 0
    %4227 = vmatprep.subr.bf16.mxu0 0
    %4228 = vmatpush1.bf16.msra.mxu0 0
    %4229 = vmatprep.subr.bf16.mxu0 0
    %4230 = vmatpush1.bf16.msra.mxu0 0
    %4231 = vmatprep.subr.bf16.mxu0 0
    %4232 = vmatpush1.bf16.msra.mxu0 0
    %4233 = vmatprep.subr.bf16.mxu0 0
    %4234 = vmatpush1.bf16.msra.mxu0 %v4217
    %4235 = vmatprep.subr.bf16.mxu0 0
    %4236 = vmatpush2.bf16.msra.mxu0 0
    %4237 = vmatprep.subr.bf16.mxu0 0
    %4238 = vmatpush2.bf16.msra.mxu0 0
    %4239 = vmatprep.subr.bf16.mxu0 0
    %4240 = vmatpush2.bf16.msra.mxu0 0
    %4241 = vmatprep.subr.bf16.mxu0 0
    %4242 = vmatpush2.bf16.msra.mxu0 0
    %4243 = vmatprep.subr.bf16.mxu0 0
    %4244 = vmatpush2.bf16.msra.mxu0 0
    %4245 = vmatprep.subr.bf16.mxu0 0
    %4246 = vmatpush2.bf16.msra.mxu0 0
    %4247 = vmatprep.subr.bf16.mxu0 0
    %4248 = vmatpush2.bf16.msra.mxu0 0
    %4249 = vmatprep.subr.bf16.mxu0 0
    %4250 = vmatpush2.bf16.msra.mxu0 0
    %4251 = vmatprep.mubr.bf16.mxu0 0
    %4252 = vmatmul.mubr.bf16.gmra.mxu0 %v4214
    %v4253 = vpop.f32.mrf.mxu0
    %v4254 = vadd.f32 0.0, %v4253
    %v4255 = vpop.f32.mrf.mxu0
    %v4256 = vpop.f32.mrf.mxu0
    %v4257 = vpop.f32.mrf.mxu0
    %4258 = vdwg.mxu0
    %4259 = vrot.lane.b32.xlu0 %v3822, 64
    %v4260 = vpop.permute.xlu0 %4259
    %4261 = vrot.lane.b32.xlu0 %v3823, 64
    %v4262 = vpop.permute.xlu0 %4261
    %v4264 = vsel %vm492, %v4260, 0
    %v4267 = vsel %vm492, %v4262, 0
    %4269 = vmatprep.subr.bf16.mxu0 0
    %4270 = vmatpush1.bf16.xpose.msra.mxu0 0
    %4271 = vmatprep.subr.bf16.mxu0 0
    %4272 = vmatpush1.bf16.xpose.msra.mxu0 0
    %4273 = vmatprep.subr.bf16.mxu0 0
    %4274 = vmatpush1.bf16.xpose.msra.mxu0 0
    %4275 = vmatprep.subr.bf16.mxu0 0
    %4276 = vmatpush1.bf16.xpose.msra.mxu0 0
    %4277 = vmatprep.subr.bf16.mxu0 0
    %4278 = vmatpush1.bf16.xpose.msra.mxu0 0
    %4279 = vmatprep.subr.bf16.mxu0 0
    %4280 = vmatpush1.bf16.xpose.msra.mxu0 0
    %4281 = vmatprep.subr.bf16.mxu0 0
    %4282 = vmatpush1.bf16.xpose.msra.mxu0 0
    %4283 = vmatprep.subr.bf16.mxu0 0
    %4284 = vmatpush1.bf16.xpose.msra.mxu0 %v4267
    %4285 = vmatprep.subr.bf16.mxu0 0
    %4286 = vmatpush2.bf16.xpose.msra.mxu0 0
    %4287 = vmatprep.subr.bf16.mxu0 0
    %4288 = vmatpush2.bf16.xpose.msra.mxu0 0
    %4289 = vmatprep.subr.bf16.mxu0 0
    %4290 = vmatpush2.bf16.xpose.msra.mxu0 0
    %4291 = vmatprep.subr.bf16.mxu0 0
    %4292 = vmatpush2.bf16.xpose.msra.mxu0 0
    %4293 = vmatprep.subr.bf16.mxu0 0
    %4294 = vmatpush2.bf16.xpose.msra.mxu0 0
    %4295 = vmatprep.subr.bf16.mxu0 0
    %4296 = vmatpush2.bf16.xpose.msra.mxu0 0
    %4297 = vmatprep.subr.bf16.mxu0 0
    %4298 = vmatpush2.bf16.xpose.msra.mxu0 0
    %4299 = vmatprep.subr.bf16.mxu0 0
    %4300 = vmatpush2.bf16.xpose.msra.mxu0 0
    %4301 = vmatprep.mubr.bf16.mxu0 0
    %4302 = vmatmul.mubr.bf16.gmra.mxu0 %v4264
    %v4303 = vpop.f32.mrf.mxu0
    %v4304 = vadd.f32 0.0, %v4303
    %v4305 = vpop.f32.mrf.mxu0
    %v4306 = vpop.f32.mrf.mxu0
    %v4307 = vpop.f32.mrf.mxu0
    %4308 = vdwg.mxu0
    %v4309 = vsel %vm539, %v4304, -inf
    %4310 = vmax.xlane.f32.xlu0 %v4309
    %v4311 = vpop.xlane.xlu0 %4310
    %v4312 = vsub.f32 %v4304, %v4311
    %v4313 = vmul.f32 %v4312, 1.442695
    %v4314 = vpow.pop %v4313
    %v4315 = vsel %vm539, %v4314, 0.0
    %4316 = vadd.xlane.f32.xlu0 %v4315
    %v4317 = vpop.xlane.xlu0 %4316
    %v4318 = vrcp.pop %v4317
    %v4319 = vmul.f32 %v4314, %v4318
    %v4320 = vpack.c.bf16 %v4319, %v4319
    %4321 = vrot.lane.b32.xlu0 %v3882, 64
    %v4322 = vpop.permute.xlu0 %4321
    %v4324 = vsel %vm539, %v4320, 0
    %v4327 = vsel %vm555, %v4322, 0
    %4329 = vmatprep.subr.bf16.mxu0 0
    %4330 = vmatpush1.bf16.msra.mxu0 0
    %4331 = vmatprep.subr.bf16.mxu0 0
    %4332 = vmatpush1.bf16.msra.mxu0 0
    %4333 = vmatprep.subr.bf16.mxu0 0
    %4334 = vmatpush1.bf16.msra.mxu0 0
    %4335 = vmatprep.subr.bf16.mxu0 0
    %4336 = vmatpush1.bf16.msra.mxu0 0
    %4337 = vmatprep.subr.bf16.mxu0 0
    %4338 = vmatpush1.bf16.msra.mxu0 0
    %4339 = vmatprep.subr.bf16.mxu0 0
    %4340 = vmatpush1.bf16.msra.mxu0 0
    %4341 = vmatprep.subr.bf16.mxu0 0
    %4342 = vmatpush1.bf16.msra.mxu0 0
    %4343 = vmatprep.subr.bf16.mxu0 0
    %4344 = vmatpush1.bf16.msra.mxu0 %v4327
    %4345 = vmatprep.subr.bf16.mxu0 0
    %4346 = vmatpush2.bf16.msra.mxu0 0
    %4347 = vmatprep.subr.bf16.mxu0 0
    %4348 = vmatpush2.bf16.msra.mxu0 0
    %4349 = vmatprep.subr.bf16.mxu0 0
    %4350 = vmatpush2.bf16.msra.mxu0 0
    %4351 = vmatprep.subr.bf16.mxu0 0
    %4352 = vmatpush2.bf16.msra.mxu0 0
    %4353 = vmatprep.subr.bf16.mxu0 0
    %4354 = vmatpush2.bf16.msra.mxu0 0
    %4355 = vmatprep.subr.bf16.mxu0 0
    %4356 = vmatpush2.bf16.msra.mxu0 0
    %4357 = vmatprep.subr.bf16.mxu0 0
    %4358 = vmatpush2.bf16.msra.mxu0 0
    %4359 = vmatprep.subr.bf16.mxu0 0
    %4360 = vmatpush2.bf16.msra.mxu0 0
    %4361 = vmatprep.mubr.bf16.mxu0 0
    %4362 = vmatmul.mubr.bf16.gmra.mxu0 %v4324
    %v4363 = vpop.f32.mrf.mxu0
    %v4364 = vadd.f32 0.0, %v4363
    %v4365 = vpop.f32.mrf.mxu0
    %v4366 = vpop.f32.mrf.mxu0
    %v4367 = vpop.f32.mrf.mxu0
    %4368 = vdwg.mxu0
    %4369 = vrot.lane.b32.xlu0 %v3822, 48
    %v4370 = vpop.permute.xlu0 %4369
    %4371 = vrot.lane.b32.xlu0 %v3823, 48
    %v4372 = vpop.permute.xlu0 %4371
    %v4374 = vsel %vm492, %v4370, 0
    %v4377 = vsel %vm492, %v4372, 0
    %4379 = vmatprep.subr.bf16.mxu0 0
    %4380 = vmatpush1.bf16.xpose.msra.mxu0 0
    %4381 = vmatprep.subr.bf16.mxu0 0
    %4382 = vmatpush1.bf16.xpose.msra.mxu0 0
    %4383 = vmatprep.subr.bf16.mxu0 0
    %4384 = vmatpush1.bf16.xpose.msra.mxu0 0
    %4385 = vmatprep.subr.bf16.mxu0 0
    %4386 = vmatpush1.bf16.xpose.msra.mxu0 0
    %4387 = vmatprep.subr.bf16.mxu0 0
    %4388 = vmatpush1.bf16.xpose.msra.mxu0 0
    %4389 = vmatprep.subr.bf16.mxu0 0
    %4390 = vmatpush1.bf16.xpose.msra.mxu0 0
    %4391 = vmatprep.subr.bf16.mxu0 0
    %4392 = vmatpush1.bf16.xpose.msra.mxu0 0
    %4393 = vmatprep.subr.bf16.mxu0 0
    %4394 = vmatpush1.bf16.xpose.msra.mxu0 %v4377
    %4395 = vmatprep.subr.bf16.mxu0 0
    %4396 = vmatpush2.bf16.xpose.msra.mxu0 0
    %4397 = vmatprep.subr.bf16.mxu0 0
    %4398 = vmatpush2.bf16.xpose.msra.mxu0 0
    %4399 = vmatprep.subr.bf16.mxu0 0
    %4400 = vmatpush2.bf16.xpose.msra.mxu0 0
    %4401 = vmatprep.subr.bf16.mxu0 0
    %4402 = vmatpush2.bf16.xpose.msra.mxu0 0
    %4403 = vmatprep.subr.bf16.mxu0 0
    %4404 = vmatpush2.bf16.xpose.msra.mxu0 0
    %4405 = vmatprep.subr.bf16.mxu0 0
    %4406 = vmatpush2.bf16.xpose.msra.mxu0 0
    %4407 = vmatprep.subr.bf16.mxu0 0
    %4408 = vmatpush2.bf16.xpose.msra.mxu0 0
    %4409 = vmatprep.subr.bf16.mxu0 0
    %4410 = vmatpush2.bf16.xpose.msra.mxu0 0
    %4411 = vmatprep.mubr.bf16.mxu0 0
    %4412 = vmatmul.mubr.bf16.gmra.mxu0 %v4374
    %v4413 = vpop.f32.mrf.mxu0
    %v4414 = vadd.f32 0.0, %v4413
    %v4415 = vpop.f32.mrf.mxu0
    %v4416 = vpop.f32.mrf.mxu0
    %v4417 = vpop.f32.mrf.mxu0
    %4418 = vdwg.mxu0
    %v4419 = vsel %vm539, %v4414, -inf
    %4420 = vmax.xlane.f32.xlu0 %v4419
    %v4421 = vpop.xlane.xlu0 %4420
    %v4422 = vsub.f32 %v4414, %v4421
    %v4423 = vmul.f32 %v4422, 1.442695
    %v4424 = vpow.pop %v4423
    %v4425 = vsel %vm539, %v4424, 0.0
    %4426 = vadd.xlane.f32.xlu0 %v4425
    %v4427 = vpop.xlane.xlu0 %4426
    %v4428 = vrcp.pop %v4427
    %v4429 = vmul.f32 %v4424, %v4428
    %v4430 = vpack.c.bf16 %v4429, %v4429
    %4431 = vrot.lane.b32.xlu0 %v3882, 48
    %v4432 = vpop.permute.xlu0 %4431
    %v4434 = vsel %vm539, %v4430, 0
    %v4437 = vsel %vm555, %v4432, 0
    %4439 = vmatprep.subr.bf16.mxu0 0
    %4440 = vmatpush1.bf16.msra.mxu0 0
    %4441 = vmatprep.subr.bf16.mxu0 0
    %4442 = vmatpush1.bf16.msra.mxu0 0
    %4443 = vmatprep.subr.bf16.mxu0 0
    %4444 = vmatpush1.bf16.msra.mxu0 0
    %4445 = vmatprep.subr.bf16.mxu0 0
    %4446 = vmatpush1.bf16.msra.mxu0 0
    %4447 = vmatprep.subr.bf16.mxu0 0
    %4448 = vmatpush1.bf16.msra.mxu0 0
    %4449 = vmatprep.subr.bf16.mxu0 0
    %4450 = vmatpush1.bf16.msra.mxu0 0
    %4451 = vmatprep.subr.bf16.mxu0 0
    %4452 = vmatpush1.bf16.msra.mxu0 0
    %4453 = vmatprep.subr.bf16.mxu0 0
    %4454 = vmatpush1.bf16.msra.mxu0 %v4437
    %4455 = vmatprep.subr.bf16.mxu0 0
    %4456 = vmatpush2.bf16.msra.mxu0 0
    %4457 = vmatprep.subr.bf16.mxu0 0
    %4458 = vmatpush2.bf16.msra.mxu0 0
    %4459 = vmatprep.subr.bf16.mxu0 0
    %4460 = vmatpush2.bf16.msra.mxu0 0
    %4461 = vmatprep.subr.bf16.mxu0 0
    %4462 = vmatpush2.bf16.msra.mxu0 0
    %4463 = vmatprep.subr.bf16.mxu0 0
    %4464 = vmatpush2.bf16.msra.mxu0 0
    %4465 = vmatprep.subr.bf16.mxu0 0
    %4466 = vmatpush2.bf16.msra.mxu0 0
    %4467 = vmatprep.subr.bf16.mxu0 0
    %4468 = vmatpush2.bf16.msra.mxu0 0
    %4469 = vmatprep.subr.bf16.mxu0 0
    %4470 = vmatpush2.bf16.msra.mxu0 0
    %4471 = vmatprep.mubr.bf16.mxu0 0
    %4472 = vmatmul.mubr.bf16.gmra.mxu0 %v4434
    %v4473 = vpop.f32.mrf.mxu0
    %v4474 = vadd.f32 0.0, %v4473
    %v4475 = vpop.f32.mrf.mxu0
    %v4476 = vpop.f32.mrf.mxu0
    %v4477 = vpop.f32.mrf.mxu0
    %4478 = vdwg.mxu0
    %4479 = vrot.lane.b32.xlu0 %v3822, 32
    %v4480 = vpop.permute.xlu0 %4479
    %4481 = vrot.lane.b32.xlu0 %v3823, 32
    %v4482 = vpop.permute.xlu0 %4481
    %v4484 = vsel %vm492, %v4480, 0
    %v4487 = vsel %vm492, %v4482, 0
    %4489 = vmatprep.subr.bf16.mxu0 0
    %4490 = vmatpush1.bf16.xpose.msra.mxu0 0
    %4491 = vmatprep.subr.bf16.mxu0 0
    %4492 = vmatpush1.bf16.xpose.msra.mxu0 0
    %4493 = vmatprep.subr.bf16.mxu0 0
    %4494 = vmatpush1.bf16.xpose.msra.mxu0 0
    %4495 = vmatprep.subr.bf16.mxu0 0
    %4496 = vmatpush1.bf16.xpose.msra.mxu0 0
    %4497 = vmatprep.subr.bf16.mxu0 0
    %4498 = vmatpush1.bf16.xpose.msra.mxu0 0
    %4499 = vmatprep.subr.bf16.mxu0 0
    %4500 = vmatpush1.bf16.xpose.msra.mxu0 0
    %4501 = vmatprep.subr.bf16.mxu0 0
    %4502 = vmatpush1.bf16.xpose.msra.mxu0 0
    %4503 = vmatprep.subr.bf16.mxu0 0
    %4504 = vmatpush1.bf16.xpose.msra.mxu0 %v4487
    %4505 = vmatprep.subr.bf16.mxu0 0
    %4506 = vmatpush2.bf16.xpose.msra.mxu0 0
    %4507 = vmatprep.subr.bf16.mxu0 0
    %4508 = vmatpush2.bf16.xpose.msra.mxu0 0
    %4509 = vmatprep.subr.bf16.mxu0 0
    %4510 = vmatpush2.bf16.xpose.msra.mxu0 0
    %4511 = vmatprep.subr.bf16.mxu0 0
    %4512 = vmatpush2.bf16.xpose.msra.mxu0 0
    %4513 = vmatprep.subr.bf16.mxu0 0
    %4514 = vmatpush2.bf16.xpose.msra.mxu0 0
    %4515 = vmatprep.subr.bf16.mxu0 0
    %4516 = vmatpush2.bf16.xpose.msra.mxu0 0
    %4517 = vmatprep.subr.bf16.mxu0 0
    %4518 = vmatpush2.bf16.xpose.msra.mxu0 0
    %4519 = vmatprep.subr.bf16.mxu0 0
    %4520 = vmatpush2.bf16.xpose.msra.mxu0 0
    %4521 = vmatprep.mubr.bf16.mxu0 0
    %4522 = vmatmul.mubr.bf16.gmra.mxu0 %v4484
    %v4523 = vpop.f32.mrf.mxu0
    %v4524 = vadd.f32 0.0, %v4523
    %v4525 = vpop.f32.mrf.mxu0
    %v4526 = vpop.f32.mrf.mxu0
    %v4527 = vpop.f32.mrf.mxu0
    %4528 = vdwg.mxu0
    %v4529 = vsel %vm539, %v4524, -inf
    %4530 = vmax.xlane.f32.xlu0 %v4529
    %v4531 = vpop.xlane.xlu0 %4530
    %v4532 = vsub.f32 %v4524, %v4531
    %v4533 = vmul.f32 %v4532, 1.442695
    %v4534 = vpow.pop %v4533
    %v4535 = vsel %vm539, %v4534, 0.0
    %4536 = vadd.xlane.f32.xlu0 %v4535
    %v4537 = vpop.xlane.xlu0 %4536
    %v4538 = vrcp.pop %v4537
    %v4539 = vmul.f32 %v4534, %v4538
    %v4540 = vpack.c.bf16 %v4539, %v4539
    %4541 = vrot.lane.b32.xlu0 %v3882, 32
    %v4542 = vpop.permute.xlu0 %4541
    %v4544 = vsel %vm539, %v4540, 0
    %v4547 = vsel %vm555, %v4542, 0
    %4549 = vmatprep.subr.bf16.mxu0 0
    %4550 = vmatpush1.bf16.msra.mxu0 0
    %4551 = vmatprep.subr.bf16.mxu0 0
    %4552 = vmatpush1.bf16.msra.mxu0 0
    %4553 = vmatprep.subr.bf16.mxu0 0
    %4554 = vmatpush1.bf16.msra.mxu0 0
    %4555 = vmatprep.subr.bf16.mxu0 0
    %4556 = vmatpush1.bf16.msra.mxu0 0
    %4557 = vmatprep.subr.bf16.mxu0 0
    %4558 = vmatpush1.bf16.msra.mxu0 0
    %4559 = vmatprep.subr.bf16.mxu0 0
    %4560 = vmatpush1.bf16.msra.mxu0 0
    %4561 = vmatprep.subr.bf16.mxu0 0
    %4562 = vmatpush1.bf16.msra.mxu0 0
    %4563 = vmatprep.subr.bf16.mxu0 0
    %4564 = vmatpush1.bf16.msra.mxu0 %v4547
    %4565 = vmatprep.subr.bf16.mxu0 0
    %4566 = vmatpush2.bf16.msra.mxu0 0
    %4567 = vmatprep.subr.bf16.mxu0 0
    %4568 = vmatpush2.bf16.msra.mxu0 0
    %4569 = vmatprep.subr.bf16.mxu0 0
    %4570 = vmatpush2.bf16.msra.mxu0 0
    %4571 = vmatprep.subr.bf16.mxu0 0
    %4572 = vmatpush2.bf16.msra.mxu0 0
    %4573 = vmatprep.subr.bf16.mxu0 0
    %4574 = vmatpush2.bf16.msra.mxu0 0
    %4575 = vmatprep.subr.bf16.mxu0 0
    %4576 = vmatpush2.bf16.msra.mxu0 0
    %4577 = vmatprep.subr.bf16.mxu0 0
    %4578 = vmatpush2.bf16.msra.mxu0 0
    %4579 = vmatprep.subr.bf16.mxu0 0
    %4580 = vmatpush2.bf16.msra.mxu0 0
    %4581 = vmatprep.mubr.bf16.mxu0 0
    %4582 = vmatmul.mubr.bf16.gmra.mxu0 %v4544
    %v4583 = vpop.f32.mrf.mxu0
    %v4584 = vadd.f32 0.0, %v4583
    %v4585 = vpop.f32.mrf.mxu0
    %v4586 = vpop.f32.mrf.mxu0
    %v4587 = vpop.f32.mrf.mxu0
    %4588 = vdwg.mxu0
    %4589 = vrot.lane.b32.xlu0 %v3822, 16
    %v4590 = vpop.permute.xlu0 %4589
    %4591 = vrot.lane.b32.xlu0 %v3823, 16
    %v4592 = vpop.permute.xlu0 %4591
    %v4594 = vsel %vm492, %v4590, 0
    %v4597 = vsel %vm492, %v4592, 0
    %4599 = vmatprep.subr.bf16.mxu0 0
    %4600 = vmatpush1.bf16.xpose.msra.mxu0 0
    %4601 = vmatprep.subr.bf16.mxu0 0
    %4602 = vmatpush1.bf16.xpose.msra.mxu0 0
    %4603 = vmatprep.subr.bf16.mxu0 0
    %4604 = vmatpush1.bf16.xpose.msra.mxu0 0
    %4605 = vmatprep.subr.bf16.mxu0 0
    %4606 = vmatpush1.bf16.xpose.msra.mxu0 0
    %4607 = vmatprep.subr.bf16.mxu0 0
    %4608 = vmatpush1.bf16.xpose.msra.mxu0 0
    %4609 = vmatprep.subr.bf16.mxu0 0
    %4610 = vmatpush1.bf16.xpose.msra.mxu0 0
    %4611 = vmatprep.subr.bf16.mxu0 0
    %4612 = vmatpush1.bf16.xpose.msra.mxu0 0
    %4613 = vmatprep.subr.bf16.mxu0 0
    %4614 = vmatpush1.bf16.xpose.msra.mxu0 %v4597
    %4615 = vmatprep.subr.bf16.mxu0 0
    %4616 = vmatpush2.bf16.xpose.msra.mxu0 0
    %4617 = vmatprep.subr.bf16.mxu0 0
    %4618 = vmatpush2.bf16.xpose.msra.mxu0 0
    %4619 = vmatprep.subr.bf16.mxu0 0
    %4620 = vmatpush2.bf16.xpose.msra.mxu0 0
    %4621 = vmatprep.subr.bf16.mxu0 0
    %4622 = vmatpush2.bf16.xpose.msra.mxu0 0
    %4623 = vmatprep.subr.bf16.mxu0 0
    %4624 = vmatpush2.bf16.xpose.msra.mxu0 0
    %4625 = vmatprep.subr.bf16.mxu0 0
    %4626 = vmatpush2.bf16.xpose.msra.mxu0 0
    %4627 = vmatprep.subr.bf16.mxu0 0
    %4628 = vmatpush2.bf16.xpose.msra.mxu0 0
    %4629 = vmatprep.subr.bf16.mxu0 0
    %4630 = vmatpush2.bf16.xpose.msra.mxu0 0
    %4631 = vmatprep.mubr.bf16.mxu0 0
    %4632 = vmatmul.mubr.bf16.gmra.mxu0 %v4594
    %v4633 = vpop.f32.mrf.mxu0
    %v4634 = vadd.f32 0.0, %v4633
    %v4635 = vpop.f32.mrf.mxu0
    %v4636 = vpop.f32.mrf.mxu0
    %v4637 = vpop.f32.mrf.mxu0
    %4638 = vdwg.mxu0
    %v4639 = vsel %vm539, %v4634, -inf
    %4640 = vmax.xlane.f32.xlu0 %v4639
    %v4641 = vpop.xlane.xlu0 %4640
    %v4642 = vsub.f32 %v4634, %v4641
    %v4643 = vmul.f32 %v4642, 1.442695
    %v4644 = vpow.pop %v4643
    %v4645 = vsel %vm539, %v4644, 0.0
    %4646 = vadd.xlane.f32.xlu0 %v4645
    %v4647 = vpop.xlane.xlu0 %4646
    %v4648 = vrcp.pop %v4647
    %v4649 = vmul.f32 %v4644, %v4648
    %v4650 = vpack.c.bf16 %v4649, %v4649
    %4651 = vrot.lane.b32.xlu0 %v3882, 16
    %v4652 = vpop.permute.xlu0 %4651
    %v4654 = vsel %vm539, %v4650, 0
    %v4657 = vsel %vm555, %v4652, 0
    %4659 = vmatprep.subr.bf16.mxu0 0
    %4660 = vmatpush1.bf16.msra.mxu0 0
    %4661 = vmatprep.subr.bf16.mxu0 0
    %4662 = vmatpush1.bf16.msra.mxu0 0
    %4663 = vmatprep.subr.bf16.mxu0 0
    %4664 = vmatpush1.bf16.msra.mxu0 0
    %4665 = vmatprep.subr.bf16.mxu0 0
    %4666 = vmatpush1.bf16.msra.mxu0 0
    %4667 = vmatprep.subr.bf16.mxu0 0
    %4668 = vmatpush1.bf16.msra.mxu0 0
    %4669 = vmatprep.subr.bf16.mxu0 0
    %4670 = vmatpush1.bf16.msra.mxu0 0
    %4671 = vmatprep.subr.bf16.mxu0 0
    %4672 = vmatpush1.bf16.msra.mxu0 0
    %4673 = vmatprep.subr.bf16.mxu0 0
    %4674 = vmatpush1.bf16.msra.mxu0 %v4657
    %4675 = vmatprep.subr.bf16.mxu0 0
    %4676 = vmatpush2.bf16.msra.mxu0 0
    %4677 = vmatprep.subr.bf16.mxu0 0
    %4678 = vmatpush2.bf16.msra.mxu0 0
    %4679 = vmatprep.subr.bf16.mxu0 0
    %4680 = vmatpush2.bf16.msra.mxu0 0
    %4681 = vmatprep.subr.bf16.mxu0 0
    %4682 = vmatpush2.bf16.msra.mxu0 0
    %4683 = vmatprep.subr.bf16.mxu0 0
    %4684 = vmatpush2.bf16.msra.mxu0 0
    %4685 = vmatprep.subr.bf16.mxu0 0
    %4686 = vmatpush2.bf16.msra.mxu0 0
    %4687 = vmatprep.subr.bf16.mxu0 0
    %4688 = vmatpush2.bf16.msra.mxu0 0
    %4689 = vmatprep.subr.bf16.mxu0 0
    %4690 = vmatpush2.bf16.msra.mxu0 0
    %4691 = vmatprep.mubr.bf16.mxu0 0
    %4692 = vmatmul.mubr.bf16.gmra.mxu0 %v4654
    %v4693 = vpop.f32.mrf.mxu0
    %v4694 = vadd.f32 0.0, %v4693
    %v4695 = vpop.f32.mrf.mxu0
    %v4696 = vpop.f32.mrf.mxu0
    %v4697 = vpop.f32.mrf.mxu0
    %4698 = vdwg.mxu0
    %v4700 = vsel %vm492, %v3044, 0
    %v4703 = vsel %vm492, %v3157, 0
    %v4706 = vsel %vm492, %v3267, 0
    %v4709 = vsel %vm492, %v3377, 0
    %v4712 = vsel %vm492, %v3487, 0
    %v4715 = vsel %vm492, %v3597, 0
    %v4718 = vsel %vm492, %v3707, 0
    %v4721 = vsel %vm492, %v3817, 0
    %v4724 = vsel %vm492, %v3924, 0
    %v4727 = vsel %vm492, %v4034, 0
    %v4730 = vsel %vm492, %v4144, 0
    %v4733 = vsel %vm492, %v4254, 0
    %v4736 = vsel %vm492, %v4364, 0
    %v4739 = vsel %vm492, %v4474, 0
    %v4742 = vsel %vm492, %v4584, 0
    %v4745 = vsel %vm492, %v4694, 0
    %4747 = vmatprep.subr.mxu0 0.0
    %4748 = vmatpush1.msra.mxu0 0.0
    %4749 = vmatprep.subr.mxu0 0.0
    %4750 = vmatpush1.msra.mxu0 0.0
    %4751 = vmatprep.subr.mxu0 0.0
    %4752 = vmatpush1.msra.mxu0 0.0
    %4753 = vmatprep.subr.mxu0 0.0
    %4754 = vmatpush1.msra.mxu0 0.0
    %4755 = vmatprep.subr.mxu0 0.0
    %4756 = vmatpush1.msra.mxu0 0.0
    %4757 = vmatprep.subr.mxu0 0.0
    %4758 = vmatpush1.msra.mxu0 0.0
    %4759 = vmatprep.subr.mxu0 0.0
    %4760 = vmatpush1.msra.mxu0 0.0
    %4761 = vmatprep.subr.mxu0 0.0
    %4762 = vmatpush1.msra.mxu0 0.0
    %4763 = vmatprep.subr.mxu0 0.0
    %4764 = vmatpush1.msra.mxu0 0.0
    %4765 = vmatprep.subr.mxu0 0.0
    %4766 = vmatpush1.msra.mxu0 0.0
    %4767 = vmatprep.subr.mxu0 0.0
    %4768 = vmatpush1.msra.mxu0 0.0
    %4769 = vmatprep.subr.mxu0 0.0
    %4770 = vmatpush1.msra.mxu0 0.0
    %4771 = vmatprep.subr.mxu0 0.0
    %4772 = vmatpush1.msra.mxu0 0.0
    %4773 = vmatprep.subr.mxu0 0.0
    %4774 = vmatpush1.msra.mxu0 0.0
    %4775 = vmatprep.subr.mxu0 0.0
    %4776 = vmatpush1.msra.mxu0 %v206
    %4777 = vmatprep.subr.mxu0 0.0
    %4778 = vmatpush1.msra.mxu0 %v205
    %4779 = vmatprep.subr.mxu0 0.0
    %4780 = vmatpush2.msra.mxu0 0.0
    %4781 = vmatprep.subr.mxu0 0.0
    %4782 = vmatpush2.msra.mxu0 0.0
    %4783 = vmatprep.subr.mxu0 0.0
    %4784 = vmatpush2.msra.mxu0 0.0
    %4785 = vmatprep.subr.mxu0 0.0
    %4786 = vmatpush2.msra.mxu0 0.0
    %4787 = vmatprep.subr.mxu0 0.0
    %4788 = vmatpush2.msra.mxu0 0.0
    %4789 = vmatprep.subr.mxu0 0.0
    %4790 = vmatpush2.msra.mxu0 0.0
    %4791 = vmatprep.subr.mxu0 0.0
    %4792 = vmatpush2.msra.mxu0 0.0
    %4793 = vmatprep.subr.mxu0 0.0
    %4794 = vmatpush2.msra.mxu0 0.0
    %4795 = vmatprep.subr.mxu0 0.0
    %4796 = vmatpush2.msra.mxu0 0.0
    %4797 = vmatprep.subr.mxu0 0.0
    %4798 = vmatpush2.msra.mxu0 0.0
    %4799 = vmatprep.subr.mxu0 0.0
    %4800 = vmatpush2.msra.mxu0 0.0
    %4801 = vmatprep.subr.mxu0 0.0
    %4802 = vmatpush2.msra.mxu0 0.0
    %4803 = vmatprep.subr.mxu0 0.0
    %4804 = vmatpush2.msra.mxu0 0.0
    %4805 = vmatprep.subr.mxu0 0.0
    %4806 = vmatpush2.msra.mxu0 0.0
    %4807 = vmatprep.subr.mxu0 0.0
    %4808 = vmatpush2.msra.mxu0 0.0
    %4809 = vmatprep.subr.mxu0 0.0
    %4810 = vmatpush2.msra.mxu0 0.0
    %4811 = vmatprep.mubr.f32.mxu0 0.0
    %4812 = vmatmul.mubr.f32.gmra.mxu0 %v4700
    %v4813 = vpop.f32.mrf.mxu0
    %v4814 = vadd.f32 0.0, %v4813
    %v4815 = vpop.f32.mrf.mxu0
    %4816 = vmatprep.mubr.f32.mxu0 0.0
    %4817 = vmatmul.mubr.f32.gmra.mxu0 %v4703
    %v4818 = vpop.f32.mrf.mxu0
    %v4819 = vadd.f32 0.0, %v4818
    %v4820 = vpop.f32.mrf.mxu0
    %4821 = vmatprep.mubr.f32.mxu0 0.0
    %4822 = vmatmul.mubr.f32.gmra.mxu0 %v4706
    %v4823 = vpop.f32.mrf.mxu0
    %v4824 = vadd.f32 0.0, %v4823
    %v4825 = vpop.f32.mrf.mxu0
    %4826 = vmatprep.mubr.f32.mxu0 0.0
    %4827 = vmatmul.mubr.f32.gmra.mxu0 %v4709
    %v4828 = vpop.f32.mrf.mxu0
    %v4829 = vadd.f32 0.0, %v4828
    %v4830 = vpop.f32.mrf.mxu0
    %4831 = vmatprep.mubr.f32.mxu0 0.0
    %4832 = vmatmul.mubr.f32.gmra.mxu0 %v4712
    %v4833 = vpop.f32.mrf.mxu0
    %v4834 = vadd.f32 0.0, %v4833
    %v4835 = vpop.f32.mrf.mxu0
    %4836 = vmatprep.mubr.f32.mxu0 0.0
    %4837 = vmatmul.mubr.f32.gmra.mxu0 %v4715
    %v4838 = vpop.f32.mrf.mxu0
    %v4839 = vadd.f32 0.0, %v4838
    %v4840 = vpop.f32.mrf.mxu0
    %4841 = vmatprep.mubr.f32.mxu0 0.0
    %4842 = vmatmul.mubr.f32.gmra.mxu0 %v4718
    %v4843 = vpop.f32.mrf.mxu0
    %v4844 = vadd.f32 0.0, %v4843
    %v4845 = vpop.f32.mrf.mxu0
    %4846 = vmatprep.mubr.f32.mxu0 0.0
    %4847 = vmatmul.mubr.f32.gmra.mxu0 %v4721
    %v4848 = vpop.f32.mrf.mxu0
    %v4849 = vadd.f32 0.0, %v4848
    %v4850 = vpop.f32.mrf.mxu0
    %4851 = vmatprep.mubr.f32.mxu0 0.0
    %4852 = vmatmul.mubr.f32.gmra.mxu0 %v4724
    %v4853 = vpop.f32.mrf.mxu0
    %v4854 = vadd.f32 0.0, %v4853
    %v4855 = vpop.f32.mrf.mxu0
    %4856 = vmatprep.mubr.f32.mxu0 0.0
    %4857 = vmatmul.mubr.f32.gmra.mxu0 %v4727
    %v4858 = vpop.f32.mrf.mxu0
    %v4859 = vadd.f32 0.0, %v4858
    %v4860 = vpop.f32.mrf.mxu0
    %4861 = vmatprep.mubr.f32.mxu0 0.0
    %4862 = vmatmul.mubr.f32.gmra.mxu0 %v4730
    %v4863 = vpop.f32.mrf.mxu0
    %v4864 = vadd.f32 0.0, %v4863
    %v4865 = vpop.f32.mrf.mxu0
    %4866 = vmatprep.mubr.f32.mxu0 0.0
    %4867 = vmatmul.mubr.f32.gmra.mxu0 %v4733
    %v4868 = vpop.f32.mrf.mxu0
    %v4869 = vadd.f32 0.0, %v4868
    %v4870 = vpop.f32.mrf.mxu0
    %4871 = vmatprep.mubr.f32.mxu0 0.0
    %4872 = vmatmul.mubr.f32.gmra.mxu0 %v4736
    %v4873 = vpop.f32.mrf.mxu0
    %v4874 = vadd.f32 0.0, %v4873
    %v4875 = vpop.f32.mrf.mxu0
    %4876 = vmatprep.mubr.f32.mxu0 0.0
    %4877 = vmatmul.mubr.f32.gmra.mxu0 %v4739
    %v4878 = vpop.f32.mrf.mxu0
    %v4879 = vadd.f32 0.0, %v4878
    %v4880 = vpop.f32.mrf.mxu0
    %4881 = vmatprep.mubr.f32.mxu0 0.0
    %4882 = vmatmul.mubr.f32.gmra.mxu0 %v4742
    %v4883 = vpop.f32.mrf.mxu0
    %v4884 = vadd.f32 0.0, %v4883
    %v4885 = vpop.f32.mrf.mxu0
    %4886 = vmatprep.mubr.f32.mxu0 0.0
    %4887 = vmatmul.mubr.f32.gmra.mxu0 %v4745
    %v4888 = vpop.f32.mrf.mxu0
    %v4889 = vadd.f32 0.0, %v4888
    %v4890 = vpop.f32.mrf.mxu0
    %4891 = vdwg.mxu0
    %v4892 = vmul.f32 %v4814, %v207
    %v4893 = vmul.f32 %v4819, %v208
    %v4894 = vmul.f32 %v4824, %v209
    %v4895 = vmul.f32 %v4829, %v210
    %v4896 = vmul.f32 %v4834, %v211
    %v4897 = vmul.f32 %v4839, %v212
    %v4898 = vmul.f32 %v4844, %v213
    %v4899 = vmul.f32 %v4849, %v214
    %v4900 = vmul.f32 %v4854, %v215
    %v4901 = vmul.f32 %v4859, %v216
    %v4902 = vmul.f32 %v4864, %v217
    %v4903 = vmul.f32 %v4869, %v218
    %v4904 = vmul.f32 %v4874, %v219
    %v4905 = vmul.f32 %v4879, %v220
    %v4906 = vmul.f32 %v4884, %v221
    %v4907 = vmul.f32 %v4889, %v222
    %4908 = vmatprep.subr.mxu0 0.0
    %4909 = vmatpush1.msra.mxu0 %v4907
    %4910 = vmatprep.subr.mxu0 0.0
    %4911 = vmatpush1.msra.mxu0 %v4906
    %4912 = vmatprep.subr.mxu0 0.0
    %4913 = vmatpush1.msra.mxu0 %v4905
    %4914 = vmatprep.subr.mxu0 0.0
    %4915 = vmatpush1.msra.mxu0 %v4904
    %4916 = vmatprep.subr.mxu0 0.0
    %4917 = vmatpush1.msra.mxu0 %v4903
    %4918 = vmatprep.subr.mxu0 0.0
    %4919 = vmatpush1.msra.mxu0 %v4902
    %4920 = vmatprep.subr.mxu0 0.0
    %4921 = vmatpush1.msra.mxu0 %v4901
    %4922 = vmatprep.subr.mxu0 0.0
    %4923 = vmatpush1.msra.mxu0 %v4900
    %4924 = vmatprep.subr.mxu0 0.0
    %4925 = vmatpush1.msra.mxu0 %v4899
    %4926 = vmatprep.subr.mxu0 0.0
    %4927 = vmatpush1.msra.mxu0 %v4898
    %4928 = vmatprep.subr.mxu0 0.0
    %4929 = vmatpush1.msra.mxu0 %v4897
    %4930 = vmatprep.subr.mxu0 0.0
    %4931 = vmatpush1.msra.mxu0 %v4896
    %4932 = vmatprep.subr.mxu0 0.0
    %4933 = vmatpush1.msra.mxu0 %v4895
    %4934 = vmatprep.subr.mxu0 0.0
    %4935 = vmatpush1.msra.mxu0 %v4894
    %4936 = vmatprep.subr.mxu0 0.0
    %4937 = vmatpush1.msra.mxu0 %v4893
    %4938 = vmatprep.subr.mxu0 0.0
    %4939 = vmatpush1.msra.mxu0 %v4892
    %4940 = vmatprep.subr.mxu0 0.0
    %4941 = vmatpush2.msra.mxu0 0.0
    %4942 = vmatprep.subr.mxu0 0.0
    %4943 = vmatpush2.msra.mxu0 0.0
    %4944 = vmatprep.subr.mxu0 0.0
    %4945 = vmatpush2.msra.mxu0 0.0
    %4946 = vmatprep.subr.mxu0 0.0
    %4947 = vmatpush2.msra.mxu0 0.0
    %4948 = vmatprep.subr.mxu0 0.0
    %4949 = vmatpush2.msra.mxu0 0.0
    %4950 = vmatprep.subr.mxu0 0.0
    %4951 = vmatpush2.msra.mxu0 0.0
    %4952 = vmatprep.subr.mxu0 0.0
    %4953 = vmatpush2.msra.mxu0 0.0
    %4954 = vmatprep.subr.mxu0 0.0
    %4955 = vmatpush2.msra.mxu0 0.0
    %4956 = vmatprep.subr.mxu0 0.0
    %4957 = vmatpush2.msra.mxu0 0.0
    %4958 = vmatprep.subr.mxu0 0.0
    %4959 = vmatpush2.msra.mxu0 0.0
    %4960 = vmatprep.subr.mxu0 0.0
    %4961 = vmatpush2.msra.mxu0 0.0
    %4962 = vmatprep.subr.mxu0 0.0
    %4963 = vmatpush2.msra.mxu0 0.0
    %4964 = vmatprep.subr.mxu0 0.0
    %4965 = vmatpush2.msra.mxu0 0.0
    %4966 = vmatprep.subr.mxu0 0.0
    %4967 = vmatpush2.msra.mxu0 0.0
    %4968 = vmatprep.subr.mxu0 0.0
    %4969 = vmatpush2.msra.mxu0 0.0
    %4970 = vmatprep.subr.mxu0 0.0
    %4971 = vmatpush2.msra.mxu0 0.0
    %4972 = vmatprep.mubr.f32.mxu0 0.0
    %4973 = vmatmul.mubr.f32.gmra.mxu0 %v223
    %v4974 = vpop.f32.mrf.mxu0
    %v4975 = vadd.f32 0.0, %v4974
    %v4976 = vpop.f32.mrf.mxu0
    %4977 = vmatprep.mubr.f32.mxu0 0.0
    %4978 = vmatmul.mubr.f32.gmra.mxu0 %v224
    %v4979 = vpop.f32.mrf.mxu0
    %v4980 = vadd.f32 0.0, %v4979
    %v4981 = vpop.f32.mrf.mxu0
    %4982 = vdwg.mxu0
    %v4983 = vpack.c.bf16 %v4980, %v4975
    %v4984 = vld [vmem:[#allocation13] sm:$0xf]
    %v4985 = vld [vmem:[#allocation13 + $0x4] sm:$0xf]
    %v4986 = vld [vmem:[#allocation13 + $0x8] sm:$0xf]
    %v4987 = vld [vmem:[#allocation13 + $0xc] sm:$0xf]
    %v4988 = vld [vmem:[#allocation13 + $0x10] sm:$0xf]
    %v4989 = vld [vmem:[#allocation13 + $0x14] sm:$0xf]
    %v4990 = vld [vmem:[#allocation13 + $0x18] sm:$0xf]
    %v4991 = vld [vmem:[#allocation13 + $0x1c] sm:$0xf]
    %v4992 = vld [vmem:[#allocation13 + $0x20] sm:$0xf]
    %v4993 = vld [vmem:[#allocation13 + $0x24] sm:$0xf]
    %v4994 = vld [vmem:[#allocation13 + $0x28] sm:$0xf]
    %v4995 = vld [vmem:[#allocation13 + $0x2c] sm:$0xf]
    %v4996 = vld [vmem:[#allocation13 + $0x30] sm:$0xf]
    %v4997 = vld [vmem:[#allocation13 + $0x34] sm:$0xf]
    %v4998 = vld [vmem:[#allocation13 + $0x38] sm:$0xf]
    %v4999 = vld [vmem:[#allocation13 + $0x3c] sm:$0xf]
    %v5000 = vlaneseq
    %v5001 = vshrl.u32 %v5000, 7
    %v5002 = vsub.s32 1, %v5001
    %v5003 = vrot.slane %v204, %v5002
    %v5020 = vunpack.c.l.b16 %v4984
    %v5021 = vunpack.c.l.b16 %v4985
    %v5022 = vunpack.c.l.b16 %v4986
    %v5023 = vunpack.c.l.b16 %v4987
    %v5024 = vunpack.c.l.b16 %v4988
    %v5025 = vunpack.c.l.b16 %v4989
    %v5026 = vunpack.c.l.b16 %v4990
    %v5027 = vunpack.c.l.b16 %v4991
    %v5028 = vunpack.c.l.b16 %v4992
    %v5029 = vunpack.c.l.b16 %v4993
    %v5030 = vunpack.c.l.b16 %v4994
    %v5031 = vunpack.c.l.b16 %v4995
    %v5032 = vunpack.c.l.b16 %v4996
    %v5033 = vunpack.c.l.b16 %v4997
    %v5034 = vunpack.c.l.b16 %v4998
    %v5035 = vunpack.c.l.b16 %v4999
    %v5036 = vpack.c.b16 %v5021, %v5020
    %v5037 = vpack.c.b16 %v5023, %v5022
    %v5038 = vpack.c.b16 %v5025, %v5024
    %v5039 = vpack.c.b16 %v5027, %v5026
    %v5040 = vpack.c.b16 %v5029, %v5028
    %v5041 = vpack.c.b16 %v5031, %v5030
    %v5042 = vpack.c.b16 %v5033, %v5032
    %v5043 = vpack.c.b16 %v5035, %v5034
    %5052 = vmatprep.subr.bf16.mxu0 0
    %5053 = vmatpush1.bf16.msra.mxu0 %v5043
    %5054 = vmatprep.subr.bf16.mxu0 0
    %5055 = vmatpush1.bf16.msra.mxu0 %v5042
    %5056 = vmatprep.subr.bf16.mxu0 0
    %5057 = vmatpush1.bf16.msra.mxu0 %v5041
    %5058 = vmatprep.subr.bf16.mxu0 0
    %5059 = vmatpush1.bf16.msra.mxu0 %v5040
    %5060 = vmatprep.subr.bf16.mxu0 0
    %5061 = vmatpush1.bf16.msra.mxu0 %v5039
    %5062 = vmatprep.subr.bf16.mxu0 0
    %5063 = vmatpush1.bf16.msra.mxu0 %v5038
    %5064 = vmatprep.subr.bf16.mxu0 0
    %5065 = vmatpush1.bf16.msra.mxu0 %v5037
    %5066 = vmatprep.subr.bf16.mxu0 0
    %5067 = vmatpush1.bf16.msra.mxu0 %v5036
    %5068 = vmatprep.subr.bf16.mxu0 0
    %5069 = vmatpush2.bf16.msra.mxu0 0
    %5070 = vmatprep.subr.bf16.mxu0 0
    %5071 = vmatpush2.bf16.msra.mxu0 0
    %5072 = vmatprep.subr.bf16.mxu0 0
    %5073 = vmatpush2.bf16.msra.mxu0 0
    %5074 = vmatprep.subr.bf16.mxu0 0
    %5075 = vmatpush2.bf16.msra.mxu0 0
    %5076 = vmatprep.subr.bf16.mxu0 0
    %5077 = vmatpush2.bf16.msra.mxu0 0
    %5078 = vmatprep.subr.bf16.mxu0 0
    %5079 = vmatpush2.bf16.msra.mxu0 0
    %5080 = vmatprep.subr.bf16.mxu0 0
    %5081 = vmatpush2.bf16.msra.mxu0 0
    %5082 = vmatprep.subr.bf16.mxu0 0
    %5083 = vmatpush2.bf16.msra.mxu0 0
    %5084 = vmatprep.mubr.bf16.mxu0 0
    %5085 = vmatmul.mubr.bf16.gmra.mxu0 %v4983
    %v5086 = vpop.f32.mrf.mxu0
    %v5087 = vadd.f32 %v5003, %v5086
    %v5088 = vpop.f32.mrf.mxu0
    %v5089 = vpop.f32.mrf.mxu0
    %v5090 = vadd.f32 %v5003, %v5089
    %v5091 = vpop.f32.mrf.mxu0
    %5092 = vdwg.mxu0
    %v5093 = vadd.f32 %v5087, %v2678
    %v5094 = vadd.f32 %v5090, %v2679
    %5095 = vadd.xlane.f32.xlu0 %v5093
    %v5096 = vpop.xlane.xlu0 %5095
    %5097 = vadd.xlane.f32.xlu0 %v5094
    %v5098 = vpop.xlane.xlu0 %5097
    %v5099 = vmul.f32 %v5096, %v2649
    %v5100 = vmul.f32 %v5098, %v2649
    %v5101 = vsub.f32 %v5093, %v5099
    %v5102 = vsub.f32 %v5094, %v5100
    %v5103 = vmul.f32 %v5101, %v5101
    %v5104 = vmul.f32 %v5102, %v5102
    %5105 = vadd.xlane.f32.xlu0 %v5103
    %v5106 = vpop.xlane.xlu0 %5105
    %5107 = vadd.xlane.f32.xlu0 %v5104
    %v5108 = vpop.xlane.xlu0 %5107
    %v5109 = vmul.f32 %v5106, %v2649
    %v5110 = vmul.f32 %v5108, %v2649
    %v5111 = vadd.f32 %v5109, 1e-05
    %v5112 = vadd.f32 %v5110, 1e-05
    %v5113 = vrsqrt.pop %v5111
    %v5114 = vrsqrt.pop %v5112
    %v5115 = vmul.f32 %v5101, %v5113
    %v5116 = vmul.f32 %v5102, %v5114
    %v5117 = vlaneseq
    %v5118 = vshrl.u32 %v5117, 7
    %v5119 = vsub.s32 2, %v5118
    %v5120 = vrot.slane %v204, %v5119
    %v5121 = vmul.f32 %v5115, %v5120
    %v5122 = vmul.f32 %v5116, %v5120
    %v5123 = vlaneseq
    %v5124 = vshrl.u32 %v5123, 7
    %v5125 = vsub.s32 3, %v5124
    %v5126 = vrot.slane %v204, %v5125
    %v5127 = vadd.f32 %v5121, %v5126
    %v5128 = vadd.f32 %v5122, %v5126
    %v5129 = vpack.c.bf16 %v5128, %v5127
    %v5130 = vld [vmem:[#allocation14] sm:$0xff]
    %v5131 = vld [vmem:[#allocation14 + $0x8] sm:$0xff]
    %v5132 = vld [vmem:[#allocation14 + $0x10] sm:$0xff]
    %v5133 = vld [vmem:[#allocation14 + $0x18] sm:$0xff]
    %v5134 = vld [vmem:[#allocation14 + $0x20] sm:$0xff]
    %v5135 = vld [vmem:[#allocation14 + $0x28] sm:$0xff]
    %v5136 = vld [vmem:[#allocation14 + $0x30] sm:$0xff]
    %v5137 = vld [vmem:[#allocation14 + $0x38] sm:$0xff]
    %v5138 = vld [vmem:[#allocation14 + $0x40] sm:$0xff]
    %v5139 = vld [vmem:[#allocation14 + $0x48] sm:$0xff]
    %v5140 = vld [vmem:[#allocation14 + $0x50] sm:$0xff]
    %v5141 = vld [vmem:[#allocation14 + $0x58] sm:$0xff]
    %v5142 = vld [vmem:[#allocation14 + $0x60] sm:$0xff]
    %v5143 = vld [vmem:[#allocation14 + $0x68] sm:$0xff]
    %v5144 = vld [vmem:[#allocation14 + $0x70] sm:$0xff]
    %v5145 = vld [vmem:[#allocation14 + $0x78] sm:$0xff]
    %v5146 = vld [vmem:[#allocation16] sm:$0x3]
    %v5148 = vlaneseq
    %v5149 = vshrl.u32 %v5148, 7
    %v5150 = vsub.s32 0, %v5149
    %v5151 = vrot.slane %v5146, %v5150
    %v5152 = vlaneseq
    %v5153 = vshrl.u32 %v5152, 7
    %v5154 = vsub.s32 1, %v5153
    %v5155 = vrot.slane %v5146, %v5154
    %v5174 = vunpack.c.l.b16 %v5130
    %v5175 = vunpack.c.h.b16 %v5130
    %v5176 = vunpack.c.l.b16 %v5131
    %v5177 = vunpack.c.h.b16 %v5131
    %v5178 = vunpack.c.l.b16 %v5132
    %v5179 = vunpack.c.h.b16 %v5132
    %v5180 = vunpack.c.l.b16 %v5133
    %v5181 = vunpack.c.h.b16 %v5133
    %v5182 = vunpack.c.l.b16 %v5134
    %v5183 = vunpack.c.h.b16 %v5134
    %v5184 = vunpack.c.l.b16 %v5135
    %v5185 = vunpack.c.h.b16 %v5135
    %v5186 = vunpack.c.l.b16 %v5136
    %v5187 = vunpack.c.h.b16 %v5136
    %v5188 = vunpack.c.l.b16 %v5137
    %v5189 = vunpack.c.h.b16 %v5137
    %v5190 = vunpack.c.l.b16 %v5138
    %v5191 = vunpack.c.h.b16 %v5138
    %v5192 = vunpack.c.l.b16 %v5139
    %v5193 = vunpack.c.h.b16 %v5139
    %v5194 = vunpack.c.l.b16 %v5140
    %v5195 = vunpack.c.h.b16 %v5140
    %v5196 = vunpack.c.l.b16 %v5141
    %v5197 = vunpack.c.h.b16 %v5141
    %v5198 = vunpack.c.l.b16 %v5142
    %v5199 = vunpack.c.h.b16 %v5142
    %v5200 = vunpack.c.l.b16 %v5143
    %v5201 = vunpack.c.h.b16 %v5143
    %v5202 = vunpack.c.l.b16 %v5144
    %v5203 = vunpack.c.h.b16 %v5144
    %v5204 = vunpack.c.l.b16 %v5145
    %v5205 = vunpack.c.h.b16 %v5145
    %v5206 = vpack.c.b16 %v5176, %v5174
    %v5207 = vpack.c.b16 %v5177, %v5175
    %v5208 = vpack.c.b16 %v5180, %v5178
    %v5209 = vpack.c.b16 %v5181, %v5179
    %v5210 = vpack.c.b16 %v5184, %v5182
    %v5211 = vpack.c.b16 %v5185, %v5183
    %v5212 = vpack.c.b16 %v5188, %v5186
    %v5213 = vpack.c.b16 %v5189, %v5187
    %v5214 = vpack.c.b16 %v5192, %v5190
    %v5215 = vpack.c.b16 %v5193, %v5191
    %v5216 = vpack.c.b16 %v5196, %v5194
    %v5217 = vpack.c.b16 %v5197, %v5195
    %v5218 = vpack.c.b16 %v5200, %v5198
    %v5219 = vpack.c.b16 %v5201, %v5199
    %v5220 = vpack.c.b16 %v5204, %v5202
    %v5221 = vpack.c.b16 %v5205, %v5203
    %5238 = vmatprep.subr.bf16.mxu0 %v5221
    %5239 = vmatpush1.bf16.msra.mxu0 %v5220
    %5240 = vmatprep.subr.bf16.mxu0 %v5219
    %5241 = vmatpush1.bf16.msra.mxu0 %v5218
    %5242 = vmatprep.subr.bf16.mxu0 %v5217
    %5243 = vmatpush1.bf16.msra.mxu0 %v5216
    %5244 = vmatprep.subr.bf16.mxu0 %v5215
    %5245 = vmatpush1.bf16.msra.mxu0 %v5214
    %5246 = vmatprep.subr.bf16.mxu0 %v5213
    %5247 = vmatpush1.bf16.msra.mxu0 %v5212
    %5248 = vmatprep.subr.bf16.mxu0 %v5211
    %5249 = vmatpush1.bf16.msra.mxu0 %v5210
    %5250 = vmatprep.subr.bf16.mxu0 %v5209
    %5251 = vmatpush1.bf16.msra.mxu0 %v5208
    %5252 = vmatprep.subr.bf16.mxu0 %v5207
    %5253 = vmatpush1.bf16.msra.mxu0 %v5206
    %5254 = vmatprep.subr.bf16.mxu0 0
    %5255 = vmatpush2.bf16.msra.mxu0 0
    %5256 = vmatprep.subr.bf16.mxu0 0
    %5257 = vmatpush2.bf16.msra.mxu0 0
    %5258 = vmatprep.subr.bf16.mxu0 0
    %5259 = vmatpush2.bf16.msra.mxu0 0
    %5260 = vmatprep.subr.bf16.mxu0 0
    %5261 = vmatpush2.bf16.msra.mxu0 0
    %5262 = vmatprep.subr.bf16.mxu0 0
    %5263 = vmatpush2.bf16.msra.mxu0 0
    %5264 = vmatprep.subr.bf16.mxu0 0
    %5265 = vmatpush2.bf16.msra.mxu0 0
    %5266 = vmatprep.subr.bf16.mxu0 0
    %5267 = vmatpush2.bf16.msra.mxu0 0
    %5268 = vmatprep.subr.bf16.mxu0 0
    %5269 = vmatpush2.bf16.msra.mxu0 0
    %5270 = vmatprep.mubr.bf16.mxu0 0
    %5271 = vmatmul.mubr.bf16.gmra.mxu0 %v5129
    %v5272 = vpop.f32.mrf.mxu0
    %v5273 = vadd.f32 %v5151, %v5272
    %v5274 = vpop.f32.mrf.mxu0
    %v5275 = vadd.f32 %v5155, %v5274
    %v5276 = vpop.f32.mrf.mxu0
    %v5277 = vadd.f32 %v5151, %v5276
    %v5278 = vpop.f32.mrf.mxu0
    %v5279 = vadd.f32 %v5155, %v5278
    %5280 = vdwg.mxu0
    %v5281 = vmax.f32 %v5273, 0.0
    %v5282 = vmax.f32 %v5275, 0.0
    %v5283 = vmax.f32 %v5277, 0.0
    %v5284 = vmax.f32 %v5279, 0.0
    %v5285 = vpack.c.bf16 %v5283, %v5281
    %v5286 = vpack.c.bf16 %v5284, %v5282
    %v5287 = vld [vmem:[#allocation17] sm:$0xf]
    %v5288 = vld [vmem:[#allocation17 + $0x4] sm:$0xf]
    %v5289 = vld [vmem:[#allocation17 + $0x8] sm:$0xf]
    %v5290 = vld [vmem:[#allocation17 + $0xc] sm:$0xf]
    %v5291 = vld [vmem:[#allocation17 + $0x10] sm:$0xf]
    %v5292 = vld [vmem:[#allocation17 + $0x14] sm:$0xf]
    %v5293 = vld [vmem:[#allocation17 + $0x18] sm:$0xf]
    %v5294 = vld [vmem:[#allocation17 + $0x1c] sm:$0xf]
    %v5295 = vld [vmem:[#allocation17 + $0x20] sm:$0xf]
    %v5296 = vld [vmem:[#allocation17 + $0x24] sm:$0xf]
    %v5297 = vld [vmem:[#allocation17 + $0x28] sm:$0xf]
    %v5298 = vld [vmem:[#allocation17 + $0x2c] sm:$0xf]
    %v5299 = vld [vmem:[#allocation17 + $0x30] sm:$0xf]
    %v5300 = vld [vmem:[#allocation17 + $0x34] sm:$0xf]
    %v5301 = vld [vmem:[#allocation17 + $0x38] sm:$0xf]
    %v5302 = vld [vmem:[#allocation17 + $0x3c] sm:$0xf]
    %v5303 = vld [vmem:[#allocation17 + $0x40] sm:$0xf]
    %v5304 = vld [vmem:[#allocation17 + $0x44] sm:$0xf]
    %v5305 = vld [vmem:[#allocation17 + $0x48] sm:$0xf]
    %v5306 = vld [vmem:[#allocation17 + $0x4c] sm:$0xf]
    %v5307 = vld [vmem:[#allocation17 + $0x50] sm:$0xf]
    %v5308 = vld [vmem:[#allocation17 + $0x54] sm:$0xf]
    %v5309 = vld [vmem:[#allocation17 + $0x58] sm:$0xf]
    %v5310 = vld [vmem:[#allocation17 + $0x5c] sm:$0xf]
    %v5311 = vld [vmem:[#allocation17 + $0x60] sm:$0xf]
    %v5312 = vld [vmem:[#allocation17 + $0x64] sm:$0xf]
    %v5313 = vld [vmem:[#allocation17 + $0x68] sm:$0xf]
    %v5314 = vld [vmem:[#allocation17 + $0x6c] sm:$0xf]
    %v5315 = vld [vmem:[#allocation17 + $0x70] sm:$0xf]
    %v5316 = vld [vmem:[#allocation17 + $0x74] sm:$0xf]
    %v5317 = vld [vmem:[#allocation17 + $0x78] sm:$0xf]
    %v5318 = vld [vmem:[#allocation17 + $0x7c] sm:$0xf]
    %v5319 = vlaneseq
    %v5320 = vshrl.u32 %v5319, 7
    %v5321 = vsub.s32 4, %v5320
    %v5322 = vrot.slane %v204, %v5321
    %v5355 = vunpack.c.l.b16 %v5287
    %v5356 = vunpack.c.l.b16 %v5288
    %v5357 = vunpack.c.l.b16 %v5289
    %v5358 = vunpack.c.l.b16 %v5290
    %v5359 = vunpack.c.l.b16 %v5291
    %v5360 = vunpack.c.l.b16 %v5292
    %v5361 = vunpack.c.l.b16 %v5293
    %v5362 = vunpack.c.l.b16 %v5294
    %v5363 = vunpack.c.l.b16 %v5295
    %v5364 = vunpack.c.l.b16 %v5296
    %v5365 = vunpack.c.l.b16 %v5297
    %v5366 = vunpack.c.l.b16 %v5298
    %v5367 = vunpack.c.l.b16 %v5299
    %v5368 = vunpack.c.l.b16 %v5300
    %v5369 = vunpack.c.l.b16 %v5301
    %v5370 = vunpack.c.l.b16 %v5302
    %v5371 = vunpack.c.l.b16 %v5303
    %v5372 = vunpack.c.l.b16 %v5304
    %v5373 = vunpack.c.l.b16 %v5305
    %v5374 = vunpack.c.l.b16 %v5306
    %v5375 = vunpack.c.l.b16 %v5307
    %v5376 = vunpack.c.l.b16 %v5308
    %v5377 = vunpack.c.l.b16 %v5309
    %v5378 = vunpack.c.l.b16 %v5310
    %v5379 = vunpack.c.l.b16 %v5311
    %v5380 = vunpack.c.l.b16 %v5312
    %v5381 = vunpack.c.l.b16 %v5313
    %v5382 = vunpack.c.l.b16 %v5314
    %v5383 = vunpack.c.l.b16 %v5315
    %v5384 = vunpack.c.l.b16 %v5316
    %v5385 = vunpack.c.l.b16 %v5317
    %v5386 = vunpack.c.l.b16 %v5318
    %v5387 = vpack.c.b16 %v5356, %v5355
    %v5388 = vpack.c.b16 %v5358, %v5357
    %v5389 = vpack.c.b16 %v5360, %v5359
    %v5390 = vpack.c.b16 %v5362, %v5361
    %v5391 = vpack.c.b16 %v5364, %v5363
    %v5392 = vpack.c.b16 %v5366, %v5365
    %v5393 = vpack.c.b16 %v5368, %v5367
    %v5394 = vpack.c.b16 %v5370, %v5369
    %v5395 = vpack.c.b16 %v5372, %v5371
    %v5396 = vpack.c.b16 %v5374, %v5373
    %v5397 = vpack.c.b16 %v5376, %v5375
    %v5398 = vpack.c.b16 %v5378, %v5377
    %v5399 = vpack.c.b16 %v5380, %v5379
    %v5400 = vpack.c.b16 %v5382, %v5381
    %v5401 = vpack.c.b16 %v5384, %v5383
    %v5402 = vpack.c.b16 %v5386, %v5385
    %5419 = vmatprep.subr.bf16.mxu0 0
    %5420 = vmatpush1.bf16.msra.mxu0 %v5394
    %5421 = vmatprep.subr.bf16.mxu0 0
    %5422 = vmatpush1.bf16.msra.mxu0 %v5393
    %5423 = vmatprep.subr.bf16.mxu0 0
    %5424 = vmatpush1.bf16.msra.mxu0 %v5392
    %5425 = vmatprep.subr.bf16.mxu0 0
    %5426 = vmatpush1.bf16.msra.mxu0 %v5391
    %5427 = vmatprep.subr.bf16.mxu0 0
    %5428 = vmatpush1.bf16.msra.mxu0 %v5390
    %5429 = vmatprep.subr.bf16.mxu0 0
    %5430 = vmatpush1.bf16.msra.mxu0 %v5389
    %5431 = vmatprep.subr.bf16.mxu0 0
    %5432 = vmatpush1.bf16.msra.mxu0 %v5388
    %5433 = vmatprep.subr.bf16.mxu0 0
    %5434 = vmatpush1.bf16.msra.mxu0 %v5387
    %5435 = vmatprep.subr.bf16.mxu0 0
    %5436 = vmatpush2.bf16.msra.mxu0 %v5402
    %5437 = vmatprep.subr.bf16.mxu0 0
    %5438 = vmatpush2.bf16.msra.mxu0 %v5401
    %5439 = vmatprep.subr.bf16.mxu0 0
    %5440 = vmatpush2.bf16.msra.mxu0 %v5400
    %5441 = vmatprep.subr.bf16.mxu0 0
    %5442 = vmatpush2.bf16.msra.mxu0 %v5399
    %5443 = vmatprep.subr.bf16.mxu0 0
    %5444 = vmatpush2.bf16.msra.mxu0 %v5398
    %5445 = vmatprep.subr.bf16.mxu0 0
    %5446 = vmatpush2.bf16.msra.mxu0 %v5397
    %5447 = vmatprep.subr.bf16.mxu0 0
    %5448 = vmatpush2.bf16.msra.mxu0 %v5396
    %5449 = vmatprep.subr.bf16.mxu0 0
    %5450 = vmatpush2.bf16.msra.mxu0 %v5395
    %5451 = vmatprep.mubr.bf16.mxu0 %v5286
    %5452 = vmatmul.mubr.bf16.gmra.mxu0 %v5285
    %v5453 = vpop.f32.mrf.mxu0
    %v5454 = vadd.f32 %v5322, %v5453
    %v5455 = vpop.f32.mrf.mxu0
    %v5456 = vpop.f32.mrf.mxu0
    %v5457 = vadd.f32 %v5322, %v5456
    %v5458 = vpop.f32.mrf.mxu0
    %5459 = vdwg.mxu0
    %v5460 = vadd.f32 %v5454, %v5127
    %v5461 = vadd.f32 %v5457, %v5128
    %5462 = vadd.xlane.f32.xlu0 %v5460
    %v5463 = vpop.xlane.xlu0 %5462
    %5464 = vadd.xlane.f32.xlu0 %v5461
    %v5465 = vpop.xlane.xlu0 %5464
    %v5466 = vmul.f32 %v5463, %v2649
    %v5467 = vmul.f32 %v5465, %v2649
    %v5468 = vsub.f32 %v5460, %v5466
    %v5469 = vsub.f32 %v5461, %v5467
    %v5470 = vmul.f32 %v5468, %v5468
    %v5471 = vmul.f32 %v5469, %v5469
    %5472 = vadd.xlane.f32.xlu0 %v5470
    %v5473 = vpop.xlane.xlu0 %5472
    %5474 = vadd.xlane.f32.xlu0 %v5471
    %v5475 = vpop.xlane.xlu0 %5474
    %v5476 = vmul.f32 %v5473, %v2649
    %v5477 = vmul.f32 %v5475, %v2649
    %v5478 = vadd.f32 %v5476, 1e-05
    %v5479 = vadd.f32 %v5477, 1e-05
    %v5480 = vrsqrt.pop %v5478
    %v5481 = vrsqrt.pop %v5479
    %v5482 = vmul.f32 %v5468, %v5480
    %v5483 = vmul.f32 %v5469, %v5481
    %v5484 = vlaneseq
    %v5485 = vshrl.u32 %v5484, 7
    %v5486 = vsub.s32 5, %v5485
    %v5487 = vrot.slane %v204, %v5486
    %v5488 = vmul.f32 %v5482, %v5487
    %v5489 = vmul.f32 %v5483, %v5487
    %v5490 = vlaneseq
    %v5491 = vshrl.u32 %v5490, 7
    %v5492 = vsub.s32 6, %v5491
    %v5493 = vrot.slane %v204, %v5492
    %v5494 = vadd.f32 %v5488, %v5493
    %v5495 = vadd.f32 %v5489, %v5493
    %5496 = vst [vmem:[#allocation20] sm:$0xff] %v5494
    %5497 = vst [vmem:[#allocation20 + $0x8] sm:$0xff] %v5495
    // Predicated region
    $region106: #{decoder_forward.1} parent=1 // pred_check
      _
    $region107: #{decoder_forward.1} parent=1 // pred_check_branch
      %5499 = sbr.rel (0) target = $region109
    $region108: #{decoder_forward.1} parent=1 // pred_region
      %s5501 = ssub.s32 256, 256
      %5502 = vsyncadd [#allocation4], %s5501
      %s5503 = sshll.u32 [#allocation20], 4
      %s5504 = int_to_ptr.vmem [resolvable:$true] %s5503
      %5509 = dma.vmem_to_hbm [thread:$0]  %s5504, 256, %s15, [#allocation4], 128, 128, 8
    $region109: #{decoder_forward.1} parent=1 // pred_fallthru
      _
    // Predicated region
    $region110: #{decoder_forward.1} parent=1 // pred_check
      _
    $region111: #{decoder_forward.1} parent=1 // pred_check_branch
      %5511 = sbr.rel (0) target = $region113
    $region112: #{decoder_forward.1} parent=1 // pred_region
      %5512 = dma.done [#allocation4], 256
    $region113: #{decoder_forward.1} parent=1 // pred_fallthru
      _
    %5513 = vsyncpa [#allocation3], 1
    %5514 = vsyncpa [#allocation6], 1
    %5515 = vsyncpa [#allocation9], 1
    %5516 = vsyncpa [#allocation12], 1
    %5517 = vsyncpa [#allocation15], 1
    %5518 = vsyncpa [#allocation18], 1
    %5519 = vsyncpa [#allocation4], 1

</llo_original>
